<compile_context>
chip_gen: v5e
topology: v5e:2x2
jax: 0.10.0
libtpu: 0.0.40
codegen_flags: <defaults>
</compile_context>

<pallas_src>
import numpy as np
import jax
import jax.numpy as jnp
from functools import partial
from jax.experimental import pallas as pl
from jax.experimental.pallas import tpu as pltpu


# ---------------------------------------------------------------------------
# Bilinear resize (align_corners=True), NCHW -> NCHW, as one Pallas kernel
# ---------------------------------------------------------------------------
def _interp_matrix(out_size, in_size):
    """(out_size, in_size) row-interpolation matrix, bilinear, align_corners=True."""
    if out_size == 1:
        src = np.zeros((1,), np.float64)
    else:
        src = np.arange(out_size, dtype=np.float64) * (in_size - 1) / (out_size - 1)
    i0 = np.clip(np.floor(src).astype(np.int64), 0, in_size - 1)
    i1 = np.minimum(i0 + 1, in_size - 1)
    w1 = (src - i0).astype(np.float32)
    w0 = 1.0 - w1
    a = np.zeros((out_size, in_size), np.float32)
    a[np.arange(out_size), i0] += w0
    a[np.arange(out_size), i1] += w1
    return a


def _resize_kernel(ahblk_ref, awt_ref, x_ref, o_ref):
    # x_ref:     (TN*H, W)      f32   streamed slab of TN images (rows stacked)
    # awt_ref:   (W, Wo)        bf16  resident width-interp matrix (transposed)
    # ahblk_ref: (TN*Ho, TN*H)  bf16  resident block-diag height-interp matrix
    # o_ref:     (TN*Ho, Wo)    bf16
    x = x_ref[...].astype(jnp.bfloat16)
    # width pass: one big matmul (M = TN*H)
    t = jnp.dot(x, awt_ref[...], preferred_element_type=jnp.float32)
    # height pass: kron(I_TN, Ah) left-multiply -> ONE matmul for the whole slab
    out = jnp.dot(ahblk_ref[...], t.astype(jnp.bfloat16),
                  preferred_element_type=jnp.float32)
    o_ref[...] = out.astype(o_ref.dtype)


def _pick_resize_slab(n, h_in, h_out, bytes_per_img):
    """Images per grid step: ~6 MiB input-block cap (2x in + 2x out double
    buffers stay inside v5e's 16 MiB scoped-VMEM default and well inside v7x's
    64 MiB VMEM), >=2 grid steps when possible (v7x: 2 TensorCores), and
    8-sublane-aligned row blocks."""
    cap = max(1, (6 << 20) // max(1, bytes_per_img))
    tn = min(n, cap)
    if n >= 2:
        tn = min(tn, pl.cdiv(n, 2))          # at least 2 parallel grid steps
    g = next(k for k in range(1, 9) if (k * h_in) % 8 == 0 and (k * h_out) % 8 == 0)
    tn = (tn // g) * g
    if tn <= 0 or tn > n:
        tn = n                               # single full block (block == array is legal)
    return tn


def bilinear_resize_nchw(x, out_hw, out_dtype=jnp.bfloat16):
    """F.interpolate(mode='bilinear', align_corners=True) on NCHW input.
    out[n] = Ah @ x[n] @ Aw^T, computed as two lane-dense 2-D matmuls per slab."""
    B, C, H, W = x.shape
    Ho, Wo = out_hw
    N = B * C
    tn = _pick_resize_slab(N, H, Ho, H * W * x.dtype.itemsize)

    ah = _interp_matrix(Ho, H)                              # (Ho, H)
    awt = np.ascontiguousarray(_interp_matrix(Wo, W).T)     # (W, Wo)
    # block-diagonal height matrix: applies Ah to every image of the slab in one matmul
    ahblk = jnp.asarray(np.kron(np.eye(tn, dtype=np.float32), ah), jnp.bfloat16)
    awt_b = jnp.asarray(awt, jnp.bfloat16)

    x2 = x.reshape(N * H, W)                                 # free (contiguous) reshape
    grid = pl.cdiv(N, tn)                                    # partial last block is masked
    out = pl.pallas_call(
        _resize_kernel,
        out_shape=jax.ShapeDtypeStruct((N * Ho, Wo), out_dtype),
        grid=(grid,),
        in_specs=[
            pl.BlockSpec((tn * Ho, tn * H), lambda i: (0, 0)),   # resident
            pl.BlockSpec((W, Wo), lambda i: (0, 0)),             # resident
            pl.BlockSpec((tn * H, W), lambda i: (i, 0)),          # streamed slabs
        ],
        out_specs=pl.BlockSpec((tn * Ho, Wo), lambda i: (i, 0)),
        compiler_params=pltpu.CompilerParams(dimension_semantics=("parallel",)),
    )(ahblk, awt_b, x2)
    return out.reshape(B, C, Ho, Wo)


# ---------------------------------------------------------------------------
# Conv 3x3 / stride 2 / pad 1 + bias + ReLU with the im2col folded in-kernel
# ---------------------------------------------------------------------------
def _conv3x3_s2_relu_kernel(x_ref, w_ref, b_ref, o_ref):
    # x_ref: (4, Hs, Ws, Cin) bf16  stride-2 parity grids of the padded image:
    #        x_ref[2*pi + pj, r, c, :] == x_pad[2*r + pi, 2*c + pj, :]
    # w_ref: (9, Cin, Cout)   bf16  per-tap weights, tap index = 3*di + dj
    # b_ref: (1, Cout)        f32
    # o_ref: (1, Ho, Wo, Cout)
    _, Ho, Wo, Cout = o_ref.shape
    acc = jnp.zeros((Ho, Wo, Cout), jnp.float32)
    # folded im2col: 9 unit-stride shifted windows, one matmul each, f32 accumulate
    for di in range(3):
        for dj in range(3):
            par = (di % 2) * 2 + (dj % 2)
            win = x_ref[par, pl.ds(di // 2, Ho), pl.ds(dj // 2, Wo), :]   # (Ho, Wo, Cin)
            acc = acc + jnp.dot(win, w_ref[3 * di + dj],
                                preferred_element_type=jnp.float32)
    acc = acc + b_ref[...]                     # (1, Cout) broadcasts over (Ho, Wo, Cout)
    o_ref[0] = jnp.maximum(acc, 0.0).astype(o_ref.dtype)


def conv3x3_s2_relu(x_nhwc, w_hwio, b, out_dtype=jnp.bfloat16):
    """3x3 / stride-2 / pad-1 conv + bias + ReLU.  One grid step per image; the
    output is written with the true Cout (no padded lanes, no post-slice)."""
    B, H, W, Cin = x_nhwc.shape
    Cout = w_hwio.shape[-1]
    Ho = (H - 1) // 2 + 1
    Wo = (W - 1) // 2 + 1
    Hs, Ws = Ho + 1, Wo + 1

    # Pad to even (2*Hs, 2*Ws) and split by stride-2 parity (space-to-depth).
    # This single ~1x-input XLA copy replaces the old ~2.25x im2col patches
    # round trip and keeps every in-kernel slice unit-stride.
    # TODO(synk): move the parity split in-kernel via 2-D strided pl.ds loads to
    # remove this last XLA pass once strided VMEM loads are verified on-target.
    xh = x_nhwc.astype(jnp.bfloat16)
    xp = jnp.pad(xh, ((0, 0), (1, 2 * Hs - H - 1), (1, 2 * Ws - W - 1), (0, 0)))
    xsd = (xp.reshape(B, Hs, 2, Ws, 2, Cin)
             .transpose(0, 2, 4, 1, 3, 5)
             .reshape(B * 4, Hs, Ws, Cin))

    w9 = w_hwio.astype(jnp.bfloat16).reshape(9, Cin, Cout)
    b2 = b.astype(jnp.float32).reshape(1, Cout)

    # Per-step VMEM: parity block + weights + bias + (Ho,Wo,Cout) f32 acc — a few
    # MiB even at 224^2 inputs, within every generation's scoped-VMEM default.
    return pl.pallas_call(
        _conv3x3_s2_relu_kernel,
        out_shape=jax.ShapeDtypeStruct((B, Ho, Wo, Cout), out_dtype),
        grid=(B,),                                              # B>=2 keeps both v7x TCs busy
        in_specs=[
            pl.BlockSpec((4, Hs, Ws, Cin), lambda bi: (bi, 0, 0, 0)),
            pl.BlockSpec((9, Cin, Cout), lambda bi: (0, 0, 0)),     # resident weights
            pl.BlockSpec((1, Cout), lambda bi: (0, 0)),             # resident bias
        ],
        out_specs=pl.BlockSpec((1, Ho, Wo, Cout), lambda bi: (bi, 0, 0, 0)),
        compiler_params=pltpu.CompilerParams(dimension_semantics=("parallel",)),
    )(xsd, w9, b2)


# ---------------------------------------------------------------------------
# Synthetic backbone + Encoder forward
# ---------------------------------------------------------------------------
def init_backbone(key, in_ch=3, widths=(8, 16, 32, 64)):
    # TODO(synk): stands in for the pretrained timm backbone (features_only,
    # out_indices=[3], stride 16); a deterministic 4-stage conv stack is used.
    params = []
    c = in_ch
    for co in widths:
        key, kw = jax.random.split(key)
        fan_in = 3 * 3 * c
        w = (jax.random.normal(kw, (3, 3, c, co), jnp.float32)
             * np.sqrt(2.0 / fan_in)).astype(jnp.bfloat16)
        bias = jnp.zeros((co,), jnp.float32)
        params.append((w, bias))
        c = co
    return params


def feature_extractor(x_nchw, params):
    # one NCHW->NHWC transpose per level, done in bf16 (halves transpose traffic)
    h = jnp.transpose(x_nchw.astype(jnp.bfloat16), (0, 2, 3, 1))
    for (w, bias) in params:
        h = conv3x3_s2_relu(h, w, bias)          # stays NHWC bf16 between stages
    # tiny stride-16 feature map back to NCHW f32 (matches the reference layout)
    return jnp.transpose(h, (0, 3, 1, 2)).astype(jnp.float32)


@partial(jax.jit, static_argnames=("img_size", "feature_levels"))
def encoder_forward(x, params, *, img_size, feature_levels):
    outs = []
    for s in range(feature_levels):
        if s > 0:
            size = img_size // (2 ** s)
            x_ = bilinear_resize_nchw(x, (size, size))   # bf16 feeds the bf16 conv stack
        else:
            x_ = x
        outs.append(feature_extractor(x_, params))       # list of feature maps
    return outs


if __name__ == "__main__":
    key = jax.random.PRNGKey(0)
    kx, kp = jax.random.split(key)

    B, C, img_size = 2, 3, 16
    feature_levels = 2

    x = jax.random.normal(kx, (B, C, img_size, img_size), jnp.float32)
    params = init_backbone(kp, in_ch=C)

    outs = encoder_forward(x, params, img_size=img_size, feature_levels=feature_levels)
    outs = [jax.block_until_ready(o) for o in outs]

    assert len(outs) == feature_levels
    for o in outs:
        assert o.ndim == 4 and o.shape[0] == B and o.shape[1] == 64
    print("KERNEL_OK")
</pallas_src>

<mosaic_0001>
module attributes {stable_mosaic.version = 11 : i64} {
  func.func @_conv3x3_s2_relu_kernel(%arg0: i32, %arg1: memref<4x9x9x3xbf16, #tpu.memory_space<vmem>>, %arg2: memref<9x3x8xbf16, #tpu.memory_space<vmem>>, %arg3: memref<1x8xf32, #tpu.memory_space<vmem>>, %arg4: memref<1x8x8x8xbf16, #tpu.memory_space<vmem>>) attributes {dimension_semantics = [#tpu.dimension_semantics<parallel>], iteration_bounds = array<i64: 2>, scalar_prefetch = 0 : i64, scratch_operands = 0 : i64, tpu.core_type = #tpu.core_type<tc>, window_params = [{transform_indices = @transform_0, window_bounds = array<i64: 4, 9, 9, 3>}, {pipeline_mode = #tpu.pipeline_mode<synchronous>, transform_indices = @transform_1, window_bounds = array<i64: 9, 3, 8>}, {pipeline_mode = #tpu.pipeline_mode<synchronous>, transform_indices = @transform_2, window_bounds = array<i64: 1, 8>}, {transform_indices = @transform_3, window_bounds = array<i64: 1, 8, 8, 8>}]} {
    %cst = arith.constant 0.000000e+00 : f32
    %0 = vector.broadcast %cst : f32 to vector<8x8x8xf32>
    %c0 = arith.constant 0 : index
    %c0_0 = arith.constant 0 : index
    %c0_1 = arith.constant 0 : index
    %c0_2 = arith.constant 0 : index
    %1 = vector.load %arg1[%c0, %c0_0, %c0_1, %c0_2] : memref<4x9x9x3xbf16, #tpu.memory_space<vmem>>, vector<1x8x8x3xbf16>
    %2 = vector.shape_cast %1 : vector<1x8x8x3xbf16> to vector<8x8x3xbf16>
    %c0_3 = arith.constant 0 : index
    %c0_4 = arith.constant 0 : index
    %c0_5 = arith.constant 0 : index
    %3 = vector.load %arg2[%c0_3, %c0_4, %c0_5] : memref<9x3x8xbf16, #tpu.memory_space<vmem>>, vector<1x3x8xbf16>
    %4 = vector.shape_cast %3 : vector<1x3x8xbf16> to vector<3x8xbf16>
    %cst_6 = arith.constant dense<0.000000e+00> : vector<8x8x8xf32>
    %5 = tpu.matmul %2, %4, %cst_6 {dimension_numbers = #tpu.dot_dimension_numbers<[2], [0], [0, 1], [1], [0, 0, 0, 1, 1, 1], [], []>} : vector<8x8x3xbf16>, vector<3x8xbf16>, vector<8x8x8xf32> -> vector<8x8x8xf32>
    %6 = arith.addf %0, %5 : vector<8x8x8xf32>
    %c1 = arith.constant 1 : index
    %c0_7 = arith.constant 0 : index
    %c0_8 = arith.constant 0 : index
    %c0_9 = arith.constant 0 : index
    %7 = vector.load %arg1[%c1, %c0_7, %c0_8, %c0_9] : memref<4x9x9x3xbf16, #tpu.memory_space<vmem>>, vector<1x8x8x3xbf16>
    %8 = vector.shape_cast %7 : vector<1x8x8x3xbf16> to vector<8x8x3xbf16>
    %c1_10 = arith.constant 1 : index
    %c0_11 = arith.constant 0 : index
    %c0_12 = arith.constant 0 : index
    %9 = vector.load %arg2[%c1_10, %c0_11, %c0_12] : memref<9x3x8xbf16, #tpu.memory_space<vmem>>, vector<1x3x8xbf16>
    %10 = vector.shape_cast %9 : vector<1x3x8xbf16> to vector<3x8xbf16>
    %cst_13 = arith.constant dense<0.000000e+00> : vector<8x8x8xf32>
    %11 = tpu.matmul %8, %10, %cst_13 {dimension_numbers = #tpu.dot_dimension_numbers<[2], [0], [0, 1], [1], [0, 0, 0, 1, 1, 1], [], []>} : vector<8x8x3xbf16>, vector<3x8xbf16>, vector<8x8x8xf32> -> vector<8x8x8xf32>
    %12 = arith.addf %6, %11 : vector<8x8x8xf32>
    %c0_14 = arith.constant 0 : index
    %c0_15 = arith.constant 0 : index
    %c1_16 = arith.constant 1 : index
    %c0_17 = arith.constant 0 : index
    %13 = vector.load %arg1[%c0_14, %c0_15, %c1_16, %c0_17] : memref<4x9x9x3xbf16, #tpu.memory_space<vmem>>, vector<1x8x8x3xbf16>
    %14 = vector.shape_cast %13 : vector<1x8x8x3xbf16> to vector<8x8x3xbf16>
    %c2 = arith.constant 2 : index
    %c0_18 = arith.constant 0 : index
    %c0_19 = arith.constant 0 : index
    %15 = vector.load %arg2[%c2, %c0_18, %c0_19] : memref<9x3x8xbf16, #tpu.memory_space<vmem>>, vector<1x3x8xbf16>
    %16 = vector.shape_cast %15 : vector<1x3x8xbf16> to vector<3x8xbf16>
    %cst_20 = arith.constant dense<0.000000e+00> : vector<8x8x8xf32>
    %17 = tpu.matmul %14, %16, %cst_20 {dimension_numbers = #tpu.dot_dimension_numbers<[2], [0], [0, 1], [1], [0, 0, 0, 1, 1, 1], [], []>} : vector<8x8x3xbf16>, vector<3x8xbf16>, vector<8x8x8xf32> -> vector<8x8x8xf32>
    %18 = arith.addf %12, %17 : vector<8x8x8xf32>
    %c2_21 = arith.constant 2 : index
    %c0_22 = arith.constant 0 : index
    %c0_23 = arith.constant 0 : index
    %c0_24 = arith.constant 0 : index
    %19 = vector.load %arg1[%c2_21, %c0_22, %c0_23, %c0_24] : memref<4x9x9x3xbf16, #tpu.memory_space<vmem>>, vector<1x8x8x3xbf16>
    %20 = vector.shape_cast %19 : vector<1x8x8x3xbf16> to vector<8x8x3xbf16>
    %c3 = arith.constant 3 : index
    %c0_25 = arith.constant 0 : index
    %c0_26 = arith.constant 0 : index
    %21 = vector.load %arg2[%c3, %c0_25, %c0_26] : memref<9x3x8xbf16, #tpu.memory_space<vmem>>, vector<1x3x8xbf16>
    %22 = vector.shape_cast %21 : vector<1x3x8xbf16> to vector<3x8xbf16>
    %cst_27 = arith.constant dense<0.000000e+00> : vector<8x8x8xf32>
    %23 = tpu.matmul %20, %22, %cst_27 {dimension_numbers = #tpu.dot_dimension_numbers<[2], [0], [0, 1], [1], [0, 0, 0, 1, 1, 1], [], []>} : vector<8x8x3xbf16>, vector<3x8xbf16>, vector<8x8x8xf32> -> vector<8x8x8xf32>
    %24 = arith.addf %18, %23 : vector<8x8x8xf32>
    %c3_28 = arith.constant 3 : index
    %c0_29 = arith.constant 0 : index
    %c0_30 = arith.constant 0 : index
    %c0_31 = arith.constant 0 : index
    %25 = vector.load %arg1[%c3_28, %c0_29, %c0_30, %c0_31] : memref<4x9x9x3xbf16, #tpu.memory_space<vmem>>, vector<1x8x8x3xbf16>
    %26 = vector.shape_cast %25 : vector<1x8x8x3xbf16> to vector<8x8x3xbf16>
    %c4 = arith.constant 4 : index
    %c0_32 = arith.constant 0 : index
    %c0_33 = arith.constant 0 : index
    %27 = vector.load %arg2[%c4, %c0_32, %c0_33] : memref<9x3x8xbf16, #tpu.memory_space<vmem>>, vector<1x3x8xbf16>
    %28 = vector.shape_cast %27 : vector<1x3x8xbf16> to vector<3x8xbf16>
    %cst_34 = arith.constant dense<0.000000e+00> : vector<8x8x8xf32>
    %29 = tpu.matmul %26, %28, %cst_34 {dimension_numbers = #tpu.dot_dimension_numbers<[2], [0], [0, 1], [1], [0, 0, 0, 1, 1, 1], [], []>} : vector<8x8x3xbf16>, vector<3x8xbf16>, vector<8x8x8xf32> -> vector<8x8x8xf32>
    %30 = arith.addf %24, %29 : vector<8x8x8xf32>
    %c2_35 = arith.constant 2 : index
    %c0_36 = arith.constant 0 : index
    %c1_37 = arith.constant 1 : index
    %c0_38 = arith.constant 0 : index
    %31 = vector.load %arg1[%c2_35, %c0_36, %c1_37, %c0_38] : memref<4x9x9x3xbf16, #tpu.memory_space<vmem>>, vector<1x8x8x3xbf16>
    %32 = vector.shape_cast %31 : vector<1x8x8x3xbf16> to vector<8x8x3xbf16>
    %c5 = arith.constant 5 : index
    %c0_39 = arith.constant 0 : index
    %c0_40 = arith.constant 0 : index
    %33 = vector.load %arg2[%c5, %c0_39, %c0_40] : memref<9x3x8xbf16, #tpu.memory_space<vmem>>, vector<1x3x8xbf16>
    %34 = vector.shape_cast %33 : vector<1x3x8xbf16> to vector<3x8xbf16>
    %cst_41 = arith.constant dense<0.000000e+00> : vector<8x8x8xf32>
    %35 = tpu.matmul %32, %34, %cst_41 {dimension_numbers = #tpu.dot_dimension_numbers<[2], [0], [0, 1], [1], [0, 0, 0, 1, 1, 1], [], []>} : vector<8x8x3xbf16>, vector<3x8xbf16>, vector<8x8x8xf32> -> vector<8x8x8xf32>
    %36 = arith.addf %30, %35 : vector<8x8x8xf32>
    %c0_42 = arith.constant 0 : index
    %c1_43 = arith.constant 1 : index
    %c0_44 = arith.constant 0 : index
    %c0_45 = arith.constant 0 : index
    %37 = vector.load %arg1[%c0_42, %c1_43, %c0_44, %c0_45] : memref<4x9x9x3xbf16, #tpu.memory_space<vmem>>, vector<1x8x8x3xbf16>
    %38 = vector.shape_cast %37 : vector<1x8x8x3xbf16> to vector<8x8x3xbf16>
    %c6 = arith.constant 6 : index
    %c0_46 = arith.constant 0 : index
    %c0_47 = arith.constant 0 : index
    %39 = vector.load %arg2[%c6, %c0_46, %c0_47] : memref<9x3x8xbf16, #tpu.memory_space<vmem>>, vector<1x3x8xbf16>
    %40 = vector.shape_cast %39 : vector<1x3x8xbf16> to vector<3x8xbf16>
    %cst_48 = arith.constant dense<0.000000e+00> : vector<8x8x8xf32>
    %41 = tpu.matmul %38, %40, %cst_48 {dimension_numbers = #tpu.dot_dimension_numbers<[2], [0], [0, 1], [1], [0, 0, 0, 1, 1, 1], [], []>} : vector<8x8x3xbf16>, vector<3x8xbf16>, vector<8x8x8xf32> -> vector<8x8x8xf32>
    %42 = arith.addf %36, %41 : vector<8x8x8xf32>
    %c1_49 = arith.constant 1 : index
    %c1_50 = arith.constant 1 : index
    %c0_51 = arith.constant 0 : index
    %c0_52 = arith.constant 0 : index
    %43 = vector.load %arg1[%c1_49, %c1_50, %c0_51, %c0_52] : memref<4x9x9x3xbf16, #tpu.memory_space<vmem>>, vector<1x8x8x3xbf16>
    %44 = vector.shape_cast %43 : vector<1x8x8x3xbf16> to vector<8x8x3xbf16>
    %c7 = arith.constant 7 : index
    %c0_53 = arith.constant 0 : index
    %c0_54 = arith.constant 0 : index
    %45 = vector.load %arg2[%c7, %c0_53, %c0_54] : memref<9x3x8xbf16, #tpu.memory_space<vmem>>, vector<1x3x8xbf16>
    %46 = vector.shape_cast %45 : vector<1x3x8xbf16> to vector<3x8xbf16>
    %cst_55 = arith.constant dense<0.000000e+00> : vector<8x8x8xf32>
    %47 = tpu.matmul %44, %46, %cst_55 {dimension_numbers = #tpu.dot_dimension_numbers<[2], [0], [0, 1], [1], [0, 0, 0, 1, 1, 1], [], []>} : vector<8x8x3xbf16>, vector<3x8xbf16>, vector<8x8x8xf32> -> vector<8x8x8xf32>
    %48 = arith.addf %42, %47 : vector<8x8x8xf32>
    %c0_56 = arith.constant 0 : index
    %c1_57 = arith.constant 1 : index
    %c1_58 = arith.constant 1 : index
    %c0_59 = arith.constant 0 : index
    %49 = vector.load %arg1[%c0_56, %c1_57, %c1_58, %c0_59] : memref<4x9x9x3xbf16, #tpu.memory_space<vmem>>, vector<1x8x8x3xbf16>
    %50 = vector.shape_cast %49 : vector<1x8x8x3xbf16> to vector<8x8x3xbf16>
    %c8 = arith.constant 8 : index
    %c0_60 = arith.constant 0 : index
    %c0_61 = arith.constant 0 : index
    %51 = vector.load %arg2[%c8, %c0_60, %c0_61] : memref<9x3x8xbf16, #tpu.memory_space<vmem>>, vector<1x3x8xbf16>
    %52 = vector.shape_cast %51 : vector<1x3x8xbf16> to vector<3x8xbf16>
    %cst_62 = arith.constant dense<0.000000e+00> : vector<8x8x8xf32>
    %53 = tpu.matmul %50, %52, %cst_62 {dimension_numbers = #tpu.dot_dimension_numbers<[2], [0], [0, 1], [1], [0, 0, 0, 1, 1, 1], [], []>} : vector<8x8x3xbf16>, vector<3x8xbf16>, vector<8x8x8xf32> -> vector<8x8x8xf32>
    %54 = arith.addf %48, %53 : vector<8x8x8xf32>
    %c0_63 = arith.constant 0 : index
    %c0_64 = arith.constant 0 : index
    %55 = vector.load %arg3[%c0_63, %c0_64] : memref<1x8xf32, #tpu.memory_space<vmem>>, vector<1x8xf32>
    %56 = vector.shape_cast %55 : vector<1x8xf32> to vector<1x1x8xf32>
    %57 = vector.broadcast %56 : vector<1x1x8xf32> to vector<8x8x8xf32>
    %58 = arith.addf %54, %57 : vector<8x8x8xf32>
    %cst_65 = arith.constant 0.000000e+00 : f32
    %59 = vector.broadcast %cst_65 : f32 to vector<8x8x8xf32>
    %60 = arith.maximumf %58, %59 : vector<8x8x8xf32>
    %61 = arith.truncf %60 : vector<8x8x8xf32> to vector<8x8x8xbf16>
    %c0_66 = arith.constant 0 : index
    %c0_67 = arith.constant 0 : index
    %c0_68 = arith.constant 0 : index
    %c0_69 = arith.constant 0 : index
    %62 = vector.load %arg4[%c0_66, %c0_67, %c0_68, %c0_69] : memref<1x8x8x8xbf16, #tpu.memory_space<vmem>>, vector<1x8x8x8xbf16>
    %63 = vector.shape_cast %62 : vector<1x8x8x8xbf16> to vector<8x8x8xbf16>
    %64 = vector.shape_cast %61 : vector<8x8x8xbf16> to vector<1x8x8x8xbf16>
    tpu.vector_store %arg4[%c0_66, %c0_67, %c0_68, %c0_69], %64 {strides = array<i32>} : memref<1x8x8x8xbf16, #tpu.memory_space<vmem>>, vector<1x8x8x8xbf16>,
    return
  }
  func.func @transform_0(%arg0: i32) -> (i32, i32, i32, i32) {
    %c0_i32 = arith.constant 0 : i32
    %c0_i32_0 = arith.constant 0 : i32
    %c0_i32_1 = arith.constant 0 : i32
    %c0_i32_2 = arith.constant 0 : i32
    return %arg0, %c0_i32, %c0_i32_0, %c0_i32_1 : i32, i32, i32, i32
  }
  func.func @transform_1(%arg0: i32) -> (i32, i32, i32) {
    %c0_i32 = arith.constant 0 : i32
    %c0_i32_0 = arith.constant 0 : i32
    %c0_i32_1 = arith.constant 0 : i32
    %c0_i32_2 = arith.constant 0 : i32
    return %c0_i32, %c0_i32_0, %c0_i32_1 : i32, i32, i32
  }
  func.func @transform_2(%arg0: i32) -> (i32, i32) {
    %c0_i32 = arith.constant 0 : i32
    %c0_i32_0 = arith.constant 0 : i32
    %c0_i32_1 = arith.constant 0 : i32
    return %c0_i32, %c0_i32_0 : i32, i32
  }
  func.func @transform_3(%arg0: i32) -> (i32, i32, i32, i32) {
    %c0_i32 = arith.constant 0 : i32
    %c0_i32_0 = arith.constant 0 : i32
    %c0_i32_1 = arith.constant 0 : i32
    %c0_i32_2 = arith.constant 0 : i32
    return %arg0, %c0_i32, %c0_i32_0, %c0_i32_1 : i32, i32, i32, i32
  }
}

module attributes {stable_mosaic.version = 11 : i64} {
  func.func @_conv3x3_s2_relu_kernel(%arg0: i32, %arg1: memref<4x3x3x16xbf16, #tpu.memory_space<vmem>>, %arg2: memref<9x16x32xbf16, #tpu.memory_space<vmem>>, %arg3: memref<1x32xf32, #tpu.memory_space<vmem>>, %arg4: memref<1x2x2x32xbf16, #tpu.memory_space<vmem>>) attributes {dimension_semantics = [#tpu.dimension_semantics<parallel>], iteration_bounds = array<i64: 2>, scalar_prefetch = 0 : i64, scratch_operands = 0 : i64, tpu.core_type = #tpu.core_type<tc>, window_params = [{transform_indices = @transform_0, window_bounds = array<i64: 4, 3, 3, 16>}, {pipeline_mode = #tpu.pipeline_mode<synchronous>, transform_indices = @transform_1, window_bounds = array<i64: 9, 16, 32>}, {pipeline_mode = #tpu.pipeline_mode<synchronous>, transform_indices = @transform_2, window_bounds = array<i64: 1, 32>}, {transform_indices = @transform_3, window_bounds = array<i64: 1, 2, 2, 32>}]} {
    %cst = arith.constant 0.000000e+00 : f32
    %0 = vector.broadcast %cst : f32 to vector<2x2x32xf32>
    %c0 = arith.constant 0 : index
    %c0_0 = arith.constant 0 : index
    %c0_1 = arith.constant 0 : index
    %c0_2 = arith.constant 0 : index
    %1 = vector.load %arg1[%c0, %c0_0, %c0_1, %c0_2] : memref<4x3x3x16xbf16, #tpu.memory_space<vmem>>, vector<1x2x2x16xbf16>
    %2 = vector.shape_cast %1 : vector<1x2x2x16xbf16> to vector<2x2x16xbf16>
    %c0_3 = arith.constant 0 : index
    %c0_4 = arith.constant 0 : index
    %c0_5 = arith.constant 0 : index
    %3 = vector.load %arg2[%c0_3, %c0_4, %c0_5] : memref<9x16x32xbf16, #tpu.memory_space<vmem>>, vector<1x16x32xbf16>
    %4 = vector.shape_cast %3 : vector<1x16x32xbf16> to vector<16x32xbf16>
    %cst_6 = arith.constant dense<0.000000e+00> : vector<2x2x32xf32>
    %5 = tpu.matmul %2, %4, %cst_6 {dimension_numbers = #tpu.dot_dimension_numbers<[2], [0], [0, 1], [1], [0, 0, 0, 1, 1, 1], [], []>} : vector<2x2x16xbf16>, vector<16x32xbf16>, vector<2x2x32xf32> -> vector<2x2x32xf32>
    %6 = arith.addf %0, %5 : vector<2x2x32xf32>
    %c1 = arith.constant 1 : index
    %c0_7 = arith.constant 0 : index
    %c0_8 = arith.constant 0 : index
    %c0_9 = arith.constant 0 : index
    %7 = vector.load %arg1[%c1, %c0_7, %c0_8, %c0_9] : memref<4x3x3x16xbf16, #tpu.memory_space<vmem>>, vector<1x2x2x16xbf16>
    %8 = vector.shape_cast %7 : vector<1x2x2x16xbf16> to vector<2x2x16xbf16>
    %c1_10 = arith.constant 1 : index
    %c0_11 = arith.constant 0 : index
    %c0_12 = arith.constant 0 : index
    %9 = vector.load %arg2[%c1_10, %c0_11, %c0_12] : memref<9x16x32xbf16, #tpu.memory_space<vmem>>, vector<1x16x32xbf16>
    %10 = vector.shape_cast %9 : vector<1x16x32xbf16> to vector<16x32xbf16>
    %cst_13 = arith.constant dense<0.000000e+00> : vector<2x2x32xf32>
    %11 = tpu.matmul %8, %10, %cst_13 {dimension_numbers = #tpu.dot_dimension_numbers<[2], [0], [0, 1], [1], [0, 0, 0, 1, 1, 1], [], []>} : vector<2x2x16xbf16>, vector<16x32xbf16>, vector<2x2x32xf32> -> vector<2x2x32xf32>
    %12 = arith.addf %6, %11 : vector<2x2x32xf32>
    %c0_14 = arith.constant 0 : index
    %c0_15 = arith.constant 0 : index
    %c1_16 = arith.constant 1 : index
    %c0_17 = arith.constant 0 : index
    %13 = vector.load %arg1[%c0_14, %c0_15, %c1_16, %c0_17] : memref<4x3x3x16xbf16, #tpu.memory_space<vmem>>, vector<1x2x2x16xbf16>
    %14 = vector.shape_cast %13 : vector<1x2x2x16xbf16> to vector<2x2x16xbf16>
    %c2 = arith.constant 2 : index
    %c0_18 = arith.constant 0 : index
    %c0_19 = arith.constant 0 : index
    %15 = vector.load %arg2[%c2, %c0_18, %c0_19] : memref<9x16x32xbf16, #tpu.memory_space<vmem>>, vector<1x16x32xbf16>
    %16 = vector.shape_cast %15 : vector<1x16x32xbf16> to vector<16x32xbf16>
    %cst_20 = arith.constant dense<0.000000e+00> : vector<2x2x32xf32>
    %17 = tpu.matmul %14, %16, %cst_20 {dimension_numbers = #tpu.dot_dimension_numbers<[2], [0], [0, 1], [1], [0, 0, 0, 1, 1, 1], [], []>} : vector<2x2x16xbf16>, vector<16x32xbf16>, vector<2x2x32xf32> -> vector<2x2x32xf32>
    %18 = arith.addf %12, %17 : vector<2x2x32xf32>
    %c2_21 = arith.constant 2 : index
    %c0_22 = arith.constant 0 : index
    %c0_23 = arith.constant 0 : index
    %c0_24 = arith.constant 0 : index
    %19 = vector.load %arg1[%c2_21, %c0_22, %c0_23, %c0_24] : memref<4x3x3x16xbf16, #tpu.memory_space<vmem>>, vector<1x2x2x16xbf16>
    %20 = vector.shape_cast %19 : vector<1x2x2x16xbf16> to vector<2x2x16xbf16>
    %c3 = arith.constant 3 : index
    %c0_25 = arith.constant 0 : index
    %c0_26 = arith.constant 0 : index
    %21 = vector.load %arg2[%c3, %c0_25, %c0_26] : memref<9x16x32xbf16, #tpu.memory_space<vmem>>, vector<1x16x32xbf16>
    %22 = vector.shape_cast %21 : vector<1x16x32xbf16> to vector<16x32xbf16>
    %cst_27 = arith.constant dense<0.000000e+00> : vector<2x2x32xf32>
    %23 = tpu.matmul %20, %22, %cst_27 {dimension_numbers = #tpu.dot_dimension_numbers<[2], [0], [0, 1], [1], [0, 0, 0, 1, 1, 1], [], []>} : vector<2x2x16xbf16>, vector<16x32xbf16>, vector<2x2x32xf32> -> vector<2x2x32xf32>
    %24 = arith.addf %18, %23 : vector<2x2x32xf32>
    %c3_28 = arith.constant 3 : index
    %c0_29 = arith.constant 0 : index
    %c0_30 = arith.constant 0 : index
    %c0_31 = arith.constant 0 : index
    %25 = vector.load %arg1[%c3_28, %c0_29, %c0_30, %c0_31] : memref<4x3x3x16xbf16, #tpu.memory_space<vmem>>, vector<1x2x2x16xbf16>
    %26 = vector.shape_cast %25 : vector<1x2x2x16xbf16> to vector<2x2x16xbf16>
    %c4 = arith.constant 4 : index
    %c0_32 = arith.constant 0 : index
    %c0_33 = arith.constant 0 : index
    %27 = vector.load %arg2[%c4, %c0_32, %c0_33] : memref<9x16x32xbf16, #tpu.memory_space<vmem>>, vector<1x16x32xbf16>
    %28 = vector.shape_cast %27 : vector<1x16x32xbf16> to vector<16x32xbf16>
    %cst_34 = arith.constant dense<0.000000e+00> : vector<2x2x32xf32>
    %29 = tpu.matmul %26, %28, %cst_34 {dimension_numbers = #tpu.dot_dimension_numbers<[2], [0], [0, 1], [1], [0, 0, 0, 1, 1, 1], [], []>} : vector<2x2x16xbf16>, vector<16x32xbf16>, vector<2x2x32xf32> -> vector<2x2x32xf32>
    %30 = arith.addf %24, %29 : vector<2x2x32xf32>
    %c2_35 = arith.constant 2 : index
    %c0_36 = arith.constant 0 : index
    %c1_37 = arith.constant 1 : index
    %c0_38 = arith.constant 0 : index
    %31 = vector.load %arg1[%c2_35, %c0_36, %c1_37, %c0_38] : memref<4x3x3x16xbf16, #tpu.memory_space<vmem>>, vector<1x2x2x16xbf16>
    %32 = vector.shape_cast %31 : vector<1x2x2x16xbf16> to vector<2x2x16xbf16>
    %c5 = arith.constant 5 : index
    %c0_39 = arith.constant 0 : index
    %c0_40 = arith.constant 0 : index
    %33 = vector.load %arg2[%c5, %c0_39, %c0_40] : memref<9x16x32xbf16, #tpu.memory_space<vmem>>, vector<1x16x32xbf16>
    %34 = vector.shape_cast %33 : vector<1x16x32xbf16> to vector<16x32xbf16>
    %cst_41 = arith.constant dense<0.000000e+00> : vector<2x2x32xf32>
    %35 = tpu.matmul %32, %34, %cst_41 {dimension_numbers = #tpu.dot_dimension_numbers<[2], [0], [0, 1], [1], [0, 0, 0, 1, 1, 1], [], []>} : vector<2x2x16xbf16>, vector<16x32xbf16>, vector<2x2x32xf32> -> vector<2x2x32xf32>
    %36 = arith.addf %30, %35 : vector<2x2x32xf32>
    %c0_42 = arith.constant 0 : index
    %c1_43 = arith.constant 1 : index
    %c0_44 = arith.constant 0 : index
    %c0_45 = arith.constant 0 : index
    %37 = vector.load %arg1[%c0_42, %c1_43, %c0_44, %c0_45] : memref<4x3x3x16xbf16, #tpu.memory_space<vmem>>, vector<1x2x2x16xbf16>
    %38 = vector.shape_cast %37 : vector<1x2x2x16xbf16> to vector<2x2x16xbf16>
    %c6 = arith.constant 6 : index
    %c0_46 = arith.constant 0 : index
    %c0_47 = arith.constant 0 : index
    %39 = vector.load %arg2[%c6, %c0_46, %c0_47] : memref<9x16x32xbf16, #tpu.memory_space<vmem>>, vector<1x16x32xbf16>
    %40 = vector.shape_cast %39 : vector<1x16x32xbf16> to vector<16x32xbf16>
    %cst_48 = arith.constant dense<0.000000e+00> : vector<2x2x32xf32>
    %41 = tpu.matmul %38, %40, %cst_48 {dimension_numbers = #tpu.dot_dimension_numbers<[2], [0], [0, 1], [1], [0, 0, 0, 1, 1, 1], [], []>} : vector<2x2x16xbf16>, vector<16x32xbf16>, vector<2x2x32xf32> -> vector<2x2x32xf32>
    %42 = arith.addf %36, %41 : vector<2x2x32xf32>
    %c1_49 = arith.constant 1 : index
    %c1_50 = arith.constant 1 : index
    %c0_51 = arith.constant 0 : index
    %c0_52 = arith.constant 0 : index
    %43 = vector.load %arg1[%c1_49, %c1_50, %c0_51, %c0_52] : memref<4x3x3x16xbf16, #tpu.memory_space<vmem>>, vector<1x2x2x16xbf16>
    %44 = vector.shape_cast %43 : vector<1x2x2x16xbf16> to vector<2x2x16xbf16>
    %c7 = arith.constant 7 : index
    %c0_53 = arith.constant 0 : index
    %c0_54 = arith.constant 0 : index
    %45 = vector.load %arg2[%c7, %c0_53, %c0_54] : memref<9x16x32xbf16, #tpu.memory_space<vmem>>, vector<1x16x32xbf16>
    %46 = vector.shape_cast %45 : vector<1x16x32xbf16> to vector<16x32xbf16>
    %cst_55 = arith.constant dense<0.000000e+00> : vector<2x2x32xf32>
    %47 = tpu.matmul %44, %46, %cst_55 {dimension_numbers = #tpu.dot_dimension_numbers<[2], [0], [0, 1], [1], [0, 0, 0, 1, 1, 1], [], []>} : vector<2x2x16xbf16>, vector<16x32xbf16>, vector<2x2x32xf32> -> vector<2x2x32xf32>
    %48 = arith.addf %42, %47 : vector<2x2x32xf32>
    %c0_56 = arith.constant 0 : index
    %c1_57 = arith.constant 1 : index
    %c1_58 = arith.constant 1 : index
    %c0_59 = arith.constant 0 : index
    %49 = vector.load %arg1[%c0_56, %c1_57, %c1_58, %c0_59] : memref<4x3x3x16xbf16, #tpu.memory_space<vmem>>, vector<1x2x2x16xbf16>
    %50 = vector.shape_cast %49 : vector<1x2x2x16xbf16> to vector<2x2x16xbf16>
    %c8 = arith.constant 8 : index
    %c0_60 = arith.constant 0 : index
    %c0_61 = arith.constant 0 : index
    %51 = vector.load %arg2[%c8, %c0_60, %c0_61] : memref<9x16x32xbf16, #tpu.memory_space<vmem>>, vector<1x16x32xbf16>
    %52 = vector.shape_cast %51 : vector<1x16x32xbf16> to vector<16x32xbf16>
    %cst_62 = arith.constant dense<0.000000e+00> : vector<2x2x32xf32>
    %53 = tpu.matmul %50, %52, %cst_62 {dimension_numbers = #tpu.dot_dimension_numbers<[2], [0], [0, 1], [1], [0, 0, 0, 1, 1, 1], [], []>} : vector<2x2x16xbf16>, vector<16x32xbf16>, vector<2x2x32xf32> -> vector<2x2x32xf32>
    %54 = arith.addf %48, %53 : vector<2x2x32xf32>
    %c0_63 = arith.constant 0 : index
    %c0_64 = arith.constant 0 : index
    %55 = vector.load %arg3[%c0_63, %c0_64] : memref<1x32xf32, #tpu.memory_space<vmem>>, vector<1x32xf32>
    %56 = vector.shape_cast %55 : vector<1x32xf32> to vector<1x1x32xf32>
    %57 = vector.broadcast %56 : vector<1x1x32xf32> to vector<2x2x32xf32>
    %58 = arith.addf %54, %57 : vector<2x2x32xf32>
    %cst_65 = arith.constant 0.000000e+00 : f32
    %59 = vector.broadcast %cst_65 : f32 to vector<2x2x32xf32>
    %60 = arith.maximumf %58, %59 : vector<2x2x32xf32>
    %61 = arith.truncf %60 : vector<2x2x32xf32> to vector<2x2x32xbf16>
    %c0_66 = arith.constant 0 : index
    %c0_67 = arith.constant 0 : index
    %c0_68 = arith.constant 0 : index
    %c0_69 = arith.constant 0 : index
    %62 = vector.load %arg4[%c0_66, %c0_67, %c0_68, %c0_69] : memref<1x2x2x32xbf16, #tpu.memory_space<vmem>>, vector<1x2x2x32xbf16>
    %63 = vector.shape_cast %62 : vector<1x2x2x32xbf16> to vector<2x2x32xbf16>
    %64 = vector.shape_cast %61 : vector<2x2x32xbf16> to vector<1x2x2x32xbf16>
    tpu.vector_store %arg4[%c0_66, %c0_67, %c0_68, %c0_69], %64 {strides = array<i32>} : memref<1x2x2x32xbf16, #tpu.memory_space<vmem>>, vector<1x2x2x32xbf16>,
    return
  }
  func.func @transform_0(%arg0: i32) -> (i32, i32, i32, i32) {
    %c0_i32 = arith.constant 0 : i32
    %c0_i32_0 = arith.constant 0 : i32
    %c0_i32_1 = arith.constant 0 : i32
    %c0_i32_2 = arith.constant 0 : i32
    return %arg0, %c0_i32, %c0_i32_0, %c0_i32_1 : i32, i32, i32, i32
  }
  func.func @transform_1(%arg0: i32) -> (i32, i32, i32) {
    %c0_i32 = arith.constant 0 : i32
    %c0_i32_0 = arith.constant 0 : i32
    %c0_i32_1 = arith.constant 0 : i32
    %c0_i32_2 = arith.constant 0 : i32
    return %c0_i32, %c0_i32_0, %c0_i32_1 : i32, i32, i32
  }
  func.func @transform_2(%arg0: i32) -> (i32, i32) {
    %c0_i32 = arith.constant 0 : i32
    %c0_i32_0 = arith.constant 0 : i32
    %c0_i32_1 = arith.constant 0 : i32
    return %c0_i32, %c0_i32_0 : i32, i32
  }
  func.func @transform_3(%arg0: i32) -> (i32, i32, i32, i32) {
    %c0_i32 = arith.constant 0 : i32
    %c0_i32_0 = arith.constant 0 : i32
    %c0_i32_1 = arith.constant 0 : i32
    %c0_i32_2 = arith.constant 0 : i32
    return %arg0, %c0_i32, %c0_i32_0, %c0_i32_1 : i32, i32, i32, i32
  }
}

module attributes {stable_mosaic.version = 11 : i64} {
  func.func @_conv3x3_s2_relu_kernel(%arg0: i32, %arg1: memref<4x5x5x8xbf16, #tpu.memory_space<vmem>>, %arg2: memref<9x8x16xbf16, #tpu.memory_space<vmem>>, %arg3: memref<1x16xf32, #tpu.memory_space<vmem>>, %arg4: memref<1x4x4x16xbf16, #tpu.memory_space<vmem>>) attributes {dimension_semantics = [#tpu.dimension_semantics<parallel>], iteration_bounds = array<i64: 2>, scalar_prefetch = 0 : i64, scratch_operands = 0 : i64, tpu.core_type = #tpu.core_type<tc>, window_params = [{transform_indices = @transform_0, window_bounds = array<i64: 4, 5, 5, 8>}, {pipeline_mode = #tpu.pipeline_mode<synchronous>, transform_indices = @transform_1, window_bounds = array<i64: 9, 8, 16>}, {pipeline_mode = #tpu.pipeline_mode<synchronous>, transform_indices = @transform_2, window_bounds = array<i64: 1, 16>}, {transform_indices = @transform_3, window_bounds = array<i64: 1, 4, 4, 16>}]} {
    %cst = arith.constant 0.000000e+00 : f32
    %0 = vector.broadcast %cst : f32 to vector<4x4x16xf32>
    %c0 = arith.constant 0 : index
    %c0_0 = arith.constant 0 : index
    %c0_1 = arith.constant 0 : index
    %c0_2 = arith.constant 0 : index
    %1 = vector.load %arg1[%c0, %c0_0, %c0_1, %c0_2] : memref<4x5x5x8xbf16, #tpu.memory_space<vmem>>, vector<1x4x4x8xbf16>
    %2 = vector.shape_cast %1 : vector<1x4x4x8xbf16> to vector<4x4x8xbf16>
    %c0_3 = arith.constant 0 : index
    %c0_4 = arith.constant 0 : index
    %c0_5 = arith.constant 0 : index
    %3 = vector.load %arg2[%c0_3, %c0_4, %c0_5] : memref<9x8x16xbf16, #tpu.memory_space<vmem>>, vector<1x8x16xbf16>
    %4 = vector.shape_cast %3 : vector<1x8x16xbf16> to vector<8x16xbf16>
    %cst_6 = arith.constant dense<0.000000e+00> : vector<4x4x16xf32>
    %5 = tpu.matmul %2, %4, %cst_6 {dimension_numbers = #tpu.dot_dimension_numbers<[2], [0], [0, 1], [1], [0, 0, 0, 1, 1, 1], [], []>} : vector<4x4x8xbf16>, vector<8x16xbf16>, vector<4x4x16xf32> -> vector<4x4x16xf32>
    %6 = arith.addf %0, %5 : vector<4x4x16xf32>
    %c1 = arith.constant 1 : index
    %c0_7 = arith.constant 0 : index
    %c0_8 = arith.constant 0 : index
    %c0_9 = arith.constant 0 : index
    %7 = vector.load %arg1[%c1, %c0_7, %c0_8, %c0_9] : memref<4x5x5x8xbf16, #tpu.memory_space<vmem>>, vector<1x4x4x8xbf16>
    %8 = vector.shape_cast %7 : vector<1x4x4x8xbf16> to vector<4x4x8xbf16>
    %c1_10 = arith.constant 1 : index
    %c0_11 = arith.constant 0 : index
    %c0_12 = arith.constant 0 : index
    %9 = vector.load %arg2[%c1_10, %c0_11, %c0_12] : memref<9x8x16xbf16, #tpu.memory_space<vmem>>, vector<1x8x16xbf16>
    %10 = vector.shape_cast %9 : vector<1x8x16xbf16> to vector<8x16xbf16>
    %cst_13 = arith.constant dense<0.000000e+00> : vector<4x4x16xf32>
    %11 = tpu.matmul %8, %10, %cst_13 {dimension_numbers = #tpu.dot_dimension_numbers<[2], [0], [0, 1], [1], [0, 0, 0, 1, 1, 1], [], []>} : vector<4x4x8xbf16>, vector<8x16xbf16>, vector<4x4x16xf32> -> vector<4x4x16xf32>
    %12 = arith.addf %6, %11 : vector<4x4x16xf32>
    %c0_14 = arith.constant 0 : index
    %c0_15 = arith.constant 0 : index
    %c1_16 = arith.constant 1 : index
    %c0_17 = arith.constant 0 : index
    %13 = vector.load %arg1[%c0_14, %c0_15, %c1_16, %c0_17] : memref<4x5x5x8xbf16, #tpu.memory_space<vmem>>, vector<1x4x4x8xbf16>
    %14 = vector.shape_cast %13 : vector<1x4x4x8xbf16> to vector<4x4x8xbf16>
    %c2 = arith.constant 2 : index
    %c0_18 = arith.constant 0 : index
    %c0_19 = arith.constant 0 : index
    %15 = vector.load %arg2[%c2, %c0_18, %c0_19] : memref<9x8x16xbf16, #tpu.memory_space<vmem>>, vector<1x8x16xbf16>
    %16 = vector.shape_cast %15 : vector<1x8x16xbf16> to vector<8x16xbf16>
    %cst_20 = arith.constant dense<0.000000e+00> : vector<4x4x16xf32>
    %17 = tpu.matmul %14, %16, %cst_20 {dimension_numbers = #tpu.dot_dimension_numbers<[2], [0], [0, 1], [1], [0, 0, 0, 1, 1, 1], [], []>} : vector<4x4x8xbf16>, vector<8x16xbf16>, vector<4x4x16xf32> -> vector<4x4x16xf32>
    %18 = arith.addf %12, %17 : vector<4x4x16xf32>
    %c2_21 = arith.constant 2 : index
    %c0_22 = arith.constant 0 : index
    %c0_23 = arith.constant 0 : index
    %c0_24 = arith.constant 0 : index
    %19 = vector.load %arg1[%c2_21, %c0_22, %c0_23, %c0_24] : memref<4x5x5x8xbf16, #tpu.memory_space<vmem>>, vector<1x4x4x8xbf16>
    %20 = vector.shape_cast %19 : vector<1x4x4x8xbf16> to vector<4x4x8xbf16>
    %c3 = arith.constant 3 : index
    %c0_25 = arith.constant 0 : index
    %c0_26 = arith.constant 0 : index
    %21 = vector.load %arg2[%c3, %c0_25, %c0_26] : memref<9x8x16xbf16, #tpu.memory_space<vmem>>, vector<1x8x16xbf16>
    %22 = vector.shape_cast %21 : vector<1x8x16xbf16> to vector<8x16xbf16>
    %cst_27 = arith.constant dense<0.000000e+00> : vector<4x4x16xf32>
    %23 = tpu.matmul %20, %22, %cst_27 {dimension_numbers = #tpu.dot_dimension_numbers<[2], [0], [0, 1], [1], [0, 0, 0, 1, 1, 1], [], []>} : vector<4x4x8xbf16>, vector<8x16xbf16>, vector<4x4x16xf32> -> vector<4x4x16xf32>
    %24 = arith.addf %18, %23 : vector<4x4x16xf32>
    %c3_28 = arith.constant 3 : index
    %c0_29 = arith.constant 0 : index
    %c0_30 = arith.constant 0 : index
    %c0_31 = arith.constant 0 : index
    %25 = vector.load %arg1[%c3_28, %c0_29, %c0_30, %c0_31] : memref<4x5x5x8xbf16, #tpu.memory_space<vmem>>, vector<1x4x4x8xbf16>
    %26 = vector.shape_cast %25 : vector<1x4x4x8xbf16> to vector<4x4x8xbf16>
    %c4 = arith.constant 4 : index
    %c0_32 = arith.constant 0 : index
    %c0_33 = arith.constant 0 : index
    %27 = vector.load %arg2[%c4, %c0_32, %c0_33] : memref<9x8x16xbf16, #tpu.memory_space<vmem>>, vector<1x8x16xbf16>
    %28 = vector.shape_cast %27 : vector<1x8x16xbf16> to vector<8x16xbf16>
    %cst_34 = arith.constant dense<0.000000e+00> : vector<4x4x16xf32>
    %29 = tpu.matmul %26, %28, %cst_34 {dimension_numbers = #tpu.dot_dimension_numbers<[2], [0], [0, 1], [1], [0, 0, 0, 1, 1, 1], [], []>} : vector<4x4x8xbf16>, vector<8x16xbf16>, vector<4x4x16xf32> -> vector<4x4x16xf32>
    %30 = arith.addf %24, %29 : vector<4x4x16xf32>
    %c2_35 = arith.constant 2 : index
    %c0_36 = arith.constant 0 : index
    %c1_37 = arith.constant 1 : index
    %c0_38 = arith.constant 0 : index
    %31 = vector.load %arg1[%c2_35, %c0_36, %c1_37, %c0_38] : memref<4x5x5x8xbf16, #tpu.memory_space<vmem>>, vector<1x4x4x8xbf16>
    %32 = vector.shape_cast %31 : vector<1x4x4x8xbf16> to vector<4x4x8xbf16>
    %c5 = arith.constant 5 : index
    %c0_39 = arith.constant 0 : index
    %c0_40 = arith.constant 0 : index
    %33 = vector.load %arg2[%c5, %c0_39, %c0_40] : memref<9x8x16xbf16, #tpu.memory_space<vmem>>, vector<1x8x16xbf16>
    %34 = vector.shape_cast %33 : vector<1x8x16xbf16> to vector<8x16xbf16>
    %cst_41 = arith.constant dense<0.000000e+00> : vector<4x4x16xf32>
    %35 = tpu.matmul %32, %34, %cst_41 {dimension_numbers = #tpu.dot_dimension_numbers<[2], [0], [0, 1], [1], [0, 0, 0, 1, 1, 1], [], []>} : vector<4x4x8xbf16>, vector<8x16xbf16>, vector<4x4x16xf32> -> vector<4x4x16xf32>
    %36 = arith.addf %30, %35 : vector<4x4x16xf32>
    %c0_42 = arith.constant 0 : index
    %c1_43 = arith.constant 1 : index
    %c0_44 = arith.constant 0 : index
    %c0_45 = arith.constant 0 : index
    %37 = vector.load %arg1[%c0_42, %c1_43, %c0_44, %c0_45] : memref<4x5x5x8xbf16, #tpu.memory_space<vmem>>, vector<1x4x4x8xbf16>
    %38 = vector.shape_cast %37 : vector<1x4x4x8xbf16> to vector<4x4x8xbf16>
    %c6 = arith.constant 6 : index
    %c0_46 = arith.constant 0 : index
    %c0_47 = arith.constant 0 : index
    %39 = vector.load %arg2[%c6, %c0_46, %c0_47] : memref<9x8x16xbf16, #tpu.memory_space<vmem>>, vector<1x8x16xbf16>
    %40 = vector.shape_cast %39 : vector<1x8x16xbf16> to vector<8x16xbf16>
    %cst_48 = arith.constant dense<0.000000e+00> : vector<4x4x16xf32>
    %41 = tpu.matmul %38, %40, %cst_48 {dimension_numbers = #tpu.dot_dimension_numbers<[2], [0], [0, 1], [1], [0, 0, 0, 1, 1, 1], [], []>} : vector<4x4x8xbf16>, vector<8x16xbf16>, vector<4x4x16xf32> -> vector<4x4x16xf32>
    %42 = arith.addf %36, %41 : vector<4x4x16xf32>
    %c1_49 = arith.constant 1 : index
    %c1_50 = arith.constant 1 : index
    %c0_51 = arith.constant 0 : index
    %c0_52 = arith.constant 0 : index
    %43 = vector.load %arg1[%c1_49, %c1_50, %c0_51, %c0_52] : memref<4x5x5x8xbf16, #tpu.memory_space<vmem>>, vector<1x4x4x8xbf16>
    %44 = vector.shape_cast %43 : vector<1x4x4x8xbf16> to vector<4x4x8xbf16>
    %c7 = arith.constant 7 : index
    %c0_53 = arith.constant 0 : index
    %c0_54 = arith.constant 0 : index
    %45 = vector.load %arg2[%c7, %c0_53, %c0_54] : memref<9x8x16xbf16, #tpu.memory_space<vmem>>, vector<1x8x16xbf16>
    %46 = vector.shape_cast %45 : vector<1x8x16xbf16> to vector<8x16xbf16>
    %cst_55 = arith.constant dense<0.000000e+00> : vector<4x4x16xf32>
    %47 = tpu.matmul %44, %46, %cst_55 {dimension_numbers = #tpu.dot_dimension_numbers<[2], [0], [0, 1], [1], [0, 0, 0, 1, 1, 1], [], []>} : vector<4x4x8xbf16>, vector<8x16xbf16>, vector<4x4x16xf32> -> vector<4x4x16xf32>
    %48 = arith.addf %42, %47 : vector<4x4x16xf32>
    %c0_56 = arith.constant 0 : index
    %c1_57 = arith.constant 1 : index
    %c1_58 = arith.constant 1 : index
    %c0_59 = arith.constant 0 : index
    %49 = vector.load %arg1[%c0_56, %c1_57, %c1_58, %c0_59] : memref<4x5x5x8xbf16, #tpu.memory_space<vmem>>, vector<1x4x4x8xbf16>
    %50 = vector.shape_cast %49 : vector<1x4x4x8xbf16> to vector<4x4x8xbf16>
    %c8 = arith.constant 8 : index
    %c0_60 = arith.constant 0 : index
    %c0_61 = arith.constant 0 : index
    %51 = vector.load %arg2[%c8, %c0_60, %c0_61] : memref<9x8x16xbf16, #tpu.memory_space<vmem>>, vector<1x8x16xbf16>
    %52 = vector.shape_cast %51 : vector<1x8x16xbf16> to vector<8x16xbf16>
    %cst_62 = arith.constant dense<0.000000e+00> : vector<4x4x16xf32>
    %53 = tpu.matmul %50, %52, %cst_62 {dimension_numbers = #tpu.dot_dimension_numbers<[2], [0], [0, 1], [1], [0, 0, 0, 1, 1, 1], [], []>} : vector<4x4x8xbf16>, vector<8x16xbf16>, vector<4x4x16xf32> -> vector<4x4x16xf32>
    %54 = arith.addf %48, %53 : vector<4x4x16xf32>
    %c0_63 = arith.constant 0 : index
    %c0_64 = arith.constant 0 : index
    %55 = vector.load %arg3[%c0_63, %c0_64] : memref<1x16xf32, #tpu.memory_space<vmem>>, vector<1x16xf32>
    %56 = vector.shape_cast %55 : vector<1x16xf32> to vector<1x1x16xf32>
    %57 = vector.broadcast %56 : vector<1x1x16xf32> to vector<4x4x16xf32>
    %58 = arith.addf %54, %57 : vector<4x4x16xf32>
    %cst_65 = arith.constant 0.000000e+00 : f32
    %59 = vector.broadcast %cst_65 : f32 to vector<4x4x16xf32>
    %60 = arith.maximumf %58, %59 : vector<4x4x16xf32>
    %61 = arith.truncf %60 : vector<4x4x16xf32> to vector<4x4x16xbf16>
    %c0_66 = arith.constant 0 : index
    %c0_67 = arith.constant 0 : index
    %c0_68 = arith.constant 0 : index
    %c0_69 = arith.constant 0 : index
    %62 = vector.load %arg4[%c0_66, %c0_67, %c0_68, %c0_69] : memref<1x4x4x16xbf16, #tpu.memory_space<vmem>>, vector<1x4x4x16xbf16>
    %63 = vector.shape_cast %62 : vector<1x4x4x16xbf16> to vector<4x4x16xbf16>
    %64 = vector.shape_cast %61 : vector<4x4x16xbf16> to vector<1x4x4x16xbf16>
    tpu.vector_store %arg4[%c0_66, %c0_67, %c0_68, %c0_69], %64 {strides = array<i32>} : memref<1x4x4x16xbf16, #tpu.memory_space<vmem>>, vector<1x4x4x16xbf16>,
    return
  }
  func.func @transform_0(%arg0: i32) -> (i32, i32, i32, i32) {
    %c0_i32 = arith.constant 0 : i32
    %c0_i32_0 = arith.constant 0 : i32
    %c0_i32_1 = arith.constant 0 : i32
    %c0_i32_2 = arith.constant 0 : i32
    return %arg0, %c0_i32, %c0_i32_0, %c0_i32_1 : i32, i32, i32, i32
  }
  func.func @transform_1(%arg0: i32) -> (i32, i32, i32) {
    %c0_i32 = arith.constant 0 : i32
    %c0_i32_0 = arith.constant 0 : i32
    %c0_i32_1 = arith.constant 0 : i32
    %c0_i32_2 = arith.constant 0 : i32
    return %c0_i32, %c0_i32_0, %c0_i32_1 : i32, i32, i32
  }
  func.func @transform_2(%arg0: i32) -> (i32, i32) {
    %c0_i32 = arith.constant 0 : i32
    %c0_i32_0 = arith.constant 0 : i32
    %c0_i32_1 = arith.constant 0 : i32
    return %c0_i32, %c0_i32_0 : i32, i32
  }
  func.func @transform_3(%arg0: i32) -> (i32, i32, i32, i32) {
    %c0_i32 = arith.constant 0 : i32
    %c0_i32_0 = arith.constant 0 : i32
    %c0_i32_1 = arith.constant 0 : i32
    %c0_i32_2 = arith.constant 0 : i32
    return %arg0, %c0_i32, %c0_i32_0, %c0_i32_1 : i32, i32, i32, i32
  }
}

module attributes {stable_mosaic.version = 11 : i64} {
  func.func @_conv3x3_s2_relu_kernel(%arg0: i32, %arg1: memref<4x2x2x32xbf16, #tpu.memory_space<vmem>>, %arg2: memref<9x32x64xbf16, #tpu.memory_space<vmem>>, %arg3: memref<1x64xf32, #tpu.memory_space<vmem>>, %arg4: memref<1x1x1x64xbf16, #tpu.memory_space<vmem>>) attributes {dimension_semantics = [#tpu.dimension_semantics<parallel>], iteration_bounds = array<i64: 2>, scalar_prefetch = 0 : i64, scratch_operands = 0 : i64, tpu.core_type = #tpu.core_type<tc>, window_params = [{transform_indices = @transform_0, window_bounds = array<i64: 4, 2, 2, 32>}, {pipeline_mode = #tpu.pipeline_mode<synchronous>, transform_indices = @transform_1, window_bounds = array<i64: 9, 32, 64>}, {pipeline_mode = #tpu.pipeline_mode<synchronous>, transform_indices = @transform_2, window_bounds = array<i64: 1, 64>}, {transform_indices = @transform_3, window_bounds = array<i64: 1, 1, 1, 64>}]} {
    %cst = arith.constant 0.000000e+00 : f32
    %0 = vector.broadcast %cst : f32 to vector<1x1x64xf32>
    %c0 = arith.constant 0 : index
    %c0_0 = arith.constant 0 : index
    %c0_1 = arith.constant 0 : index
    %c0_2 = arith.constant 0 : index
    %1 = vector.load %arg1[%c0, %c0_0, %c0_1, %c0_2] : memref<4x2x2x32xbf16, #tpu.memory_space<vmem>>, vector<1x1x1x32xbf16>
    %2 = vector.shape_cast %1 : vector<1x1x1x32xbf16> to vector<1x1x32xbf16>
    %c0_3 = arith.constant 0 : index
    %c0_4 = arith.constant 0 : index
    %c0_5 = arith.constant 0 : index
    %3 = vector.load %arg2[%c0_3, %c0_4, %c0_5] : memref<9x32x64xbf16, #tpu.memory_space<vmem>>, vector<1x32x64xbf16>
    %4 = vector.shape_cast %3 : vector<1x32x64xbf16> to vector<32x64xbf16>
    %cst_6 = arith.constant dense<0.000000e+00> : vector<1x1x64xf32>
    %5 = tpu.matmul %2, %4, %cst_6 {dimension_numbers = #tpu.dot_dimension_numbers<[2], [0], [0, 1], [1], [0, 0, 0, 1, 1, 1], [], []>} : vector<1x1x32xbf16>, vector<32x64xbf16>, vector<1x1x64xf32> -> vector<1x1x64xf32>
    %6 = arith.addf %0, %5 : vector<1x1x64xf32>
    %c1 = arith.constant 1 : index
    %c0_7 = arith.constant 0 : index
    %c0_8 = arith.constant 0 : index
    %c0_9 = arith.constant 0 : index
    %7 = vector.load %arg1[%c1, %c0_7, %c0_8, %c0_9] : memref<4x2x2x32xbf16, #tpu.memory_space<vmem>>, vector<1x1x1x32xbf16>
    %8 = vector.shape_cast %7 : vector<1x1x1x32xbf16> to vector<1x1x32xbf16>
    %c1_10 = arith.constant 1 : index
    %c0_11 = arith.constant 0 : index
    %c0_12 = arith.constant 0 : index
    %9 = vector.load %arg2[%c1_10, %c0_11, %c0_12] : memref<9x32x64xbf16, #tpu.memory_space<vmem>>, vector<1x32x64xbf16>
    %10 = vector.shape_cast %9 : vector<1x32x64xbf16> to vector<32x64xbf16>
    %cst_13 = arith.constant dense<0.000000e+00> : vector<1x1x64xf32>
    %11 = tpu.matmul %8, %10, %cst_13 {dimension_numbers = #tpu.dot_dimension_numbers<[2], [0], [0, 1], [1], [0, 0, 0, 1, 1, 1], [], []>} : vector<1x1x32xbf16>, vector<32x64xbf16>, vector<1x1x64xf32> -> vector<1x1x64xf32>
    %12 = arith.addf %6, %11 : vector<1x1x64xf32>
    %c0_14 = arith.constant 0 : index
    %c0_15 = arith.constant 0 : index
    %c1_16 = arith.constant 1 : index
    %c0_17 = arith.constant 0 : index
    %13 = vector.load %arg1[%c0_14, %c0_15, %c1_16, %c0_17] : memref<4x2x2x32xbf16, #tpu.memory_space<vmem>>, vector<1x1x1x32xbf16>
    %14 = vector.shape_cast %13 : vector<1x1x1x32xbf16> to vector<1x1x32xbf16>
    %c2 = arith.constant 2 : index
    %c0_18 = arith.constant 0 : index
    %c0_19 = arith.constant 0 : index
    %15 = vector.load %arg2[%c2, %c0_18, %c0_19] : memref<9x32x64xbf16, #tpu.memory_space<vmem>>, vector<1x32x64xbf16>
    %16 = vector.shape_cast %15 : vector<1x32x64xbf16> to vector<32x64xbf16>
    %cst_20 = arith.constant dense<0.000000e+00> : vector<1x1x64xf32>
    %17 = tpu.matmul %14, %16, %cst_20 {dimension_numbers = #tpu.dot_dimension_numbers<[2], [0], [0, 1], [1], [0, 0, 0, 1, 1, 1], [], []>} : vector<1x1x32xbf16>, vector<32x64xbf16>, vector<1x1x64xf32> -> vector<1x1x64xf32>
    %18 = arith.addf %12, %17 : vector<1x1x64xf32>
    %c2_21 = arith.constant 2 : index
    %c0_22 = arith.constant 0 : index
    %c0_23 = arith.constant 0 : index
    %c0_24 = arith.constant 0 : index
    %19 = vector.load %arg1[%c2_21, %c0_22, %c0_23, %c0_24] : memref<4x2x2x32xbf16, #tpu.memory_space<vmem>>, vector<1x1x1x32xbf16>
    %20 = vector.shape_cast %19 : vector<1x1x1x32xbf16> to vector<1x1x32xbf16>
    %c3 = arith.constant 3 : index
    %c0_25 = arith.constant 0 : index
    %c0_26 = arith.constant 0 : index
    %21 = vector.load %arg2[%c3, %c0_25, %c0_26] : memref<9x32x64xbf16, #tpu.memory_space<vmem>>, vector<1x32x64xbf16>
    %22 = vector.shape_cast %21 : vector<1x32x64xbf16> to vector<32x64xbf16>
    %cst_27 = arith.constant dense<0.000000e+00> : vector<1x1x64xf32>
    %23 = tpu.matmul %20, %22, %cst_27 {dimension_numbers = #tpu.dot_dimension_numbers<[2], [0], [0, 1], [1], [0, 0, 0, 1, 1, 1], [], []>} : vector<1x1x32xbf16>, vector<32x64xbf16>, vector<1x1x64xf32> -> vector<1x1x64xf32>
    %24 = arith.addf %18, %23 : vector<1x1x64xf32>
    %c3_28 = arith.constant 3 : index
    %c0_29 = arith.constant 0 : index
    %c0_30 = arith.constant 0 : index
    %c0_31 = arith.constant 0 : index
    %25 = vector.load %arg1[%c3_28, %c0_29, %c0_30, %c0_31] : memref<4x2x2x32xbf16, #tpu.memory_space<vmem>>, vector<1x1x1x32xbf16>
    %26 = vector.shape_cast %25 : vector<1x1x1x32xbf16> to vector<1x1x32xbf16>
    %c4 = arith.constant 4 : index
    %c0_32 = arith.constant 0 : index
    %c0_33 = arith.constant 0 : index
    %27 = vector.load %arg2[%c4, %c0_32, %c0_33] : memref<9x32x64xbf16, #tpu.memory_space<vmem>>, vector<1x32x64xbf16>
    %28 = vector.shape_cast %27 : vector<1x32x64xbf16> to vector<32x64xbf16>
    %cst_34 = arith.constant dense<0.000000e+00> : vector<1x1x64xf32>
    %29 = tpu.matmul %26, %28, %cst_34 {dimension_numbers = #tpu.dot_dimension_numbers<[2], [0], [0, 1], [1], [0, 0, 0, 1, 1, 1], [], []>} : vector<1x1x32xbf16>, vector<32x64xbf16>, vector<1x1x64xf32> -> vector<1x1x64xf32>
    %30 = arith.addf %24, %29 : vector<1x1x64xf32>
    %c2_35 = arith.constant 2 : index
    %c0_36 = arith.constant 0 : index
    %c1_37 = arith.constant 1 : index
    %c0_38 = arith.constant 0 : index
    %31 = vector.load %arg1[%c2_35, %c0_36, %c1_37, %c0_38] : memref<4x2x2x32xbf16, #tpu.memory_space<vmem>>, vector<1x1x1x32xbf16>
    %32 = vector.shape_cast %31 : vector<1x1x1x32xbf16> to vector<1x1x32xbf16>
    %c5 = arith.constant 5 : index
    %c0_39 = arith.constant 0 : index
    %c0_40 = arith.constant 0 : index
    %33 = vector.load %arg2[%c5, %c0_39, %c0_40] : memref<9x32x64xbf16, #tpu.memory_space<vmem>>, vector<1x32x64xbf16>
    %34 = vector.shape_cast %33 : vector<1x32x64xbf16> to vector<32x64xbf16>
    %cst_41 = arith.constant dense<0.000000e+00> : vector<1x1x64xf32>
    %35 = tpu.matmul %32, %34, %cst_41 {dimension_numbers = #tpu.dot_dimension_numbers<[2], [0], [0, 1], [1], [0, 0, 0, 1, 1, 1], [], []>} : vector<1x1x32xbf16>, vector<32x64xbf16>, vector<1x1x64xf32> -> vector<1x1x64xf32>
    %36 = arith.addf %30, %35 : vector<1x1x64xf32>
    %c0_42 = arith.constant 0 : index
    %c1_43 = arith.constant 1 : index
    %c0_44 = arith.constant 0 : index
    %c0_45 = arith.constant 0 : index
    %37 = vector.load %arg1[%c0_42, %c1_43, %c0_44, %c0_45] : memref<4x2x2x32xbf16, #tpu.memory_space<vmem>>, vector<1x1x1x32xbf16>
    %38 = vector.shape_cast %37 : vector<1x1x1x32xbf16> to vector<1x1x32xbf16>
    %c6 = arith.constant 6 : index
    %c0_46 = arith.constant 0 : index
    %c0_47 = arith.constant 0 : index
    %39 = vector.load %arg2[%c6, %c0_46, %c0_47] : memref<9x32x64xbf16, #tpu.memory_space<vmem>>, vector<1x32x64xbf16>
    %40 = vector.shape_cast %39 : vector<1x32x64xbf16> to vector<32x64xbf16>
    %cst_48 = arith.constant dense<0.000000e+00> : vector<1x1x64xf32>
    %41 = tpu.matmul %38, %40, %cst_48 {dimension_numbers = #tpu.dot_dimension_numbers<[2], [0], [0, 1], [1], [0, 0, 0, 1, 1, 1], [], []>} : vector<1x1x32xbf16>, vector<32x64xbf16>, vector<1x1x64xf32> -> vector<1x1x64xf32>
    %42 = arith.addf %36, %41 : vector<1x1x64xf32>
    %c1_49 = arith.constant 1 : index
    %c1_50 = arith.constant 1 : index
    %c0_51 = arith.constant 0 : index
    %c0_52 = arith.constant 0 : index
    %43 = vector.load %arg1[%c1_49, %c1_50, %c0_51, %c0_52] : memref<4x2x2x32xbf16, #tpu.memory_space<vmem>>, vector<1x1x1x32xbf16>
    %44 = vector.shape_cast %43 : vector<1x1x1x32xbf16> to vector<1x1x32xbf16>
    %c7 = arith.constant 7 : index
    %c0_53 = arith.constant 0 : index
    %c0_54 = arith.constant 0 : index
    %45 = vector.load %arg2[%c7, %c0_53, %c0_54] : memref<9x32x64xbf16, #tpu.memory_space<vmem>>, vector<1x32x64xbf16>
    %46 = vector.shape_cast %45 : vector<1x32x64xbf16> to vector<32x64xbf16>
    %cst_55 = arith.constant dense<0.000000e+00> : vector<1x1x64xf32>
    %47 = tpu.matmul %44, %46, %cst_55 {dimension_numbers = #tpu.dot_dimension_numbers<[2], [0], [0, 1], [1], [0, 0, 0, 1, 1, 1], [], []>} : vector<1x1x32xbf16>, vector<32x64xbf16>, vector<1x1x64xf32> -> vector<1x1x64xf32>
    %48 = arith.addf %42, %47 : vector<1x1x64xf32>
    %c0_56 = arith.constant 0 : index
    %c1_57 = arith.constant 1 : index
    %c1_58 = arith.constant 1 : index
    %c0_59 = arith.constant 0 : index
    %49 = vector.load %arg1[%c0_56, %c1_57, %c1_58, %c0_59] : memref<4x2x2x32xbf16, #tpu.memory_space<vmem>>, vector<1x1x1x32xbf16>
    %50 = vector.shape_cast %49 : vector<1x1x1x32xbf16> to vector<1x1x32xbf16>
    %c8 = arith.constant 8 : index
    %c0_60 = arith.constant 0 : index
    %c0_61 = arith.constant 0 : index
    %51 = vector.load %arg2[%c8, %c0_60, %c0_61] : memref<9x32x64xbf16, #tpu.memory_space<vmem>>, vector<1x32x64xbf16>
    %52 = vector.shape_cast %51 : vector<1x32x64xbf16> to vector<32x64xbf16>
    %cst_62 = arith.constant dense<0.000000e+00> : vector<1x1x64xf32>
    %53 = tpu.matmul %50, %52, %cst_62 {dimension_numbers = #tpu.dot_dimension_numbers<[2], [0], [0, 1], [1], [0, 0, 0, 1, 1, 1], [], []>} : vector<1x1x32xbf16>, vector<32x64xbf16>, vector<1x1x64xf32> -> vector<1x1x64xf32>
    %54 = arith.addf %48, %53 : vector<1x1x64xf32>
    %c0_63 = arith.constant 0 : index
    %c0_64 = arith.constant 0 : index
    %55 = vector.load %arg3[%c0_63, %c0_64] : memref<1x64xf32, #tpu.memory_space<vmem>>, vector<1x64xf32>
    %56 = vector.shape_cast %55 : vector<1x64xf32> to vector<1x1x64xf32>
    %57 = arith.addf %54, %56 : vector<1x1x64xf32>
    %cst_65 = arith.constant 0.000000e+00 : f32
    %58 = vector.broadcast %cst_65 : f32 to vector<1x1x64xf32>
    %59 = arith.maximumf %57, %58 : vector<1x1x64xf32>
    %60 = arith.truncf %59 : vector<1x1x64xf32> to vector<1x1x64xbf16>
    %c0_66 = arith.constant 0 : index
    %c0_67 = arith.constant 0 : index
    %c0_68 = arith.constant 0 : index
    %c0_69 = arith.constant 0 : index
    %61 = vector.load %arg4[%c0_66, %c0_67, %c0_68, %c0_69] : memref<1x1x1x64xbf16, #tpu.memory_space<vmem>>, vector<1x1x1x64xbf16>
    %62 = vector.shape_cast %61 : vector<1x1x1x64xbf16> to vector<1x1x64xbf16>
    %63 = vector.shape_cast %60 : vector<1x1x64xbf16> to vector<1x1x1x64xbf16>
    tpu.vector_store %arg4[%c0_66, %c0_67, %c0_68, %c0_69], %63 {strides = array<i32>} : memref<1x1x1x64xbf16, #tpu.memory_space<vmem>>, vector<1x1x1x64xbf16>,
    return
  }
  func.func @transform_0(%arg0: i32) -> (i32, i32, i32, i32) {
    %c0_i32 = arith.constant 0 : i32
    %c0_i32_0 = arith.constant 0 : i32
    %c0_i32_1 = arith.constant 0 : i32
    %c0_i32_2 = arith.constant 0 : i32
    return %arg0, %c0_i32, %c0_i32_0, %c0_i32_1 : i32, i32, i32, i32
  }
  func.func @transform_1(%arg0: i32) -> (i32, i32, i32) {
    %c0_i32 = arith.constant 0 : i32
    %c0_i32_0 = arith.constant 0 : i32
    %c0_i32_1 = arith.constant 0 : i32
    %c0_i32_2 = arith.constant 0 : i32
    return %c0_i32, %c0_i32_0, %c0_i32_1 : i32, i32, i32
  }
  func.func @transform_2(%arg0: i32) -> (i32, i32) {
    %c0_i32 = arith.constant 0 : i32
    %c0_i32_0 = arith.constant 0 : i32
    %c0_i32_1 = arith.constant 0 : i32
    return %c0_i32, %c0_i32_0 : i32, i32
  }
  func.func @transform_3(%arg0: i32) -> (i32, i32, i32, i32) {
    %c0_i32 = arith.constant 0 : i32
    %c0_i32_0 = arith.constant 0 : i32
    %c0_i32_1 = arith.constant 0 : i32
    %c0_i32_2 = arith.constant 0 : i32
    return %arg0, %c0_i32, %c0_i32_0, %c0_i32_1 : i32, i32, i32, i32
  }
}

module attributes {stable_mosaic.version = 11 : i64} {
  func.func @_resize_kernel(%arg0: i32, %arg1: memref<24x48xbf16, #tpu.memory_space<vmem>>, %arg2: memref<16x8xbf16, #tpu.memory_space<vmem>>, %arg3: memref<48x16xf32, #tpu.memory_space<vmem>>, %arg4: memref<24x8xbf16, #tpu.memory_space<vmem>>) attributes {dimension_semantics = [#tpu.dimension_semantics<parallel>], iteration_bounds = array<i64: 2>, scalar_prefetch = 0 : i64, scratch_operands = 0 : i64, tpu.core_type = #tpu.core_type<tc>, window_params = [{pipeline_mode = #tpu.pipeline_mode<synchronous>, transform_indices = @transform_0, window_bounds = array<i64: 24, 48>}, {pipeline_mode = #tpu.pipeline_mode<synchronous>, transform_indices = @transform_1, window_bounds = array<i64: 16, 8>}, {transform_indices = @transform_2, window_bounds = array<i64: 48, 16>}, {transform_indices = @transform_3, window_bounds = array<i64: 24, 8>}]} {
    %c0 = arith.constant 0 : index
    %c0_0 = arith.constant 0 : index
    %0 = vector.load %arg3[%c0, %c0_0] : memref<48x16xf32, #tpu.memory_space<vmem>>, vector<48x16xf32>
    %1 = arith.truncf %0 : vector<48x16xf32> to vector<48x16xbf16>
    %c0_1 = arith.constant 0 : index
    %c0_2 = arith.constant 0 : index
    %2 = vector.load %arg2[%c0_1, %c0_2] : memref<16x8xbf16, #tpu.memory_space<vmem>>, vector<16x8xbf16>
    %cst = arith.constant dense<0.000000e+00> : vector<48x8xf32>
    %3 = tpu.matmul %1, %2, %cst {dimension_numbers = #tpu.dot_dimension_numbers<[1], [0], [0], [1], [0, 0, 1, 1], [], []>} : vector<48x16xbf16>, vector<16x8xbf16>, vector<48x8xf32> -> vector<48x8xf32>
    %c0_3 = arith.constant 0 : index
    %c0_4 = arith.constant 0 : index
    %4 = vector.load %arg1[%c0_3, %c0_4] : memref<24x48xbf16, #tpu.memory_space<vmem>>, vector<24x48xbf16>
    %5 = arith.truncf %3 : vector<48x8xf32> to vector<48x8xbf16>
    %cst_5 = arith.constant dense<0.000000e+00> : vector<24x8xf32>
    %6 = tpu.matmul %4, %5, %cst_5 {dimension_numbers = #tpu.dot_dimension_numbers<[1], [0], [0], [1], [0, 0, 1, 1], [], []>} : vector<24x48xbf16>, vector<48x8xbf16>, vector<24x8xf32> -> vector<24x8xf32>
    %7 = arith.truncf %6 : vector<24x8xf32> to vector<24x8xbf16>
    %c0_6 = arith.constant 0 : index
    %c0_7 = arith.constant 0 : index
    %8 = vector.load %arg4[%c0_6, %c0_7] : memref<24x8xbf16, #tpu.memory_space<vmem>>, vector<24x8xbf16>
    tpu.vector_store %arg4[%c0_6, %c0_7], %7 {strides = array<i32>} : memref<24x8xbf16, #tpu.memory_space<vmem>>, vector<24x8xbf16>,
    return
  }
  func.func @transform_0(%arg0: i32) -> (i32, i32) {
    %c0_i32 = arith.constant 0 : i32
    %c0_i32_0 = arith.constant 0 : i32
    %c0_i32_1 = arith.constant 0 : i32
    return %c0_i32, %c0_i32_0 : i32, i32
  }
  func.func @transform_1(%arg0: i32) -> (i32, i32) {
    %c0_i32 = arith.constant 0 : i32
    %c0_i32_0 = arith.constant 0 : i32
    %c0_i32_1 = arith.constant 0 : i32
    return %c0_i32, %c0_i32_0 : i32, i32
  }
  func.func @transform_2(%arg0: i32) -> (i32, i32) {
    %c0_i32 = arith.constant 0 : i32
    %c0_i32_0 = arith.constant 0 : i32
    return %arg0, %c0_i32 : i32, i32
  }
  func.func @transform_3(%arg0: i32) -> (i32, i32) {
    %c0_i32 = arith.constant 0 : i32
    %c0_i32_0 = arith.constant 0 : i32
    return %arg0, %c0_i32 : i32, i32
  }
}

module attributes {stable_mosaic.version = 11 : i64} {
  func.func @_conv3x3_s2_relu_kernel(%arg0: i32, %arg1: memref<4x3x3x8xbf16, #tpu.memory_space<vmem>>, %arg2: memref<9x8x16xbf16, #tpu.memory_space<vmem>>, %arg3: memref<1x16xf32, #tpu.memory_space<vmem>>, %arg4: memref<1x2x2x16xbf16, #tpu.memory_space<vmem>>) attributes {dimension_semantics = [#tpu.dimension_semantics<parallel>], iteration_bounds = array<i64: 2>, scalar_prefetch = 0 : i64, scratch_operands = 0 : i64, tpu.core_type = #tpu.core_type<tc>, window_params = [{transform_indices = @transform_0, window_bounds = array<i64: 4, 3, 3, 8>}, {pipeline_mode = #tpu.pipeline_mode<synchronous>, transform_indices = @transform_1, window_bounds = array<i64: 9, 8, 16>}, {pipeline_mode = #tpu.pipeline_mode<synchronous>, transform_indices = @transform_2, window_bounds = array<i64: 1, 16>}, {transform_indices = @transform_3, window_bounds = array<i64: 1, 2, 2, 16>}]} {
    %cst = arith.constant 0.000000e+00 : f32
    %0 = vector.broadcast %cst : f32 to vector<2x2x16xf32>
    %c0 = arith.constant 0 : index
    %c0_0 = arith.constant 0 : index
    %c0_1 = arith.constant 0 : index
    %c0_2 = arith.constant 0 : index
    %1 = vector.load %arg1[%c0, %c0_0, %c0_1, %c0_2] : memref<4x3x3x8xbf16, #tpu.memory_space<vmem>>, vector<1x2x2x8xbf16>
    %2 = vector.shape_cast %1 : vector<1x2x2x8xbf16> to vector<2x2x8xbf16>
    %c0_3 = arith.constant 0 : index
    %c0_4 = arith.constant 0 : index
    %c0_5 = arith.constant 0 : index
    %3 = vector.load %arg2[%c0_3, %c0_4, %c0_5] : memref<9x8x16xbf16, #tpu.memory_space<vmem>>, vector<1x8x16xbf16>
    %4 = vector.shape_cast %3 : vector<1x8x16xbf16> to vector<8x16xbf16>
    %cst_6 = arith.constant dense<0.000000e+00> : vector<2x2x16xf32>
    %5 = tpu.matmul %2, %4, %cst_6 {dimension_numbers = #tpu.dot_dimension_numbers<[2], [0], [0, 1], [1], [0, 0, 0, 1, 1, 1], [], []>} : vector<2x2x8xbf16>, vector<8x16xbf16>, vector<2x2x16xf32> -> vector<2x2x16xf32>
    %6 = arith.addf %0, %5 : vector<2x2x16xf32>
    %c1 = arith.constant 1 : index
    %c0_7 = arith.constant 0 : index
    %c0_8 = arith.constant 0 : index
    %c0_9 = arith.constant 0 : index
    %7 = vector.load %arg1[%c1, %c0_7, %c0_8, %c0_9] : memref<4x3x3x8xbf16, #tpu.memory_space<vmem>>, vector<1x2x2x8xbf16>
    %8 = vector.shape_cast %7 : vector<1x2x2x8xbf16> to vector<2x2x8xbf16>
    %c1_10 = arith.constant 1 : index
    %c0_11 = arith.constant 0 : index
    %c0_12 = arith.constant 0 : index
    %9 = vector.load %arg2[%c1_10, %c0_11, %c0_12] : memref<9x8x16xbf16, #tpu.memory_space<vmem>>, vector<1x8x16xbf16>
    %10 = vector.shape_cast %9 : vector<1x8x16xbf16> to vector<8x16xbf16>
    %cst_13 = arith.constant dense<0.000000e+00> : vector<2x2x16xf32>
    %11 = tpu.matmul %8, %10, %cst_13 {dimension_numbers = #tpu.dot_dimension_numbers<[2], [0], [0, 1], [1], [0, 0, 0, 1, 1, 1], [], []>} : vector<2x2x8xbf16>, vector<8x16xbf16>, vector<2x2x16xf32> -> vector<2x2x16xf32>
    %12 = arith.addf %6, %11 : vector<2x2x16xf32>
    %c0_14 = arith.constant 0 : index
    %c0_15 = arith.constant 0 : index
    %c1_16 = arith.constant 1 : index
    %c0_17 = arith.constant 0 : index
    %13 = vector.load %arg1[%c0_14, %c0_15, %c1_16, %c0_17] : memref<4x3x3x8xbf16, #tpu.memory_space<vmem>>, vector<1x2x2x8xbf16>
    %14 = vector.shape_cast %13 : vector<1x2x2x8xbf16> to vector<2x2x8xbf16>
    %c2 = arith.constant 2 : index
    %c0_18 = arith.constant 0 : index
    %c0_19 = arith.constant 0 : index
    %15 = vector.load %arg2[%c2, %c0_18, %c0_19] : memref<9x8x16xbf16, #tpu.memory_space<vmem>>, vector<1x8x16xbf16>
    %16 = vector.shape_cast %15 : vector<1x8x16xbf16> to vector<8x16xbf16>
    %cst_20 = arith.constant dense<0.000000e+00> : vector<2x2x16xf32>
    %17 = tpu.matmul %14, %16, %cst_20 {dimension_numbers = #tpu.dot_dimension_numbers<[2], [0], [0, 1], [1], [0, 0, 0, 1, 1, 1], [], []>} : vector<2x2x8xbf16>, vector<8x16xbf16>, vector<2x2x16xf32> -> vector<2x2x16xf32>
    %18 = arith.addf %12, %17 : vector<2x2x16xf32>
    %c2_21 = arith.constant 2 : index
    %c0_22 = arith.constant 0 : index
    %c0_23 = arith.constant 0 : index
    %c0_24 = arith.constant 0 : index
    %19 = vector.load %arg1[%c2_21, %c0_22, %c0_23, %c0_24] : memref<4x3x3x8xbf16, #tpu.memory_space<vmem>>, vector<1x2x2x8xbf16>
    %20 = vector.shape_cast %19 : vector<1x2x2x8xbf16> to vector<2x2x8xbf16>
    %c3 = arith.constant 3 : index
    %c0_25 = arith.constant 0 : index
    %c0_26 = arith.constant 0 : index
    %21 = vector.load %arg2[%c3, %c0_25, %c0_26] : memref<9x8x16xbf16, #tpu.memory_space<vmem>>, vector<1x8x16xbf16>
    %22 = vector.shape_cast %21 : vector<1x8x16xbf16> to vector<8x16xbf16>
    %cst_27 = arith.constant dense<0.000000e+00> : vector<2x2x16xf32>
    %23 = tpu.matmul %20, %22, %cst_27 {dimension_numbers = #tpu.dot_dimension_numbers<[2], [0], [0, 1], [1], [0, 0, 0, 1, 1, 1], [], []>} : vector<2x2x8xbf16>, vector<8x16xbf16>, vector<2x2x16xf32> -> vector<2x2x16xf32>
    %24 = arith.addf %18, %23 : vector<2x2x16xf32>
    %c3_28 = arith.constant 3 : index
    %c0_29 = arith.constant 0 : index
    %c0_30 = arith.constant 0 : index
    %c0_31 = arith.constant 0 : index
    %25 = vector.load %arg1[%c3_28, %c0_29, %c0_30, %c0_31] : memref<4x3x3x8xbf16, #tpu.memory_space<vmem>>, vector<1x2x2x8xbf16>
    %26 = vector.shape_cast %25 : vector<1x2x2x8xbf16> to vector<2x2x8xbf16>
    %c4 = arith.constant 4 : index
    %c0_32 = arith.constant 0 : index
    %c0_33 = arith.constant 0 : index
    %27 = vector.load %arg2[%c4, %c0_32, %c0_33] : memref<9x8x16xbf16, #tpu.memory_space<vmem>>, vector<1x8x16xbf16>
    %28 = vector.shape_cast %27 : vector<1x8x16xbf16> to vector<8x16xbf16>
    %cst_34 = arith.constant dense<0.000000e+00> : vector<2x2x16xf32>
    %29 = tpu.matmul %26, %28, %cst_34 {dimension_numbers = #tpu.dot_dimension_numbers<[2], [0], [0, 1], [1], [0, 0, 0, 1, 1, 1], [], []>} : vector<2x2x8xbf16>, vector<8x16xbf16>, vector<2x2x16xf32> -> vector<2x2x16xf32>
    %30 = arith.addf %24, %29 : vector<2x2x16xf32>
    %c2_35 = arith.constant 2 : index
    %c0_36 = arith.constant 0 : index
    %c1_37 = arith.constant 1 : index
    %c0_38 = arith.constant 0 : index
    %31 = vector.load %arg1[%c2_35, %c0_36, %c1_37, %c0_38] : memref<4x3x3x8xbf16, #tpu.memory_space<vmem>>, vector<1x2x2x8xbf16>
    %32 = vector.shape_cast %31 : vector<1x2x2x8xbf16> to vector<2x2x8xbf16>
    %c5 = arith.constant 5 : index
    %c0_39 = arith.constant 0 : index
    %c0_40 = arith.constant 0 : index
    %33 = vector.load %arg2[%c5, %c0_39, %c0_40] : memref<9x8x16xbf16, #tpu.memory_space<vmem>>, vector<1x8x16xbf16>
    %34 = vector.shape_cast %33 : vector<1x8x16xbf16> to vector<8x16xbf16>
    %cst_41 = arith.constant dense<0.000000e+00> : vector<2x2x16xf32>
    %35 = tpu.matmul %32, %34, %cst_41 {dimension_numbers = #tpu.dot_dimension_numbers<[2], [0], [0, 1], [1], [0, 0, 0, 1, 1, 1], [], []>} : vector<2x2x8xbf16>, vector<8x16xbf16>, vector<2x2x16xf32> -> vector<2x2x16xf32>
    %36 = arith.addf %30, %35 : vector<2x2x16xf32>
    %c0_42 = arith.constant 0 : index
    %c1_43 = arith.constant 1 : index
    %c0_44 = arith.constant 0 : index
    %c0_45 = arith.constant 0 : index
    %37 = vector.load %arg1[%c0_42, %c1_43, %c0_44, %c0_45] : memref<4x3x3x8xbf16, #tpu.memory_space<vmem>>, vector<1x2x2x8xbf16>
    %38 = vector.shape_cast %37 : vector<1x2x2x8xbf16> to vector<2x2x8xbf16>
    %c6 = arith.constant 6 : index
    %c0_46 = arith.constant 0 : index
    %c0_47 = arith.constant 0 : index
    %39 = vector.load %arg2[%c6, %c0_46, %c0_47] : memref<9x8x16xbf16, #tpu.memory_space<vmem>>, vector<1x8x16xbf16>
    %40 = vector.shape_cast %39 : vector<1x8x16xbf16> to vector<8x16xbf16>
    %cst_48 = arith.constant dense<0.000000e+00> : vector<2x2x16xf32>
    %41 = tpu.matmul %38, %40, %cst_48 {dimension_numbers = #tpu.dot_dimension_numbers<[2], [0], [0, 1], [1], [0, 0, 0, 1, 1, 1], [], []>} : vector<2x2x8xbf16>, vector<8x16xbf16>, vector<2x2x16xf32> -> vector<2x2x16xf32>
    %42 = arith.addf %36, %41 : vector<2x2x16xf32>
    %c1_49 = arith.constant 1 : index
    %c1_50 = arith.constant 1 : index
    %c0_51 = arith.constant 0 : index
    %c0_52 = arith.constant 0 : index
    %43 = vector.load %arg1[%c1_49, %c1_50, %c0_51, %c0_52] : memref<4x3x3x8xbf16, #tpu.memory_space<vmem>>, vector<1x2x2x8xbf16>
    %44 = vector.shape_cast %43 : vector<1x2x2x8xbf16> to vector<2x2x8xbf16>
    %c7 = arith.constant 7 : index
    %c0_53 = arith.constant 0 : index
    %c0_54 = arith.constant 0 : index
    %45 = vector.load %arg2[%c7, %c0_53, %c0_54] : memref<9x8x16xbf16, #tpu.memory_space<vmem>>, vector<1x8x16xbf16>
    %46 = vector.shape_cast %45 : vector<1x8x16xbf16> to vector<8x16xbf16>
    %cst_55 = arith.constant dense<0.000000e+00> : vector<2x2x16xf32>
    %47 = tpu.matmul %44, %46, %cst_55 {dimension_numbers = #tpu.dot_dimension_numbers<[2], [0], [0, 1], [1], [0, 0, 0, 1, 1, 1], [], []>} : vector<2x2x8xbf16>, vector<8x16xbf16>, vector<2x2x16xf32> -> vector<2x2x16xf32>
    %48 = arith.addf %42, %47 : vector<2x2x16xf32>
    %c0_56 = arith.constant 0 : index
    %c1_57 = arith.constant 1 : index
    %c1_58 = arith.constant 1 : index
    %c0_59 = arith.constant 0 : index
    %49 = vector.load %arg1[%c0_56, %c1_57, %c1_58, %c0_59] : memref<4x3x3x8xbf16, #tpu.memory_space<vmem>>, vector<1x2x2x8xbf16>
    %50 = vector.shape_cast %49 : vector<1x2x2x8xbf16> to vector<2x2x8xbf16>
    %c8 = arith.constant 8 : index
    %c0_60 = arith.constant 0 : index
    %c0_61 = arith.constant 0 : index
    %51 = vector.load %arg2[%c8, %c0_60, %c0_61] : memref<9x8x16xbf16, #tpu.memory_space<vmem>>, vector<1x8x16xbf16>
    %52 = vector.shape_cast %51 : vector<1x8x16xbf16> to vector<8x16xbf16>
    %cst_62 = arith.constant dense<0.000000e+00> : vector<2x2x16xf32>
    %53 = tpu.matmul %50, %52, %cst_62 {dimension_numbers = #tpu.dot_dimension_numbers<[2], [0], [0, 1], [1], [0, 0, 0, 1, 1, 1], [], []>} : vector<2x2x8xbf16>, vector<8x16xbf16>, vector<2x2x16xf32> -> vector<2x2x16xf32>
    %54 = arith.addf %48, %53 : vector<2x2x16xf32>
    %c0_63 = arith.constant 0 : index
    %c0_64 = arith.constant 0 : index
    %55 = vector.load %arg3[%c0_63, %c0_64] : memref<1x16xf32, #tpu.memory_space<vmem>>, vector<1x16xf32>
    %56 = vector.shape_cast %55 : vector<1x16xf32> to vector<1x1x16xf32>
    %57 = vector.broadcast %56 : vector<1x1x16xf32> to vector<2x2x16xf32>
    %58 = arith.addf %54, %57 : vector<2x2x16xf32>
    %cst_65 = arith.constant 0.000000e+00 : f32
    %59 = vector.broadcast %cst_65 : f32 to vector<2x2x16xf32>
    %60 = arith.maximumf %58, %59 : vector<2x2x16xf32>
    %61 = arith.truncf %60 : vector<2x2x16xf32> to vector<2x2x16xbf16>
    %c0_66 = arith.constant 0 : index
    %c0_67 = arith.constant 0 : index
    %c0_68 = arith.constant 0 : index
    %c0_69 = arith.constant 0 : index
    %62 = vector.load %arg4[%c0_66, %c0_67, %c0_68, %c0_69] : memref<1x2x2x16xbf16, #tpu.memory_space<vmem>>, vector<1x2x2x16xbf16>
    %63 = vector.shape_cast %62 : vector<1x2x2x16xbf16> to vector<2x2x16xbf16>
    %64 = vector.shape_cast %61 : vector<2x2x16xbf16> to vector<1x2x2x16xbf16>
    tpu.vector_store %arg4[%c0_66, %c0_67, %c0_68, %c0_69], %64 {strides = array<i32>} : memref<1x2x2x16xbf16, #tpu.memory_space<vmem>>, vector<1x2x2x16xbf16>,
    return
  }
  func.func @transform_0(%arg0: i32) -> (i32, i32, i32, i32) {
    %c0_i32 = arith.constant 0 : i32
    %c0_i32_0 = arith.constant 0 : i32
    %c0_i32_1 = arith.constant 0 : i32
    %c0_i32_2 = arith.constant 0 : i32
    return %arg0, %c0_i32, %c0_i32_0, %c0_i32_1 : i32, i32, i32, i32
  }
  func.func @transform_1(%arg0: i32) -> (i32, i32, i32) {
    %c0_i32 = arith.constant 0 : i32
    %c0_i32_0 = arith.constant 0 : i32
    %c0_i32_1 = arith.constant 0 : i32
    %c0_i32_2 = arith.constant 0 : i32
    return %c0_i32, %c0_i32_0, %c0_i32_1 : i32, i32, i32
  }
  func.func @transform_2(%arg0: i32) -> (i32, i32) {
    %c0_i32 = arith.constant 0 : i32
    %c0_i32_0 = arith.constant 0 : i32
    %c0_i32_1 = arith.constant 0 : i32
    return %c0_i32, %c0_i32_0 : i32, i32
  }
  func.func @transform_3(%arg0: i32) -> (i32, i32, i32, i32) {
    %c0_i32 = arith.constant 0 : i32
    %c0_i32_0 = arith.constant 0 : i32
    %c0_i32_1 = arith.constant 0 : i32
    %c0_i32_2 = arith.constant 0 : i32
    return %arg0, %c0_i32, %c0_i32_0, %c0_i32_1 : i32, i32, i32, i32
  }
}

module attributes {stable_mosaic.version = 11 : i64} {
  func.func @_conv3x3_s2_relu_kernel(%arg0: i32, %arg1: memref<4x2x2x16xbf16, #tpu.memory_space<vmem>>, %arg2: memref<9x16x32xbf16, #tpu.memory_space<vmem>>, %arg3: memref<1x32xf32, #tpu.memory_space<vmem>>, %arg4: memref<1x1x1x32xbf16, #tpu.memory_space<vmem>>) attributes {dimension_semantics = [#tpu.dimension_semantics<parallel>], iteration_bounds = array<i64: 2>, scalar_prefetch = 0 : i64, scratch_operands = 0 : i64, tpu.core_type = #tpu.core_type<tc>, window_params = [{transform_indices = @transform_0, window_bounds = array<i64: 4, 2, 2, 16>}, {pipeline_mode = #tpu.pipeline_mode<synchronous>, transform_indices = @transform_1, window_bounds = array<i64: 9, 16, 32>}, {pipeline_mode = #tpu.pipeline_mode<synchronous>, transform_indices = @transform_2, window_bounds = array<i64: 1, 32>}, {transform_indices = @transform_3, window_bounds = array<i64: 1, 1, 1, 32>}]} {
    %cst = arith.constant 0.000000e+00 : f32
    %0 = vector.broadcast %cst : f32 to vector<1x1x32xf32>
    %c0 = arith.constant 0 : index
    %c0_0 = arith.constant 0 : index
    %c0_1 = arith.constant 0 : index
    %c0_2 = arith.constant 0 : index
    %1 = vector.load %arg1[%c0, %c0_0, %c0_1, %c0_2] : memref<4x2x2x16xbf16, #tpu.memory_space<vmem>>, vector<1x1x1x16xbf16>
    %2 = vector.shape_cast %1 : vector<1x1x1x16xbf16> to vector<1x1x16xbf16>
    %c0_3 = arith.constant 0 : index
    %c0_4 = arith.constant 0 : index
    %c0_5 = arith.constant 0 : index
    %3 = vector.load %arg2[%c0_3, %c0_4, %c0_5] : memref<9x16x32xbf16, #tpu.memory_space<vmem>>, vector<1x16x32xbf16>
    %4 = vector.shape_cast %3 : vector<1x16x32xbf16> to vector<16x32xbf16>
    %cst_6 = arith.constant dense<0.000000e+00> : vector<1x1x32xf32>
    %5 = tpu.matmul %2, %4, %cst_6 {dimension_numbers = #tpu.dot_dimension_numbers<[2], [0], [0, 1], [1], [0, 0, 0, 1, 1, 1], [], []>} : vector<1x1x16xbf16>, vector<16x32xbf16>, vector<1x1x32xf32> -> vector<1x1x32xf32>
    %6 = arith.addf %0, %5 : vector<1x1x32xf32>
    %c1 = arith.constant 1 : index
    %c0_7 = arith.constant 0 : index
    %c0_8 = arith.constant 0 : index
    %c0_9 = arith.constant 0 : index
    %7 = vector.load %arg1[%c1, %c0_7, %c0_8, %c0_9] : memref<4x2x2x16xbf16, #tpu.memory_space<vmem>>, vector<1x1x1x16xbf16>
    %8 = vector.shape_cast %7 : vector<1x1x1x16xbf16> to vector<1x1x16xbf16>
    %c1_10 = arith.constant 1 : index
    %c0_11 = arith.constant 0 : index
    %c0_12 = arith.constant 0 : index
    %9 = vector.load %arg2[%c1_10, %c0_11, %c0_12] : memref<9x16x32xbf16, #tpu.memory_space<vmem>>, vector<1x16x32xbf16>
    %10 = vector.shape_cast %9 : vector<1x16x32xbf16> to vector<16x32xbf16>
    %cst_13 = arith.constant dense<0.000000e+00> : vector<1x1x32xf32>
    %11 = tpu.matmul %8, %10, %cst_13 {dimension_numbers = #tpu.dot_dimension_numbers<[2], [0], [0, 1], [1], [0, 0, 0, 1, 1, 1], [], []>} : vector<1x1x16xbf16>, vector<16x32xbf16>, vector<1x1x32xf32> -> vector<1x1x32xf32>
    %12 = arith.addf %6, %11 : vector<1x1x32xf32>
    %c0_14 = arith.constant 0 : index
    %c0_15 = arith.constant 0 : index
    %c1_16 = arith.constant 1 : index
    %c0_17 = arith.constant 0 : index
    %13 = vector.load %arg1[%c0_14, %c0_15, %c1_16, %c0_17] : memref<4x2x2x16xbf16, #tpu.memory_space<vmem>>, vector<1x1x1x16xbf16>
    %14 = vector.shape_cast %13 : vector<1x1x1x16xbf16> to vector<1x1x16xbf16>
    %c2 = arith.constant 2 : index
    %c0_18 = arith.constant 0 : index
    %c0_19 = arith.constant 0 : index
    %15 = vector.load %arg2[%c2, %c0_18, %c0_19] : memref<9x16x32xbf16, #tpu.memory_space<vmem>>, vector<1x16x32xbf16>
    %16 = vector.shape_cast %15 : vector<1x16x32xbf16> to vector<16x32xbf16>
    %cst_20 = arith.constant dense<0.000000e+00> : vector<1x1x32xf32>
    %17 = tpu.matmul %14, %16, %cst_20 {dimension_numbers = #tpu.dot_dimension_numbers<[2], [0], [0, 1], [1], [0, 0, 0, 1, 1, 1], [], []>} : vector<1x1x16xbf16>, vector<16x32xbf16>, vector<1x1x32xf32> -> vector<1x1x32xf32>
    %18 = arith.addf %12, %17 : vector<1x1x32xf32>
    %c2_21 = arith.constant 2 : index
    %c0_22 = arith.constant 0 : index
    %c0_23 = arith.constant 0 : index
    %c0_24 = arith.constant 0 : index
    %19 = vector.load %arg1[%c2_21, %c0_22, %c0_23, %c0_24] : memref<4x2x2x16xbf16, #tpu.memory_space<vmem>>, vector<1x1x1x16xbf16>
    %20 = vector.shape_cast %19 : vector<1x1x1x16xbf16> to vector<1x1x16xbf16>
    %c3 = arith.constant 3 : index
    %c0_25 = arith.constant 0 : index
    %c0_26 = arith.constant 0 : index
    %21 = vector.load %arg2[%c3, %c0_25, %c0_26] : memref<9x16x32xbf16, #tpu.memory_space<vmem>>, vector<1x16x32xbf16>
    %22 = vector.shape_cast %21 : vector<1x16x32xbf16> to vector<16x32xbf16>
    %cst_27 = arith.constant dense<0.000000e+00> : vector<1x1x32xf32>
    %23 = tpu.matmul %20, %22, %cst_27 {dimension_numbers = #tpu.dot_dimension_numbers<[2], [0], [0, 1], [1], [0, 0, 0, 1, 1, 1], [], []>} : vector<1x1x16xbf16>, vector<16x32xbf16>, vector<1x1x32xf32> -> vector<1x1x32xf32>
    %24 = arith.addf %18, %23 : vector<1x1x32xf32>
    %c3_28 = arith.constant 3 : index
    %c0_29 = arith.constant 0 : index
    %c0_30 = arith.constant 0 : index
    %c0_31 = arith.constant 0 : index
    %25 = vector.load %arg1[%c3_28, %c0_29, %c0_30, %c0_31] : memref<4x2x2x16xbf16, #tpu.memory_space<vmem>>, vector<1x1x1x16xbf16>
    %26 = vector.shape_cast %25 : vector<1x1x1x16xbf16> to vector<1x1x16xbf16>
    %c4 = arith.constant 4 : index
    %c0_32 = arith.constant 0 : index
    %c0_33 = arith.constant 0 : index
    %27 = vector.load %arg2[%c4, %c0_32, %c0_33] : memref<9x16x32xbf16, #tpu.memory_space<vmem>>, vector<1x16x32xbf16>
    %28 = vector.shape_cast %27 : vector<1x16x32xbf16> to vector<16x32xbf16>
    %cst_34 = arith.constant dense<0.000000e+00> : vector<1x1x32xf32>
    %29 = tpu.matmul %26, %28, %cst_34 {dimension_numbers = #tpu.dot_dimension_numbers<[2], [0], [0, 1], [1], [0, 0, 0, 1, 1, 1], [], []>} : vector<1x1x16xbf16>, vector<16x32xbf16>, vector<1x1x32xf32> -> vector<1x1x32xf32>
    %30 = arith.addf %24, %29 : vector<1x1x32xf32>
    %c2_35 = arith.constant 2 : index
    %c0_36 = arith.constant 0 : index
    %c1_37 = arith.constant 1 : index
    %c0_38 = arith.constant 0 : index
    %31 = vector.load %arg1[%c2_35, %c0_36, %c1_37, %c0_38] : memref<4x2x2x16xbf16, #tpu.memory_space<vmem>>, vector<1x1x1x16xbf16>
    %32 = vector.shape_cast %31 : vector<1x1x1x16xbf16> to vector<1x1x16xbf16>
    %c5 = arith.constant 5 : index
    %c0_39 = arith.constant 0 : index
    %c0_40 = arith.constant 0 : index
    %33 = vector.load %arg2[%c5, %c0_39, %c0_40] : memref<9x16x32xbf16, #tpu.memory_space<vmem>>, vector<1x16x32xbf16>
    %34 = vector.shape_cast %33 : vector<1x16x32xbf16> to vector<16x32xbf16>
    %cst_41 = arith.constant dense<0.000000e+00> : vector<1x1x32xf32>
    %35 = tpu.matmul %32, %34, %cst_41 {dimension_numbers = #tpu.dot_dimension_numbers<[2], [0], [0, 1], [1], [0, 0, 0, 1, 1, 1], [], []>} : vector<1x1x16xbf16>, vector<16x32xbf16>, vector<1x1x32xf32> -> vector<1x1x32xf32>
    %36 = arith.addf %30, %35 : vector<1x1x32xf32>
    %c0_42 = arith.constant 0 : index
    %c1_43 = arith.constant 1 : index
    %c0_44 = arith.constant 0 : index
    %c0_45 = arith.constant 0 : index
    %37 = vector.load %arg1[%c0_42, %c1_43, %c0_44, %c0_45] : memref<4x2x2x16xbf16, #tpu.memory_space<vmem>>, vector<1x1x1x16xbf16>
    %38 = vector.shape_cast %37 : vector<1x1x1x16xbf16> to vector<1x1x16xbf16>
    %c6 = arith.constant 6 : index
    %c0_46 = arith.constant 0 : index
    %c0_47 = arith.constant 0 : index
    %39 = vector.load %arg2[%c6, %c0_46, %c0_47] : memref<9x16x32xbf16, #tpu.memory_space<vmem>>, vector<1x16x32xbf16>
    %40 = vector.shape_cast %39 : vector<1x16x32xbf16> to vector<16x32xbf16>
    %cst_48 = arith.constant dense<0.000000e+00> : vector<1x1x32xf32>
    %41 = tpu.matmul %38, %40, %cst_48 {dimension_numbers = #tpu.dot_dimension_numbers<[2], [0], [0, 1], [1], [0, 0, 0, 1, 1, 1], [], []>} : vector<1x1x16xbf16>, vector<16x32xbf16>, vector<1x1x32xf32> -> vector<1x1x32xf32>
    %42 = arith.addf %36, %41 : vector<1x1x32xf32>
    %c1_49 = arith.constant 1 : index
    %c1_50 = arith.constant 1 : index
    %c0_51 = arith.constant 0 : index
    %c0_52 = arith.constant 0 : index
    %43 = vector.load %arg1[%c1_49, %c1_50, %c0_51, %c0_52] : memref<4x2x2x16xbf16, #tpu.memory_space<vmem>>, vector<1x1x1x16xbf16>
    %44 = vector.shape_cast %43 : vector<1x1x1x16xbf16> to vector<1x1x16xbf16>
    %c7 = arith.constant 7 : index
    %c0_53 = arith.constant 0 : index
    %c0_54 = arith.constant 0 : index
    %45 = vector.load %arg2[%c7, %c0_53, %c0_54] : memref<9x16x32xbf16, #tpu.memory_space<vmem>>, vector<1x16x32xbf16>
    %46 = vector.shape_cast %45 : vector<1x16x32xbf16> to vector<16x32xbf16>
    %cst_55 = arith.constant dense<0.000000e+00> : vector<1x1x32xf32>
    %47 = tpu.matmul %44, %46, %cst_55 {dimension_numbers = #tpu.dot_dimension_numbers<[2], [0], [0, 1], [1], [0, 0, 0, 1, 1, 1], [], []>} : vector<1x1x16xbf16>, vector<16x32xbf16>, vector<1x1x32xf32> -> vector<1x1x32xf32>
    %48 = arith.addf %42, %47 : vector<1x1x32xf32>
    %c0_56 = arith.constant 0 : index
    %c1_57 = arith.constant 1 : index
    %c1_58 = arith.constant 1 : index
    %c0_59 = arith.constant 0 : index
    %49 = vector.load %arg1[%c0_56, %c1_57, %c1_58, %c0_59] : memref<4x2x2x16xbf16, #tpu.memory_space<vmem>>, vector<1x1x1x16xbf16>
    %50 = vector.shape_cast %49 : vector<1x1x1x16xbf16> to vector<1x1x16xbf16>
    %c8 = arith.constant 8 : index
    %c0_60 = arith.constant 0 : index
    %c0_61 = arith.constant 0 : index
    %51 = vector.load %arg2[%c8, %c0_60, %c0_61] : memref<9x16x32xbf16, #tpu.memory_space<vmem>>, vector<1x16x32xbf16>
    %52 = vector.shape_cast %51 : vector<1x16x32xbf16> to vector<16x32xbf16>
    %cst_62 = arith.constant dense<0.000000e+00> : vector<1x1x32xf32>
    %53 = tpu.matmul %50, %52, %cst_62 {dimension_numbers = #tpu.dot_dimension_numbers<[2], [0], [0, 1], [1], [0, 0, 0, 1, 1, 1], [], []>} : vector<1x1x16xbf16>, vector<16x32xbf16>, vector<1x1x32xf32> -> vector<1x1x32xf32>
    %54 = arith.addf %48, %53 : vector<1x1x32xf32>
    %c0_63 = arith.constant 0 : index
    %c0_64 = arith.constant 0 : index
    %55 = vector.load %arg3[%c0_63, %c0_64] : memref<1x32xf32, #tpu.memory_space<vmem>>, vector<1x32xf32>
    %56 = vector.shape_cast %55 : vector<1x32xf32> to vector<1x1x32xf32>
    %57 = arith.addf %54, %56 : vector<1x1x32xf32>
    %cst_65 = arith.constant 0.000000e+00 : f32
    %58 = vector.broadcast %cst_65 : f32 to vector<1x1x32xf32>
    %59 = arith.maximumf %57, %58 : vector<1x1x32xf32>
    %60 = arith.truncf %59 : vector<1x1x32xf32> to vector<1x1x32xbf16>
    %c0_66 = arith.constant 0 : index
    %c0_67 = arith.constant 0 : index
    %c0_68 = arith.constant 0 : index
    %c0_69 = arith.constant 0 : index
    %61 = vector.load %arg4[%c0_66, %c0_67, %c0_68, %c0_69] : memref<1x1x1x32xbf16, #tpu.memory_space<vmem>>, vector<1x1x1x32xbf16>
    %62 = vector.shape_cast %61 : vector<1x1x1x32xbf16> to vector<1x1x32xbf16>
    %63 = vector.shape_cast %60 : vector<1x1x32xbf16> to vector<1x1x1x32xbf16>
    tpu.vector_store %arg4[%c0_66, %c0_67, %c0_68, %c0_69], %63 {strides = array<i32>} : memref<1x1x1x32xbf16, #tpu.memory_space<vmem>>, vector<1x1x1x32xbf16>,
    return
  }
  func.func @transform_0(%arg0: i32) -> (i32, i32, i32, i32) {
    %c0_i32 = arith.constant 0 : i32
    %c0_i32_0 = arith.constant 0 : i32
    %c0_i32_1 = arith.constant 0 : i32
    %c0_i32_2 = arith.constant 0 : i32
    return %arg0, %c0_i32, %c0_i32_0, %c0_i32_1 : i32, i32, i32, i32
  }
  func.func @transform_1(%arg0: i32) -> (i32, i32, i32) {
    %c0_i32 = arith.constant 0 : i32
    %c0_i32_0 = arith.constant 0 : i32
    %c0_i32_1 = arith.constant 0 : i32
    %c0_i32_2 = arith.constant 0 : i32
    return %c0_i32, %c0_i32_0, %c0_i32_1 : i32, i32, i32
  }
  func.func @transform_2(%arg0: i32) -> (i32, i32) {
    %c0_i32 = arith.constant 0 : i32
    %c0_i32_0 = arith.constant 0 : i32
    %c0_i32_1 = arith.constant 0 : i32
    return %c0_i32, %c0_i32_0 : i32, i32
  }
  func.func @transform_3(%arg0: i32) -> (i32, i32, i32, i32) {
    %c0_i32 = arith.constant 0 : i32
    %c0_i32_0 = arith.constant 0 : i32
    %c0_i32_1 = arith.constant 0 : i32
    %c0_i32_2 = arith.constant 0 : i32
    return %arg0, %c0_i32, %c0_i32_0, %c0_i32_1 : i32, i32, i32, i32
  }
}

module attributes {stable_mosaic.version = 11 : i64} {
  func.func @_conv3x3_s2_relu_kernel(%arg0: i32, %arg1: memref<4x5x5x3xbf16, #tpu.memory_space<vmem>>, %arg2: memref<9x3x8xbf16, #tpu.memory_space<vmem>>, %arg3: memref<1x8xf32, #tpu.memory_space<vmem>>, %arg4: memref<1x4x4x8xbf16, #tpu.memory_space<vmem>>) attributes {dimension_semantics = [#tpu.dimension_semantics<parallel>], iteration_bounds = array<i64: 2>, scalar_prefetch = 0 : i64, scratch_operands = 0 : i64, tpu.core_type = #tpu.core_type<tc>, window_params = [{transform_indices = @transform_0, window_bounds = array<i64: 4, 5, 5, 3>}, {pipeline_mode = #tpu.pipeline_mode<synchronous>, transform_indices = @transform_1, window_bounds = array<i64: 9, 3, 8>}, {pipeline_mode = #tpu.pipeline_mode<synchronous>, transform_indices = @transform_2, window_bounds = array<i64: 1, 8>}, {transform_indices = @transform_3, window_bounds = array<i64: 1, 4, 4, 8>}]} {
    %cst = arith.constant 0.000000e+00 : f32
    %0 = vector.broadcast %cst : f32 to vector<4x4x8xf32>
    %c0 = arith.constant 0 : index
    %c0_0 = arith.constant 0 : index
    %c0_1 = arith.constant 0 : index
    %c0_2 = arith.constant 0 : index
    %1 = vector.load %arg1[%c0, %c0_0, %c0_1, %c0_2] : memref<4x5x5x3xbf16, #tpu.memory_space<vmem>>, vector<1x4x4x3xbf16>
    %2 = vector.shape_cast %1 : vector<1x4x4x3xbf16> to vector<4x4x3xbf16>
    %c0_3 = arith.constant 0 : index
    %c0_4 = arith.constant 0 : index
    %c0_5 = arith.constant 0 : index
    %3 = vector.load %arg2[%c0_3, %c0_4, %c0_5] : memref<9x3x8xbf16, #tpu.memory_space<vmem>>, vector<1x3x8xbf16>
    %4 = vector.shape_cast %3 : vector<1x3x8xbf16> to vector<3x8xbf16>
    %cst_6 = arith.constant dense<0.000000e+00> : vector<4x4x8xf32>
    %5 = tpu.matmul %2, %4, %cst_6 {dimension_numbers = #tpu.dot_dimension_numbers<[2], [0], [0, 1], [1], [0, 0, 0, 1, 1, 1], [], []>} : vector<4x4x3xbf16>, vector<3x8xbf16>, vector<4x4x8xf32> -> vector<4x4x8xf32>
    %6 = arith.addf %0, %5 : vector<4x4x8xf32>
    %c1 = arith.constant 1 : index
    %c0_7 = arith.constant 0 : index
    %c0_8 = arith.constant 0 : index
    %c0_9 = arith.constant 0 : index
    %7 = vector.load %arg1[%c1, %c0_7, %c0_8, %c0_9] : memref<4x5x5x3xbf16, #tpu.memory_space<vmem>>, vector<1x4x4x3xbf16>
    %8 = vector.shape_cast %7 : vector<1x4x4x3xbf16> to vector<4x4x3xbf16>
    %c1_10 = arith.constant 1 : index
    %c0_11 = arith.constant 0 : index
    %c0_12 = arith.constant 0 : index
    %9 = vector.load %arg2[%c1_10, %c0_11, %c0_12] : memref<9x3x8xbf16, #tpu.memory_space<vmem>>, vector<1x3x8xbf16>
    %10 = vector.shape_cast %9 : vector<1x3x8xbf16> to vector<3x8xbf16>
    %cst_13 = arith.constant dense<0.000000e+00> : vector<4x4x8xf32>
    %11 = tpu.matmul %8, %10, %cst_13 {dimension_numbers = #tpu.dot_dimension_numbers<[2], [0], [0, 1], [1], [0, 0, 0, 1, 1, 1], [], []>} : vector<4x4x3xbf16>, vector<3x8xbf16>, vector<4x4x8xf32> -> vector<4x4x8xf32>
    %12 = arith.addf %6, %11 : vector<4x4x8xf32>
    %c0_14 = arith.constant 0 : index
    %c0_15 = arith.constant 0 : index
    %c1_16 = arith.constant 1 : index
    %c0_17 = arith.constant 0 : index
    %13 = vector.load %arg1[%c0_14, %c0_15, %c1_16, %c0_17] : memref<4x5x5x3xbf16, #tpu.memory_space<vmem>>, vector<1x4x4x3xbf16>
    %14 = vector.shape_cast %13 : vector<1x4x4x3xbf16> to vector<4x4x3xbf16>
    %c2 = arith.constant 2 : index
    %c0_18 = arith.constant 0 : index
    %c0_19 = arith.constant 0 : index
    %15 = vector.load %arg2[%c2, %c0_18, %c0_19] : memref<9x3x8xbf16, #tpu.memory_space<vmem>>, vector<1x3x8xbf16>
    %16 = vector.shape_cast %15 : vector<1x3x8xbf16> to vector<3x8xbf16>
    %cst_20 = arith.constant dense<0.000000e+00> : vector<4x4x8xf32>
    %17 = tpu.matmul %14, %16, %cst_20 {dimension_numbers = #tpu.dot_dimension_numbers<[2], [0], [0, 1], [1], [0, 0, 0, 1, 1, 1], [], []>} : vector<4x4x3xbf16>, vector<3x8xbf16>, vector<4x4x8xf32> -> vector<4x4x8xf32>
    %18 = arith.addf %12, %17 : vector<4x4x8xf32>
    %c2_21 = arith.constant 2 : index
    %c0_22 = arith.constant 0 : index
    %c0_23 = arith.constant 0 : index
    %c0_24 = arith.constant 0 : index
    %19 = vector.load %arg1[%c2_21, %c0_22, %c0_23, %c0_24] : memref<4x5x5x3xbf16, #tpu.memory_space<vmem>>, vector<1x4x4x3xbf16>
    %20 = vector.shape_cast %19 : vector<1x4x4x3xbf16> to vector<4x4x3xbf16>
    %c3 = arith.constant 3 : index
    %c0_25 = arith.constant 0 : index
    %c0_26 = arith.constant 0 : index
    %21 = vector.load %arg2[%c3, %c0_25, %c0_26] : memref<9x3x8xbf16, #tpu.memory_space<vmem>>, vector<1x3x8xbf16>
    %22 = vector.shape_cast %21 : vector<1x3x8xbf16> to vector<3x8xbf16>
    %cst_27 = arith.constant dense<0.000000e+00> : vector<4x4x8xf32>
    %23 = tpu.matmul %20, %22, %cst_27 {dimension_numbers = #tpu.dot_dimension_numbers<[2], [0], [0, 1], [1], [0, 0, 0, 1, 1, 1], [], []>} : vector<4x4x3xbf16>, vector<3x8xbf16>, vector<4x4x8xf32> -> vector<4x4x8xf32>
    %24 = arith.addf %18, %23 : vector<4x4x8xf32>
    %c3_28 = arith.constant 3 : index
    %c0_29 = arith.constant 0 : index
    %c0_30 = arith.constant 0 : index
    %c0_31 = arith.constant 0 : index
    %25 = vector.load %arg1[%c3_28, %c0_29, %c0_30, %c0_31] : memref<4x5x5x3xbf16, #tpu.memory_space<vmem>>, vector<1x4x4x3xbf16>
    %26 = vector.shape_cast %25 : vector<1x4x4x3xbf16> to vector<4x4x3xbf16>
    %c4 = arith.constant 4 : index
    %c0_32 = arith.constant 0 : index
    %c0_33 = arith.constant 0 : index
    %27 = vector.load %arg2[%c4, %c0_32, %c0_33] : memref<9x3x8xbf16, #tpu.memory_space<vmem>>, vector<1x3x8xbf16>
    %28 = vector.shape_cast %27 : vector<1x3x8xbf16> to vector<3x8xbf16>
    %cst_34 = arith.constant dense<0.000000e+00> : vector<4x4x8xf32>
    %29 = tpu.matmul %26, %28, %cst_34 {dimension_numbers = #tpu.dot_dimension_numbers<[2], [0], [0, 1], [1], [0, 0, 0, 1, 1, 1], [], []>} : vector<4x4x3xbf16>, vector<3x8xbf16>, vector<4x4x8xf32> -> vector<4x4x8xf32>
    %30 = arith.addf %24, %29 : vector<4x4x8xf32>
    %c2_35 = arith.constant 2 : index
    %c0_36 = arith.constant 0 : index
    %c1_37 = arith.constant 1 : index
    %c0_38 = arith.constant 0 : index
    %31 = vector.load %arg1[%c2_35, %c0_36, %c1_37, %c0_38] : memref<4x5x5x3xbf16, #tpu.memory_space<vmem>>, vector<1x4x4x3xbf16>
    %32 = vector.shape_cast %31 : vector<1x4x4x3xbf16> to vector<4x4x3xbf16>
    %c5 = arith.constant 5 : index
    %c0_39 = arith.constant 0 : index
    %c0_40 = arith.constant 0 : index
    %33 = vector.load %arg2[%c5, %c0_39, %c0_40] : memref<9x3x8xbf16, #tpu.memory_space<vmem>>, vector<1x3x8xbf16>
    %34 = vector.shape_cast %33 : vector<1x3x8xbf16> to vector<3x8xbf16>
    %cst_41 = arith.constant dense<0.000000e+00> : vector<4x4x8xf32>
    %35 = tpu.matmul %32, %34, %cst_41 {dimension_numbers = #tpu.dot_dimension_numbers<[2], [0], [0, 1], [1], [0, 0, 0, 1, 1, 1], [], []>} : vector<4x4x3xbf16>, vector<3x8xbf16>, vector<4x4x8xf32> -> vector<4x4x8xf32>
    %36 = arith.addf %30, %35 : vector<4x4x8xf32>
    %c0_42 = arith.constant 0 : index
    %c1_43 = arith.constant 1 : index
    %c0_44 = arith.constant 0 : index
    %c0_45 = arith.constant 0 : index
    %37 = vector.load %arg1[%c0_42, %c1_43, %c0_44, %c0_45] : memref<4x5x5x3xbf16, #tpu.memory_space<vmem>>, vector<1x4x4x3xbf16>
    %38 = vector.shape_cast %37 : vector<1x4x4x3xbf16> to vector<4x4x3xbf16>
    %c6 = arith.constant 6 : index
    %c0_46 = arith.constant 0 : index
    %c0_47 = arith.constant 0 : index
    %39 = vector.load %arg2[%c6, %c0_46, %c0_47] : memref<9x3x8xbf16, #tpu.memory_space<vmem>>, vector<1x3x8xbf16>
    %40 = vector.shape_cast %39 : vector<1x3x8xbf16> to vector<3x8xbf16>
    %cst_48 = arith.constant dense<0.000000e+00> : vector<4x4x8xf32>
    %41 = tpu.matmul %38, %40, %cst_48 {dimension_numbers = #tpu.dot_dimension_numbers<[2], [0], [0, 1], [1], [0, 0, 0, 1, 1, 1], [], []>} : vector<4x4x3xbf16>, vector<3x8xbf16>, vector<4x4x8xf32> -> vector<4x4x8xf32>
    %42 = arith.addf %36, %41 : vector<4x4x8xf32>
    %c1_49 = arith.constant 1 : index
    %c1_50 = arith.constant 1 : index
    %c0_51 = arith.constant 0 : index
    %c0_52 = arith.constant 0 : index
    %43 = vector.load %arg1[%c1_49, %c1_50, %c0_51, %c0_52] : memref<4x5x5x3xbf16, #tpu.memory_space<vmem>>, vector<1x4x4x3xbf16>
    %44 = vector.shape_cast %43 : vector<1x4x4x3xbf16> to vector<4x4x3xbf16>
    %c7 = arith.constant 7 : index
    %c0_53 = arith.constant 0 : index
    %c0_54 = arith.constant 0 : index
    %45 = vector.load %arg2[%c7, %c0_53, %c0_54] : memref<9x3x8xbf16, #tpu.memory_space<vmem>>, vector<1x3x8xbf16>
    %46 = vector.shape_cast %45 : vector<1x3x8xbf16> to vector<3x8xbf16>
    %cst_55 = arith.constant dense<0.000000e+00> : vector<4x4x8xf32>
    %47 = tpu.matmul %44, %46, %cst_55 {dimension_numbers = #tpu.dot_dimension_numbers<[2], [0], [0, 1], [1], [0, 0, 0, 1, 1, 1], [], []>} : vector<4x4x3xbf16>, vector<3x8xbf16>, vector<4x4x8xf32> -> vector<4x4x8xf32>
    %48 = arith.addf %42, %47 : vector<4x4x8xf32>
    %c0_56 = arith.constant 0 : index
    %c1_57 = arith.constant 1 : index
    %c1_58 = arith.constant 1 : index
    %c0_59 = arith.constant 0 : index
    %49 = vector.load %arg1[%c0_56, %c1_57, %c1_58, %c0_59] : memref<4x5x5x3xbf16, #tpu.memory_space<vmem>>, vector<1x4x4x3xbf16>
    %50 = vector.shape_cast %49 : vector<1x4x4x3xbf16> to vector<4x4x3xbf16>
    %c8 = arith.constant 8 : index
    %c0_60 = arith.constant 0 : index
    %c0_61 = arith.constant 0 : index
    %51 = vector.load %arg2[%c8, %c0_60, %c0_61] : memref<9x3x8xbf16, #tpu.memory_space<vmem>>, vector<1x3x8xbf16>
    %52 = vector.shape_cast %51 : vector<1x3x8xbf16> to vector<3x8xbf16>
    %cst_62 = arith.constant dense<0.000000e+00> : vector<4x4x8xf32>
    %53 = tpu.matmul %50, %52, %cst_62 {dimension_numbers = #tpu.dot_dimension_numbers<[2], [0], [0, 1], [1], [0, 0, 0, 1, 1, 1], [], []>} : vector<4x4x3xbf16>, vector<3x8xbf16>, vector<4x4x8xf32> -> vector<4x4x8xf32>
    %54 = arith.addf %48, %53 : vector<4x4x8xf32>
    %c0_63 = arith.constant 0 : index
    %c0_64 = arith.constant 0 : index
    %55 = vector.load %arg3[%c0_63, %c0_64] : memref<1x8xf32, #tpu.memory_space<vmem>>, vector<1x8xf32>
    %56 = vector.shape_cast %55 : vector<1x8xf32> to vector<1x1x8xf32>
    %57 = vector.broadcast %56 : vector<1x1x8xf32> to vector<4x4x8xf32>
    %58 = arith.addf %54, %57 : vector<4x4x8xf32>
    %cst_65 = arith.constant 0.000000e+00 : f32
    %59 = vector.broadcast %cst_65 : f32 to vector<4x4x8xf32>
    %60 = arith.maximumf %58, %59 : vector<4x4x8xf32>
    %61 = arith.truncf %60 : vector<4x4x8xf32> to vector<4x4x8xbf16>
    %c0_66 = arith.constant 0 : index
    %c0_67 = arith.constant 0 : index
    %c0_68 = arith.constant 0 : index
    %c0_69 = arith.constant 0 : index
    %62 = vector.load %arg4[%c0_66, %c0_67, %c0_68, %c0_69] : memref<1x4x4x8xbf16, #tpu.memory_space<vmem>>, vector<1x4x4x8xbf16>
    %63 = vector.shape_cast %62 : vector<1x4x4x8xbf16> to vector<4x4x8xbf16>
    %64 = vector.shape_cast %61 : vector<4x4x8xbf16> to vector<1x4x4x8xbf16>
    tpu.vector_store %arg4[%c0_66, %c0_67, %c0_68, %c0_69], %64 {strides = array<i32>} : memref<1x4x4x8xbf16, #tpu.memory_space<vmem>>, vector<1x4x4x8xbf16>,
    return
  }
  func.func @transform_0(%arg0: i32) -> (i32, i32, i32, i32) {
    %c0_i32 = arith.constant 0 : i32
    %c0_i32_0 = arith.constant 0 : i32
    %c0_i32_1 = arith.constant 0 : i32
    %c0_i32_2 = arith.constant 0 : i32
    return %arg0, %c0_i32, %c0_i32_0, %c0_i32_1 : i32, i32, i32, i32
  }
  func.func @transform_1(%arg0: i32) -> (i32, i32, i32) {
    %c0_i32 = arith.constant 0 : i32
    %c0_i32_0 = arith.constant 0 : i32
    %c0_i32_1 = arith.constant 0 : i32
    %c0_i32_2 = arith.constant 0 : i32
    return %c0_i32, %c0_i32_0, %c0_i32_1 : i32, i32, i32
  }
  func.func @transform_2(%arg0: i32) -> (i32, i32) {
    %c0_i32 = arith.constant 0 : i32
    %c0_i32_0 = arith.constant 0 : i32
    %c0_i32_1 = arith.constant 0 : i32
    return %c0_i32, %c0_i32_0 : i32, i32
  }
  func.func @transform_3(%arg0: i32) -> (i32, i32, i32, i32) {
    %c0_i32 = arith.constant 0 : i32
    %c0_i32_0 = arith.constant 0 : i32
    %c0_i32_1 = arith.constant 0 : i32
    %c0_i32_2 = arith.constant 0 : i32
    return %arg0, %c0_i32, %c0_i32_0, %c0_i32_1 : i32, i32, i32, i32
  }
}

</mosaic_0001>

<llo_original>
// kernel: encoder_forward.12
$region0: #{encoder_forward.12}
  #allocation0 [shape = 'u32[]', space=smem, size = 0x4, offset = 0x4, fixed_abs, tag = 'smem constant byte address 0x4 - core index']
  #allocation1 [shape = 'u32[72,128]{1,0:T(1,128)}', space=vmem, size = 0x9000, scoped, tag = 'internal scratch']
  %s0 = inlined_call_operand.vmem [shape: bf16[8,2,2,32], index: 0, kind: input, shape index: {}]
  %s1 = inlined_call_operand.vmem [shape: bf16[9,32,64], index: 1, kind: input, shape index: {}]
  %s2 = inlined_call_operand.vmem [shape: f32[1,64], index: 2, kind: input, shape index: {}]
  %s3 = inlined_call_operand.vmem [shape: bf16[2,1,1,64], index: 3, kind: output, shape index: {}]
  %s4 = sld [smem:[#allocation0]]
  $region45: #{encoder_forward.12} parent=0
    _
  %s6 = ssub.s32 1, %s4
  %s7 = scalar_select 0, %s6, %s4
  loop: start=0, step=1, limit=4
  $region2: #{encoder_forward.12} parent=0 // loop_pre_header
    _
  $region3: #{encoder_forward.12} parent=0 // loop_header
    %s9 = sphi 0, %s13
    %p10 = scmp.ge.s32.totalorder %s9, 4
    %s19 = sphi 0, %s21
    %s22 = sphi 0, %s19
    %s23 = sphi 0, %s22
    %s39 = sphi 0, %s23
    %s43 = sphi 0, %s43
    %s45 = sphi 0, %s43
    %s46 = sphi 0, %s45
    %s60 = sphi 0, %s46
    %s64 = sphi 0, %s64
    %s66 = sphi 0, %s64
    %s67 = sphi 0, %s66
    %s81 = sphi 0, %s67
    %s87 = sphi 0, %s89
    %s90 = sphi 0, %s87
    %s91 = sphi 0, %s90
    %s107 = sphi 0, %s91
  $region4: #{encoder_forward.12} parent=0 // loop_header_branch
    %12 = sbr.rel (%p10) target = $region8
  $region5: #{encoder_forward.12} parent=0 // loop_body
    %s14 = ssub.s32 %s9, 1
    %s15 = ssub.s32 %s9, 2
    %s16 = sadd.s32 %s9, 1
    %s17 = ssub.s32 %s9, %s16
    %p18 = scmp.eq.s32.totalorder %s17, 0
    %s20 = sadd.s32 %s19, 1
    %s21 = scalar_select %p18, %s19, %s20
    %p24 = pneg %p18
    %p25 = scmp.eq.s32.totalorder %s9, 1
    %p26 = por %p24, %p25
    %p27 = scmp.ne.s32.totalorder %s19, %s22
    %p28 = scmp.eq.s32.totalorder %s9, 0
    %p29 = por %p27, %p28
    %p30 = scmp.ne.s32.totalorder %s19, %s22
    %p31 = scmp.eq.s32.totalorder %s14, 1
    %p32 = por %p30, %p31
    %p33 = scmp.ne.s32.totalorder %s22, %s23
    %p34 = scmp.eq.s32.totalorder %s14, 0
    %p35 = por %p33, %p34
    %p36 = scmp.ne.s32.totalorder %s22, %s23
    %p37 = scmp.eq.s32.totalorder %s15, 1
    %p38 = por %p36, %p37
    %p40 = scmp.ne.s32.totalorder %s23, %s39
    %p41 = scmp.eq.s32.totalorder %s15, 0
    %p42 = por %p40, %p41
    %s44 = sadd.s32 %s43, 1
    %p47 = scmp.eq.s32.totalorder %s9, 1
    %p48 = scmp.ne.s32.totalorder %s43, %s45
    %p49 = scmp.eq.s32.totalorder %s9, 0
    %p50 = por %p48, %p49
    %p51 = scmp.ne.s32.totalorder %s43, %s45
    %p52 = scmp.eq.s32.totalorder %s14, 1
    %p53 = por %p51, %p52
    %p54 = scmp.ne.s32.totalorder %s45, %s46
    %p55 = scmp.eq.s32.totalorder %s14, 0
    %p56 = por %p54, %p55
    %p57 = scmp.ne.s32.totalorder %s45, %s46
    %p58 = scmp.eq.s32.totalorder %s15, 1
    %p59 = por %p57, %p58
    %p61 = scmp.ne.s32.totalorder %s46, %s60
    %p62 = scmp.eq.s32.totalorder %s15, 0
    %p63 = por %p61, %p62
    %s65 = sadd.s32 %s64, 1
    %p68 = scmp.eq.s32.totalorder %s9, 1
    %p69 = scmp.ne.s32.totalorder %s64, %s66
    %p70 = scmp.eq.s32.totalorder %s9, 0
    %p71 = por %p69, %p70
    %p72 = scmp.ne.s32.totalorder %s64, %s66
    %p73 = scmp.eq.s32.totalorder %s14, 1
    %p74 = por %p72, %p73
    %p75 = scmp.ne.s32.totalorder %s66, %s67
    %p76 = scmp.eq.s32.totalorder %s14, 0
    %p77 = por %p75, %p76
    %p78 = scmp.ne.s32.totalorder %s66, %s67
    %p79 = scmp.eq.s32.totalorder %s15, 1
    %p80 = por %p78, %p79
    %p82 = scmp.ne.s32.totalorder %s67, %s81
    %p83 = scmp.eq.s32.totalorder %s15, 0
    %p84 = por %p82, %p83
    %s85 = ssub.s32 %s9, %s16
    %p86 = scmp.eq.s32.totalorder %s85, 0
    %s88 = sadd.s32 %s87, 1
    %s89 = scalar_select %p86, %s87, %s88
    %p92 = pneg %p86
    %p93 = scmp.eq.s32.totalorder %s9, 1
    %p94 = por %p92, %p93
    %p95 = scmp.ne.s32.totalorder %s87, %s90
    %p96 = scmp.eq.s32.totalorder %s9, 0
    %p97 = por %p95, %p96
    %p98 = scmp.ne.s32.totalorder %s87, %s90
    %p99 = scmp.eq.s32.totalorder %s14, 1
    %p100 = por %p98, %p99
    %p101 = scmp.ne.s32.totalorder %s90, %s91
    %p102 = scmp.eq.s32.totalorder %s14, 0
    %p103 = por %p101, %p102
    %p104 = scmp.ne.s32.totalorder %s90, %s91
    %p105 = scmp.eq.s32.totalorder %s15, 1
    %p106 = por %p104, %p105
    %p108 = scmp.ne.s32.totalorder %s91, %s107
    %p109 = scmp.eq.s32.totalorder %s15, 0
    %p110 = por %p108, %p109
    %p111 = scmp.le.s32.totalorder 1, %s9
    %p112 = scmp.lt.s32.totalorder %s9, 3
    %p113 = pnand %p111, %p112
    %p114 = pneg %p113
    // Predicated region
    $region9: #{encoder_forward.12} parent=5 // pred_check
      _
    $region10: #{encoder_forward.12} parent=5 // pred_check_branch
      %116 = sbr.rel (%p113) target = $region12
    $region11: #{encoder_forward.12} parent=5 // pred_region
      %s117 = ssub.s32 %s9, 1
      // Predicated region
      $region13: #{encoder_forward.12} parent=11 // pred_check
        %p118 = pneg %p56
      $region14: #{encoder_forward.12} parent=11 // pred_check_branch
        %120 = sbr.rel (%p118) target = $region16
      $region15: #{encoder_forward.12} parent=11 // pred_region
        _
      $region16: #{encoder_forward.12} parent=11 // pred_fallthru
        _
      // Predicated region
      $region17: #{encoder_forward.12} parent=11 // pred_check
        %p121 = pneg %p77
      $region18: #{encoder_forward.12} parent=11 // pred_check_branch
        %123 = sbr.rel (%p121) target = $region20
      $region19: #{encoder_forward.12} parent=11 // pred_region
        _
      $region20: #{encoder_forward.12} parent=11 // pred_fallthru
        _
    $region12: #{encoder_forward.12} parent=5 // pred_fallthru
      _
    %p124 = scmp.lt.s32.totalorder %s9, 2
    // Predicated region
    $region21: #{encoder_forward.12} parent=5 // pred_check
      %p125 = pneg %p124
    $region22: #{encoder_forward.12} parent=5 // pred_check_branch
      %127 = sbr.rel (%p125) target = $region24
    $region23: #{encoder_forward.12} parent=5 // pred_region
      // Predicated region
      $region25: #{encoder_forward.12} parent=23 // pred_check
        %p128 = pneg %p29
      $region26: #{encoder_forward.12} parent=23 // pred_check_branch
        %130 = sbr.rel (%p128) target = $region28
      $region27: #{encoder_forward.12} parent=23 // pred_region
        %s131 = smul.u32 4, %s9
        %p132 = scmp.lt.s32.totalorder %s131, 7
        %s133 = scalar_select %p132, %s131, 7
        %s134 = smul.addr %s133, 2
        %s135 = scalar_lea.vmem %s0, %s134
        %s136 = smul.u32 4, %s9
      $region28: #{encoder_forward.12} parent=23 // pred_fallthru
        _
    $region24: #{encoder_forward.12} parent=5 // pred_fallthru
      _
    %p137 = scmp.le.s32.totalorder 1, %s9
    %p138 = scmp.lt.s32.totalorder %s9, 3
    %p139 = pnand %p137, %p138
    %p140 = pneg %p139
    // Predicated region
    $region29: #{encoder_forward.12} parent=5 // pred_check
      _
    $region30: #{encoder_forward.12} parent=5 // pred_check_branch
      %142 = sbr.rel (%p139) target = $region32
    $region31: #{encoder_forward.12} parent=5 // pred_region
      %s143 = ssub.s32 %s9, 1
      %s144 = smul.u32 4, %s14
      %p145 = scmp.lt.s32.totalorder %s144, 7
      %s146 = scalar_select %p145, %s144, 7
      %s147 = smul.addr %s146, 2
      %s148 = scalar_lea.vmem %s0, %s147
      %p149 = pneg %p35
      %p150 = pneg %p32
      %p151 = pneg %p56
      %p152 = pneg %p53
      %p153 = pneg %p77
      %p154 = pneg %p74
      %p155 = pneg %p103
      %p156 = pneg %p100
      %p157 = scmp.lt.s32.totalorder %s14, 1
      %s158 = scalar_select %p157, %s14, 1
      %s159 = scalar_lea.vmem %s3, %s158
      %s160 = smul.u32 4, %s14
      %p161 = scmp.lt.s32.totalorder %s160, 7
      %s162 = scalar_select %p161, %s160, 7
      %s163 = smul.addr %s162, 2
      %s164 = scalar_lea.vmem %s0, %s163
      %s165 = smul.u32 4, %s14
      %p166 = scmp.lt.s32.totalorder %s14, 1
      %s167 = scalar_select %p166, %s14, 1
      %s168 = scalar_lea.vmem %s3, %s167
      %v170 = vld [vmem:[%s164] sm:$0x1]
      %v171 = vld [vmem:[%s1] sm:$0xf]
      %v172 = vld [vmem:[%s1 + $0x4] sm:$0xf]
      %v173 = vld [vmem:[%s1 + $0x8] sm:$0xf]
      %v174 = vld [vmem:[%s1 + $0xc] sm:$0xf]
      %s175 = scalar_lea.vmem %s164, 2
      %v176 = vld [vmem:[%s175] sm:$0x1]
      %s177 = scalar_lea.vmem %s1, 16
      %v178 = vld [vmem:[%s177] sm:$0xf]
      %v179 = vld [vmem:[%s177 + $0x4] sm:$0xf]
      %v180 = vld [vmem:[%s177 + $0x8] sm:$0xf]
      %v181 = vld [vmem:[%s177 + $0xc] sm:$0xf]
      %v186 = vunpack.c.l.b16 %v178
      %v187 = vunpack.c.l.b16 %v179
      %v188 = vunpack.c.l.b16 %v180
      %v189 = vunpack.c.l.b16 %v181
      %v190 = vpack.c.b16 %v187, %v186
      %v191 = vpack.c.b16 %v189, %v188
      %vm194 = vcmask 261120
      %v196 = vsel %vm194, %v176, 0
      %198 = vmatpush.bf16.msra.mxu0 0
      %199 = vmatpush.bf16.msra.mxu0 0
      %200 = vmatpush.bf16.msra.mxu0 0
      %201 = vmatpush.bf16.msra.mxu0 0
      %202 = vmatpush.bf16.msra.mxu0 0
      %203 = vmatpush.bf16.msra.mxu0 0
      %204 = vmatpush.bf16.msra.mxu0 %v191
      %205 = vmatpush.bf16.msra.mxu0 %v190
      %206 = vmatmul.bf16.gmra.mxu0 %v196
      %v207 = vpop.f32.mrf.mxu0
      %v208 = vadd.f32 0.0, %v207
      %v209 = vpop.f32.mrf.mxu0
      %210 = vdwg.mxu0
      %v215 = vunpack.c.l.b16 %v171
      %v216 = vunpack.c.l.b16 %v172
      %v217 = vunpack.c.l.b16 %v173
      %v218 = vunpack.c.l.b16 %v174
      %v219 = vpack.c.b16 %v216, %v215
      %v220 = vpack.c.b16 %v218, %v217
      %v224 = vsel %vm194, %v170, 0
      %226 = vmatpush.bf16.msra.mxu0 0
      %227 = vmatpush.bf16.msra.mxu0 0
      %228 = vmatpush.bf16.msra.mxu0 0
      %229 = vmatpush.bf16.msra.mxu0 0
      %230 = vmatpush.bf16.msra.mxu0 0
      %231 = vmatpush.bf16.msra.mxu0 0
      %232 = vmatpush.bf16.msra.mxu0 %v220
      %233 = vmatpush.bf16.msra.mxu0 %v219
      %234 = vmatmul.bf16.gmra.mxu0 %v224
      %v235 = vpop.f32.mrf.mxu0
      %v236 = vadd.f32 %v208, %v235
      %v237 = vpop.f32.mrf.mxu0
      %238 = vdwg.mxu0
      %s239 = scalar_lea.vmem %s1, 32
      %v240 = vld [vmem:[%s239] sm:$0xf]
      %v241 = vld [vmem:[%s239 + $0x4] sm:$0xf]
      %v242 = vld [vmem:[%s239 + $0x8] sm:$0xf]
      %v243 = vld [vmem:[%s239 + $0xc] sm:$0xf]
      %244 = vst [vmem:[#allocation1] ss:$9 sm:$0xff] %v170
      %v245 = vld [vmem:[#allocation1] sm:$0xff]
      %v246 = vshrl.u32 %v245, 16
      %v252 = vunpack.c.l.b16 %v240
      %v253 = vunpack.c.l.b16 %v241
      %v254 = vunpack.c.l.b16 %v242
      %v255 = vunpack.c.l.b16 %v243
      %v256 = vpack.c.b16 %v253, %v252
      %v257 = vpack.c.b16 %v255, %v254
      %v261 = vsel %vm194, %v246, 0
      %263 = vmatpush.bf16.msra.mxu0 0
      %264 = vmatpush.bf16.msra.mxu0 0
      %265 = vmatpush.bf16.msra.mxu0 0
      %266 = vmatpush.bf16.msra.mxu0 0
      %267 = vmatpush.bf16.msra.mxu0 0
      %268 = vmatpush.bf16.msra.mxu0 0
      %269 = vmatpush.bf16.msra.mxu0 %v257
      %270 = vmatpush.bf16.msra.mxu0 %v256
      %271 = vmatmul.bf16.gmra.mxu0 %v261
      %v272 = vpop.f32.mrf.mxu0
      %v273 = vadd.f32 0.0, %v272
      %v274 = vpop.f32.mrf.mxu0
      %275 = vdwg.mxu0
      %v276 = vadd.f32 %v236, %v273
      %s277 = scalar_lea.vmem %s164, 4
      %v278 = vld [vmem:[%s277] sm:$0x1]
      %s279 = scalar_lea.vmem %s1, 48
      %v280 = vld [vmem:[%s279] sm:$0xf]
      %v281 = vld [vmem:[%s279 + $0x4] sm:$0xf]
      %v282 = vld [vmem:[%s279 + $0x8] sm:$0xf]
      %v283 = vld [vmem:[%s279 + $0xc] sm:$0xf]
      %v288 = vunpack.c.l.b16 %v280
      %v289 = vunpack.c.l.b16 %v281
      %v290 = vunpack.c.l.b16 %v282
      %v291 = vunpack.c.l.b16 %v283
      %v292 = vpack.c.b16 %v289, %v288
      %v293 = vpack.c.b16 %v291, %v290
      %v297 = vsel %vm194, %v278, 0
      %299 = vmatpush.bf16.msra.mxu0 0
      %300 = vmatpush.bf16.msra.mxu0 0
      %301 = vmatpush.bf16.msra.mxu0 0
      %302 = vmatpush.bf16.msra.mxu0 0
      %303 = vmatpush.bf16.msra.mxu0 0
      %304 = vmatpush.bf16.msra.mxu0 0
      %305 = vmatpush.bf16.msra.mxu0 %v293
      %306 = vmatpush.bf16.msra.mxu0 %v292
      %307 = vmatmul.bf16.gmra.mxu0 %v297
      %v308 = vpop.f32.mrf.mxu0
      %v309 = vadd.f32 0.0, %v308
      %v310 = vpop.f32.mrf.mxu0
      %311 = vdwg.mxu0
      %v312 = vadd.f32 %v276, %v309
      %s313 = scalar_lea.vmem %s164, 6
      %v314 = vld [vmem:[%s313] sm:$0x1]
      %s315 = scalar_lea.vmem %s1, 64
      %v316 = vld [vmem:[%s315] sm:$0xf]
      %v317 = vld [vmem:[%s315 + $0x4] sm:$0xf]
      %v318 = vld [vmem:[%s315 + $0x8] sm:$0xf]
      %v319 = vld [vmem:[%s315 + $0xc] sm:$0xf]
      %v324 = vunpack.c.l.b16 %v316
      %v325 = vunpack.c.l.b16 %v317
      %v326 = vunpack.c.l.b16 %v318
      %v327 = vunpack.c.l.b16 %v319
      %v328 = vpack.c.b16 %v325, %v324
      %v329 = vpack.c.b16 %v327, %v326
      %v333 = vsel %vm194, %v314, 0
      %335 = vmatpush.bf16.msra.mxu0 0
      %336 = vmatpush.bf16.msra.mxu0 0
      %337 = vmatpush.bf16.msra.mxu0 0
      %338 = vmatpush.bf16.msra.mxu0 0
      %339 = vmatpush.bf16.msra.mxu0 0
      %340 = vmatpush.bf16.msra.mxu0 0
      %341 = vmatpush.bf16.msra.mxu0 %v329
      %342 = vmatpush.bf16.msra.mxu0 %v328
      %343 = vmatmul.bf16.gmra.mxu0 %v333
      %v344 = vpop.f32.mrf.mxu0
      %v345 = vadd.f32 0.0, %v344
      %v346 = vpop.f32.mrf.mxu0
      %347 = vdwg.mxu0
      %v348 = vadd.f32 %v312, %v345
      %s349 = scalar_lea.vmem %s1, 80
      %v350 = vld [vmem:[%s349] sm:$0xf]
      %v351 = vld [vmem:[%s349 + $0x4] sm:$0xf]
      %v352 = vld [vmem:[%s349 + $0x8] sm:$0xf]
      %v353 = vld [vmem:[%s349 + $0xc] sm:$0xf]
      %354 = vst [vmem:[#allocation1] ss:$9 sm:$0xff] %v278
      %v355 = vld [vmem:[#allocation1] sm:$0xff]
      %v356 = vshrl.u32 %v355, 16
      %v362 = vunpack.c.l.b16 %v350
      %v363 = vunpack.c.l.b16 %v351
      %v364 = vunpack.c.l.b16 %v352
      %v365 = vunpack.c.l.b16 %v353
      %v366 = vpack.c.b16 %v363, %v362
      %v367 = vpack.c.b16 %v365, %v364
      %v371 = vsel %vm194, %v356, 0
      %373 = vmatpush.bf16.msra.mxu0 0
      %374 = vmatpush.bf16.msra.mxu0 0
      %375 = vmatpush.bf16.msra.mxu0 0
      %376 = vmatpush.bf16.msra.mxu0 0
      %377 = vmatpush.bf16.msra.mxu0 0
      %378 = vmatpush.bf16.msra.mxu0 0
      %379 = vmatpush.bf16.msra.mxu0 %v367
      %380 = vmatpush.bf16.msra.mxu0 %v366
      %381 = vmatmul.bf16.gmra.mxu0 %v371
      %v382 = vpop.f32.mrf.mxu0
      %v383 = vadd.f32 0.0, %v382
      %v384 = vpop.f32.mrf.mxu0
      %385 = vdwg.mxu0
      %v386 = vadd.f32 %v348, %v383
      %s387 = scalar_lea.vmem %s164, 1
      %v388 = vld [vmem:[%s387] sm:$0x1]
      %s389 = scalar_lea.vmem %s1, 96
      %v390 = vld [vmem:[%s389] sm:$0xf]
      %v391 = vld [vmem:[%s389 + $0x4] sm:$0xf]
      %v392 = vld [vmem:[%s389 + $0x8] sm:$0xf]
      %v393 = vld [vmem:[%s389 + $0xc] sm:$0xf]
      %v398 = vunpack.c.l.b16 %v390
      %v399 = vunpack.c.l.b16 %v391
      %v400 = vunpack.c.l.b16 %v392
      %v401 = vunpack.c.l.b16 %v393
      %v402 = vpack.c.b16 %v399, %v398
      %v403 = vpack.c.b16 %v401, %v400
      %v407 = vsel %vm194, %v388, 0
      %409 = vmatpush.bf16.msra.mxu0 0
      %410 = vmatpush.bf16.msra.mxu0 0
      %411 = vmatpush.bf16.msra.mxu0 0
      %412 = vmatpush.bf16.msra.mxu0 0
      %413 = vmatpush.bf16.msra.mxu0 0
      %414 = vmatpush.bf16.msra.mxu0 0
      %415 = vmatpush.bf16.msra.mxu0 %v403
      %416 = vmatpush.bf16.msra.mxu0 %v402
      %417 = vmatmul.bf16.gmra.mxu0 %v407
      %v418 = vpop.f32.mrf.mxu0
      %v419 = vadd.f32 0.0, %v418
      %v420 = vpop.f32.mrf.mxu0
      %421 = vdwg.mxu0
      %v422 = vadd.f32 %v386, %v419
      %s423 = scalar_lea.vmem %s164, 3
      %v424 = vld [vmem:[%s423] sm:$0x1]
      %s425 = scalar_lea.vmem %s1, 112
      %v426 = vld [vmem:[%s425] sm:$0xf]
      %v427 = vld [vmem:[%s425 + $0x4] sm:$0xf]
      %v428 = vld [vmem:[%s425 + $0x8] sm:$0xf]
      %v429 = vld [vmem:[%s425 + $0xc] sm:$0xf]
      %v434 = vunpack.c.l.b16 %v426
      %v435 = vunpack.c.l.b16 %v427
      %v436 = vunpack.c.l.b16 %v428
      %v437 = vunpack.c.l.b16 %v429
      %v438 = vpack.c.b16 %v435, %v434
      %v439 = vpack.c.b16 %v437, %v436
      %v443 = vsel %vm194, %v424, 0
      %445 = vmatpush.bf16.msra.mxu0 0
      %446 = vmatpush.bf16.msra.mxu0 0
      %447 = vmatpush.bf16.msra.mxu0 0
      %448 = vmatpush.bf16.msra.mxu0 0
      %449 = vmatpush.bf16.msra.mxu0 0
      %450 = vmatpush.bf16.msra.mxu0 0
      %451 = vmatpush.bf16.msra.mxu0 %v439
      %452 = vmatpush.bf16.msra.mxu0 %v438
      %453 = vmatmul.bf16.gmra.mxu0 %v443
      %v454 = vpop.f32.mrf.mxu0
      %v455 = vadd.f32 0.0, %v454
      %v456 = vpop.f32.mrf.mxu0
      %457 = vdwg.mxu0
      %v458 = vadd.f32 %v422, %v455
      %s459 = scalar_lea.vmem %s1, 128
      %v460 = vld [vmem:[%s459] sm:$0xf]
      %v461 = vld [vmem:[%s459 + $0x4] sm:$0xf]
      %v462 = vld [vmem:[%s459 + $0x8] sm:$0xf]
      %v463 = vld [vmem:[%s459 + $0xc] sm:$0xf]
      %464 = vst [vmem:[#allocation1] ss:$9 sm:$0xff] %v388
      %v465 = vld [vmem:[#allocation1] sm:$0xff]
      %v466 = vshrl.u32 %v465, 16
      %v472 = vunpack.c.l.b16 %v460
      %v473 = vunpack.c.l.b16 %v461
      %v474 = vunpack.c.l.b16 %v462
      %v475 = vunpack.c.l.b16 %v463
      %v476 = vpack.c.b16 %v473, %v472
      %v477 = vpack.c.b16 %v475, %v474
      %v481 = vsel %vm194, %v466, 0
      %483 = vmatpush.bf16.msra.mxu0 0
      %484 = vmatpush.bf16.msra.mxu0 0
      %485 = vmatpush.bf16.msra.mxu0 0
      %486 = vmatpush.bf16.msra.mxu0 0
      %487 = vmatpush.bf16.msra.mxu0 0
      %488 = vmatpush.bf16.msra.mxu0 0
      %489 = vmatpush.bf16.msra.mxu0 %v477
      %490 = vmatpush.bf16.msra.mxu0 %v476
      %491 = vmatmul.bf16.gmra.mxu0 %v481
      %v492 = vpop.f32.mrf.mxu0
      %v493 = vadd.f32 0.0, %v492
      %v494 = vpop.f32.mrf.mxu0
      %495 = vdwg.mxu0
      %v496 = vadd.f32 %v458, %v493
      %v497 = vld [vmem:[%s2] sm:$0x1]
      %v498 = vadd.f32 %v496, %v497
      %v499 = vmax.f32 %v498, 0.0
      %v500 = vpack.c.bf16 %v499, %v499
      %vm501 = vcmask 516096
      %vm502 = vsmask.f32 256
      %vm503 = vmand %vm501, %vm502
      %v504 = vld [vmem:[%s168] sm:$0x1]
      %v505 = vsel %vm503, %v500, %v504
      %506 = vst [vmem:[%s168] sm:$0x1] %v505
      %p507 = scmp.lt.s32.totalorder %s14, 1
      %s508 = scalar_select %p507, %s14, 1
      %s509 = scalar_lea.vmem %s3, %s508
      // Predicated region
      $region33: #{encoder_forward.12} parent=31 // pred_check
        %p510 = pneg %p100
      $region34: #{encoder_forward.12} parent=31 // pred_check_branch
        %512 = sbr.rel (%p510) target = $region36
      $region35: #{encoder_forward.12} parent=31 // pred_region
        _
      $region36: #{encoder_forward.12} parent=31 // pred_fallthru
        _
    $region32: #{encoder_forward.12} parent=5 // pred_fallthru
      _
    %p513 = scmp.le.s32.totalorder 2, %s9
    // Predicated region
    $region37: #{encoder_forward.12} parent=5 // pred_check
      %p514 = pneg %p513
    $region38: #{encoder_forward.12} parent=5 // pred_check_branch
      %516 = sbr.rel (%p514) target = $region40
    $region39: #{encoder_forward.12} parent=5 // pred_region
      %s517 = ssub.s32 %s9, 2
      // Predicated region
      $region41: #{encoder_forward.12} parent=39 // pred_check
        %p518 = pneg %p106
      $region42: #{encoder_forward.12} parent=39 // pred_check_branch
        %520 = sbr.rel (%p518) target = $region44
      $region43: #{encoder_forward.12} parent=39 // pred_region
        %p521 = scmp.lt.s32.totalorder %s15, 1
        %s522 = scalar_select %p521, %s15, 1
        %s523 = scalar_lea.vmem %s3, %s522
      $region44: #{encoder_forward.12} parent=39 // pred_fallthru
        _
    $region40: #{encoder_forward.12} parent=5 // pred_fallthru
      _
  $region6: #{encoder_forward.12} parent=0 // loop_footer
    %s13 = sadd.s32 1, %s9
  $region7: #{encoder_forward.12} parent=0 // loop_footer_branch
    %8 = sbr.rel target = $region3
  $region8: #{encoder_forward.12} parent=0 // loop_exit
    _

// kernel: encoder_forward.11
$region0: #{encoder_forward.11}
  #allocation0 [shape = 'u32[]', space=smem, size = 0x4, offset = 0x4, fixed_abs, tag = 'smem constant byte address 0x4 - core index']
  #allocation1 [shape = 'u32[72,128]{1,0:T(1,128)}', space=vmem, size = 0x9000, scoped, tag = 'internal scratch']
  %s0 = inlined_call_operand.vmem [shape: bf16[8,3,3,16], index: 0, kind: input, shape index: {}]
  %s1 = inlined_call_operand.vmem [shape: bf16[9,16,32], index: 1, kind: input, shape index: {}]
  %s2 = inlined_call_operand.vmem [shape: f32[1,32], index: 2, kind: input, shape index: {}]
  %s3 = inlined_call_operand.vmem [shape: bf16[2,2,2,32], index: 3, kind: output, shape index: {}]
  %s4 = sld [smem:[#allocation0]]
  $region45: #{encoder_forward.11} parent=0
    _
  %s6 = ssub.s32 1, %s4
  %s7 = scalar_select 0, %s6, %s4
  loop: start=0, step=1, limit=4
  $region2: #{encoder_forward.11} parent=0 // loop_pre_header
    _
  $region3: #{encoder_forward.11} parent=0 // loop_header
    %s9 = sphi 0, %s13
    %p10 = scmp.ge.s32.totalorder %s9, 4
    %s19 = sphi 0, %s21
    %s22 = sphi 0, %s19
    %s23 = sphi 0, %s22
    %s39 = sphi 0, %s23
    %s43 = sphi 0, %s43
    %s45 = sphi 0, %s43
    %s46 = sphi 0, %s45
    %s60 = sphi 0, %s46
    %s64 = sphi 0, %s64
    %s66 = sphi 0, %s64
    %s67 = sphi 0, %s66
    %s81 = sphi 0, %s67
    %s87 = sphi 0, %s89
    %s90 = sphi 0, %s87
    %s91 = sphi 0, %s90
    %s107 = sphi 0, %s91
  $region4: #{encoder_forward.11} parent=0 // loop_header_branch
    %12 = sbr.rel (%p10) target = $region8
  $region5: #{encoder_forward.11} parent=0 // loop_body
    %s14 = ssub.s32 %s9, 1
    %s15 = ssub.s32 %s9, 2
    %s16 = sadd.s32 %s9, 1
    %s17 = ssub.s32 %s9, %s16
    %p18 = scmp.eq.s32.totalorder %s17, 0
    %s20 = sadd.s32 %s19, 1
    %s21 = scalar_select %p18, %s19, %s20
    %p24 = pneg %p18
    %p25 = scmp.eq.s32.totalorder %s9, 1
    %p26 = por %p24, %p25
    %p27 = scmp.ne.s32.totalorder %s19, %s22
    %p28 = scmp.eq.s32.totalorder %s9, 0
    %p29 = por %p27, %p28
    %p30 = scmp.ne.s32.totalorder %s19, %s22
    %p31 = scmp.eq.s32.totalorder %s14, 1
    %p32 = por %p30, %p31
    %p33 = scmp.ne.s32.totalorder %s22, %s23
    %p34 = scmp.eq.s32.totalorder %s14, 0
    %p35 = por %p33, %p34
    %p36 = scmp.ne.s32.totalorder %s22, %s23
    %p37 = scmp.eq.s32.totalorder %s15, 1
    %p38 = por %p36, %p37
    %p40 = scmp.ne.s32.totalorder %s23, %s39
    %p41 = scmp.eq.s32.totalorder %s15, 0
    %p42 = por %p40, %p41
    %s44 = sadd.s32 %s43, 1
    %p47 = scmp.eq.s32.totalorder %s9, 1
    %p48 = scmp.ne.s32.totalorder %s43, %s45
    %p49 = scmp.eq.s32.totalorder %s9, 0
    %p50 = por %p48, %p49
    %p51 = scmp.ne.s32.totalorder %s43, %s45
    %p52 = scmp.eq.s32.totalorder %s14, 1
    %p53 = por %p51, %p52
    %p54 = scmp.ne.s32.totalorder %s45, %s46
    %p55 = scmp.eq.s32.totalorder %s14, 0
    %p56 = por %p54, %p55
    %p57 = scmp.ne.s32.totalorder %s45, %s46
    %p58 = scmp.eq.s32.totalorder %s15, 1
    %p59 = por %p57, %p58
    %p61 = scmp.ne.s32.totalorder %s46, %s60
    %p62 = scmp.eq.s32.totalorder %s15, 0
    %p63 = por %p61, %p62
    %s65 = sadd.s32 %s64, 1
    %p68 = scmp.eq.s32.totalorder %s9, 1
    %p69 = scmp.ne.s32.totalorder %s64, %s66
    %p70 = scmp.eq.s32.totalorder %s9, 0
    %p71 = por %p69, %p70
    %p72 = scmp.ne.s32.totalorder %s64, %s66
    %p73 = scmp.eq.s32.totalorder %s14, 1
    %p74 = por %p72, %p73
    %p75 = scmp.ne.s32.totalorder %s66, %s67
    %p76 = scmp.eq.s32.totalorder %s14, 0
    %p77 = por %p75, %p76
    %p78 = scmp.ne.s32.totalorder %s66, %s67
    %p79 = scmp.eq.s32.totalorder %s15, 1
    %p80 = por %p78, %p79
    %p82 = scmp.ne.s32.totalorder %s67, %s81
    %p83 = scmp.eq.s32.totalorder %s15, 0
    %p84 = por %p82, %p83
    %s85 = ssub.s32 %s9, %s16
    %p86 = scmp.eq.s32.totalorder %s85, 0
    %s88 = sadd.s32 %s87, 1
    %s89 = scalar_select %p86, %s87, %s88
    %p92 = pneg %p86
    %p93 = scmp.eq.s32.totalorder %s9, 1
    %p94 = por %p92, %p93
    %p95 = scmp.ne.s32.totalorder %s87, %s90
    %p96 = scmp.eq.s32.totalorder %s9, 0
    %p97 = por %p95, %p96
    %p98 = scmp.ne.s32.totalorder %s87, %s90
    %p99 = scmp.eq.s32.totalorder %s14, 1
    %p100 = por %p98, %p99
    %p101 = scmp.ne.s32.totalorder %s90, %s91
    %p102 = scmp.eq.s32.totalorder %s14, 0
    %p103 = por %p101, %p102
    %p104 = scmp.ne.s32.totalorder %s90, %s91
    %p105 = scmp.eq.s32.totalorder %s15, 1
    %p106 = por %p104, %p105
    %p108 = scmp.ne.s32.totalorder %s91, %s107
    %p109 = scmp.eq.s32.totalorder %s15, 0
    %p110 = por %p108, %p109
    %p111 = scmp.le.s32.totalorder 1, %s9
    %p112 = scmp.lt.s32.totalorder %s9, 3
    %p113 = pnand %p111, %p112
    %p114 = pneg %p113
    // Predicated region
    $region9: #{encoder_forward.11} parent=5 // pred_check
      _
    $region10: #{encoder_forward.11} parent=5 // pred_check_branch
      %116 = sbr.rel (%p113) target = $region12
    $region11: #{encoder_forward.11} parent=5 // pred_region
      %s117 = ssub.s32 %s9, 1
      // Predicated region
      $region13: #{encoder_forward.11} parent=11 // pred_check
        %p118 = pneg %p56
      $region14: #{encoder_forward.11} parent=11 // pred_check_branch
        %120 = sbr.rel (%p118) target = $region16
      $region15: #{encoder_forward.11} parent=11 // pred_region
        _
      $region16: #{encoder_forward.11} parent=11 // pred_fallthru
        _
      // Predicated region
      $region17: #{encoder_forward.11} parent=11 // pred_check
        %p121 = pneg %p77
      $region18: #{encoder_forward.11} parent=11 // pred_check_branch
        %123 = sbr.rel (%p121) target = $region20
      $region19: #{encoder_forward.11} parent=11 // pred_region
        _
      $region20: #{encoder_forward.11} parent=11 // pred_fallthru
        _
    $region12: #{encoder_forward.11} parent=5 // pred_fallthru
      _
    %p124 = scmp.lt.s32.totalorder %s9, 2
    // Predicated region
    $region21: #{encoder_forward.11} parent=5 // pred_check
      %p125 = pneg %p124
    $region22: #{encoder_forward.11} parent=5 // pred_check_branch
      %127 = sbr.rel (%p125) target = $region24
    $region23: #{encoder_forward.11} parent=5 // pred_region
      // Predicated region
      $region25: #{encoder_forward.11} parent=23 // pred_check
        %p128 = pneg %p29
      $region26: #{encoder_forward.11} parent=23 // pred_check_branch
        %130 = sbr.rel (%p128) target = $region28
      $region27: #{encoder_forward.11} parent=23 // pred_region
        %s131 = smul.u32 4, %s9
        %p132 = scmp.lt.s32.totalorder %s131, 7
        %s133 = scalar_select %p132, %s131, 7
        %s134 = smul.addr %s133, 3
        %s135 = smul.addr %s134, 2
        %s136 = scalar_lea.vmem %s0, %s135
        %s137 = smul.u32 4, %s9
      $region28: #{encoder_forward.11} parent=23 // pred_fallthru
        _
    $region24: #{encoder_forward.11} parent=5 // pred_fallthru
      _
    %p138 = scmp.le.s32.totalorder 1, %s9
    %p139 = scmp.lt.s32.totalorder %s9, 3
    %p140 = pnand %p138, %p139
    %p141 = pneg %p140
    // Predicated region
    $region29: #{encoder_forward.11} parent=5 // pred_check
      _
    $region30: #{encoder_forward.11} parent=5 // pred_check_branch
      %143 = sbr.rel (%p140) target = $region32
    $region31: #{encoder_forward.11} parent=5 // pred_region
      %s144 = ssub.s32 %s9, 1
      %s145 = smul.u32 4, %s14
      %p146 = scmp.lt.s32.totalorder %s145, 7
      %s147 = scalar_select %p146, %s145, 7
      %s148 = smul.addr %s147, 3
      %s149 = smul.addr %s148, 2
      %s150 = scalar_lea.vmem %s0, %s149
      %p151 = pneg %p35
      %p152 = pneg %p32
      %p153 = pneg %p56
      %p154 = pneg %p53
      %p155 = pneg %p77
      %p156 = pneg %p74
      %p157 = pneg %p103
      %p158 = pneg %p100
      %p159 = scmp.lt.s32.totalorder %s14, 1
      %s160 = scalar_select %p159, %s14, 1
      %s161 = smul.addr %s160, 2
      %s162 = scalar_lea.vmem %s3, %s161
      %s163 = smul.u32 4, %s14
      %p164 = scmp.lt.s32.totalorder %s163, 7
      %s165 = scalar_select %p164, %s163, 7
      %s166 = smul.addr %s165, 3
      %s167 = smul.addr %s166, 2
      %s168 = scalar_lea.vmem %s0, %s167
      %s169 = smul.u32 4, %s14
      %p170 = scmp.lt.s32.totalorder %s14, 1
      %s171 = scalar_select %p170, %s14, 1
      %s172 = smul.addr %s171, 2
      %s173 = scalar_lea.vmem %s3, %s172
      %v175 = vld [vmem:[%s168] sm:$0x1]
      %v176 = vld [vmem:[%s168 + $0x2] sm:$0x1]
      %v177 = vld [vmem:[%s1] sm:$0xf]
      %v178 = vld [vmem:[%s1 + $0x4] sm:$0xf]
      %s179 = scalar_lea.vmem %s168, 6
      %v180 = vld [vmem:[%s179] sm:$0x1]
      %v181 = vld [vmem:[%s179 + $0x2] sm:$0x1]
      %s182 = scalar_lea.vmem %s1, 8
      %v183 = vld [vmem:[%s182] sm:$0xf]
      %v184 = vld [vmem:[%s182 + $0x4] sm:$0xf]
      %186 = vst [vmem:[#allocation1] ss:$9 sm:$0xff] %v180
      %s188 = scalar_lea.vmem [#allocation1], 1
      %189 = vst [vmem:[%s188] ss:$9 sm:$0xff] %v181
      %v190 = vld [vmem:[#allocation1] sm:$0xff]
      %v193 = vunpack.c.l.b16 %v183
      %v194 = vunpack.c.l.b16 %v184
      %v195 = vpack.c.b16 %v194, %v193
      %vm197 = vcmask 130048
      %v198 = vsel %vm197, %v190, 0
      %200 = vmatpush.bf16.msra.mxu0 0
      %201 = vmatpush.bf16.msra.mxu0 0
      %202 = vmatpush.bf16.msra.mxu0 0
      %203 = vmatpush.bf16.msra.mxu0 0
      %204 = vmatpush.bf16.msra.mxu0 0
      %205 = vmatpush.bf16.msra.mxu0 0
      %206 = vmatpush.bf16.msra.mxu0 0
      %207 = vmatpush.bf16.msra.mxu0 %v195
      %208 = vmatmul.bf16.gmra.mxu0 %v198
      %v209 = vpop.f32.mrf.mxu0
      %v210 = vadd.f32 0.0, %v209
      %v211 = vpop.f32.mrf.mxu0
      %212 = vdwg.mxu0
      %214 = vst [vmem:[#allocation1] ss:$9 sm:$0xff] %v175
      %s216 = scalar_lea.vmem [#allocation1], 1
      %217 = vst [vmem:[%s216] ss:$9 sm:$0xff] %v176
      %v218 = vld [vmem:[#allocation1] sm:$0xff]
      %v221 = vunpack.c.l.b16 %v177
      %v222 = vunpack.c.l.b16 %v178
      %v223 = vpack.c.b16 %v222, %v221
      %v225 = vsel %vm197, %v218, 0
      %227 = vmatpush.bf16.msra.mxu0 0
      %228 = vmatpush.bf16.msra.mxu0 0
      %229 = vmatpush.bf16.msra.mxu0 0
      %230 = vmatpush.bf16.msra.mxu0 0
      %231 = vmatpush.bf16.msra.mxu0 0
      %232 = vmatpush.bf16.msra.mxu0 0
      %233 = vmatpush.bf16.msra.mxu0 0
      %234 = vmatpush.bf16.msra.mxu0 %v223
      %235 = vmatmul.bf16.gmra.mxu0 %v225
      %v236 = vpop.f32.mrf.mxu0
      %v237 = vadd.f32 %v210, %v236
      %v238 = vpop.f32.mrf.mxu0
      %239 = vdwg.mxu0
      %v241 = vrot.slane %v237, 2
      %v243 = vld [vmem:[%s168] sm:$0x3]
      %v244 = vld [vmem:[%s168 + $0x2] sm:$0x3]
      %s245 = scalar_lea.vmem %s1, 16
      %v246 = vld [vmem:[%s245] sm:$0xf]
      %v247 = vld [vmem:[%s245 + $0x4] sm:$0xf]
      %v250 = vrot.slane %v243, 1
      %v251 = vrot.slane %v243, 2
      %v252 = vrot.slane %v243, 3
      %v253 = vrot.slane %v244, 1
      %v254 = vrot.slane %v244, 2
      %v255 = vrot.slane %v244, 3
      %vm256 = vcmask 1040384
      %v259 = vsel %vm256, %v243, %v250
      %vm260 = vcmask 1042434
      %v263 = vsel %vm260, %v251, %v252
      %vm264 = vcmask 1041408
      %v265 = vsel %vm264, %v259, %v263
      %vm266 = vcmask 1041409
      %v267 = vsel %vm266, %v243, %v250
      %vm268 = vcmask 1043459
      %v269 = vsel %vm268, %v251, %v252
      %vm270 = vcmask 1042433
      %v271 = vsel %vm270, %v267, %v269
      %v273 = vrot.slane %v271, 1
      %v276 = vsel %vm256, %v244, %v253
      %v279 = vsel %vm260, %v254, %v255
      %v280 = vsel %vm264, %v276, %v279
      %v281 = vsel %vm266, %v244, %v253
      %v282 = vsel %vm268, %v254, %v255
      %v283 = vsel %vm270, %v281, %v282
      %v285 = vrot.slane %v283, 1
      %vm286 = vsmask.f32 256
      %vm287 = vsmask.f32 1284
      %vm288 = vmor %vm286, %vm287
      %vm289 = vsmask.f32 2312
      %vm290 = vmor %vm288, %vm289
      %vm291 = vsmask.f32 3340
      %vm292 = vmor %vm290, %vm291
      %vm293 = vsmask.f32 4368
      %vm294 = vmor %vm292, %vm293
      %vm295 = vsmask.f32 5396
      %vm296 = vmor %vm294, %vm295
      %vm297 = vsmask.f32 6424
      %vm298 = vmor %vm296, %vm297
      %vm299 = vsmask.f32 7452
      %vm300 = vmor %vm298, %vm299
      %v301 = vshrl.u32 %v265, 16
      %v303 = vrot.slane %v301, 7
      %v304 = vrot.slane %v303, 1
      %v306 = vshll.u32 %v273, 16
      %v308 = vsel %vm300, %v304, %v306
      %v309 = vshrl.u32 %v280, 16
      %v311 = vrot.slane %v309, 7
      %v312 = vrot.slane %v311, 1
      %v314 = vshll.u32 %v285, 16
      %v316 = vsel %vm300, %v312, %v314
      %318 = vst [vmem:[#allocation1] ss:$9 sm:$0xff] %v308
      %s320 = scalar_lea.vmem [#allocation1], 1
      %321 = vst [vmem:[%s320] ss:$9 sm:$0xff] %v316
      %v322 = vld [vmem:[#allocation1] sm:$0xff]
      %v325 = vunpack.c.l.b16 %v246
      %v326 = vunpack.c.l.b16 %v247
      %v327 = vpack.c.b16 %v326, %v325
      %v329 = vsel %vm197, %v322, 0
      %331 = vmatpush.bf16.msra.mxu0 0
      %332 = vmatpush.bf16.msra.mxu0 0
      %333 = vmatpush.bf16.msra.mxu0 0
      %334 = vmatpush.bf16.msra.mxu0 0
      %335 = vmatpush.bf16.msra.mxu0 0
      %336 = vmatpush.bf16.msra.mxu0 0
      %337 = vmatpush.bf16.msra.mxu0 0
      %338 = vmatpush.bf16.msra.mxu0 %v327
      %339 = vmatmul.bf16.gmra.mxu0 %v329
      %v340 = vpop.f32.mrf.mxu0
      %v341 = vadd.f32 0.0, %v340
      %v342 = vpop.f32.mrf.mxu0
      %343 = vdwg.mxu0
      %v345 = vrot.slane %v341, 2
      %v347 = vadd.f32 %v237, %v341
      %v348 = vadd.f32 %v241, %v345
      %s349 = scalar_lea.vmem %s168, 12
      %v350 = vld [vmem:[%s349] sm:$0x1]
      %v351 = vld [vmem:[%s349 + $0x2] sm:$0x1]
      %s352 = scalar_lea.vmem %s1, 24
      %v353 = vld [vmem:[%s352] sm:$0xf]
      %v354 = vld [vmem:[%s352 + $0x4] sm:$0xf]
      %356 = vst [vmem:[#allocation1] ss:$9 sm:$0xff] %v350
      %s358 = scalar_lea.vmem [#allocation1], 1
      %359 = vst [vmem:[%s358] ss:$9 sm:$0xff] %v351
      %v360 = vld [vmem:[#allocation1] sm:$0xff]
      %v363 = vunpack.c.l.b16 %v353
      %v364 = vunpack.c.l.b16 %v354
      %v365 = vpack.c.b16 %v364, %v363
      %v367 = vsel %vm197, %v360, 0
      %369 = vmatpush.bf16.msra.mxu0 0
      %370 = vmatpush.bf16.msra.mxu0 0
      %371 = vmatpush.bf16.msra.mxu0 0
      %372 = vmatpush.bf16.msra.mxu0 0
      %373 = vmatpush.bf16.msra.mxu0 0
      %374 = vmatpush.bf16.msra.mxu0 0
      %375 = vmatpush.bf16.msra.mxu0 0
      %376 = vmatpush.bf16.msra.mxu0 %v365
      %377 = vmatmul.bf16.gmra.mxu0 %v367
      %v378 = vpop.f32.mrf.mxu0
      %v379 = vadd.f32 0.0, %v378
      %v380 = vpop.f32.mrf.mxu0
      %381 = vdwg.mxu0
      %v383 = vrot.slane %v379, 2
      %v385 = vadd.f32 %v347, %v379
      %v386 = vadd.f32 %v348, %v383
      %s387 = scalar_lea.vmem %s168, 18
      %v388 = vld [vmem:[%s387] sm:$0x1]
      %v389 = vld [vmem:[%s387 + $0x2] sm:$0x1]
      %s390 = scalar_lea.vmem %s1, 32
      %v391 = vld [vmem:[%s390] sm:$0xf]
      %v392 = vld [vmem:[%s390 + $0x4] sm:$0xf]
      %394 = vst [vmem:[#allocation1] ss:$9 sm:$0xff] %v388
      %s396 = scalar_lea.vmem [#allocation1], 1
      %397 = vst [vmem:[%s396] ss:$9 sm:$0xff] %v389
      %v398 = vld [vmem:[#allocation1] sm:$0xff]
      %v401 = vunpack.c.l.b16 %v391
      %v402 = vunpack.c.l.b16 %v392
      %v403 = vpack.c.b16 %v402, %v401
      %v405 = vsel %vm197, %v398, 0
      %407 = vmatpush.bf16.msra.mxu0 0
      %408 = vmatpush.bf16.msra.mxu0 0
      %409 = vmatpush.bf16.msra.mxu0 0
      %410 = vmatpush.bf16.msra.mxu0 0
      %411 = vmatpush.bf16.msra.mxu0 0
      %412 = vmatpush.bf16.msra.mxu0 0
      %413 = vmatpush.bf16.msra.mxu0 0
      %414 = vmatpush.bf16.msra.mxu0 %v403
      %415 = vmatmul.bf16.gmra.mxu0 %v405
      %v416 = vpop.f32.mrf.mxu0
      %v417 = vadd.f32 0.0, %v416
      %v418 = vpop.f32.mrf.mxu0
      %419 = vdwg.mxu0
      %v421 = vrot.slane %v417, 2
      %v423 = vadd.f32 %v385, %v417
      %v424 = vadd.f32 %v386, %v421
      %v425 = vld [vmem:[%s349] sm:$0x3]
      %v426 = vld [vmem:[%s349 + $0x2] sm:$0x3]
      %s427 = scalar_lea.vmem %s1, 40
      %v428 = vld [vmem:[%s427] sm:$0xf]
      %v429 = vld [vmem:[%s427 + $0x4] sm:$0xf]
      %v432 = vrot.slane %v425, 1
      %v433 = vrot.slane %v425, 2
      %v434 = vrot.slane %v425, 3
      %v435 = vrot.slane %v426, 1
      %v436 = vrot.slane %v426, 2
      %v437 = vrot.slane %v426, 3
      %v440 = vsel %vm256, %v425, %v432
      %v443 = vsel %vm260, %v433, %v434
      %v444 = vsel %vm264, %v440, %v443
      %v445 = vsel %vm266, %v425, %v432
      %v446 = vsel %vm268, %v433, %v434
      %v447 = vsel %vm270, %v445, %v446
      %v449 = vrot.slane %v447, 1
      %v452 = vsel %vm256, %v426, %v435
      %v455 = vsel %vm260, %v436, %v437
      %v456 = vsel %vm264, %v452, %v455
      %v457 = vsel %vm266, %v426, %v435
      %v458 = vsel %vm268, %v436, %v437
      %v459 = vsel %vm270, %v457, %v458
      %v461 = vrot.slane %v459, 1
      %v462 = vshrl.u32 %v444, 16
      %v464 = vrot.slane %v462, 7
      %v465 = vrot.slane %v464, 1
      %v467 = vshll.u32 %v449, 16
      %v469 = vsel %vm300, %v465, %v467
      %v470 = vshrl.u32 %v456, 16
      %v472 = vrot.slane %v470, 7
      %v473 = vrot.slane %v472, 1
      %v475 = vshll.u32 %v461, 16
      %v477 = vsel %vm300, %v473, %v475
      %479 = vst [vmem:[#allocation1] ss:$9 sm:$0xff] %v469
      %s481 = scalar_lea.vmem [#allocation1], 1
      %482 = vst [vmem:[%s481] ss:$9 sm:$0xff] %v477
      %v483 = vld [vmem:[#allocation1] sm:$0xff]
      %v486 = vunpack.c.l.b16 %v428
      %v487 = vunpack.c.l.b16 %v429
      %v488 = vpack.c.b16 %v487, %v486
      %v490 = vsel %vm197, %v483, 0
      %492 = vmatpush.bf16.msra.mxu0 0
      %493 = vmatpush.bf16.msra.mxu0 0
      %494 = vmatpush.bf16.msra.mxu0 0
      %495 = vmatpush.bf16.msra.mxu0 0
      %496 = vmatpush.bf16.msra.mxu0 0
      %497 = vmatpush.bf16.msra.mxu0 0
      %498 = vmatpush.bf16.msra.mxu0 0
      %499 = vmatpush.bf16.msra.mxu0 %v488
      %500 = vmatmul.bf16.gmra.mxu0 %v490
      %v501 = vpop.f32.mrf.mxu0
      %v502 = vadd.f32 0.0, %v501
      %v503 = vpop.f32.mrf.mxu0
      %504 = vdwg.mxu0
      %v506 = vrot.slane %v502, 2
      %v508 = vadd.f32 %v423, %v502
      %v509 = vadd.f32 %v424, %v506
      %s510 = scalar_lea.vmem %s168, 2
      %v511 = vld [vmem:[%s510] sm:$0x1]
      %v512 = vld [vmem:[%s510 + $0x2] sm:$0x1]
      %s513 = scalar_lea.vmem %s1, 48
      %v514 = vld [vmem:[%s513] sm:$0xf]
      %v515 = vld [vmem:[%s513 + $0x4] sm:$0xf]
      %517 = vst [vmem:[#allocation1] ss:$9 sm:$0xff] %v511
      %s519 = scalar_lea.vmem [#allocation1], 1
      %520 = vst [vmem:[%s519] ss:$9 sm:$0xff] %v512
      %v521 = vld [vmem:[#allocation1] sm:$0xff]
      %v524 = vunpack.c.l.b16 %v514
      %v525 = vunpack.c.l.b16 %v515
      %v526 = vpack.c.b16 %v525, %v524
      %v528 = vsel %vm197, %v521, 0
      %530 = vmatpush.bf16.msra.mxu0 0
      %531 = vmatpush.bf16.msra.mxu0 0
      %532 = vmatpush.bf16.msra.mxu0 0
      %533 = vmatpush.bf16.msra.mxu0 0
      %534 = vmatpush.bf16.msra.mxu0 0
      %535 = vmatpush.bf16.msra.mxu0 0
      %536 = vmatpush.bf16.msra.mxu0 0
      %537 = vmatpush.bf16.msra.mxu0 %v526
      %538 = vmatmul.bf16.gmra.mxu0 %v528
      %v539 = vpop.f32.mrf.mxu0
      %v540 = vadd.f32 0.0, %v539
      %v541 = vpop.f32.mrf.mxu0
      %542 = vdwg.mxu0
      %v544 = vrot.slane %v540, 2
      %v546 = vadd.f32 %v508, %v540
      %v547 = vadd.f32 %v509, %v544
      %s548 = scalar_lea.vmem %s168, 8
      %v549 = vld [vmem:[%s548] sm:$0x1]
      %v550 = vld [vmem:[%s548 + $0x2] sm:$0x1]
      %s551 = scalar_lea.vmem %s1, 56
      %v552 = vld [vmem:[%s551] sm:$0xf]
      %v553 = vld [vmem:[%s551 + $0x4] sm:$0xf]
      %555 = vst [vmem:[#allocation1] ss:$9 sm:$0xff] %v549
      %s557 = scalar_lea.vmem [#allocation1], 1
      %558 = vst [vmem:[%s557] ss:$9 sm:$0xff] %v550
      %v559 = vld [vmem:[#allocation1] sm:$0xff]
      %v562 = vunpack.c.l.b16 %v552
      %v563 = vunpack.c.l.b16 %v553
      %v564 = vpack.c.b16 %v563, %v562
      %v566 = vsel %vm197, %v559, 0
      %568 = vmatpush.bf16.msra.mxu0 0
      %569 = vmatpush.bf16.msra.mxu0 0
      %570 = vmatpush.bf16.msra.mxu0 0
      %571 = vmatpush.bf16.msra.mxu0 0
      %572 = vmatpush.bf16.msra.mxu0 0
      %573 = vmatpush.bf16.msra.mxu0 0
      %574 = vmatpush.bf16.msra.mxu0 0
      %575 = vmatpush.bf16.msra.mxu0 %v564
      %576 = vmatmul.bf16.gmra.mxu0 %v566
      %v577 = vpop.f32.mrf.mxu0
      %v578 = vadd.f32 0.0, %v577
      %v579 = vpop.f32.mrf.mxu0
      %580 = vdwg.mxu0
      %v582 = vrot.slane %v578, 2
      %v584 = vadd.f32 %v546, %v578
      %v585 = vadd.f32 %v547, %v582
      %v586 = vld [vmem:[%s510] sm:$0x3]
      %v587 = vld [vmem:[%s510 + $0x2] sm:$0x3]
      %s588 = scalar_lea.vmem %s1, 64
      %v589 = vld [vmem:[%s588] sm:$0xf]
      %v590 = vld [vmem:[%s588 + $0x4] sm:$0xf]
      %v593 = vrot.slane %v586, 1
      %v594 = vrot.slane %v586, 2
      %v595 = vrot.slane %v586, 3
      %v596 = vrot.slane %v587, 1
      %v597 = vrot.slane %v587, 2
      %v598 = vrot.slane %v587, 3
      %v601 = vsel %vm256, %v586, %v593
      %v604 = vsel %vm260, %v594, %v595
      %v605 = vsel %vm264, %v601, %v604
      %v606 = vsel %vm266, %v586, %v593
      %v607 = vsel %vm268, %v594, %v595
      %v608 = vsel %vm270, %v606, %v607
      %v610 = vrot.slane %v608, 1
      %v613 = vsel %vm256, %v587, %v596
      %v616 = vsel %vm260, %v597, %v598
      %v617 = vsel %vm264, %v613, %v616
      %v618 = vsel %vm266, %v587, %v596
      %v619 = vsel %vm268, %v597, %v598
      %v620 = vsel %vm270, %v618, %v619
      %v622 = vrot.slane %v620, 1
      %v623 = vshrl.u32 %v605, 16
      %v625 = vrot.slane %v623, 7
      %v626 = vrot.slane %v625, 1
      %v628 = vshll.u32 %v610, 16
      %v630 = vsel %vm300, %v626, %v628
      %v631 = vshrl.u32 %v617, 16
      %v633 = vrot.slane %v631, 7
      %v634 = vrot.slane %v633, 1
      %v636 = vshll.u32 %v622, 16
      %v638 = vsel %vm300, %v634, %v636
      %640 = vst [vmem:[#allocation1] ss:$9 sm:$0xff] %v630
      %s642 = scalar_lea.vmem [#allocation1], 1
      %643 = vst [vmem:[%s642] ss:$9 sm:$0xff] %v638
      %v644 = vld [vmem:[#allocation1] sm:$0xff]
      %v647 = vunpack.c.l.b16 %v589
      %v648 = vunpack.c.l.b16 %v590
      %v649 = vpack.c.b16 %v648, %v647
      %v651 = vsel %vm197, %v644, 0
      %653 = vmatpush.bf16.msra.mxu0 0
      %654 = vmatpush.bf16.msra.mxu0 0
      %655 = vmatpush.bf16.msra.mxu0 0
      %656 = vmatpush.bf16.msra.mxu0 0
      %657 = vmatpush.bf16.msra.mxu0 0
      %658 = vmatpush.bf16.msra.mxu0 0
      %659 = vmatpush.bf16.msra.mxu0 0
      %660 = vmatpush.bf16.msra.mxu0 %v649
      %661 = vmatmul.bf16.gmra.mxu0 %v651
      %v662 = vpop.f32.mrf.mxu0
      %v663 = vadd.f32 0.0, %v662
      %v664 = vpop.f32.mrf.mxu0
      %665 = vdwg.mxu0
      %v667 = vrot.slane %v663, 2
      %v669 = vadd.f32 %v584, %v663
      %v670 = vadd.f32 %v585, %v667
      %v671 = vld [vmem:[%s2] sm:$0x1]
      %v673 = vperm.slane %v671, 0
      %v675 = vadd.f32 %v669, %v673
      %v676 = vadd.f32 %v670, %v673
      %v677 = vmax.f32 %v675, 0.0
      %v678 = vmax.f32 %v676, 0.0
      %v679 = vpack.c.bf16 %v677, %v677
      %v680 = vpack.c.bf16 %v678, %v678
      %vm681 = vcmask 253952
      %682 = vst.msk [vmem:[%s173] sm:$0x1] %vm681, %v679
      %683 = vst.msk [vmem:[%s173 + $0x1] sm:$0x1] %vm681, %v680
      %p684 = scmp.lt.s32.totalorder %s14, 1
      %s685 = scalar_select %p684, %s14, 1
      %s686 = smul.addr %s685, 2
      %s687 = scalar_lea.vmem %s3, %s686
      // Predicated region
      $region33: #{encoder_forward.11} parent=31 // pred_check
        %p688 = pneg %p100
      $region34: #{encoder_forward.11} parent=31 // pred_check_branch
        %690 = sbr.rel (%p688) target = $region36
      $region35: #{encoder_forward.11} parent=31 // pred_region
        _
      $region36: #{encoder_forward.11} parent=31 // pred_fallthru
        _
    $region32: #{encoder_forward.11} parent=5 // pred_fallthru
      _
    %p691 = scmp.le.s32.totalorder 2, %s9
    // Predicated region
    $region37: #{encoder_forward.11} parent=5 // pred_check
      %p692 = pneg %p691
    $region38: #{encoder_forward.11} parent=5 // pred_check_branch
      %694 = sbr.rel (%p692) target = $region40
    $region39: #{encoder_forward.11} parent=5 // pred_region
      %s695 = ssub.s32 %s9, 2
      // Predicated region
      $region41: #{encoder_forward.11} parent=39 // pred_check
        %p696 = pneg %p106
      $region42: #{encoder_forward.11} parent=39 // pred_check_branch
        %698 = sbr.rel (%p696) target = $region44
      $region43: #{encoder_forward.11} parent=39 // pred_region
        %p699 = scmp.lt.s32.totalorder %s15, 1
        %s700 = scalar_select %p699, %s15, 1
        %s701 = smul.addr %s700, 2
        %s702 = scalar_lea.vmem %s3, %s701
      $region44: #{encoder_forward.11} parent=39 // pred_fallthru
        _
    $region40: #{encoder_forward.11} parent=5 // pred_fallthru
      _
  $region6: #{encoder_forward.11} parent=0 // loop_footer
    %s13 = sadd.s32 1, %s9
  $region7: #{encoder_forward.11} parent=0 // loop_footer_branch
    %8 = sbr.rel target = $region3
  $region8: #{encoder_forward.11} parent=0 // loop_exit
    _

// kernel: encoder_forward.10
$region0: #{encoder_forward.10}
  #allocation0 [shape = 'u32[]', space=smem, size = 0x4, offset = 0x4, fixed_abs, tag = 'smem constant byte address 0x4 - core index']
  #allocation1 [shape = 'u32[72,128]{1,0:T(1,128)}', space=vmem, size = 0x9000, scoped, tag = 'internal scratch']
  %s0 = inlined_call_operand.vmem [shape: bf16[8,5,5,8], index: 0, kind: input, shape index: {}]
  %s1 = inlined_call_operand.vmem [shape: bf16[9,8,16], index: 1, kind: input, shape index: {}]
  %s2 = inlined_call_operand.vmem [shape: f32[1,16], index: 2, kind: input, shape index: {}]
  %s3 = inlined_call_operand.vmem [shape: bf16[2,4,4,16], index: 3, kind: output, shape index: {}]
  %s4 = sld [smem:[#allocation0]]
  $region45: #{encoder_forward.10} parent=0
    _
  %s6 = ssub.s32 1, %s4
  %s7 = scalar_select 0, %s6, %s4
  loop: start=0, step=1, limit=4
  $region2: #{encoder_forward.10} parent=0 // loop_pre_header
    _
  $region3: #{encoder_forward.10} parent=0 // loop_header
    %s9 = sphi 0, %s13
    %p10 = scmp.ge.s32.totalorder %s9, 4
    %s19 = sphi 0, %s21
    %s22 = sphi 0, %s19
    %s23 = sphi 0, %s22
    %s39 = sphi 0, %s23
    %s43 = sphi 0, %s43
    %s45 = sphi 0, %s43
    %s46 = sphi 0, %s45
    %s60 = sphi 0, %s46
    %s64 = sphi 0, %s64
    %s66 = sphi 0, %s64
    %s67 = sphi 0, %s66
    %s81 = sphi 0, %s67
    %s87 = sphi 0, %s89
    %s90 = sphi 0, %s87
    %s91 = sphi 0, %s90
    %s107 = sphi 0, %s91
  $region4: #{encoder_forward.10} parent=0 // loop_header_branch
    %12 = sbr.rel (%p10) target = $region8
  $region5: #{encoder_forward.10} parent=0 // loop_body
    %s14 = ssub.s32 %s9, 1
    %s15 = ssub.s32 %s9, 2
    %s16 = sadd.s32 %s9, 1
    %s17 = ssub.s32 %s9, %s16
    %p18 = scmp.eq.s32.totalorder %s17, 0
    %s20 = sadd.s32 %s19, 1
    %s21 = scalar_select %p18, %s19, %s20
    %p24 = pneg %p18
    %p25 = scmp.eq.s32.totalorder %s9, 1
    %p26 = por %p24, %p25
    %p27 = scmp.ne.s32.totalorder %s19, %s22
    %p28 = scmp.eq.s32.totalorder %s9, 0
    %p29 = por %p27, %p28
    %p30 = scmp.ne.s32.totalorder %s19, %s22
    %p31 = scmp.eq.s32.totalorder %s14, 1
    %p32 = por %p30, %p31
    %p33 = scmp.ne.s32.totalorder %s22, %s23
    %p34 = scmp.eq.s32.totalorder %s14, 0
    %p35 = por %p33, %p34
    %p36 = scmp.ne.s32.totalorder %s22, %s23
    %p37 = scmp.eq.s32.totalorder %s15, 1
    %p38 = por %p36, %p37
    %p40 = scmp.ne.s32.totalorder %s23, %s39
    %p41 = scmp.eq.s32.totalorder %s15, 0
    %p42 = por %p40, %p41
    %s44 = sadd.s32 %s43, 1
    %p47 = scmp.eq.s32.totalorder %s9, 1
    %p48 = scmp.ne.s32.totalorder %s43, %s45
    %p49 = scmp.eq.s32.totalorder %s9, 0
    %p50 = por %p48, %p49
    %p51 = scmp.ne.s32.totalorder %s43, %s45
    %p52 = scmp.eq.s32.totalorder %s14, 1
    %p53 = por %p51, %p52
    %p54 = scmp.ne.s32.totalorder %s45, %s46
    %p55 = scmp.eq.s32.totalorder %s14, 0
    %p56 = por %p54, %p55
    %p57 = scmp.ne.s32.totalorder %s45, %s46
    %p58 = scmp.eq.s32.totalorder %s15, 1
    %p59 = por %p57, %p58
    %p61 = scmp.ne.s32.totalorder %s46, %s60
    %p62 = scmp.eq.s32.totalorder %s15, 0
    %p63 = por %p61, %p62
    %s65 = sadd.s32 %s64, 1
    %p68 = scmp.eq.s32.totalorder %s9, 1
    %p69 = scmp.ne.s32.totalorder %s64, %s66
    %p70 = scmp.eq.s32.totalorder %s9, 0
    %p71 = por %p69, %p70
    %p72 = scmp.ne.s32.totalorder %s64, %s66
    %p73 = scmp.eq.s32.totalorder %s14, 1
    %p74 = por %p72, %p73
    %p75 = scmp.ne.s32.totalorder %s66, %s67
    %p76 = scmp.eq.s32.totalorder %s14, 0
    %p77 = por %p75, %p76
    %p78 = scmp.ne.s32.totalorder %s66, %s67
    %p79 = scmp.eq.s32.totalorder %s15, 1
    %p80 = por %p78, %p79
    %p82 = scmp.ne.s32.totalorder %s67, %s81
    %p83 = scmp.eq.s32.totalorder %s15, 0
    %p84 = por %p82, %p83
    %s85 = ssub.s32 %s9, %s16
    %p86 = scmp.eq.s32.totalorder %s85, 0
    %s88 = sadd.s32 %s87, 1
    %s89 = scalar_select %p86, %s87, %s88
    %p92 = pneg %p86
    %p93 = scmp.eq.s32.totalorder %s9, 1
    %p94 = por %p92, %p93
    %p95 = scmp.ne.s32.totalorder %s87, %s90
    %p96 = scmp.eq.s32.totalorder %s9, 0
    %p97 = por %p95, %p96
    %p98 = scmp.ne.s32.totalorder %s87, %s90
    %p99 = scmp.eq.s32.totalorder %s14, 1
    %p100 = por %p98, %p99
    %p101 = scmp.ne.s32.totalorder %s90, %s91
    %p102 = scmp.eq.s32.totalorder %s14, 0
    %p103 = por %p101, %p102
    %p104 = scmp.ne.s32.totalorder %s90, %s91
    %p105 = scmp.eq.s32.totalorder %s15, 1
    %p106 = por %p104, %p105
    %p108 = scmp.ne.s32.totalorder %s91, %s107
    %p109 = scmp.eq.s32.totalorder %s15, 0
    %p110 = por %p108, %p109
    %p111 = scmp.le.s32.totalorder 1, %s9
    %p112 = scmp.lt.s32.totalorder %s9, 3
    %p113 = pnand %p111, %p112
    %p114 = pneg %p113
    // Predicated region
    $region9: #{encoder_forward.10} parent=5 // pred_check
      _
    $region10: #{encoder_forward.10} parent=5 // pred_check_branch
      %116 = sbr.rel (%p113) target = $region12
    $region11: #{encoder_forward.10} parent=5 // pred_region
      %s117 = ssub.s32 %s9, 1
      // Predicated region
      $region13: #{encoder_forward.10} parent=11 // pred_check
        %p118 = pneg %p56
      $region14: #{encoder_forward.10} parent=11 // pred_check_branch
        %120 = sbr.rel (%p118) target = $region16
      $region15: #{encoder_forward.10} parent=11 // pred_region
        _
      $region16: #{encoder_forward.10} parent=11 // pred_fallthru
        _
      // Predicated region
      $region17: #{encoder_forward.10} parent=11 // pred_check
        %p121 = pneg %p77
      $region18: #{encoder_forward.10} parent=11 // pred_check_branch
        %123 = sbr.rel (%p121) target = $region20
      $region19: #{encoder_forward.10} parent=11 // pred_region
        _
      $region20: #{encoder_forward.10} parent=11 // pred_fallthru
        _
    $region12: #{encoder_forward.10} parent=5 // pred_fallthru
      _
    %p124 = scmp.lt.s32.totalorder %s9, 2
    // Predicated region
    $region21: #{encoder_forward.10} parent=5 // pred_check
      %p125 = pneg %p124
    $region22: #{encoder_forward.10} parent=5 // pred_check_branch
      %127 = sbr.rel (%p125) target = $region24
    $region23: #{encoder_forward.10} parent=5 // pred_region
      // Predicated region
      $region25: #{encoder_forward.10} parent=23 // pred_check
        %p128 = pneg %p29
      $region26: #{encoder_forward.10} parent=23 // pred_check_branch
        %130 = sbr.rel (%p128) target = $region28
      $region27: #{encoder_forward.10} parent=23 // pred_region
        %s131 = smul.u32 4, %s9
        %p132 = scmp.lt.s32.totalorder %s131, 7
        %s133 = scalar_select %p132, %s131, 7
        %s134 = smul.addr %s133, 5
        %s135 = smul.addr %s134, 4
        %s136 = scalar_lea.vmem %s0, %s135
        %s137 = smul.u32 4, %s9
      $region28: #{encoder_forward.10} parent=23 // pred_fallthru
        _
    $region24: #{encoder_forward.10} parent=5 // pred_fallthru
      _
    %p138 = scmp.le.s32.totalorder 1, %s9
    %p139 = scmp.lt.s32.totalorder %s9, 3
    %p140 = pnand %p138, %p139
    %p141 = pneg %p140
    // Predicated region
    $region29: #{encoder_forward.10} parent=5 // pred_check
      _
    $region30: #{encoder_forward.10} parent=5 // pred_check_branch
      %143 = sbr.rel (%p140) target = $region32
    $region31: #{encoder_forward.10} parent=5 // pred_region
      %s144 = ssub.s32 %s9, 1
      %s145 = smul.u32 4, %s14
      %p146 = scmp.lt.s32.totalorder %s145, 7
      %s147 = scalar_select %p146, %s145, 7
      %s148 = smul.addr %s147, 5
      %s149 = smul.addr %s148, 4
      %s150 = scalar_lea.vmem %s0, %s149
      %p151 = pneg %p35
      %p152 = pneg %p32
      %p153 = pneg %p56
      %p154 = pneg %p53
      %p155 = pneg %p77
      %p156 = pneg %p74
      %p157 = pneg %p103
      %p158 = pneg %p100
      %p159 = scmp.lt.s32.totalorder %s14, 1
      %s160 = scalar_select %p159, %s14, 1
      %s161 = smul.addr %s160, 4
      %s162 = smul.addr %s161, 2
      %s163 = scalar_lea.vmem %s3, %s162
      %s164 = smul.u32 4, %s14
      %p165 = scmp.lt.s32.totalorder %s164, 7
      %s166 = scalar_select %p165, %s164, 7
      %s167 = smul.addr %s166, 5
      %s168 = smul.addr %s167, 4
      %s169 = scalar_lea.vmem %s0, %s168
      %s170 = smul.u32 4, %s14
      %p171 = scmp.lt.s32.totalorder %s14, 1
      %s172 = scalar_select %p171, %s14, 1
      %s173 = smul.addr %s172, 4
      %s174 = smul.addr %s173, 2
      %s175 = scalar_lea.vmem %s3, %s174
      %v177 = vld [vmem:[%s169] sm:$0x3]
      %v178 = vld [vmem:[%s169 + $0x4] sm:$0x3]
      %v179 = vld [vmem:[%s169 + $0x8] sm:$0x3]
      %v180 = vld [vmem:[%s169 + $0xc] sm:$0x3]
      %v181 = vld [vmem:[%s1] sm:$0xf]
      %s182 = scalar_lea.vmem %s169, 20
      %v183 = vld [vmem:[%s182] sm:$0x3]
      %v184 = vld [vmem:[%s182 + $0x4] sm:$0x3]
      %v185 = vld [vmem:[%s182 + $0x8] sm:$0x3]
      %v186 = vld [vmem:[%s182 + $0xc] sm:$0x3]
      %s187 = scalar_lea.vmem %s1, 4
      %v188 = vld [vmem:[%s187] sm:$0xf]
      %190 = vst [vmem:[#allocation1] ss:$4 sm:$0xff] %v183
      %s192 = scalar_lea.vmem [#allocation1], 1
      %193 = vst [vmem:[%s192] ss:$4 sm:$0xff] %v184
      %s195 = scalar_lea.vmem [#allocation1], 2
      %196 = vst [vmem:[%s195] ss:$4 sm:$0xff] %v185
      %s198 = scalar_lea.vmem [#allocation1], 3
      %199 = vst [vmem:[%s198] ss:$4 sm:$0xff] %v186
      %v200 = vld.sshfl [vmem:[#allocation1] sm:$0xff pattern:$0x73625140]
      %vm201 = vcmask 64512
      %v202 = vsel %vm201, %v200, 0
      %vm204 = vcmask 1043456
      %v206 = vsel %vm204, %v188, 0
      %208 = vmatpush.bf16.msra.mxu0 0
      %209 = vmatpush.bf16.msra.mxu0 0
      %210 = vmatpush.bf16.msra.mxu0 0
      %211 = vmatpush.bf16.msra.mxu0 0
      %212 = vmatpush.bf16.msra.mxu0 0
      %213 = vmatpush.bf16.msra.mxu0 0
      %214 = vmatpush.bf16.msra.mxu0 0
      %215 = vmatpush.bf16.msra.mxu0 %v206
      %216 = vmatmul.bf16.gmra.mxu0 %v202
      %v217 = vpop.f32.mrf.mxu0
      %v218 = vadd.f32 0.0, %v217
      %v219 = vpop.f32.mrf.mxu0
      %v220 = vadd.f32 0.0, %v219
      %221 = vdwg.mxu0
      %223 = vst [vmem:[#allocation1] ss:$4 sm:$0xff] %v177
      %s225 = scalar_lea.vmem [#allocation1], 1
      %226 = vst [vmem:[%s225] ss:$4 sm:$0xff] %v178
      %s228 = scalar_lea.vmem [#allocation1], 2
      %229 = vst [vmem:[%s228] ss:$4 sm:$0xff] %v179
      %s231 = scalar_lea.vmem [#allocation1], 3
      %232 = vst [vmem:[%s231] ss:$4 sm:$0xff] %v180
      %v233 = vld.sshfl [vmem:[#allocation1] sm:$0xff pattern:$0x73625140]
      %v234 = vsel %vm201, %v233, 0
      %v237 = vsel %vm204, %v181, 0
      %239 = vmatpush.bf16.msra.mxu0 0
      %240 = vmatpush.bf16.msra.mxu0 0
      %241 = vmatpush.bf16.msra.mxu0 0
      %242 = vmatpush.bf16.msra.mxu0 0
      %243 = vmatpush.bf16.msra.mxu0 0
      %244 = vmatpush.bf16.msra.mxu0 0
      %245 = vmatpush.bf16.msra.mxu0 0
      %246 = vmatpush.bf16.msra.mxu0 %v237
      %247 = vmatmul.bf16.gmra.mxu0 %v234
      %v248 = vpop.f32.mrf.mxu0
      %v249 = vadd.f32 %v218, %v248
      %v250 = vpop.f32.mrf.mxu0
      %v251 = vadd.f32 %v220, %v250
      %252 = vdwg.mxu0
      %v255 = vrot.slane %v249, 4
      %v256 = vrot.slane %v251, 4
      %v259 = vld [vmem:[%s169] sm:$0x7]
      %v260 = vld [vmem:[%s169 + $0x4] sm:$0x7]
      %v261 = vld [vmem:[%s169 + $0x8] sm:$0x7]
      %v262 = vld [vmem:[%s169 + $0xc] sm:$0x7]
      %s263 = scalar_lea.vmem %s1, 8
      %v264 = vld [vmem:[%s263] sm:$0xf]
      %v269 = vrot.slane %v259, 2
      %v270 = vrot.slane %v260, 2
      %v271 = vrot.slane %v261, 2
      %v272 = vrot.slane %v262, 2
      %vm273 = vcmask 1041408
      %v276 = vsel %vm273, %v259, %v269
      %vm277 = vcmask 1043458
      %v278 = vsel %vm277, %v259, %v269
      %v280 = vrot.slane %v278, 2
      %v283 = vsel %vm273, %v260, %v270
      %v284 = vsel %vm277, %v260, %v270
      %v286 = vrot.slane %v284, 2
      %v289 = vsel %vm273, %v261, %v271
      %v290 = vsel %vm277, %v261, %v271
      %v292 = vrot.slane %v290, 2
      %v295 = vsel %vm273, %v262, %v272
      %v296 = vsel %vm277, %v262, %v272
      %v298 = vrot.slane %v296, 2
      %vm299 = vsmask.f32 1280
      %vm300 = vsmask.f32 3336
      %vm301 = vmor %vm299, %vm300
      %vm302 = vsmask.f32 5392
      %vm303 = vmor %vm301, %vm302
      %vm304 = vsmask.f32 7448
      %vm305 = vmor %vm303, %vm304
      %v306 = vshrl.u32 %v276, 16
      %v308 = vrot.slane %v306, 6
      %v309 = vshll.u32 %v276, 16
      %v311 = vrot.slane %v309, 7
      %v312 = vor.u32 %v308, %v311
      %v313 = vrot.slane %v312, 2
      %v315 = vshll.u32 %v280, 16
      %v317 = vrot.slane %v315, 7
      %v318 = vsel %vm305, %v313, %v317
      %v319 = vshrl.u32 %v283, 16
      %v321 = vrot.slane %v319, 6
      %v322 = vshll.u32 %v283, 16
      %v324 = vrot.slane %v322, 7
      %v325 = vor.u32 %v321, %v324
      %v326 = vrot.slane %v325, 2
      %v328 = vshll.u32 %v286, 16
      %v330 = vrot.slane %v328, 7
      %v331 = vsel %vm305, %v326, %v330
      %v332 = vshrl.u32 %v289, 16
      %v334 = vrot.slane %v332, 6
      %v335 = vshll.u32 %v289, 16
      %v337 = vrot.slane %v335, 7
      %v338 = vor.u32 %v334, %v337
      %v339 = vrot.slane %v338, 2
      %v341 = vshll.u32 %v292, 16
      %v343 = vrot.slane %v341, 7
      %v344 = vsel %vm305, %v339, %v343
      %v345 = vshrl.u32 %v295, 16
      %v347 = vrot.slane %v345, 6
      %v348 = vshll.u32 %v295, 16
      %v350 = vrot.slane %v348, 7
      %v351 = vor.u32 %v347, %v350
      %v352 = vrot.slane %v351, 2
      %v354 = vshll.u32 %v298, 16
      %v356 = vrot.slane %v354, 7
      %v357 = vsel %vm305, %v352, %v356
      %359 = vst [vmem:[#allocation1] ss:$4 sm:$0xff] %v318
      %s361 = scalar_lea.vmem [#allocation1], 1
      %362 = vst [vmem:[%s361] ss:$4 sm:$0xff] %v331
      %s364 = scalar_lea.vmem [#allocation1], 2
      %365 = vst [vmem:[%s364] ss:$4 sm:$0xff] %v344
      %s367 = scalar_lea.vmem [#allocation1], 3
      %368 = vst [vmem:[%s367] ss:$4 sm:$0xff] %v357
      %v369 = vld.sshfl [vmem:[#allocation1] sm:$0xff pattern:$0x73625140]
      %v370 = vsel %vm201, %v369, 0
      %v373 = vsel %vm204, %v264, 0
      %375 = vmatpush.bf16.msra.mxu0 0
      %376 = vmatpush.bf16.msra.mxu0 0
      %377 = vmatpush.bf16.msra.mxu0 0
      %378 = vmatpush.bf16.msra.mxu0 0
      %379 = vmatpush.bf16.msra.mxu0 0
      %380 = vmatpush.bf16.msra.mxu0 0
      %381 = vmatpush.bf16.msra.mxu0 0
      %382 = vmatpush.bf16.msra.mxu0 %v373
      %383 = vmatmul.bf16.gmra.mxu0 %v370
      %v384 = vpop.f32.mrf.mxu0
      %v385 = vadd.f32 0.0, %v384
      %v386 = vpop.f32.mrf.mxu0
      %v387 = vadd.f32 0.0, %v386
      %388 = vdwg.mxu0
      %v391 = vrot.slane %v385, 4
      %v392 = vrot.slane %v387, 4
      %v395 = vadd.f32 %v249, %v385
      %v396 = vadd.f32 %v255, %v391
      %v397 = vadd.f32 %v251, %v387
      %v398 = vadd.f32 %v256, %v392
      %s399 = scalar_lea.vmem %s169, 40
      %v400 = vld [vmem:[%s399] sm:$0x3]
      %v401 = vld [vmem:[%s399 + $0x4] sm:$0x3]
      %v402 = vld [vmem:[%s399 + $0x8] sm:$0x3]
      %v403 = vld [vmem:[%s399 + $0xc] sm:$0x3]
      %s404 = scalar_lea.vmem %s1, 12
      %v405 = vld [vmem:[%s404] sm:$0xf]
      %407 = vst [vmem:[#allocation1] ss:$4 sm:$0xff] %v400
      %s409 = scalar_lea.vmem [#allocation1], 1
      %410 = vst [vmem:[%s409] ss:$4 sm:$0xff] %v401
      %s412 = scalar_lea.vmem [#allocation1], 2
      %413 = vst [vmem:[%s412] ss:$4 sm:$0xff] %v402
      %s415 = scalar_lea.vmem [#allocation1], 3
      %416 = vst [vmem:[%s415] ss:$4 sm:$0xff] %v403
      %v417 = vld.sshfl [vmem:[#allocation1] sm:$0xff pattern:$0x73625140]
      %v418 = vsel %vm201, %v417, 0
      %v421 = vsel %vm204, %v405, 0
      %423 = vmatpush.bf16.msra.mxu0 0
      %424 = vmatpush.bf16.msra.mxu0 0
      %425 = vmatpush.bf16.msra.mxu0 0
      %426 = vmatpush.bf16.msra.mxu0 0
      %427 = vmatpush.bf16.msra.mxu0 0
      %428 = vmatpush.bf16.msra.mxu0 0
      %429 = vmatpush.bf16.msra.mxu0 0
      %430 = vmatpush.bf16.msra.mxu0 %v421
      %431 = vmatmul.bf16.gmra.mxu0 %v418
      %v432 = vpop.f32.mrf.mxu0
      %v433 = vadd.f32 0.0, %v432
      %v434 = vpop.f32.mrf.mxu0
      %v435 = vadd.f32 0.0, %v434
      %436 = vdwg.mxu0
      %v439 = vrot.slane %v433, 4
      %v440 = vrot.slane %v435, 4
      %v443 = vadd.f32 %v395, %v433
      %v444 = vadd.f32 %v396, %v439
      %v445 = vadd.f32 %v397, %v435
      %v446 = vadd.f32 %v398, %v440
      %s447 = scalar_lea.vmem %s169, 60
      %v448 = vld [vmem:[%s447] sm:$0x3]
      %v449 = vld [vmem:[%s447 + $0x4] sm:$0x3]
      %v450 = vld [vmem:[%s447 + $0x8] sm:$0x3]
      %v451 = vld [vmem:[%s447 + $0xc] sm:$0x3]
      %s452 = scalar_lea.vmem %s1, 16
      %v453 = vld [vmem:[%s452] sm:$0xf]
      %455 = vst [vmem:[#allocation1] ss:$4 sm:$0xff] %v448
      %s457 = scalar_lea.vmem [#allocation1], 1
      %458 = vst [vmem:[%s457] ss:$4 sm:$0xff] %v449
      %s460 = scalar_lea.vmem [#allocation1], 2
      %461 = vst [vmem:[%s460] ss:$4 sm:$0xff] %v450
      %s463 = scalar_lea.vmem [#allocation1], 3
      %464 = vst [vmem:[%s463] ss:$4 sm:$0xff] %v451
      %v465 = vld.sshfl [vmem:[#allocation1] sm:$0xff pattern:$0x73625140]
      %v466 = vsel %vm201, %v465, 0
      %v469 = vsel %vm204, %v453, 0
      %471 = vmatpush.bf16.msra.mxu0 0
      %472 = vmatpush.bf16.msra.mxu0 0
      %473 = vmatpush.bf16.msra.mxu0 0
      %474 = vmatpush.bf16.msra.mxu0 0
      %475 = vmatpush.bf16.msra.mxu0 0
      %476 = vmatpush.bf16.msra.mxu0 0
      %477 = vmatpush.bf16.msra.mxu0 0
      %478 = vmatpush.bf16.msra.mxu0 %v469
      %479 = vmatmul.bf16.gmra.mxu0 %v466
      %v480 = vpop.f32.mrf.mxu0
      %v481 = vadd.f32 0.0, %v480
      %v482 = vpop.f32.mrf.mxu0
      %v483 = vadd.f32 0.0, %v482
      %484 = vdwg.mxu0
      %v487 = vrot.slane %v481, 4
      %v488 = vrot.slane %v483, 4
      %v491 = vadd.f32 %v443, %v481
      %v492 = vadd.f32 %v444, %v487
      %v493 = vadd.f32 %v445, %v483
      %v494 = vadd.f32 %v446, %v488
      %v495 = vld [vmem:[%s399] sm:$0x7]
      %v496 = vld [vmem:[%s399 + $0x4] sm:$0x7]
      %v497 = vld [vmem:[%s399 + $0x8] sm:$0x7]
      %v498 = vld [vmem:[%s399 + $0xc] sm:$0x7]
      %s499 = scalar_lea.vmem %s1, 20
      %v500 = vld [vmem:[%s499] sm:$0xf]
      %v505 = vrot.slane %v495, 2
      %v506 = vrot.slane %v496, 2
      %v507 = vrot.slane %v497, 2
      %v508 = vrot.slane %v498, 2
      %v511 = vsel %vm273, %v495, %v505
      %v512 = vsel %vm277, %v495, %v505
      %v514 = vrot.slane %v512, 2
      %v517 = vsel %vm273, %v496, %v506
      %v518 = vsel %vm277, %v496, %v506
      %v520 = vrot.slane %v518, 2
      %v523 = vsel %vm273, %v497, %v507
      %v524 = vsel %vm277, %v497, %v507
      %v526 = vrot.slane %v524, 2
      %v529 = vsel %vm273, %v498, %v508
      %v530 = vsel %vm277, %v498, %v508
      %v532 = vrot.slane %v530, 2
      %v533 = vshrl.u32 %v511, 16
      %v535 = vrot.slane %v533, 6
      %v536 = vshll.u32 %v511, 16
      %v538 = vrot.slane %v536, 7
      %v539 = vor.u32 %v535, %v538
      %v540 = vrot.slane %v539, 2
      %v542 = vshll.u32 %v514, 16
      %v544 = vrot.slane %v542, 7
      %v545 = vsel %vm305, %v540, %v544
      %v546 = vshrl.u32 %v517, 16
      %v548 = vrot.slane %v546, 6
      %v549 = vshll.u32 %v517, 16
      %v551 = vrot.slane %v549, 7
      %v552 = vor.u32 %v548, %v551
      %v553 = vrot.slane %v552, 2
      %v555 = vshll.u32 %v520, 16
      %v557 = vrot.slane %v555, 7
      %v558 = vsel %vm305, %v553, %v557
      %v559 = vshrl.u32 %v523, 16
      %v561 = vrot.slane %v559, 6
      %v562 = vshll.u32 %v523, 16
      %v564 = vrot.slane %v562, 7
      %v565 = vor.u32 %v561, %v564
      %v566 = vrot.slane %v565, 2
      %v568 = vshll.u32 %v526, 16
      %v570 = vrot.slane %v568, 7
      %v571 = vsel %vm305, %v566, %v570
      %v572 = vshrl.u32 %v529, 16
      %v574 = vrot.slane %v572, 6
      %v575 = vshll.u32 %v529, 16
      %v577 = vrot.slane %v575, 7
      %v578 = vor.u32 %v574, %v577
      %v579 = vrot.slane %v578, 2
      %v581 = vshll.u32 %v532, 16
      %v583 = vrot.slane %v581, 7
      %v584 = vsel %vm305, %v579, %v583
      %586 = vst [vmem:[#allocation1] ss:$4 sm:$0xff] %v545
      %s588 = scalar_lea.vmem [#allocation1], 1
      %589 = vst [vmem:[%s588] ss:$4 sm:$0xff] %v558
      %s591 = scalar_lea.vmem [#allocation1], 2
      %592 = vst [vmem:[%s591] ss:$4 sm:$0xff] %v571
      %s594 = scalar_lea.vmem [#allocation1], 3
      %595 = vst [vmem:[%s594] ss:$4 sm:$0xff] %v584
      %v596 = vld.sshfl [vmem:[#allocation1] sm:$0xff pattern:$0x73625140]
      %v597 = vsel %vm201, %v596, 0
      %v600 = vsel %vm204, %v500, 0
      %602 = vmatpush.bf16.msra.mxu0 0
      %603 = vmatpush.bf16.msra.mxu0 0
      %604 = vmatpush.bf16.msra.mxu0 0
      %605 = vmatpush.bf16.msra.mxu0 0
      %606 = vmatpush.bf16.msra.mxu0 0
      %607 = vmatpush.bf16.msra.mxu0 0
      %608 = vmatpush.bf16.msra.mxu0 0
      %609 = vmatpush.bf16.msra.mxu0 %v600
      %610 = vmatmul.bf16.gmra.mxu0 %v597
      %v611 = vpop.f32.mrf.mxu0
      %v612 = vadd.f32 0.0, %v611
      %v613 = vpop.f32.mrf.mxu0
      %v614 = vadd.f32 0.0, %v613
      %615 = vdwg.mxu0
      %v618 = vrot.slane %v612, 4
      %v619 = vrot.slane %v614, 4
      %v622 = vadd.f32 %v491, %v612
      %v623 = vadd.f32 %v492, %v618
      %v624 = vadd.f32 %v493, %v614
      %v625 = vadd.f32 %v494, %v619
      %s626 = scalar_lea.vmem %s169, 4
      %v627 = vld [vmem:[%s626] sm:$0x3]
      %v628 = vld [vmem:[%s626 + $0x4] sm:$0x3]
      %v629 = vld [vmem:[%s626 + $0x8] sm:$0x3]
      %v630 = vld [vmem:[%s626 + $0xc] sm:$0x3]
      %s631 = scalar_lea.vmem %s1, 24
      %v632 = vld [vmem:[%s631] sm:$0xf]
      %634 = vst [vmem:[#allocation1] ss:$4 sm:$0xff] %v627
      %s636 = scalar_lea.vmem [#allocation1], 1
      %637 = vst [vmem:[%s636] ss:$4 sm:$0xff] %v628
      %s639 = scalar_lea.vmem [#allocation1], 2
      %640 = vst [vmem:[%s639] ss:$4 sm:$0xff] %v629
      %s642 = scalar_lea.vmem [#allocation1], 3
      %643 = vst [vmem:[%s642] ss:$4 sm:$0xff] %v630
      %v644 = vld.sshfl [vmem:[#allocation1] sm:$0xff pattern:$0x73625140]
      %v645 = vsel %vm201, %v644, 0
      %v648 = vsel %vm204, %v632, 0
      %650 = vmatpush.bf16.msra.mxu0 0
      %651 = vmatpush.bf16.msra.mxu0 0
      %652 = vmatpush.bf16.msra.mxu0 0
      %653 = vmatpush.bf16.msra.mxu0 0
      %654 = vmatpush.bf16.msra.mxu0 0
      %655 = vmatpush.bf16.msra.mxu0 0
      %656 = vmatpush.bf16.msra.mxu0 0
      %657 = vmatpush.bf16.msra.mxu0 %v648
      %658 = vmatmul.bf16.gmra.mxu0 %v645
      %v659 = vpop.f32.mrf.mxu0
      %v660 = vadd.f32 0.0, %v659
      %v661 = vpop.f32.mrf.mxu0
      %v662 = vadd.f32 0.0, %v661
      %663 = vdwg.mxu0
      %v666 = vrot.slane %v660, 4
      %v667 = vrot.slane %v662, 4
      %v670 = vadd.f32 %v622, %v660
      %v671 = vadd.f32 %v623, %v666
      %v672 = vadd.f32 %v624, %v662
      %v673 = vadd.f32 %v625, %v667
      %s674 = scalar_lea.vmem %s169, 24
      %v675 = vld [vmem:[%s674] sm:$0x3]
      %v676 = vld [vmem:[%s674 + $0x4] sm:$0x3]
      %v677 = vld [vmem:[%s674 + $0x8] sm:$0x3]
      %v678 = vld [vmem:[%s674 + $0xc] sm:$0x3]
      %s679 = scalar_lea.vmem %s1, 28
      %v680 = vld [vmem:[%s679] sm:$0xf]
      %682 = vst [vmem:[#allocation1] ss:$4 sm:$0xff] %v675
      %s684 = scalar_lea.vmem [#allocation1], 1
      %685 = vst [vmem:[%s684] ss:$4 sm:$0xff] %v676
      %s687 = scalar_lea.vmem [#allocation1], 2
      %688 = vst [vmem:[%s687] ss:$4 sm:$0xff] %v677
      %s690 = scalar_lea.vmem [#allocation1], 3
      %691 = vst [vmem:[%s690] ss:$4 sm:$0xff] %v678
      %v692 = vld.sshfl [vmem:[#allocation1] sm:$0xff pattern:$0x73625140]
      %v693 = vsel %vm201, %v692, 0
      %v696 = vsel %vm204, %v680, 0
      %698 = vmatpush.bf16.msra.mxu0 0
      %699 = vmatpush.bf16.msra.mxu0 0
      %700 = vmatpush.bf16.msra.mxu0 0
      %701 = vmatpush.bf16.msra.mxu0 0
      %702 = vmatpush.bf16.msra.mxu0 0
      %703 = vmatpush.bf16.msra.mxu0 0
      %704 = vmatpush.bf16.msra.mxu0 0
      %705 = vmatpush.bf16.msra.mxu0 %v696
      %706 = vmatmul.bf16.gmra.mxu0 %v693
      %v707 = vpop.f32.mrf.mxu0
      %v708 = vadd.f32 0.0, %v707
      %v709 = vpop.f32.mrf.mxu0
      %v710 = vadd.f32 0.0, %v709
      %711 = vdwg.mxu0
      %v714 = vrot.slane %v708, 4
      %v715 = vrot.slane %v710, 4
      %v718 = vadd.f32 %v670, %v708
      %v719 = vadd.f32 %v671, %v714
      %v720 = vadd.f32 %v672, %v710
      %v721 = vadd.f32 %v673, %v715
      %v722 = vld [vmem:[%s626] sm:$0x7]
      %v723 = vld [vmem:[%s626 + $0x4] sm:$0x7]
      %v724 = vld [vmem:[%s626 + $0x8] sm:$0x7]
      %v725 = vld [vmem:[%s626 + $0xc] sm:$0x7]
      %s726 = scalar_lea.vmem %s1, 32
      %v727 = vld [vmem:[%s726] sm:$0xf]
      %v732 = vrot.slane %v722, 2
      %v733 = vrot.slane %v723, 2
      %v734 = vrot.slane %v724, 2
      %v735 = vrot.slane %v725, 2
      %v738 = vsel %vm273, %v722, %v732
      %v739 = vsel %vm277, %v722, %v732
      %v741 = vrot.slane %v739, 2
      %v744 = vsel %vm273, %v723, %v733
      %v745 = vsel %vm277, %v723, %v733
      %v747 = vrot.slane %v745, 2
      %v750 = vsel %vm273, %v724, %v734
      %v751 = vsel %vm277, %v724, %v734
      %v753 = vrot.slane %v751, 2
      %v756 = vsel %vm273, %v725, %v735
      %v757 = vsel %vm277, %v725, %v735
      %v759 = vrot.slane %v757, 2
      %v760 = vshrl.u32 %v738, 16
      %v762 = vrot.slane %v760, 6
      %v763 = vshll.u32 %v738, 16
      %v765 = vrot.slane %v763, 7
      %v766 = vor.u32 %v762, %v765
      %v767 = vrot.slane %v766, 2
      %v769 = vshll.u32 %v741, 16
      %v771 = vrot.slane %v769, 7
      %v772 = vsel %vm305, %v767, %v771
      %v773 = vshrl.u32 %v744, 16
      %v775 = vrot.slane %v773, 6
      %v776 = vshll.u32 %v744, 16
      %v778 = vrot.slane %v776, 7
      %v779 = vor.u32 %v775, %v778
      %v780 = vrot.slane %v779, 2
      %v782 = vshll.u32 %v747, 16
      %v784 = vrot.slane %v782, 7
      %v785 = vsel %vm305, %v780, %v784
      %v786 = vshrl.u32 %v750, 16
      %v788 = vrot.slane %v786, 6
      %v789 = vshll.u32 %v750, 16
      %v791 = vrot.slane %v789, 7
      %v792 = vor.u32 %v788, %v791
      %v793 = vrot.slane %v792, 2
      %v795 = vshll.u32 %v753, 16
      %v797 = vrot.slane %v795, 7
      %v798 = vsel %vm305, %v793, %v797
      %v799 = vshrl.u32 %v756, 16
      %v801 = vrot.slane %v799, 6
      %v802 = vshll.u32 %v756, 16
      %v804 = vrot.slane %v802, 7
      %v805 = vor.u32 %v801, %v804
      %v806 = vrot.slane %v805, 2
      %v808 = vshll.u32 %v759, 16
      %v810 = vrot.slane %v808, 7
      %v811 = vsel %vm305, %v806, %v810
      %813 = vst [vmem:[#allocation1] ss:$4 sm:$0xff] %v772
      %s815 = scalar_lea.vmem [#allocation1], 1
      %816 = vst [vmem:[%s815] ss:$4 sm:$0xff] %v785
      %s818 = scalar_lea.vmem [#allocation1], 2
      %819 = vst [vmem:[%s818] ss:$4 sm:$0xff] %v798
      %s821 = scalar_lea.vmem [#allocation1], 3
      %822 = vst [vmem:[%s821] ss:$4 sm:$0xff] %v811
      %v823 = vld.sshfl [vmem:[#allocation1] sm:$0xff pattern:$0x73625140]
      %v824 = vsel %vm201, %v823, 0
      %v827 = vsel %vm204, %v727, 0
      %829 = vmatpush.bf16.msra.mxu0 0
      %830 = vmatpush.bf16.msra.mxu0 0
      %831 = vmatpush.bf16.msra.mxu0 0
      %832 = vmatpush.bf16.msra.mxu0 0
      %833 = vmatpush.bf16.msra.mxu0 0
      %834 = vmatpush.bf16.msra.mxu0 0
      %835 = vmatpush.bf16.msra.mxu0 0
      %836 = vmatpush.bf16.msra.mxu0 %v827
      %837 = vmatmul.bf16.gmra.mxu0 %v824
      %v838 = vpop.f32.mrf.mxu0
      %v839 = vadd.f32 0.0, %v838
      %v840 = vpop.f32.mrf.mxu0
      %v841 = vadd.f32 0.0, %v840
      %842 = vdwg.mxu0
      %v845 = vrot.slane %v839, 4
      %v846 = vrot.slane %v841, 4
      %v849 = vadd.f32 %v718, %v839
      %v850 = vadd.f32 %v719, %v845
      %v851 = vadd.f32 %v720, %v841
      %v852 = vadd.f32 %v721, %v846
      %v853 = vld [vmem:[%s2] sm:$0x1]
      %v855 = vperm.slane %v853, 0
      %v857 = vadd.f32 %v849, %v855
      %v858 = vadd.f32 %v850, %v855
      %v859 = vadd.f32 %v851, %v855
      %v860 = vadd.f32 %v852, %v855
      %v861 = vmax.f32 %v857, 0.0
      %v862 = vmax.f32 %v858, 0.0
      %v863 = vmax.f32 %v859, 0.0
      %v864 = vmax.f32 %v860, 0.0
      %v865 = vpack.c.bf16 %v861, %v861
      %v866 = vpack.c.bf16 %v862, %v862
      %v867 = vpack.c.bf16 %v863, %v863
      %v868 = vpack.c.bf16 %v864, %v864
      %vm869 = vcmask 123904
      %870 = vst.msk [vmem:[%s175] sm:$0x3] %vm869, %v865
      %871 = vst.msk [vmem:[%s175 + $0x2] sm:$0x3] %vm869, %v866
      %872 = vst.msk [vmem:[%s175 + $0x4] sm:$0x3] %vm869, %v867
      %873 = vst.msk [vmem:[%s175 + $0x6] sm:$0x3] %vm869, %v868
      %p874 = scmp.lt.s32.totalorder %s14, 1
      %s875 = scalar_select %p874, %s14, 1
      %s876 = smul.addr %s875, 4
      %s877 = smul.addr %s876, 2
      %s878 = scalar_lea.vmem %s3, %s877
      // Predicated region
      $region33: #{encoder_forward.10} parent=31 // pred_check
        %p879 = pneg %p100
      $region34: #{encoder_forward.10} parent=31 // pred_check_branch
        %881 = sbr.rel (%p879) target = $region36
      $region35: #{encoder_forward.10} parent=31 // pred_region
        _
      $region36: #{encoder_forward.10} parent=31 // pred_fallthru
        _
    $region32: #{encoder_forward.10} parent=5 // pred_fallthru
      _
    %p882 = scmp.le.s32.totalorder 2, %s9
    // Predicated region
    $region37: #{encoder_forward.10} parent=5 // pred_check
      %p883 = pneg %p882
    $region38: #{encoder_forward.10} parent=5 // pred_check_branch
      %885 = sbr.rel (%p883) target = $region40
    $region39: #{encoder_forward.10} parent=5 // pred_region
      %s886 = ssub.s32 %s9, 2
      // Predicated region
      $region41: #{encoder_forward.10} parent=39 // pred_check
        %p887 = pneg %p106
      $region42: #{encoder_forward.10} parent=39 // pred_check_branch
        %889 = sbr.rel (%p887) target = $region44
      $region43: #{encoder_forward.10} parent=39 // pred_region
        %p890 = scmp.lt.s32.totalorder %s15, 1
        %s891 = scalar_select %p890, %s15, 1
        %s892 = smul.addr %s891, 4
        %s893 = smul.addr %s892, 2
        %s894 = scalar_lea.vmem %s3, %s893
      $region44: #{encoder_forward.10} parent=39 // pred_fallthru
        _
    $region40: #{encoder_forward.10} parent=5 // pred_fallthru
      _
  $region6: #{encoder_forward.10} parent=0 // loop_footer
    %s13 = sadd.s32 1, %s9
  $region7: #{encoder_forward.10} parent=0 // loop_footer_branch
    %8 = sbr.rel target = $region3
  $region8: #{encoder_forward.10} parent=0 // loop_exit
    _

// kernel: encoder_forward.9
$region0: #{encoder_forward.9}
  #allocation0 [shape = 'u32[]', space=smem, size = 0x4, offset = 0x4, fixed_abs, tag = 'smem constant byte address 0x4 - core index']
  #allocation1 [shape = 'u32[72,128]{1,0:T(1,128)}', space=vmem, size = 0x9000, scoped, tag = 'internal scratch']
  %s0 = inlined_call_operand.vmem [shape: bf16[8,9,9,3], index: 0, kind: input, shape index: {}]
  %s1 = inlined_call_operand.vmem [shape: bf16[9,3,8], index: 1, kind: input, shape index: {}]
  %s2 = inlined_call_operand.vmem [shape: f32[1,8], index: 2, kind: input, shape index: {}]
  %s3 = inlined_call_operand.vmem [shape: bf16[2,8,8,8], index: 3, kind: output, shape index: {}]
  %s4 = sld [smem:[#allocation0]]
  $region45: #{encoder_forward.9} parent=0
    _
  %s6 = ssub.s32 1, %s4
  %s7 = scalar_select 0, %s6, %s4
  loop: start=0, step=1, limit=4
  $region2: #{encoder_forward.9} parent=0 // loop_pre_header
    _
  $region3: #{encoder_forward.9} parent=0 // loop_header
    %s9 = sphi 0, %s13
    %p10 = scmp.ge.s32.totalorder %s9, 4
    %s19 = sphi 0, %s21
    %s22 = sphi 0, %s19
    %s23 = sphi 0, %s22
    %s39 = sphi 0, %s23
    %s43 = sphi 0, %s43
    %s45 = sphi 0, %s43
    %s46 = sphi 0, %s45
    %s60 = sphi 0, %s46
    %s64 = sphi 0, %s64
    %s66 = sphi 0, %s64
    %s67 = sphi 0, %s66
    %s81 = sphi 0, %s67
    %s87 = sphi 0, %s89
    %s90 = sphi 0, %s87
    %s91 = sphi 0, %s90
    %s107 = sphi 0, %s91
  $region4: #{encoder_forward.9} parent=0 // loop_header_branch
    %12 = sbr.rel (%p10) target = $region8
  $region5: #{encoder_forward.9} parent=0 // loop_body
    %s14 = ssub.s32 %s9, 1
    %s15 = ssub.s32 %s9, 2
    %s16 = sadd.s32 %s9, 1
    %s17 = ssub.s32 %s9, %s16
    %p18 = scmp.eq.s32.totalorder %s17, 0
    %s20 = sadd.s32 %s19, 1
    %s21 = scalar_select %p18, %s19, %s20
    %p24 = pneg %p18
    %p25 = scmp.eq.s32.totalorder %s9, 1
    %p26 = por %p24, %p25
    %p27 = scmp.ne.s32.totalorder %s19, %s22
    %p28 = scmp.eq.s32.totalorder %s9, 0
    %p29 = por %p27, %p28
    %p30 = scmp.ne.s32.totalorder %s19, %s22
    %p31 = scmp.eq.s32.totalorder %s14, 1
    %p32 = por %p30, %p31
    %p33 = scmp.ne.s32.totalorder %s22, %s23
    %p34 = scmp.eq.s32.totalorder %s14, 0
    %p35 = por %p33, %p34
    %p36 = scmp.ne.s32.totalorder %s22, %s23
    %p37 = scmp.eq.s32.totalorder %s15, 1
    %p38 = por %p36, %p37
    %p40 = scmp.ne.s32.totalorder %s23, %s39
    %p41 = scmp.eq.s32.totalorder %s15, 0
    %p42 = por %p40, %p41
    %s44 = sadd.s32 %s43, 1
    %p47 = scmp.eq.s32.totalorder %s9, 1
    %p48 = scmp.ne.s32.totalorder %s43, %s45
    %p49 = scmp.eq.s32.totalorder %s9, 0
    %p50 = por %p48, %p49
    %p51 = scmp.ne.s32.totalorder %s43, %s45
    %p52 = scmp.eq.s32.totalorder %s14, 1
    %p53 = por %p51, %p52
    %p54 = scmp.ne.s32.totalorder %s45, %s46
    %p55 = scmp.eq.s32.totalorder %s14, 0
    %p56 = por %p54, %p55
    %p57 = scmp.ne.s32.totalorder %s45, %s46
    %p58 = scmp.eq.s32.totalorder %s15, 1
    %p59 = por %p57, %p58
    %p61 = scmp.ne.s32.totalorder %s46, %s60
    %p62 = scmp.eq.s32.totalorder %s15, 0
    %p63 = por %p61, %p62
    %s65 = sadd.s32 %s64, 1
    %p68 = scmp.eq.s32.totalorder %s9, 1
    %p69 = scmp.ne.s32.totalorder %s64, %s66
    %p70 = scmp.eq.s32.totalorder %s9, 0
    %p71 = por %p69, %p70
    %p72 = scmp.ne.s32.totalorder %s64, %s66
    %p73 = scmp.eq.s32.totalorder %s14, 1
    %p74 = por %p72, %p73
    %p75 = scmp.ne.s32.totalorder %s66, %s67
    %p76 = scmp.eq.s32.totalorder %s14, 0
    %p77 = por %p75, %p76
    %p78 = scmp.ne.s32.totalorder %s66, %s67
    %p79 = scmp.eq.s32.totalorder %s15, 1
    %p80 = por %p78, %p79
    %p82 = scmp.ne.s32.totalorder %s67, %s81
    %p83 = scmp.eq.s32.totalorder %s15, 0
    %p84 = por %p82, %p83
    %s85 = ssub.s32 %s9, %s16
    %p86 = scmp.eq.s32.totalorder %s85, 0
    %s88 = sadd.s32 %s87, 1
    %s89 = scalar_select %p86, %s87, %s88
    %p92 = pneg %p86
    %p93 = scmp.eq.s32.totalorder %s9, 1
    %p94 = por %p92, %p93
    %p95 = scmp.ne.s32.totalorder %s87, %s90
    %p96 = scmp.eq.s32.totalorder %s9, 0
    %p97 = por %p95, %p96
    %p98 = scmp.ne.s32.totalorder %s87, %s90
    %p99 = scmp.eq.s32.totalorder %s14, 1
    %p100 = por %p98, %p99
    %p101 = scmp.ne.s32.totalorder %s90, %s91
    %p102 = scmp.eq.s32.totalorder %s14, 0
    %p103 = por %p101, %p102
    %p104 = scmp.ne.s32.totalorder %s90, %s91
    %p105 = scmp.eq.s32.totalorder %s15, 1
    %p106 = por %p104, %p105
    %p108 = scmp.ne.s32.totalorder %s91, %s107
    %p109 = scmp.eq.s32.totalorder %s15, 0
    %p110 = por %p108, %p109
    %p111 = scmp.le.s32.totalorder 1, %s9
    %p112 = scmp.lt.s32.totalorder %s9, 3
    %p113 = pnand %p111, %p112
    %p114 = pneg %p113
    // Predicated region
    $region9: #{encoder_forward.9} parent=5 // pred_check
      _
    $region10: #{encoder_forward.9} parent=5 // pred_check_branch
      %116 = sbr.rel (%p113) target = $region12
    $region11: #{encoder_forward.9} parent=5 // pred_region
      %s117 = ssub.s32 %s9, 1
      // Predicated region
      $region13: #{encoder_forward.9} parent=11 // pred_check
        %p118 = pneg %p56
      $region14: #{encoder_forward.9} parent=11 // pred_check_branch
        %120 = sbr.rel (%p118) target = $region16
      $region15: #{encoder_forward.9} parent=11 // pred_region
        _
      $region16: #{encoder_forward.9} parent=11 // pred_fallthru
        _
      // Predicated region
      $region17: #{encoder_forward.9} parent=11 // pred_check
        %p121 = pneg %p77
      $region18: #{encoder_forward.9} parent=11 // pred_check_branch
        %123 = sbr.rel (%p121) target = $region20
      $region19: #{encoder_forward.9} parent=11 // pred_region
        _
      $region20: #{encoder_forward.9} parent=11 // pred_fallthru
        _
    $region12: #{encoder_forward.9} parent=5 // pred_fallthru
      _
    %p124 = scmp.lt.s32.totalorder %s9, 2
    // Predicated region
    $region21: #{encoder_forward.9} parent=5 // pred_check
      %p125 = pneg %p124
    $region22: #{encoder_forward.9} parent=5 // pred_check_branch
      %127 = sbr.rel (%p125) target = $region24
    $region23: #{encoder_forward.9} parent=5 // pred_region
      // Predicated region
      $region25: #{encoder_forward.9} parent=23 // pred_check
        %p128 = pneg %p29
      $region26: #{encoder_forward.9} parent=23 // pred_check_branch
        %130 = sbr.rel (%p128) target = $region28
      $region27: #{encoder_forward.9} parent=23 // pred_region
        %s131 = smul.u32 4, %s9
        %p132 = scmp.lt.s32.totalorder %s131, 7
        %s133 = scalar_select %p132, %s131, 7
        %s134 = smul.addr %s133, 18
        %s135 = smul.addr %s134, 4
        %s136 = scalar_lea.vmem %s0, %s135
        %s137 = smul.u32 4, %s9
      $region28: #{encoder_forward.9} parent=23 // pred_fallthru
        _
    $region24: #{encoder_forward.9} parent=5 // pred_fallthru
      _
    %p138 = scmp.le.s32.totalorder 1, %s9
    %p139 = scmp.lt.s32.totalorder %s9, 3
    %p140 = pnand %p138, %p139
    %p141 = pneg %p140
    // Predicated region
    $region29: #{encoder_forward.9} parent=5 // pred_check
      _
    $region30: #{encoder_forward.9} parent=5 // pred_check_branch
      %143 = sbr.rel (%p140) target = $region32
    $region31: #{encoder_forward.9} parent=5 // pred_region
      %s144 = ssub.s32 %s9, 1
      %s145 = smul.u32 4, %s14
      %p146 = scmp.lt.s32.totalorder %s145, 7
      %s147 = scalar_select %p146, %s145, 7
      %s148 = smul.addr %s147, 18
      %s149 = smul.addr %s148, 4
      %s150 = scalar_lea.vmem %s0, %s149
      %p151 = pneg %p35
      %p152 = pneg %p32
      %p153 = pneg %p56
      %p154 = pneg %p53
      %p155 = pneg %p77
      %p156 = pneg %p74
      %p157 = pneg %p103
      %p158 = pneg %p100
      %p159 = scmp.lt.s32.totalorder %s14, 1
      %s160 = scalar_select %p159, %s14, 1
      %s161 = smul.addr %s160, 8
      %s162 = smul.addr %s161, 4
      %s163 = scalar_lea.vmem %s3, %s162
      %s164 = smul.u32 4, %s14
      %p165 = scmp.lt.s32.totalorder %s164, 7
      %s166 = scalar_select %p165, %s164, 7
      %s167 = smul.addr %s166, 18
      %s168 = smul.addr %s167, 4
      %s169 = scalar_lea.vmem %s0, %s168
      %s170 = smul.u32 4, %s14
      %p171 = scmp.lt.s32.totalorder %s14, 1
      %s172 = scalar_select %p171, %s14, 1
      %s173 = smul.addr %s172, 8
      %s174 = smul.addr %s173, 4
      %s175 = scalar_lea.vmem %s3, %s174
      %v177 = vld [vmem:[%s169] sm:$0xf]
      %v178 = vld [vmem:[%s169 + $0x8] sm:$0xf]
      %v179 = vld [vmem:[%s169 + $0x10] sm:$0xf]
      %v180 = vld [vmem:[%s169 + $0x18] sm:$0xf]
      %v181 = vld [vmem:[%s169 + $0x20] sm:$0xf]
      %v182 = vld [vmem:[%s169 + $0x28] sm:$0xf]
      %v183 = vld [vmem:[%s169 + $0x30] sm:$0xf]
      %v184 = vld [vmem:[%s169 + $0x38] sm:$0xf]
      %v185 = vld [vmem:[%s1] sm:$0x3]
      %s186 = scalar_lea.vmem %s169, 72
      %v187 = vld [vmem:[%s186] sm:$0xf]
      %v188 = vld [vmem:[%s186 + $0x8] sm:$0xf]
      %v189 = vld [vmem:[%s186 + $0x10] sm:$0xf]
      %v190 = vld [vmem:[%s186 + $0x18] sm:$0xf]
      %v191 = vld [vmem:[%s186 + $0x20] sm:$0xf]
      %v192 = vld [vmem:[%s186 + $0x28] sm:$0xf]
      %v193 = vld [vmem:[%s186 + $0x30] sm:$0xf]
      %v194 = vld [vmem:[%s186 + $0x38] sm:$0xf]
      %s195 = scalar_lea.vmem %s1, 2
      %v196 = vld [vmem:[%s195] sm:$0x3]
      %v205 = vunpack.c.l.b16 %v187
      %v206 = vunpack.c.l.b16 %v188
      %v207 = vunpack.c.l.b16 %v189
      %v208 = vunpack.c.l.b16 %v190
      %v209 = vunpack.c.l.b16 %v191
      %v210 = vunpack.c.l.b16 %v192
      %v211 = vunpack.c.l.b16 %v193
      %v212 = vunpack.c.l.b16 %v194
      %v213 = vpack.c.b16 %v206, %v205
      %v214 = vpack.c.b16 %v208, %v207
      %v215 = vpack.c.b16 %v210, %v209
      %v216 = vpack.c.b16 %v212, %v211
      %vm217 = vcmask 23552
      %v219 = vsel %vm217, %v213, 0
      %v222 = vsel %vm217, %v214, 0
      %v225 = vsel %vm217, %v215, 0
      %v228 = vsel %vm217, %v216, 0
      %vm230 = vcmask 1040384
      %vm231 = vcmask 1041408
      %v232 = vsel %vm230, 4294967295, 65535
      %v233 = vsel %vm231, %v232, 0
      %v235 = vand.u32 %v196, %v233
      %237 = vmatpush.bf16.msra.mxu0 0
      %238 = vmatpush.bf16.msra.mxu0 0
      %239 = vmatpush.bf16.msra.mxu0 0
      %240 = vmatpush.bf16.msra.mxu0 0
      %241 = vmatpush.bf16.msra.mxu0 0
      %242 = vmatpush.bf16.msra.mxu0 0
      %243 = vmatpush.bf16.msra.mxu0 0
      %244 = vmatpush.bf16.msra.mxu0 %v235
      %245 = vmatmul.bf16.gmra.mxu0 %v219
      %v246 = vpop.f32.mrf.mxu0
      %v247 = vadd.f32 0.0, %v246
      %v248 = vpop.f32.mrf.mxu0
      %v249 = vadd.f32 0.0, %v248
      %250 = vmatmul.bf16.gmra.mxu0 %v222
      %v251 = vpop.f32.mrf.mxu0
      %v252 = vadd.f32 0.0, %v251
      %v253 = vpop.f32.mrf.mxu0
      %v254 = vadd.f32 0.0, %v253
      %255 = vmatmul.bf16.gmra.mxu0 %v225
      %v256 = vpop.f32.mrf.mxu0
      %v257 = vadd.f32 0.0, %v256
      %v258 = vpop.f32.mrf.mxu0
      %v259 = vadd.f32 0.0, %v258
      %260 = vmatmul.bf16.gmra.mxu0 %v228
      %v261 = vpop.f32.mrf.mxu0
      %v262 = vadd.f32 0.0, %v261
      %v263 = vpop.f32.mrf.mxu0
      %v264 = vadd.f32 0.0, %v263
      %265 = vdwg.mxu0
      %v274 = vunpack.c.l.b16 %v177
      %v275 = vunpack.c.l.b16 %v178
      %v276 = vunpack.c.l.b16 %v179
      %v277 = vunpack.c.l.b16 %v180
      %v278 = vunpack.c.l.b16 %v181
      %v279 = vunpack.c.l.b16 %v182
      %v280 = vunpack.c.l.b16 %v183
      %v281 = vunpack.c.l.b16 %v184
      %v282 = vpack.c.b16 %v275, %v274
      %v283 = vpack.c.b16 %v277, %v276
      %v284 = vpack.c.b16 %v279, %v278
      %v285 = vpack.c.b16 %v281, %v280
      %v287 = vsel %vm217, %v282, 0
      %v290 = vsel %vm217, %v283, 0
      %v293 = vsel %vm217, %v284, 0
      %v296 = vsel %vm217, %v285, 0
      %v299 = vand.u32 %v185, %v233
      %301 = vmatpush.bf16.msra.mxu0 0
      %302 = vmatpush.bf16.msra.mxu0 0
      %303 = vmatpush.bf16.msra.mxu0 0
      %304 = vmatpush.bf16.msra.mxu0 0
      %305 = vmatpush.bf16.msra.mxu0 0
      %306 = vmatpush.bf16.msra.mxu0 0
      %307 = vmatpush.bf16.msra.mxu0 0
      %308 = vmatpush.bf16.msra.mxu0 %v299
      %309 = vmatmul.bf16.gmra.mxu0 %v287
      %v310 = vpop.f32.mrf.mxu0
      %v311 = vadd.f32 %v247, %v310
      %v312 = vpop.f32.mrf.mxu0
      %v313 = vadd.f32 %v249, %v312
      %314 = vmatmul.bf16.gmra.mxu0 %v290
      %v315 = vpop.f32.mrf.mxu0
      %v316 = vadd.f32 %v252, %v315
      %v317 = vpop.f32.mrf.mxu0
      %v318 = vadd.f32 %v254, %v317
      %319 = vmatmul.bf16.gmra.mxu0 %v293
      %v320 = vpop.f32.mrf.mxu0
      %v321 = vadd.f32 %v257, %v320
      %v322 = vpop.f32.mrf.mxu0
      %v323 = vadd.f32 %v259, %v322
      %324 = vmatmul.bf16.gmra.mxu0 %v296
      %v325 = vpop.f32.mrf.mxu0
      %v326 = vadd.f32 %v262, %v325
      %v327 = vpop.f32.mrf.mxu0
      %v328 = vadd.f32 %v264, %v327
      %329 = vdwg.mxu0
      %v330 = vld [vmem:[%s169] sm:$0xf]
      %v331 = vld [vmem:[%s169 + $0x4] sm:$0x1]
      %v332 = vld [vmem:[%s169 + $0x8] sm:$0xf]
      %v333 = vld [vmem:[%s169 + $0xc] sm:$0x1]
      %v334 = vld [vmem:[%s169 + $0x10] sm:$0xf]
      %v335 = vld [vmem:[%s169 + $0x14] sm:$0x1]
      %v336 = vld [vmem:[%s169 + $0x18] sm:$0xf]
      %v337 = vld [vmem:[%s169 + $0x1c] sm:$0x1]
      %v338 = vld [vmem:[%s169 + $0x20] sm:$0xf]
      %v339 = vld [vmem:[%s169 + $0x24] sm:$0x1]
      %v340 = vld [vmem:[%s169 + $0x28] sm:$0xf]
      %v341 = vld [vmem:[%s169 + $0x2c] sm:$0x1]
      %v342 = vld [vmem:[%s169 + $0x30] sm:$0xf]
      %v343 = vld [vmem:[%s169 + $0x34] sm:$0x1]
      %v344 = vld [vmem:[%s169 + $0x38] sm:$0xf]
      %v345 = vld [vmem:[%s169 + $0x3c] sm:$0x1]
      %s346 = scalar_lea.vmem %s1, 4
      %v347 = vld [vmem:[%s346] sm:$0x3]
      %vm348 = vsmask.f32 3328
      %vm349 = vsmask.f32 7440
      %vm350 = vmor %vm348, %vm349
      %v352 = vshrl.u32 %v330, 16
      %v354 = vrot.slane %v352, 4
      %v355 = vshll.u32 %v330, 16
      %v357 = vrot.slane %v355, 5
      %v358 = vor.u32 %v354, %v357
      %v359 = vrot.slane %v358, 4
      %v361 = vshll.u32 %v331, 16
      %v363 = vrot.slane %v361, 5
      %v364 = vsel %vm350, %v359, %v363
      %v366 = vshrl.u32 %v332, 16
      %v368 = vrot.slane %v366, 4
      %v369 = vshll.u32 %v332, 16
      %v371 = vrot.slane %v369, 5
      %v372 = vor.u32 %v368, %v371
      %v373 = vrot.slane %v372, 4
      %v375 = vshll.u32 %v333, 16
      %v377 = vrot.slane %v375, 5
      %v378 = vsel %vm350, %v373, %v377
      %v380 = vshrl.u32 %v334, 16
      %v382 = vrot.slane %v380, 4
      %v383 = vshll.u32 %v334, 16
      %v385 = vrot.slane %v383, 5
      %v386 = vor.u32 %v382, %v385
      %v387 = vrot.slane %v386, 4
      %v389 = vshll.u32 %v335, 16
      %v391 = vrot.slane %v389, 5
      %v392 = vsel %vm350, %v387, %v391
      %v394 = vshrl.u32 %v336, 16
      %v396 = vrot.slane %v394, 4
      %v397 = vshll.u32 %v336, 16
      %v399 = vrot.slane %v397, 5
      %v400 = vor.u32 %v396, %v399
      %v401 = vrot.slane %v400, 4
      %v403 = vshll.u32 %v337, 16
      %v405 = vrot.slane %v403, 5
      %v406 = vsel %vm350, %v401, %v405
      %v408 = vshrl.u32 %v338, 16
      %v410 = vrot.slane %v408, 4
      %v411 = vshll.u32 %v338, 16
      %v413 = vrot.slane %v411, 5
      %v414 = vor.u32 %v410, %v413
      %v415 = vrot.slane %v414, 4
      %v417 = vshll.u32 %v339, 16
      %v419 = vrot.slane %v417, 5
      %v420 = vsel %vm350, %v415, %v419
      %v422 = vshrl.u32 %v340, 16
      %v424 = vrot.slane %v422, 4
      %v425 = vshll.u32 %v340, 16
      %v427 = vrot.slane %v425, 5
      %v428 = vor.u32 %v424, %v427
      %v429 = vrot.slane %v428, 4
      %v431 = vshll.u32 %v341, 16
      %v433 = vrot.slane %v431, 5
      %v434 = vsel %vm350, %v429, %v433
      %v436 = vshrl.u32 %v342, 16
      %v438 = vrot.slane %v436, 4
      %v439 = vshll.u32 %v342, 16
      %v441 = vrot.slane %v439, 5
      %v442 = vor.u32 %v438, %v441
      %v443 = vrot.slane %v442, 4
      %v445 = vshll.u32 %v343, 16
      %v447 = vrot.slane %v445, 5
      %v448 = vsel %vm350, %v443, %v447
      %v450 = vshrl.u32 %v344, 16
      %v452 = vrot.slane %v450, 4
      %v453 = vshll.u32 %v344, 16
      %v455 = vrot.slane %v453, 5
      %v456 = vor.u32 %v452, %v455
      %v457 = vrot.slane %v456, 4
      %v459 = vshll.u32 %v345, 16
      %v461 = vrot.slane %v459, 5
      %v462 = vsel %vm350, %v457, %v461
      %v463 = vunpack.c.l.b16 %v364
      %v464 = vunpack.c.l.b16 %v378
      %v465 = vunpack.c.l.b16 %v392
      %v466 = vunpack.c.l.b16 %v406
      %v467 = vunpack.c.l.b16 %v420
      %v468 = vunpack.c.l.b16 %v434
      %v469 = vunpack.c.l.b16 %v448
      %v470 = vunpack.c.l.b16 %v462
      %v471 = vpack.c.b16 %v464, %v463
      %v472 = vpack.c.b16 %v466, %v465
      %v473 = vpack.c.b16 %v468, %v467
      %v474 = vpack.c.b16 %v470, %v469
      %v476 = vsel %vm217, %v471, 0
      %v479 = vsel %vm217, %v472, 0
      %v482 = vsel %vm217, %v473, 0
      %v485 = vsel %vm217, %v474, 0
      %v488 = vand.u32 %v347, %v233
      %490 = vmatpush.bf16.msra.mxu0 0
      %491 = vmatpush.bf16.msra.mxu0 0
      %492 = vmatpush.bf16.msra.mxu0 0
      %493 = vmatpush.bf16.msra.mxu0 0
      %494 = vmatpush.bf16.msra.mxu0 0
      %495 = vmatpush.bf16.msra.mxu0 0
      %496 = vmatpush.bf16.msra.mxu0 0
      %497 = vmatpush.bf16.msra.mxu0 %v488
      %498 = vmatmul.bf16.gmra.mxu0 %v476
      %v499 = vpop.f32.mrf.mxu0
      %v500 = vadd.f32 0.0, %v499
      %v501 = vpop.f32.mrf.mxu0
      %v502 = vadd.f32 0.0, %v501
      %503 = vmatmul.bf16.gmra.mxu0 %v479
      %v504 = vpop.f32.mrf.mxu0
      %v505 = vadd.f32 0.0, %v504
      %v506 = vpop.f32.mrf.mxu0
      %v507 = vadd.f32 0.0, %v506
      %508 = vmatmul.bf16.gmra.mxu0 %v482
      %v509 = vpop.f32.mrf.mxu0
      %v510 = vadd.f32 0.0, %v509
      %v511 = vpop.f32.mrf.mxu0
      %v512 = vadd.f32 0.0, %v511
      %513 = vmatmul.bf16.gmra.mxu0 %v485
      %v514 = vpop.f32.mrf.mxu0
      %v515 = vadd.f32 0.0, %v514
      %v516 = vpop.f32.mrf.mxu0
      %v517 = vadd.f32 0.0, %v516
      %518 = vdwg.mxu0
      %v519 = vadd.f32 %v311, %v500
      %v520 = vadd.f32 %v313, %v502
      %v521 = vadd.f32 %v316, %v505
      %v522 = vadd.f32 %v318, %v507
      %v523 = vadd.f32 %v321, %v510
      %v524 = vadd.f32 %v323, %v512
      %v525 = vadd.f32 %v326, %v515
      %v526 = vadd.f32 %v328, %v517
      %s527 = scalar_lea.vmem %s169, 144
      %v528 = vld [vmem:[%s527] sm:$0xf]
      %v529 = vld [vmem:[%s527 + $0x8] sm:$0xf]
      %v530 = vld [vmem:[%s527 + $0x10] sm:$0xf]
      %v531 = vld [vmem:[%s527 + $0x18] sm:$0xf]
      %v532 = vld [vmem:[%s527 + $0x20] sm:$0xf]
      %v533 = vld [vmem:[%s527 + $0x28] sm:$0xf]
      %v534 = vld [vmem:[%s527 + $0x30] sm:$0xf]
      %v535 = vld [vmem:[%s527 + $0x38] sm:$0xf]
      %s536 = scalar_lea.vmem %s1, 6
      %v537 = vld [vmem:[%s536] sm:$0x3]
      %v546 = vunpack.c.l.b16 %v528
      %v547 = vunpack.c.l.b16 %v529
      %v548 = vunpack.c.l.b16 %v530
      %v549 = vunpack.c.l.b16 %v531
      %v550 = vunpack.c.l.b16 %v532
      %v551 = vunpack.c.l.b16 %v533
      %v552 = vunpack.c.l.b16 %v534
      %v553 = vunpack.c.l.b16 %v535
      %v554 = vpack.c.b16 %v547, %v546
      %v555 = vpack.c.b16 %v549, %v548
      %v556 = vpack.c.b16 %v551, %v550
      %v557 = vpack.c.b16 %v553, %v552
      %v559 = vsel %vm217, %v554, 0
      %v562 = vsel %vm217, %v555, 0
      %v565 = vsel %vm217, %v556, 0
      %v568 = vsel %vm217, %v557, 0
      %v571 = vand.u32 %v537, %v233
      %573 = vmatpush.bf16.msra.mxu0 0
      %574 = vmatpush.bf16.msra.mxu0 0
      %575 = vmatpush.bf16.msra.mxu0 0
      %576 = vmatpush.bf16.msra.mxu0 0
      %577 = vmatpush.bf16.msra.mxu0 0
      %578 = vmatpush.bf16.msra.mxu0 0
      %579 = vmatpush.bf16.msra.mxu0 0
      %580 = vmatpush.bf16.msra.mxu0 %v571
      %581 = vmatmul.bf16.gmra.mxu0 %v559
      %v582 = vpop.f32.mrf.mxu0
      %v583 = vadd.f32 0.0, %v582
      %v584 = vpop.f32.mrf.mxu0
      %v585 = vadd.f32 0.0, %v584
      %586 = vmatmul.bf16.gmra.mxu0 %v562
      %v587 = vpop.f32.mrf.mxu0
      %v588 = vadd.f32 0.0, %v587
      %v589 = vpop.f32.mrf.mxu0
      %v590 = vadd.f32 0.0, %v589
      %591 = vmatmul.bf16.gmra.mxu0 %v565
      %v592 = vpop.f32.mrf.mxu0
      %v593 = vadd.f32 0.0, %v592
      %v594 = vpop.f32.mrf.mxu0
      %v595 = vadd.f32 0.0, %v594
      %596 = vmatmul.bf16.gmra.mxu0 %v568
      %v597 = vpop.f32.mrf.mxu0
      %v598 = vadd.f32 0.0, %v597
      %v599 = vpop.f32.mrf.mxu0
      %v600 = vadd.f32 0.0, %v599
      %601 = vdwg.mxu0
      %v602 = vadd.f32 %v519, %v583
      %v603 = vadd.f32 %v520, %v585
      %v604 = vadd.f32 %v521, %v588
      %v605 = vadd.f32 %v522, %v590
      %v606 = vadd.f32 %v523, %v593
      %v607 = vadd.f32 %v524, %v595
      %v608 = vadd.f32 %v525, %v598
      %v609 = vadd.f32 %v526, %v600
      %s610 = scalar_lea.vmem %s169, 216
      %v611 = vld [vmem:[%s610] sm:$0xf]
      %v612 = vld [vmem:[%s610 + $0x8] sm:$0xf]
      %v613 = vld [vmem:[%s610 + $0x10] sm:$0xf]
      %v614 = vld [vmem:[%s610 + $0x18] sm:$0xf]
      %v615 = vld [vmem:[%s610 + $0x20] sm:$0xf]
      %v616 = vld [vmem:[%s610 + $0x28] sm:$0xf]
      %v617 = vld [vmem:[%s610 + $0x30] sm:$0xf]
      %v618 = vld [vmem:[%s610 + $0x38] sm:$0xf]
      %s619 = scalar_lea.vmem %s1, 8
      %v620 = vld [vmem:[%s619] sm:$0x3]
      %v629 = vunpack.c.l.b16 %v611
      %v630 = vunpack.c.l.b16 %v612
      %v631 = vunpack.c.l.b16 %v613
      %v632 = vunpack.c.l.b16 %v614
      %v633 = vunpack.c.l.b16 %v615
      %v634 = vunpack.c.l.b16 %v616
      %v635 = vunpack.c.l.b16 %v617
      %v636 = vunpack.c.l.b16 %v618
      %v637 = vpack.c.b16 %v630, %v629
      %v638 = vpack.c.b16 %v632, %v631
      %v639 = vpack.c.b16 %v634, %v633
      %v640 = vpack.c.b16 %v636, %v635
      %v642 = vsel %vm217, %v637, 0
      %v645 = vsel %vm217, %v638, 0
      %v648 = vsel %vm217, %v639, 0
      %v651 = vsel %vm217, %v640, 0
      %v654 = vand.u32 %v620, %v233
      %656 = vmatpush.bf16.msra.mxu0 0
      %657 = vmatpush.bf16.msra.mxu0 0
      %658 = vmatpush.bf16.msra.mxu0 0
      %659 = vmatpush.bf16.msra.mxu0 0
      %660 = vmatpush.bf16.msra.mxu0 0
      %661 = vmatpush.bf16.msra.mxu0 0
      %662 = vmatpush.bf16.msra.mxu0 0
      %663 = vmatpush.bf16.msra.mxu0 %v654
      %664 = vmatmul.bf16.gmra.mxu0 %v642
      %v665 = vpop.f32.mrf.mxu0
      %v666 = vadd.f32 0.0, %v665
      %v667 = vpop.f32.mrf.mxu0
      %v668 = vadd.f32 0.0, %v667
      %669 = vmatmul.bf16.gmra.mxu0 %v645
      %v670 = vpop.f32.mrf.mxu0
      %v671 = vadd.f32 0.0, %v670
      %v672 = vpop.f32.mrf.mxu0
      %v673 = vadd.f32 0.0, %v672
      %674 = vmatmul.bf16.gmra.mxu0 %v648
      %v675 = vpop.f32.mrf.mxu0
      %v676 = vadd.f32 0.0, %v675
      %v677 = vpop.f32.mrf.mxu0
      %v678 = vadd.f32 0.0, %v677
      %679 = vmatmul.bf16.gmra.mxu0 %v651
      %v680 = vpop.f32.mrf.mxu0
      %v681 = vadd.f32 0.0, %v680
      %v682 = vpop.f32.mrf.mxu0
      %v683 = vadd.f32 0.0, %v682
      %684 = vdwg.mxu0
      %v685 = vadd.f32 %v602, %v666
      %v686 = vadd.f32 %v603, %v668
      %v687 = vadd.f32 %v604, %v671
      %v688 = vadd.f32 %v605, %v673
      %v689 = vadd.f32 %v606, %v676
      %v690 = vadd.f32 %v607, %v678
      %v691 = vadd.f32 %v608, %v681
      %v692 = vadd.f32 %v609, %v683
      %v693 = vld [vmem:[%s527] sm:$0xf]
      %v694 = vld [vmem:[%s527 + $0x4] sm:$0x1]
      %v695 = vld [vmem:[%s527 + $0x8] sm:$0xf]
      %v696 = vld [vmem:[%s527 + $0xc] sm:$0x1]
      %v697 = vld [vmem:[%s527 + $0x10] sm:$0xf]
      %v698 = vld [vmem:[%s527 + $0x14] sm:$0x1]
      %v699 = vld [vmem:[%s527 + $0x18] sm:$0xf]
      %v700 = vld [vmem:[%s527 + $0x1c] sm:$0x1]
      %v701 = vld [vmem:[%s527 + $0x20] sm:$0xf]
      %v702 = vld [vmem:[%s527 + $0x24] sm:$0x1]
      %v703 = vld [vmem:[%s527 + $0x28] sm:$0xf]
      %v704 = vld [vmem:[%s527 + $0x2c] sm:$0x1]
      %v705 = vld [vmem:[%s527 + $0x30] sm:$0xf]
      %v706 = vld [vmem:[%s527 + $0x34] sm:$0x1]
      %v707 = vld [vmem:[%s527 + $0x38] sm:$0xf]
      %v708 = vld [vmem:[%s527 + $0x3c] sm:$0x1]
      %s709 = scalar_lea.vmem %s1, 10
      %v710 = vld [vmem:[%s709] sm:$0x3]
      %v712 = vshrl.u32 %v693, 16
      %v714 = vrot.slane %v712, 4
      %v715 = vshll.u32 %v693, 16
      %v717 = vrot.slane %v715, 5
      %v718 = vor.u32 %v714, %v717
      %v719 = vrot.slane %v718, 4
      %v721 = vshll.u32 %v694, 16
      %v723 = vrot.slane %v721, 5
      %v724 = vsel %vm350, %v719, %v723
      %v726 = vshrl.u32 %v695, 16
      %v728 = vrot.slane %v726, 4
      %v729 = vshll.u32 %v695, 16
      %v731 = vrot.slane %v729, 5
      %v732 = vor.u32 %v728, %v731
      %v733 = vrot.slane %v732, 4
      %v735 = vshll.u32 %v696, 16
      %v737 = vrot.slane %v735, 5
      %v738 = vsel %vm350, %v733, %v737
      %v740 = vshrl.u32 %v697, 16
      %v742 = vrot.slane %v740, 4
      %v743 = vshll.u32 %v697, 16
      %v745 = vrot.slane %v743, 5
      %v746 = vor.u32 %v742, %v745
      %v747 = vrot.slane %v746, 4
      %v749 = vshll.u32 %v698, 16
      %v751 = vrot.slane %v749, 5
      %v752 = vsel %vm350, %v747, %v751
      %v754 = vshrl.u32 %v699, 16
      %v756 = vrot.slane %v754, 4
      %v757 = vshll.u32 %v699, 16
      %v759 = vrot.slane %v757, 5
      %v760 = vor.u32 %v756, %v759
      %v761 = vrot.slane %v760, 4
      %v763 = vshll.u32 %v700, 16
      %v765 = vrot.slane %v763, 5
      %v766 = vsel %vm350, %v761, %v765
      %v768 = vshrl.u32 %v701, 16
      %v770 = vrot.slane %v768, 4
      %v771 = vshll.u32 %v701, 16
      %v773 = vrot.slane %v771, 5
      %v774 = vor.u32 %v770, %v773
      %v775 = vrot.slane %v774, 4
      %v777 = vshll.u32 %v702, 16
      %v779 = vrot.slane %v777, 5
      %v780 = vsel %vm350, %v775, %v779
      %v782 = vshrl.u32 %v703, 16
      %v784 = vrot.slane %v782, 4
      %v785 = vshll.u32 %v703, 16
      %v787 = vrot.slane %v785, 5
      %v788 = vor.u32 %v784, %v787
      %v789 = vrot.slane %v788, 4
      %v791 = vshll.u32 %v704, 16
      %v793 = vrot.slane %v791, 5
      %v794 = vsel %vm350, %v789, %v793
      %v796 = vshrl.u32 %v705, 16
      %v798 = vrot.slane %v796, 4
      %v799 = vshll.u32 %v705, 16
      %v801 = vrot.slane %v799, 5
      %v802 = vor.u32 %v798, %v801
      %v803 = vrot.slane %v802, 4
      %v805 = vshll.u32 %v706, 16
      %v807 = vrot.slane %v805, 5
      %v808 = vsel %vm350, %v803, %v807
      %v810 = vshrl.u32 %v707, 16
      %v812 = vrot.slane %v810, 4
      %v813 = vshll.u32 %v707, 16
      %v815 = vrot.slane %v813, 5
      %v816 = vor.u32 %v812, %v815
      %v817 = vrot.slane %v816, 4
      %v819 = vshll.u32 %v708, 16
      %v821 = vrot.slane %v819, 5
      %v822 = vsel %vm350, %v817, %v821
      %v823 = vunpack.c.l.b16 %v724
      %v824 = vunpack.c.l.b16 %v738
      %v825 = vunpack.c.l.b16 %v752
      %v826 = vunpack.c.l.b16 %v766
      %v827 = vunpack.c.l.b16 %v780
      %v828 = vunpack.c.l.b16 %v794
      %v829 = vunpack.c.l.b16 %v808
      %v830 = vunpack.c.l.b16 %v822
      %v831 = vpack.c.b16 %v824, %v823
      %v832 = vpack.c.b16 %v826, %v825
      %v833 = vpack.c.b16 %v828, %v827
      %v834 = vpack.c.b16 %v830, %v829
      %v836 = vsel %vm217, %v831, 0
      %v839 = vsel %vm217, %v832, 0
      %v842 = vsel %vm217, %v833, 0
      %v845 = vsel %vm217, %v834, 0
      %v848 = vand.u32 %v710, %v233
      %850 = vmatpush.bf16.msra.mxu0 0
      %851 = vmatpush.bf16.msra.mxu0 0
      %852 = vmatpush.bf16.msra.mxu0 0
      %853 = vmatpush.bf16.msra.mxu0 0
      %854 = vmatpush.bf16.msra.mxu0 0
      %855 = vmatpush.bf16.msra.mxu0 0
      %856 = vmatpush.bf16.msra.mxu0 0
      %857 = vmatpush.bf16.msra.mxu0 %v848
      %858 = vmatmul.bf16.gmra.mxu0 %v836
      %v859 = vpop.f32.mrf.mxu0
      %v860 = vadd.f32 0.0, %v859
      %v861 = vpop.f32.mrf.mxu0
      %v862 = vadd.f32 0.0, %v861
      %863 = vmatmul.bf16.gmra.mxu0 %v839
      %v864 = vpop.f32.mrf.mxu0
      %v865 = vadd.f32 0.0, %v864
      %v866 = vpop.f32.mrf.mxu0
      %v867 = vadd.f32 0.0, %v866
      %868 = vmatmul.bf16.gmra.mxu0 %v842
      %v869 = vpop.f32.mrf.mxu0
      %v870 = vadd.f32 0.0, %v869
      %v871 = vpop.f32.mrf.mxu0
      %v872 = vadd.f32 0.0, %v871
      %873 = vmatmul.bf16.gmra.mxu0 %v845
      %v874 = vpop.f32.mrf.mxu0
      %v875 = vadd.f32 0.0, %v874
      %v876 = vpop.f32.mrf.mxu0
      %v877 = vadd.f32 0.0, %v876
      %878 = vdwg.mxu0
      %v879 = vadd.f32 %v685, %v860
      %v880 = vadd.f32 %v686, %v862
      %v881 = vadd.f32 %v687, %v865
      %v882 = vadd.f32 %v688, %v867
      %v883 = vadd.f32 %v689, %v870
      %v884 = vadd.f32 %v690, %v872
      %v885 = vadd.f32 %v691, %v875
      %v886 = vadd.f32 %v692, %v877
      %s887 = scalar_lea.vmem %s169, 8
      %v888 = vld [vmem:[%s887] sm:$0xf]
      %v889 = vld [vmem:[%s887 + $0x8] sm:$0xf]
      %v890 = vld [vmem:[%s887 + $0x10] sm:$0xf]
      %v891 = vld [vmem:[%s887 + $0x18] sm:$0xf]
      %v892 = vld [vmem:[%s887 + $0x20] sm:$0xf]
      %v893 = vld [vmem:[%s887 + $0x28] sm:$0xf]
      %v894 = vld [vmem:[%s887 + $0x30] sm:$0xf]
      %v895 = vld [vmem:[%s887 + $0x38] sm:$0xf]
      %s896 = scalar_lea.vmem %s1, 12
      %v897 = vld [vmem:[%s896] sm:$0x3]
      %v906 = vunpack.c.l.b16 %v888
      %v907 = vunpack.c.l.b16 %v889
      %v908 = vunpack.c.l.b16 %v890
      %v909 = vunpack.c.l.b16 %v891
      %v910 = vunpack.c.l.b16 %v892
      %v911 = vunpack.c.l.b16 %v893
      %v912 = vunpack.c.l.b16 %v894
      %v913 = vunpack.c.l.b16 %v895
      %v914 = vpack.c.b16 %v907, %v906
      %v915 = vpack.c.b16 %v909, %v908
      %v916 = vpack.c.b16 %v911, %v910
      %v917 = vpack.c.b16 %v913, %v912
      %v919 = vsel %vm217, %v914, 0
      %v922 = vsel %vm217, %v915, 0
      %v925 = vsel %vm217, %v916, 0
      %v928 = vsel %vm217, %v917, 0
      %v931 = vand.u32 %v897, %v233
      %933 = vmatpush.bf16.msra.mxu0 0
      %934 = vmatpush.bf16.msra.mxu0 0
      %935 = vmatpush.bf16.msra.mxu0 0
      %936 = vmatpush.bf16.msra.mxu0 0
      %937 = vmatpush.bf16.msra.mxu0 0
      %938 = vmatpush.bf16.msra.mxu0 0
      %939 = vmatpush.bf16.msra.mxu0 0
      %940 = vmatpush.bf16.msra.mxu0 %v931
      %941 = vmatmul.bf16.gmra.mxu0 %v919
      %v942 = vpop.f32.mrf.mxu0
      %v943 = vadd.f32 0.0, %v942
      %v944 = vpop.f32.mrf.mxu0
      %v945 = vadd.f32 0.0, %v944
      %946 = vmatmul.bf16.gmra.mxu0 %v922
      %v947 = vpop.f32.mrf.mxu0
      %v948 = vadd.f32 0.0, %v947
      %v949 = vpop.f32.mrf.mxu0
      %v950 = vadd.f32 0.0, %v949
      %951 = vmatmul.bf16.gmra.mxu0 %v925
      %v952 = vpop.f32.mrf.mxu0
      %v953 = vadd.f32 0.0, %v952
      %v954 = vpop.f32.mrf.mxu0
      %v955 = vadd.f32 0.0, %v954
      %956 = vmatmul.bf16.gmra.mxu0 %v928
      %v957 = vpop.f32.mrf.mxu0
      %v958 = vadd.f32 0.0, %v957
      %v959 = vpop.f32.mrf.mxu0
      %v960 = vadd.f32 0.0, %v959
      %961 = vdwg.mxu0
      %v962 = vadd.f32 %v879, %v943
      %v963 = vadd.f32 %v880, %v945
      %v964 = vadd.f32 %v881, %v948
      %v965 = vadd.f32 %v882, %v950
      %v966 = vadd.f32 %v883, %v953
      %v967 = vadd.f32 %v884, %v955
      %v968 = vadd.f32 %v885, %v958
      %v969 = vadd.f32 %v886, %v960
      %s970 = scalar_lea.vmem %s169, 80
      %v971 = vld [vmem:[%s970] sm:$0xf]
      %v972 = vld [vmem:[%s970 + $0x8] sm:$0xf]
      %v973 = vld [vmem:[%s970 + $0x10] sm:$0xf]
      %v974 = vld [vmem:[%s970 + $0x18] sm:$0xf]
      %v975 = vld [vmem:[%s970 + $0x20] sm:$0xf]
      %v976 = vld [vmem:[%s970 + $0x28] sm:$0xf]
      %v977 = vld [vmem:[%s970 + $0x30] sm:$0xf]
      %v978 = vld [vmem:[%s970 + $0x38] sm:$0xf]
      %s979 = scalar_lea.vmem %s1, 14
      %v980 = vld [vmem:[%s979] sm:$0x3]
      %v989 = vunpack.c.l.b16 %v971
      %v990 = vunpack.c.l.b16 %v972
      %v991 = vunpack.c.l.b16 %v973
      %v992 = vunpack.c.l.b16 %v974
      %v993 = vunpack.c.l.b16 %v975
      %v994 = vunpack.c.l.b16 %v976
      %v995 = vunpack.c.l.b16 %v977
      %v996 = vunpack.c.l.b16 %v978
      %v997 = vpack.c.b16 %v990, %v989
      %v998 = vpack.c.b16 %v992, %v991
      %v999 = vpack.c.b16 %v994, %v993
      %v1000 = vpack.c.b16 %v996, %v995
      %v1002 = vsel %vm217, %v997, 0
      %v1005 = vsel %vm217, %v998, 0
      %v1008 = vsel %vm217, %v999, 0
      %v1011 = vsel %vm217, %v1000, 0
      %v1014 = vand.u32 %v980, %v233
      %1016 = vmatpush.bf16.msra.mxu0 0
      %1017 = vmatpush.bf16.msra.mxu0 0
      %1018 = vmatpush.bf16.msra.mxu0 0
      %1019 = vmatpush.bf16.msra.mxu0 0
      %1020 = vmatpush.bf16.msra.mxu0 0
      %1021 = vmatpush.bf16.msra.mxu0 0
      %1022 = vmatpush.bf16.msra.mxu0 0
      %1023 = vmatpush.bf16.msra.mxu0 %v1014
      %1024 = vmatmul.bf16.gmra.mxu0 %v1002
      %v1025 = vpop.f32.mrf.mxu0
      %v1026 = vadd.f32 0.0, %v1025
      %v1027 = vpop.f32.mrf.mxu0
      %v1028 = vadd.f32 0.0, %v1027
      %1029 = vmatmul.bf16.gmra.mxu0 %v1005
      %v1030 = vpop.f32.mrf.mxu0
      %v1031 = vadd.f32 0.0, %v1030
      %v1032 = vpop.f32.mrf.mxu0
      %v1033 = vadd.f32 0.0, %v1032
      %1034 = vmatmul.bf16.gmra.mxu0 %v1008
      %v1035 = vpop.f32.mrf.mxu0
      %v1036 = vadd.f32 0.0, %v1035
      %v1037 = vpop.f32.mrf.mxu0
      %v1038 = vadd.f32 0.0, %v1037
      %1039 = vmatmul.bf16.gmra.mxu0 %v1011
      %v1040 = vpop.f32.mrf.mxu0
      %v1041 = vadd.f32 0.0, %v1040
      %v1042 = vpop.f32.mrf.mxu0
      %v1043 = vadd.f32 0.0, %v1042
      %1044 = vdwg.mxu0
      %v1045 = vadd.f32 %v962, %v1026
      %v1046 = vadd.f32 %v963, %v1028
      %v1047 = vadd.f32 %v964, %v1031
      %v1048 = vadd.f32 %v965, %v1033
      %v1049 = vadd.f32 %v966, %v1036
      %v1050 = vadd.f32 %v967, %v1038
      %v1051 = vadd.f32 %v968, %v1041
      %v1052 = vadd.f32 %v969, %v1043
      %v1053 = vld [vmem:[%s887] sm:$0xf]
      %v1054 = vld [vmem:[%s887 + $0x4] sm:$0x1]
      %v1055 = vld [vmem:[%s887 + $0x8] sm:$0xf]
      %v1056 = vld [vmem:[%s887 + $0xc] sm:$0x1]
      %v1057 = vld [vmem:[%s887 + $0x10] sm:$0xf]
      %v1058 = vld [vmem:[%s887 + $0x14] sm:$0x1]
      %v1059 = vld [vmem:[%s887 + $0x18] sm:$0xf]
      %v1060 = vld [vmem:[%s887 + $0x1c] sm:$0x1]
      %v1061 = vld [vmem:[%s887 + $0x20] sm:$0xf]
      %v1062 = vld [vmem:[%s887 + $0x24] sm:$0x1]
      %v1063 = vld [vmem:[%s887 + $0x28] sm:$0xf]
      %v1064 = vld [vmem:[%s887 + $0x2c] sm:$0x1]
      %v1065 = vld [vmem:[%s887 + $0x30] sm:$0xf]
      %v1066 = vld [vmem:[%s887 + $0x34] sm:$0x1]
      %v1067 = vld [vmem:[%s887 + $0x38] sm:$0xf]
      %v1068 = vld [vmem:[%s887 + $0x3c] sm:$0x1]
      %s1069 = scalar_lea.vmem %s1, 16
      %v1070 = vld [vmem:[%s1069] sm:$0x3]
      %v1072 = vshrl.u32 %v1053, 16
      %v1074 = vrot.slane %v1072, 4
      %v1075 = vshll.u32 %v1053, 16
      %v1077 = vrot.slane %v1075, 5
      %v1078 = vor.u32 %v1074, %v1077
      %v1079 = vrot.slane %v1078, 4
      %v1081 = vshll.u32 %v1054, 16
      %v1083 = vrot.slane %v1081, 5
      %v1084 = vsel %vm350, %v1079, %v1083
      %v1086 = vshrl.u32 %v1055, 16
      %v1088 = vrot.slane %v1086, 4
      %v1089 = vshll.u32 %v1055, 16
      %v1091 = vrot.slane %v1089, 5
      %v1092 = vor.u32 %v1088, %v1091
      %v1093 = vrot.slane %v1092, 4
      %v1095 = vshll.u32 %v1056, 16
      %v1097 = vrot.slane %v1095, 5
      %v1098 = vsel %vm350, %v1093, %v1097
      %v1100 = vshrl.u32 %v1057, 16
      %v1102 = vrot.slane %v1100, 4
      %v1103 = vshll.u32 %v1057, 16
      %v1105 = vrot.slane %v1103, 5
      %v1106 = vor.u32 %v1102, %v1105
      %v1107 = vrot.slane %v1106, 4
      %v1109 = vshll.u32 %v1058, 16
      %v1111 = vrot.slane %v1109, 5
      %v1112 = vsel %vm350, %v1107, %v1111
      %v1114 = vshrl.u32 %v1059, 16
      %v1116 = vrot.slane %v1114, 4
      %v1117 = vshll.u32 %v1059, 16
      %v1119 = vrot.slane %v1117, 5
      %v1120 = vor.u32 %v1116, %v1119
      %v1121 = vrot.slane %v1120, 4
      %v1123 = vshll.u32 %v1060, 16
      %v1125 = vrot.slane %v1123, 5
      %v1126 = vsel %vm350, %v1121, %v1125
      %v1128 = vshrl.u32 %v1061, 16
      %v1130 = vrot.slane %v1128, 4
      %v1131 = vshll.u32 %v1061, 16
      %v1133 = vrot.slane %v1131, 5
      %v1134 = vor.u32 %v1130, %v1133
      %v1135 = vrot.slane %v1134, 4
      %v1137 = vshll.u32 %v1062, 16
      %v1139 = vrot.slane %v1137, 5
      %v1140 = vsel %vm350, %v1135, %v1139
      %v1142 = vshrl.u32 %v1063, 16
      %v1144 = vrot.slane %v1142, 4
      %v1145 = vshll.u32 %v1063, 16
      %v1147 = vrot.slane %v1145, 5
      %v1148 = vor.u32 %v1144, %v1147
      %v1149 = vrot.slane %v1148, 4
      %v1151 = vshll.u32 %v1064, 16
      %v1153 = vrot.slane %v1151, 5
      %v1154 = vsel %vm350, %v1149, %v1153
      %v1156 = vshrl.u32 %v1065, 16
      %v1158 = vrot.slane %v1156, 4
      %v1159 = vshll.u32 %v1065, 16
      %v1161 = vrot.slane %v1159, 5
      %v1162 = vor.u32 %v1158, %v1161
      %v1163 = vrot.slane %v1162, 4
      %v1165 = vshll.u32 %v1066, 16
      %v1167 = vrot.slane %v1165, 5
      %v1168 = vsel %vm350, %v1163, %v1167
      %v1170 = vshrl.u32 %v1067, 16
      %v1172 = vrot.slane %v1170, 4
      %v1173 = vshll.u32 %v1067, 16
      %v1175 = vrot.slane %v1173, 5
      %v1176 = vor.u32 %v1172, %v1175
      %v1177 = vrot.slane %v1176, 4
      %v1179 = vshll.u32 %v1068, 16
      %v1181 = vrot.slane %v1179, 5
      %v1182 = vsel %vm350, %v1177, %v1181
      %v1183 = vunpack.c.l.b16 %v1084
      %v1184 = vunpack.c.l.b16 %v1098
      %v1185 = vunpack.c.l.b16 %v1112
      %v1186 = vunpack.c.l.b16 %v1126
      %v1187 = vunpack.c.l.b16 %v1140
      %v1188 = vunpack.c.l.b16 %v1154
      %v1189 = vunpack.c.l.b16 %v1168
      %v1190 = vunpack.c.l.b16 %v1182
      %v1191 = vpack.c.b16 %v1184, %v1183
      %v1192 = vpack.c.b16 %v1186, %v1185
      %v1193 = vpack.c.b16 %v1188, %v1187
      %v1194 = vpack.c.b16 %v1190, %v1189
      %v1196 = vsel %vm217, %v1191, 0
      %v1199 = vsel %vm217, %v1192, 0
      %v1202 = vsel %vm217, %v1193, 0
      %v1205 = vsel %vm217, %v1194, 0
      %v1208 = vand.u32 %v1070, %v233
      %1210 = vmatpush.bf16.msra.mxu0 0
      %1211 = vmatpush.bf16.msra.mxu0 0
      %1212 = vmatpush.bf16.msra.mxu0 0
      %1213 = vmatpush.bf16.msra.mxu0 0
      %1214 = vmatpush.bf16.msra.mxu0 0
      %1215 = vmatpush.bf16.msra.mxu0 0
      %1216 = vmatpush.bf16.msra.mxu0 0
      %1217 = vmatpush.bf16.msra.mxu0 %v1208
      %1218 = vmatmul.bf16.gmra.mxu0 %v1196
      %v1219 = vpop.f32.mrf.mxu0
      %v1220 = vadd.f32 0.0, %v1219
      %v1221 = vpop.f32.mrf.mxu0
      %v1222 = vadd.f32 0.0, %v1221
      %1223 = vmatmul.bf16.gmra.mxu0 %v1199
      %v1224 = vpop.f32.mrf.mxu0
      %v1225 = vadd.f32 0.0, %v1224
      %v1226 = vpop.f32.mrf.mxu0
      %v1227 = vadd.f32 0.0, %v1226
      %1228 = vmatmul.bf16.gmra.mxu0 %v1202
      %v1229 = vpop.f32.mrf.mxu0
      %v1230 = vadd.f32 0.0, %v1229
      %v1231 = vpop.f32.mrf.mxu0
      %v1232 = vadd.f32 0.0, %v1231
      %1233 = vmatmul.bf16.gmra.mxu0 %v1205
      %v1234 = vpop.f32.mrf.mxu0
      %v1235 = vadd.f32 0.0, %v1234
      %v1236 = vpop.f32.mrf.mxu0
      %v1237 = vadd.f32 0.0, %v1236
      %1238 = vdwg.mxu0
      %v1239 = vadd.f32 %v1045, %v1220
      %v1240 = vadd.f32 %v1046, %v1222
      %v1241 = vadd.f32 %v1047, %v1225
      %v1242 = vadd.f32 %v1048, %v1227
      %v1243 = vadd.f32 %v1049, %v1230
      %v1244 = vadd.f32 %v1050, %v1232
      %v1245 = vadd.f32 %v1051, %v1235
      %v1246 = vadd.f32 %v1052, %v1237
      %v1247 = vld [vmem:[%s2] sm:$0x1]
      %v1249 = vperm.slane %v1247, 0
      %v1251 = vadd.f32 %v1239, %v1249
      %v1252 = vadd.f32 %v1240, %v1249
      %v1253 = vadd.f32 %v1241, %v1249
      %v1254 = vadd.f32 %v1242, %v1249
      %v1255 = vadd.f32 %v1243, %v1249
      %v1256 = vadd.f32 %v1244, %v1249
      %v1257 = vadd.f32 %v1245, %v1249
      %v1258 = vadd.f32 %v1246, %v1249
      %v1259 = vmax.f32 %v1251, 0.0
      %v1260 = vmax.f32 %v1252, 0.0
      %v1261 = vmax.f32 %v1253, 0.0
      %v1262 = vmax.f32 %v1254, 0.0
      %v1263 = vmax.f32 %v1255, 0.0
      %v1264 = vmax.f32 %v1256, 0.0
      %v1265 = vmax.f32 %v1257, 0.0
      %v1266 = vmax.f32 %v1258, 0.0
      %v1267 = vpack.c.bf16 %v1259, %v1259
      %v1268 = vpack.c.bf16 %v1260, %v1260
      %v1269 = vpack.c.bf16 %v1261, %v1261
      %v1270 = vpack.c.bf16 %v1262, %v1262
      %v1271 = vpack.c.bf16 %v1263, %v1263
      %v1272 = vpack.c.bf16 %v1264, %v1264
      %v1273 = vpack.c.bf16 %v1265, %v1265
      %v1274 = vpack.c.bf16 %v1266, %v1266
      %vm1275 = vcmask 60416
      %1276 = vst.msk [vmem:[%s175] sm:$0xf] %vm1275, %v1267
      %1277 = vst.msk [vmem:[%s175 + $0x4] sm:$0xf] %vm1275, %v1268
      %1278 = vst.msk [vmem:[%s175 + $0x8] sm:$0xf] %vm1275, %v1269
      %1279 = vst.msk [vmem:[%s175 + $0xc] sm:$0xf] %vm1275, %v1270
      %1280 = vst.msk [vmem:[%s175 + $0x10] sm:$0xf] %vm1275, %v1271
      %1281 = vst.msk [vmem:[%s175 + $0x14] sm:$0xf] %vm1275, %v1272
      %1282 = vst.msk [vmem:[%s175 + $0x18] sm:$0xf] %vm1275, %v1273
      %1283 = vst.msk [vmem:[%s175 + $0x1c] sm:$0xf] %vm1275, %v1274
      %p1284 = scmp.lt.s32.totalorder %s14, 1
      %s1285 = scalar_select %p1284, %s14, 1
      %s1286 = smul.addr %s1285, 8
      %s1287 = smul.addr %s1286, 4
      %s1288 = scalar_lea.vmem %s3, %s1287
      // Predicated region
      $region33: #{encoder_forward.9} parent=31 // pred_check
        %p1289 = pneg %p100
      $region34: #{encoder_forward.9} parent=31 // pred_check_branch
        %1291 = sbr.rel (%p1289) target = $region36
      $region35: #{encoder_forward.9} parent=31 // pred_region
        _
      $region36: #{encoder_forward.9} parent=31 // pred_fallthru
        _
    $region32: #{encoder_forward.9} parent=5 // pred_fallthru
      _
    %p1292 = scmp.le.s32.totalorder 2, %s9
    // Predicated region
    $region37: #{encoder_forward.9} parent=5 // pred_check
      %p1293 = pneg %p1292
    $region38: #{encoder_forward.9} parent=5 // pred_check_branch
      %1295 = sbr.rel (%p1293) target = $region40
    $region39: #{encoder_forward.9} parent=5 // pred_region
      %s1296 = ssub.s32 %s9, 2
      // Predicated region
      $region41: #{encoder_forward.9} parent=39 // pred_check
        %p1297 = pneg %p106
      $region42: #{encoder_forward.9} parent=39 // pred_check_branch
        %1299 = sbr.rel (%p1297) target = $region44
      $region43: #{encoder_forward.9} parent=39 // pred_region
        %p1300 = scmp.lt.s32.totalorder %s15, 1
        %s1301 = scalar_select %p1300, %s15, 1
        %s1302 = smul.addr %s1301, 8
        %s1303 = smul.addr %s1302, 4
        %s1304 = scalar_lea.vmem %s3, %s1303
      $region44: #{encoder_forward.9} parent=39 // pred_fallthru
        _
    $region40: #{encoder_forward.9} parent=5 // pred_fallthru
      _
  $region6: #{encoder_forward.9} parent=0 // loop_footer
    %s13 = sadd.s32 1, %s9
  $region7: #{encoder_forward.9} parent=0 // loop_footer_branch
    %8 = sbr.rel target = $region3
  $region8: #{encoder_forward.9} parent=0 // loop_exit
    _

// kernel: encoder_forward.13
$region0: #{encoder_forward.13}
  #allocation0 [shape = 'u32[]', space=smem, size = 0x4, offset = 0x4, fixed_abs, tag = 'smem constant byte address 0x4 - core index']
  #allocation1 [shape = 'u32[72,128]{1,0:T(1,128)}', space=vmem, size = 0x9000, scoped, tag = 'internal scratch']
  %s0 = inlined_call_operand.vmem [shape: bf16[24,48], index: 0, kind: input, shape index: {}]
  %s1 = inlined_call_operand.vmem [shape: bf16[16,8], index: 1, kind: input, shape index: {}]
  %s2 = inlined_call_operand.vmem [shape: f32[96,16], index: 2, kind: input, shape index: {}]
  %s3 = inlined_call_operand.vmem [shape: bf16[48,8], index: 3, kind: output, shape index: {}]
  %s4 = sld [smem:[#allocation0]]
  $region45: #{encoder_forward.13} parent=0
    _
  %s6 = ssub.s32 1, %s4
  %s7 = scalar_select 0, %s6, %s4
  loop: start=0, step=1, limit=4
  $region2: #{encoder_forward.13} parent=0 // loop_pre_header
    _
  $region3: #{encoder_forward.13} parent=0 // loop_header
    %s9 = sphi 0, %s13
    %p10 = scmp.ge.s32.totalorder %s9, 4
    %s17 = sphi 0, %s17
    %s19 = sphi 0, %s17
    %s20 = sphi 0, %s19
    %s34 = sphi 0, %s20
    %s38 = sphi 0, %s38
    %s40 = sphi 0, %s38
    %s41 = sphi 0, %s40
    %s55 = sphi 0, %s41
    %s61 = sphi 0, %s63
    %s64 = sphi 0, %s61
    %s65 = sphi 0, %s64
    %s81 = sphi 0, %s65
    %s87 = sphi 0, %s89
    %s90 = sphi 0, %s87
    %s91 = sphi 0, %s90
    %s107 = sphi 0, %s91
  $region4: #{encoder_forward.13} parent=0 // loop_header_branch
    %12 = sbr.rel (%p10) target = $region8
  $region5: #{encoder_forward.13} parent=0 // loop_body
    %s14 = ssub.s32 %s9, 1
    %s15 = ssub.s32 %s9, 2
    %s16 = sadd.s32 %s9, 1
    %s18 = sadd.s32 %s17, 1
    %p21 = scmp.eq.s32.totalorder %s9, 1
    %p22 = scmp.ne.s32.totalorder %s17, %s19
    %p23 = scmp.eq.s32.totalorder %s9, 0
    %p24 = por %p22, %p23
    %p25 = scmp.ne.s32.totalorder %s17, %s19
    %p26 = scmp.eq.s32.totalorder %s14, 1
    %p27 = por %p25, %p26
    %p28 = scmp.ne.s32.totalorder %s19, %s20
    %p29 = scmp.eq.s32.totalorder %s14, 0
    %p30 = por %p28, %p29
    %p31 = scmp.ne.s32.totalorder %s19, %s20
    %p32 = scmp.eq.s32.totalorder %s15, 1
    %p33 = por %p31, %p32
    %p35 = scmp.ne.s32.totalorder %s20, %s34
    %p36 = scmp.eq.s32.totalorder %s15, 0
    %p37 = por %p35, %p36
    %s39 = sadd.s32 %s38, 1
    %p42 = scmp.eq.s32.totalorder %s9, 1
    %p43 = scmp.ne.s32.totalorder %s38, %s40
    %p44 = scmp.eq.s32.totalorder %s9, 0
    %p45 = por %p43, %p44
    %p46 = scmp.ne.s32.totalorder %s38, %s40
    %p47 = scmp.eq.s32.totalorder %s14, 1
    %p48 = por %p46, %p47
    %p49 = scmp.ne.s32.totalorder %s40, %s41
    %p50 = scmp.eq.s32.totalorder %s14, 0
    %p51 = por %p49, %p50
    %p52 = scmp.ne.s32.totalorder %s40, %s41
    %p53 = scmp.eq.s32.totalorder %s15, 1
    %p54 = por %p52, %p53
    %p56 = scmp.ne.s32.totalorder %s41, %s55
    %p57 = scmp.eq.s32.totalorder %s15, 0
    %p58 = por %p56, %p57
    %s59 = ssub.s32 %s9, %s16
    %p60 = scmp.eq.s32.totalorder %s59, 0
    %s62 = sadd.s32 %s61, 1
    %s63 = scalar_select %p60, %s61, %s62
    %p66 = pneg %p60
    %p67 = scmp.eq.s32.totalorder %s9, 1
    %p68 = por %p66, %p67
    %p69 = scmp.ne.s32.totalorder %s61, %s64
    %p70 = scmp.eq.s32.totalorder %s9, 0
    %p71 = por %p69, %p70
    %p72 = scmp.ne.s32.totalorder %s61, %s64
    %p73 = scmp.eq.s32.totalorder %s14, 1
    %p74 = por %p72, %p73
    %p75 = scmp.ne.s32.totalorder %s64, %s65
    %p76 = scmp.eq.s32.totalorder %s14, 0
    %p77 = por %p75, %p76
    %p78 = scmp.ne.s32.totalorder %s64, %s65
    %p79 = scmp.eq.s32.totalorder %s15, 1
    %p80 = por %p78, %p79
    %p82 = scmp.ne.s32.totalorder %s65, %s81
    %p83 = scmp.eq.s32.totalorder %s15, 0
    %p84 = por %p82, %p83
    %s85 = ssub.s32 %s9, %s16
    %p86 = scmp.eq.s32.totalorder %s85, 0
    %s88 = sadd.s32 %s87, 1
    %s89 = scalar_select %p86, %s87, %s88
    %p92 = pneg %p86
    %p93 = scmp.eq.s32.totalorder %s9, 1
    %p94 = por %p92, %p93
    %p95 = scmp.ne.s32.totalorder %s87, %s90
    %p96 = scmp.eq.s32.totalorder %s9, 0
    %p97 = por %p95, %p96
    %p98 = scmp.ne.s32.totalorder %s87, %s90
    %p99 = scmp.eq.s32.totalorder %s14, 1
    %p100 = por %p98, %p99
    %p101 = scmp.ne.s32.totalorder %s90, %s91
    %p102 = scmp.eq.s32.totalorder %s14, 0
    %p103 = por %p101, %p102
    %p104 = scmp.ne.s32.totalorder %s90, %s91
    %p105 = scmp.eq.s32.totalorder %s15, 1
    %p106 = por %p104, %p105
    %p108 = scmp.ne.s32.totalorder %s91, %s107
    %p109 = scmp.eq.s32.totalorder %s15, 0
    %p110 = por %p108, %p109
    %p111 = scmp.le.s32.totalorder 1, %s9
    %p112 = scmp.lt.s32.totalorder %s9, 3
    %p113 = pnand %p111, %p112
    %p114 = pneg %p113
    // Predicated region
    $region9: #{encoder_forward.13} parent=5 // pred_check
      _
    $region10: #{encoder_forward.13} parent=5 // pred_check_branch
      %116 = sbr.rel (%p113) target = $region12
    $region11: #{encoder_forward.13} parent=5 // pred_region
      %s117 = ssub.s32 %s9, 1
      // Predicated region
      $region13: #{encoder_forward.13} parent=11 // pred_check
        %p118 = pneg %p30
      $region14: #{encoder_forward.13} parent=11 // pred_check_branch
        %120 = sbr.rel (%p118) target = $region16
      $region15: #{encoder_forward.13} parent=11 // pred_region
        _
      $region16: #{encoder_forward.13} parent=11 // pred_fallthru
        _
      // Predicated region
      $region17: #{encoder_forward.13} parent=11 // pred_check
        %p121 = pneg %p51
      $region18: #{encoder_forward.13} parent=11 // pred_check_branch
        %123 = sbr.rel (%p121) target = $region20
      $region19: #{encoder_forward.13} parent=11 // pred_region
        _
      $region20: #{encoder_forward.13} parent=11 // pred_fallthru
        _
    $region12: #{encoder_forward.13} parent=5 // pred_fallthru
      _
    %p124 = scmp.lt.s32.totalorder %s9, 2
    // Predicated region
    $region21: #{encoder_forward.13} parent=5 // pred_check
      %p125 = pneg %p124
    $region22: #{encoder_forward.13} parent=5 // pred_check_branch
      %127 = sbr.rel (%p125) target = $region24
    $region23: #{encoder_forward.13} parent=5 // pred_region
      // Predicated region
      $region25: #{encoder_forward.13} parent=23 // pred_check
        %p128 = pneg %p71
      $region26: #{encoder_forward.13} parent=23 // pred_check_branch
        %130 = sbr.rel (%p128) target = $region28
      $region27: #{encoder_forward.13} parent=23 // pred_region
        %s131 = smul.u32 6, %s9
        %p132 = scmp.lt.s32.totalorder %s131, 11
        %s133 = scalar_select %p132, %s131, 11
        %s134 = smul.addr %s133, 8
        %s135 = scalar_lea.vmem %s2, %s134
        %s136 = smul.u32 6, %s9
      $region28: #{encoder_forward.13} parent=23 // pred_fallthru
        _
    $region24: #{encoder_forward.13} parent=5 // pred_fallthru
      _
    %p137 = scmp.le.s32.totalorder 1, %s9
    %p138 = scmp.lt.s32.totalorder %s9, 3
    %p139 = pnand %p137, %p138
    %p140 = pneg %p139
    // Predicated region
    $region29: #{encoder_forward.13} parent=5 // pred_check
      _
    $region30: #{encoder_forward.13} parent=5 // pred_check_branch
      %142 = sbr.rel (%p139) target = $region32
    $region31: #{encoder_forward.13} parent=5 // pred_region
      %s143 = ssub.s32 %s9, 1
      %p144 = pneg %p30
      %p145 = pneg %p27
      %p146 = pneg %p51
      %p147 = pneg %p48
      %s148 = smul.u32 6, %s14
      %p149 = scmp.lt.s32.totalorder %s148, 11
      %s150 = scalar_select %p149, %s148, 11
      %s151 = smul.addr %s150, 8
      %s152 = scalar_lea.vmem %s2, %s151
      %p153 = pneg %p77
      %p154 = pneg %p74
      %p155 = pneg %p103
      %p156 = pneg %p100
      %s157 = smul.u32 3, %s14
      %p158 = scmp.lt.s32.totalorder %s157, 5
      %s159 = scalar_select %p158, %s157, 5
      %s160 = smul.addr %s159, 4
      %s161 = scalar_lea.vmem %s3, %s160
      %s162 = smul.u32 6, %s14
      %p163 = scmp.lt.s32.totalorder %s162, 11
      %s164 = scalar_select %p163, %s162, 11
      %s165 = smul.addr %s164, 8
      %s166 = scalar_lea.vmem %s2, %s165
      %s167 = smul.u32 6, %s14
      %s168 = smul.u32 3, %s14
      %p169 = scmp.lt.s32.totalorder %s168, 5
      %s170 = scalar_select %p169, %s168, 5
      %s171 = smul.addr %s170, 4
      %s172 = scalar_lea.vmem %s3, %s171
      %s173 = smul.u32 3, %s14
      %v175 = vld [vmem:[%s166] sm:$0xff]
      %v176 = vld [vmem:[%s166 + $0x8] sm:$0xff]
      %v177 = vld [vmem:[%s166 + $0x10] sm:$0xff]
      %v178 = vld [vmem:[%s166 + $0x18] sm:$0xff]
      %v179 = vld [vmem:[%s166 + $0x20] sm:$0xff]
      %v180 = vld [vmem:[%s166 + $0x28] sm:$0xff]
      %v181 = vpack.c.bf16 %v176, %v175
      %v182 = vpack.c.bf16 %v178, %v177
      %v183 = vpack.c.bf16 %v180, %v179
      %v184 = vld [vmem:[%s1] sm:$0xf]
      %v185 = vld [vmem:[%s1 + $0x4] sm:$0xf]
      %v188 = vunpack.c.l.b16 %v184
      %v189 = vunpack.c.l.b16 %v185
      %v190 = vpack.c.b16 %v189, %v188
      %vm192 = vcmask 130048
      %v194 = vsel %vm192, %v181, 0
      %v197 = vsel %vm192, %v182, 0
      %v200 = vsel %vm192, %v183, 0
      %202 = vmatpush.bf16.msra.mxu0 0
      %203 = vmatpush.bf16.msra.mxu0 0
      %204 = vmatpush.bf16.msra.mxu0 0
      %205 = vmatpush.bf16.msra.mxu0 0
      %206 = vmatpush.bf16.msra.mxu0 0
      %207 = vmatpush.bf16.msra.mxu0 0
      %208 = vmatpush.bf16.msra.mxu0 0
      %209 = vmatpush.bf16.msra.mxu0 %v190
      %210 = vmatmul.bf16.gmra.mxu0 %v194
      %v211 = vpop.f32.mrf.mxu0
      %v212 = vadd.f32 0.0, %v211
      %v213 = vpop.f32.mrf.mxu0
      %v214 = vadd.f32 0.0, %v213
      %215 = vmatmul.bf16.gmra.mxu0 %v197
      %v216 = vpop.f32.mrf.mxu0
      %v217 = vadd.f32 0.0, %v216
      %v218 = vpop.f32.mrf.mxu0
      %v219 = vadd.f32 0.0, %v218
      %220 = vmatmul.bf16.gmra.mxu0 %v200
      %v221 = vpop.f32.mrf.mxu0
      %v222 = vadd.f32 0.0, %v221
      %v223 = vpop.f32.mrf.mxu0
      %v224 = vadd.f32 0.0, %v223
      %225 = vdwg.mxu0
      %v226 = vld [vmem:[%s0] sm:$0xf]
      %v227 = vld [vmem:[%s0 + $0x4] sm:$0xf]
      %v228 = vld [vmem:[%s0 + $0x8] sm:$0xf]
      %v229 = vpack.c.bf16 %v214, %v212
      %v230 = vpack.c.bf16 %v219, %v217
      %v231 = vpack.c.bf16 %v224, %v222
      %v235 = vunpack.c.l.b16 %v226
      %v236 = vunpack.c.l.b16 %v227
      %v237 = vunpack.c.l.b16 %v228
      %v238 = vpack.c.b16 %v236, %v235
      %v239 = vpack.c.b16 %v237, %v237
      %vm240 = vcmask 392192
      %v242 = vsel %vm240, %v238, 0
      %v245 = vsel %vm240, %v239, 0
      %247 = vmatpush.bf16.msra.mxu0 0
      %248 = vmatpush.bf16.msra.mxu0 0
      %249 = vmatpush.bf16.msra.mxu0 0
      %250 = vmatpush.bf16.msra.mxu0 0
      %251 = vmatpush.bf16.msra.mxu0 0
      %252 = vmatpush.bf16.msra.mxu0 %v231
      %253 = vmatpush.bf16.msra.mxu0 %v230
      %254 = vmatpush.bf16.msra.mxu0 %v229
      %255 = vmatmul.bf16.gmra.mxu0 %v242
      %v256 = vpop.f32.mrf.mxu0
      %v257 = vadd.f32 0.0, %v256
      %v258 = vpop.f32.mrf.mxu0
      %v259 = vadd.f32 0.0, %v258
      %260 = vmatmul.bf16.gmra.mxu0 %v245
      %v261 = vpop.f32.mrf.mxu0
      %v262 = vadd.f32 0.0, %v261
      %v263 = vpop.f32.mrf.mxu0
      %264 = vdwg.mxu0
      %v265 = vpack.c.bf16 %v257, %v257
      %v266 = vpack.c.bf16 %v259, %v259
      %v267 = vpack.c.bf16 %v262, %v262
      %vm268 = vcmask 60416
      %269 = vst.msk [vmem:[%s172] sm:$0xf] %vm268, %v265
      %270 = vst.msk [vmem:[%s172 + $0x4] sm:$0xf] %vm268, %v266
      %271 = vst.msk [vmem:[%s172 + $0x8] sm:$0xf] %vm268, %v267
      %s272 = smul.u32 3, %s14
      %p273 = scmp.lt.s32.totalorder %s272, 5
      %s274 = scalar_select %p273, %s272, 5
      %s275 = smul.addr %s274, 4
      %s276 = scalar_lea.vmem %s3, %s275
      // Predicated region
      $region33: #{encoder_forward.13} parent=31 // pred_check
        %p277 = pneg %p100
      $region34: #{encoder_forward.13} parent=31 // pred_check_branch
        %279 = sbr.rel (%p277) target = $region36
      $region35: #{encoder_forward.13} parent=31 // pred_region
        %s280 = smul.u32 3, %s14
      $region36: #{encoder_forward.13} parent=31 // pred_fallthru
        _
    $region32: #{encoder_forward.13} parent=5 // pred_fallthru
      _
    %p281 = scmp.le.s32.totalorder 2, %s9
    // Predicated region
    $region37: #{encoder_forward.13} parent=5 // pred_check
      %p282 = pneg %p281
    $region38: #{encoder_forward.13} parent=5 // pred_check_branch
      %284 = sbr.rel (%p282) target = $region40
    $region39: #{encoder_forward.13} parent=5 // pred_region
      %s285 = ssub.s32 %s9, 2
      // Predicated region
      $region41: #{encoder_forward.13} parent=39 // pred_check
        %p286 = pneg %p106
      $region42: #{encoder_forward.13} parent=39 // pred_check_branch
        %288 = sbr.rel (%p286) target = $region44
      $region43: #{encoder_forward.13} parent=39 // pred_region
        %s289 = smul.u32 3, %s15
        %p290 = scmp.lt.s32.totalorder %s289, 5
        %s291 = scalar_select %p290, %s289, 5
        %s292 = smul.addr %s291, 4
        %s293 = scalar_lea.vmem %s3, %s292
      $region44: #{encoder_forward.13} parent=39 // pred_fallthru
        _
    $region40: #{encoder_forward.13} parent=5 // pred_fallthru
      _
  $region6: #{encoder_forward.13} parent=0 // loop_footer
    %s13 = sadd.s32 1, %s9
  $region7: #{encoder_forward.13} parent=0 // loop_footer_branch
    %8 = sbr.rel target = $region3
  $region8: #{encoder_forward.13} parent=0 // loop_exit
    _

// kernel: encoder_forward.15
$region0: #{encoder_forward.15}
  #allocation0 [shape = 'u32[]', space=smem, size = 0x4, offset = 0x4, fixed_abs, tag = 'smem constant byte address 0x4 - core index']
  #allocation1 [shape = 'u32[72,128]{1,0:T(1,128)}', space=vmem, size = 0x9000, scoped, tag = 'internal scratch']
  %s0 = inlined_call_operand.vmem [shape: bf16[8,3,3,8], index: 0, kind: input, shape index: {}]
  %s1 = inlined_call_operand.vmem [shape: bf16[9,8,16], index: 1, kind: input, shape index: {}]
  %s2 = inlined_call_operand.vmem [shape: f32[1,16], index: 2, kind: input, shape index: {}]
  %s3 = inlined_call_operand.vmem [shape: bf16[2,2,2,16], index: 3, kind: output, shape index: {}]
  %s4 = sld [smem:[#allocation0]]
  $region45: #{encoder_forward.15} parent=0
    _
  %s6 = ssub.s32 1, %s4
  %s7 = scalar_select 0, %s6, %s4
  loop: start=0, step=1, limit=4
  $region2: #{encoder_forward.15} parent=0 // loop_pre_header
    _
  $region3: #{encoder_forward.15} parent=0 // loop_header
    %s9 = sphi 0, %s13
    %p10 = scmp.ge.s32.totalorder %s9, 4
    %s19 = sphi 0, %s21
    %s22 = sphi 0, %s19
    %s23 = sphi 0, %s22
    %s39 = sphi 0, %s23
    %s43 = sphi 0, %s43
    %s45 = sphi 0, %s43
    %s46 = sphi 0, %s45
    %s60 = sphi 0, %s46
    %s64 = sphi 0, %s64
    %s66 = sphi 0, %s64
    %s67 = sphi 0, %s66
    %s81 = sphi 0, %s67
    %s87 = sphi 0, %s89
    %s90 = sphi 0, %s87
    %s91 = sphi 0, %s90
    %s107 = sphi 0, %s91
  $region4: #{encoder_forward.15} parent=0 // loop_header_branch
    %12 = sbr.rel (%p10) target = $region8
  $region5: #{encoder_forward.15} parent=0 // loop_body
    %s14 = ssub.s32 %s9, 1
    %s15 = ssub.s32 %s9, 2
    %s16 = sadd.s32 %s9, 1
    %s17 = ssub.s32 %s9, %s16
    %p18 = scmp.eq.s32.totalorder %s17, 0
    %s20 = sadd.s32 %s19, 1
    %s21 = scalar_select %p18, %s19, %s20
    %p24 = pneg %p18
    %p25 = scmp.eq.s32.totalorder %s9, 1
    %p26 = por %p24, %p25
    %p27 = scmp.ne.s32.totalorder %s19, %s22
    %p28 = scmp.eq.s32.totalorder %s9, 0
    %p29 = por %p27, %p28
    %p30 = scmp.ne.s32.totalorder %s19, %s22
    %p31 = scmp.eq.s32.totalorder %s14, 1
    %p32 = por %p30, %p31
    %p33 = scmp.ne.s32.totalorder %s22, %s23
    %p34 = scmp.eq.s32.totalorder %s14, 0
    %p35 = por %p33, %p34
    %p36 = scmp.ne.s32.totalorder %s22, %s23
    %p37 = scmp.eq.s32.totalorder %s15, 1
    %p38 = por %p36, %p37
    %p40 = scmp.ne.s32.totalorder %s23, %s39
    %p41 = scmp.eq.s32.totalorder %s15, 0
    %p42 = por %p40, %p41
    %s44 = sadd.s32 %s43, 1
    %p47 = scmp.eq.s32.totalorder %s9, 1
    %p48 = scmp.ne.s32.totalorder %s43, %s45
    %p49 = scmp.eq.s32.totalorder %s9, 0
    %p50 = por %p48, %p49
    %p51 = scmp.ne.s32.totalorder %s43, %s45
    %p52 = scmp.eq.s32.totalorder %s14, 1
    %p53 = por %p51, %p52
    %p54 = scmp.ne.s32.totalorder %s45, %s46
    %p55 = scmp.eq.s32.totalorder %s14, 0
    %p56 = por %p54, %p55
    %p57 = scmp.ne.s32.totalorder %s45, %s46
    %p58 = scmp.eq.s32.totalorder %s15, 1
    %p59 = por %p57, %p58
    %p61 = scmp.ne.s32.totalorder %s46, %s60
    %p62 = scmp.eq.s32.totalorder %s15, 0
    %p63 = por %p61, %p62
    %s65 = sadd.s32 %s64, 1
    %p68 = scmp.eq.s32.totalorder %s9, 1
    %p69 = scmp.ne.s32.totalorder %s64, %s66
    %p70 = scmp.eq.s32.totalorder %s9, 0
    %p71 = por %p69, %p70
    %p72 = scmp.ne.s32.totalorder %s64, %s66
    %p73 = scmp.eq.s32.totalorder %s14, 1
    %p74 = por %p72, %p73
    %p75 = scmp.ne.s32.totalorder %s66, %s67
    %p76 = scmp.eq.s32.totalorder %s14, 0
    %p77 = por %p75, %p76
    %p78 = scmp.ne.s32.totalorder %s66, %s67
    %p79 = scmp.eq.s32.totalorder %s15, 1
    %p80 = por %p78, %p79
    %p82 = scmp.ne.s32.totalorder %s67, %s81
    %p83 = scmp.eq.s32.totalorder %s15, 0
    %p84 = por %p82, %p83
    %s85 = ssub.s32 %s9, %s16
    %p86 = scmp.eq.s32.totalorder %s85, 0
    %s88 = sadd.s32 %s87, 1
    %s89 = scalar_select %p86, %s87, %s88
    %p92 = pneg %p86
    %p93 = scmp.eq.s32.totalorder %s9, 1
    %p94 = por %p92, %p93
    %p95 = scmp.ne.s32.totalorder %s87, %s90
    %p96 = scmp.eq.s32.totalorder %s9, 0
    %p97 = por %p95, %p96
    %p98 = scmp.ne.s32.totalorder %s87, %s90
    %p99 = scmp.eq.s32.totalorder %s14, 1
    %p100 = por %p98, %p99
    %p101 = scmp.ne.s32.totalorder %s90, %s91
    %p102 = scmp.eq.s32.totalorder %s14, 0
    %p103 = por %p101, %p102
    %p104 = scmp.ne.s32.totalorder %s90, %s91
    %p105 = scmp.eq.s32.totalorder %s15, 1
    %p106 = por %p104, %p105
    %p108 = scmp.ne.s32.totalorder %s91, %s107
    %p109 = scmp.eq.s32.totalorder %s15, 0
    %p110 = por %p108, %p109
    %p111 = scmp.le.s32.totalorder 1, %s9
    %p112 = scmp.lt.s32.totalorder %s9, 3
    %p113 = pnand %p111, %p112
    %p114 = pneg %p113
    // Predicated region
    $region9: #{encoder_forward.15} parent=5 // pred_check
      _
    $region10: #{encoder_forward.15} parent=5 // pred_check_branch
      %116 = sbr.rel (%p113) target = $region12
    $region11: #{encoder_forward.15} parent=5 // pred_region
      %s117 = ssub.s32 %s9, 1
      // Predicated region
      $region13: #{encoder_forward.15} parent=11 // pred_check
        %p118 = pneg %p56
      $region14: #{encoder_forward.15} parent=11 // pred_check_branch
        %120 = sbr.rel (%p118) target = $region16
      $region15: #{encoder_forward.15} parent=11 // pred_region
        _
      $region16: #{encoder_forward.15} parent=11 // pred_fallthru
        _
      // Predicated region
      $region17: #{encoder_forward.15} parent=11 // pred_check
        %p121 = pneg %p77
      $region18: #{encoder_forward.15} parent=11 // pred_check_branch
        %123 = sbr.rel (%p121) target = $region20
      $region19: #{encoder_forward.15} parent=11 // pred_region
        _
      $region20: #{encoder_forward.15} parent=11 // pred_fallthru
        _
    $region12: #{encoder_forward.15} parent=5 // pred_fallthru
      _
    %p124 = scmp.lt.s32.totalorder %s9, 2
    // Predicated region
    $region21: #{encoder_forward.15} parent=5 // pred_check
      %p125 = pneg %p124
    $region22: #{encoder_forward.15} parent=5 // pred_check_branch
      %127 = sbr.rel (%p125) target = $region24
    $region23: #{encoder_forward.15} parent=5 // pred_region
      // Predicated region
      $region25: #{encoder_forward.15} parent=23 // pred_check
        %p128 = pneg %p29
      $region26: #{encoder_forward.15} parent=23 // pred_check_branch
        %130 = sbr.rel (%p128) target = $region28
      $region27: #{encoder_forward.15} parent=23 // pred_region
        %s131 = smul.u32 4, %s9
        %p132 = scmp.lt.s32.totalorder %s131, 7
        %s133 = scalar_select %p132, %s131, 7
        %s134 = smul.addr %s133, 3
        %s135 = smul.addr %s134, 2
        %s136 = scalar_lea.vmem %s0, %s135
        %s137 = smul.u32 4, %s9
      $region28: #{encoder_forward.15} parent=23 // pred_fallthru
        _
    $region24: #{encoder_forward.15} parent=5 // pred_fallthru
      _
    %p138 = scmp.le.s32.totalorder 1, %s9
    %p139 = scmp.lt.s32.totalorder %s9, 3
    %p140 = pnand %p138, %p139
    %p141 = pneg %p140
    // Predicated region
    $region29: #{encoder_forward.15} parent=5 // pred_check
      _
    $region30: #{encoder_forward.15} parent=5 // pred_check_branch
      %143 = sbr.rel (%p140) target = $region32
    $region31: #{encoder_forward.15} parent=5 // pred_region
      %s144 = ssub.s32 %s9, 1
      %s145 = smul.u32 4, %s14
      %p146 = scmp.lt.s32.totalorder %s145, 7
      %s147 = scalar_select %p146, %s145, 7
      %s148 = smul.addr %s147, 3
      %s149 = smul.addr %s148, 2
      %s150 = scalar_lea.vmem %s0, %s149
      %p151 = pneg %p35
      %p152 = pneg %p32
      %p153 = pneg %p56
      %p154 = pneg %p53
      %p155 = pneg %p77
      %p156 = pneg %p74
      %p157 = pneg %p103
      %p158 = pneg %p100
      %p159 = scmp.lt.s32.totalorder %s14, 1
      %s160 = scalar_select %p159, %s14, 1
      %s161 = smul.addr %s160, 2
      %s162 = scalar_lea.vmem %s3, %s161
      %s163 = smul.u32 4, %s14
      %p164 = scmp.lt.s32.totalorder %s163, 7
      %s165 = scalar_select %p164, %s163, 7
      %s166 = smul.addr %s165, 3
      %s167 = smul.addr %s166, 2
      %s168 = scalar_lea.vmem %s0, %s167
      %s169 = smul.u32 4, %s14
      %p170 = scmp.lt.s32.totalorder %s14, 1
      %s171 = scalar_select %p170, %s14, 1
      %s172 = smul.addr %s171, 2
      %s173 = scalar_lea.vmem %s3, %s172
      %v175 = vld [vmem:[%s168] sm:$0x1]
      %v176 = vld [vmem:[%s168 + $0x2] sm:$0x1]
      %v177 = vld [vmem:[%s1] sm:$0xf]
      %s178 = scalar_lea.vmem %s168, 6
      %v179 = vld [vmem:[%s178] sm:$0x1]
      %v180 = vld [vmem:[%s178 + $0x2] sm:$0x1]
      %s181 = scalar_lea.vmem %s1, 4
      %v182 = vld [vmem:[%s181] sm:$0xf]
      %184 = vst [vmem:[#allocation1] ss:$9 sm:$0xff] %v179
      %s186 = scalar_lea.vmem [#allocation1], 1
      %187 = vst [vmem:[%s186] ss:$9 sm:$0xff] %v180
      %v188 = vld [vmem:[#allocation1] sm:$0xff]
      %vm189 = vcmask 64512
      %v190 = vsel %vm189, %v188, 0
      %vm192 = vcmask 1043456
      %v194 = vsel %vm192, %v182, 0
      %196 = vmatpush.bf16.msra.mxu0 0
      %197 = vmatpush.bf16.msra.mxu0 0
      %198 = vmatpush.bf16.msra.mxu0 0
      %199 = vmatpush.bf16.msra.mxu0 0
      %200 = vmatpush.bf16.msra.mxu0 0
      %201 = vmatpush.bf16.msra.mxu0 0
      %202 = vmatpush.bf16.msra.mxu0 0
      %203 = vmatpush.bf16.msra.mxu0 %v194
      %204 = vmatmul.bf16.gmra.mxu0 %v190
      %v205 = vpop.f32.mrf.mxu0
      %v206 = vadd.f32 0.0, %v205
      %v207 = vpop.f32.mrf.mxu0
      %208 = vdwg.mxu0
      %210 = vst [vmem:[#allocation1] ss:$9 sm:$0xff] %v175
      %s212 = scalar_lea.vmem [#allocation1], 1
      %213 = vst [vmem:[%s212] ss:$9 sm:$0xff] %v176
      %v214 = vld [vmem:[#allocation1] sm:$0xff]
      %v215 = vsel %vm189, %v214, 0
      %v218 = vsel %vm192, %v177, 0
      %220 = vmatpush.bf16.msra.mxu0 0
      %221 = vmatpush.bf16.msra.mxu0 0
      %222 = vmatpush.bf16.msra.mxu0 0
      %223 = vmatpush.bf16.msra.mxu0 0
      %224 = vmatpush.bf16.msra.mxu0 0
      %225 = vmatpush.bf16.msra.mxu0 0
      %226 = vmatpush.bf16.msra.mxu0 0
      %227 = vmatpush.bf16.msra.mxu0 %v218
      %228 = vmatmul.bf16.gmra.mxu0 %v215
      %v229 = vpop.f32.mrf.mxu0
      %v230 = vadd.f32 %v206, %v229
      %v231 = vpop.f32.mrf.mxu0
      %232 = vdwg.mxu0
      %v234 = vrot.slane %v230, 2
      %v236 = vld [vmem:[%s168] sm:$0x3]
      %v237 = vld [vmem:[%s168 + $0x2] sm:$0x3]
      %s238 = scalar_lea.vmem %s1, 8
      %v239 = vld [vmem:[%s238] sm:$0xf]
      %v242 = vrot.slane %v236, 1
      %v243 = vrot.slane %v236, 2
      %v244 = vrot.slane %v236, 3
      %v245 = vrot.slane %v237, 1
      %v246 = vrot.slane %v237, 2
      %v247 = vrot.slane %v237, 3
      %vm248 = vcmask 1040384
      %v251 = vsel %vm248, %v236, %v242
      %vm252 = vcmask 1042434
      %v255 = vsel %vm252, %v243, %v244
      %vm256 = vcmask 1041408
      %v257 = vsel %vm256, %v251, %v255
      %vm258 = vcmask 1041409
      %v259 = vsel %vm258, %v236, %v242
      %vm260 = vcmask 1043459
      %v261 = vsel %vm260, %v243, %v244
      %vm262 = vcmask 1042433
      %v263 = vsel %vm262, %v259, %v261
      %v265 = vrot.slane %v263, 1
      %v268 = vsel %vm248, %v237, %v245
      %v271 = vsel %vm252, %v246, %v247
      %v272 = vsel %vm256, %v268, %v271
      %v273 = vsel %vm258, %v237, %v245
      %v274 = vsel %vm260, %v246, %v247
      %v275 = vsel %vm262, %v273, %v274
      %v277 = vrot.slane %v275, 1
      %vm278 = vsmask.f32 256
      %vm279 = vsmask.f32 1284
      %vm280 = vmor %vm278, %vm279
      %vm281 = vsmask.f32 2312
      %vm282 = vmor %vm280, %vm281
      %vm283 = vsmask.f32 3340
      %vm284 = vmor %vm282, %vm283
      %vm285 = vsmask.f32 4368
      %vm286 = vmor %vm284, %vm285
      %vm287 = vsmask.f32 5396
      %vm288 = vmor %vm286, %vm287
      %vm289 = vsmask.f32 6424
      %vm290 = vmor %vm288, %vm289
      %vm291 = vsmask.f32 7452
      %vm292 = vmor %vm290, %vm291
      %v293 = vshrl.u32 %v257, 16
      %v295 = vrot.slane %v293, 7
      %v296 = vrot.slane %v295, 1
      %v298 = vshll.u32 %v265, 16
      %v300 = vsel %vm292, %v296, %v298
      %v301 = vshrl.u32 %v272, 16
      %v303 = vrot.slane %v301, 7
      %v304 = vrot.slane %v303, 1
      %v306 = vshll.u32 %v277, 16
      %v308 = vsel %vm292, %v304, %v306
      %310 = vst [vmem:[#allocation1] ss:$9 sm:$0xff] %v300
      %s312 = scalar_lea.vmem [#allocation1], 1
      %313 = vst [vmem:[%s312] ss:$9 sm:$0xff] %v308
      %v314 = vld [vmem:[#allocation1] sm:$0xff]
      %v315 = vsel %vm189, %v314, 0
      %v318 = vsel %vm192, %v239, 0
      %320 = vmatpush.bf16.msra.mxu0 0
      %321 = vmatpush.bf16.msra.mxu0 0
      %322 = vmatpush.bf16.msra.mxu0 0
      %323 = vmatpush.bf16.msra.mxu0 0
      %324 = vmatpush.bf16.msra.mxu0 0
      %325 = vmatpush.bf16.msra.mxu0 0
      %326 = vmatpush.bf16.msra.mxu0 0
      %327 = vmatpush.bf16.msra.mxu0 %v318
      %328 = vmatmul.bf16.gmra.mxu0 %v315
      %v329 = vpop.f32.mrf.mxu0
      %v330 = vadd.f32 0.0, %v329
      %v331 = vpop.f32.mrf.mxu0
      %332 = vdwg.mxu0
      %v334 = vrot.slane %v330, 2
      %v336 = vadd.f32 %v230, %v330
      %v337 = vadd.f32 %v234, %v334
      %s338 = scalar_lea.vmem %s168, 12
      %v339 = vld [vmem:[%s338] sm:$0x1]
      %v340 = vld [vmem:[%s338 + $0x2] sm:$0x1]
      %s341 = scalar_lea.vmem %s1, 12
      %v342 = vld [vmem:[%s341] sm:$0xf]
      %344 = vst [vmem:[#allocation1] ss:$9 sm:$0xff] %v339
      %s346 = scalar_lea.vmem [#allocation1], 1
      %347 = vst [vmem:[%s346] ss:$9 sm:$0xff] %v340
      %v348 = vld [vmem:[#allocation1] sm:$0xff]
      %v349 = vsel %vm189, %v348, 0
      %v352 = vsel %vm192, %v342, 0
      %354 = vmatpush.bf16.msra.mxu0 0
      %355 = vmatpush.bf16.msra.mxu0 0
      %356 = vmatpush.bf16.msra.mxu0 0
      %357 = vmatpush.bf16.msra.mxu0 0
      %358 = vmatpush.bf16.msra.mxu0 0
      %359 = vmatpush.bf16.msra.mxu0 0
      %360 = vmatpush.bf16.msra.mxu0 0
      %361 = vmatpush.bf16.msra.mxu0 %v352
      %362 = vmatmul.bf16.gmra.mxu0 %v349
      %v363 = vpop.f32.mrf.mxu0
      %v364 = vadd.f32 0.0, %v363
      %v365 = vpop.f32.mrf.mxu0
      %366 = vdwg.mxu0
      %v368 = vrot.slane %v364, 2
      %v370 = vadd.f32 %v336, %v364
      %v371 = vadd.f32 %v337, %v368
      %s372 = scalar_lea.vmem %s168, 18
      %v373 = vld [vmem:[%s372] sm:$0x1]
      %v374 = vld [vmem:[%s372 + $0x2] sm:$0x1]
      %s375 = scalar_lea.vmem %s1, 16
      %v376 = vld [vmem:[%s375] sm:$0xf]
      %378 = vst [vmem:[#allocation1] ss:$9 sm:$0xff] %v373
      %s380 = scalar_lea.vmem [#allocation1], 1
      %381 = vst [vmem:[%s380] ss:$9 sm:$0xff] %v374
      %v382 = vld [vmem:[#allocation1] sm:$0xff]
      %v383 = vsel %vm189, %v382, 0
      %v386 = vsel %vm192, %v376, 0
      %388 = vmatpush.bf16.msra.mxu0 0
      %389 = vmatpush.bf16.msra.mxu0 0
      %390 = vmatpush.bf16.msra.mxu0 0
      %391 = vmatpush.bf16.msra.mxu0 0
      %392 = vmatpush.bf16.msra.mxu0 0
      %393 = vmatpush.bf16.msra.mxu0 0
      %394 = vmatpush.bf16.msra.mxu0 0
      %395 = vmatpush.bf16.msra.mxu0 %v386
      %396 = vmatmul.bf16.gmra.mxu0 %v383
      %v397 = vpop.f32.mrf.mxu0
      %v398 = vadd.f32 0.0, %v397
      %v399 = vpop.f32.mrf.mxu0
      %400 = vdwg.mxu0
      %v402 = vrot.slane %v398, 2
      %v404 = vadd.f32 %v370, %v398
      %v405 = vadd.f32 %v371, %v402
      %v406 = vld [vmem:[%s338] sm:$0x3]
      %v407 = vld [vmem:[%s338 + $0x2] sm:$0x3]
      %s408 = scalar_lea.vmem %s1, 20
      %v409 = vld [vmem:[%s408] sm:$0xf]
      %v412 = vrot.slane %v406, 1
      %v413 = vrot.slane %v406, 2
      %v414 = vrot.slane %v406, 3
      %v415 = vrot.slane %v407, 1
      %v416 = vrot.slane %v407, 2
      %v417 = vrot.slane %v407, 3
      %v420 = vsel %vm248, %v406, %v412
      %v423 = vsel %vm252, %v413, %v414
      %v424 = vsel %vm256, %v420, %v423
      %v425 = vsel %vm258, %v406, %v412
      %v426 = vsel %vm260, %v413, %v414
      %v427 = vsel %vm262, %v425, %v426
      %v429 = vrot.slane %v427, 1
      %v432 = vsel %vm248, %v407, %v415
      %v435 = vsel %vm252, %v416, %v417
      %v436 = vsel %vm256, %v432, %v435
      %v437 = vsel %vm258, %v407, %v415
      %v438 = vsel %vm260, %v416, %v417
      %v439 = vsel %vm262, %v437, %v438
      %v441 = vrot.slane %v439, 1
      %v442 = vshrl.u32 %v424, 16
      %v444 = vrot.slane %v442, 7
      %v445 = vrot.slane %v444, 1
      %v447 = vshll.u32 %v429, 16
      %v449 = vsel %vm292, %v445, %v447
      %v450 = vshrl.u32 %v436, 16
      %v452 = vrot.slane %v450, 7
      %v453 = vrot.slane %v452, 1
      %v455 = vshll.u32 %v441, 16
      %v457 = vsel %vm292, %v453, %v455
      %459 = vst [vmem:[#allocation1] ss:$9 sm:$0xff] %v449
      %s461 = scalar_lea.vmem [#allocation1], 1
      %462 = vst [vmem:[%s461] ss:$9 sm:$0xff] %v457
      %v463 = vld [vmem:[#allocation1] sm:$0xff]
      %v464 = vsel %vm189, %v463, 0
      %v467 = vsel %vm192, %v409, 0
      %469 = vmatpush.bf16.msra.mxu0 0
      %470 = vmatpush.bf16.msra.mxu0 0
      %471 = vmatpush.bf16.msra.mxu0 0
      %472 = vmatpush.bf16.msra.mxu0 0
      %473 = vmatpush.bf16.msra.mxu0 0
      %474 = vmatpush.bf16.msra.mxu0 0
      %475 = vmatpush.bf16.msra.mxu0 0
      %476 = vmatpush.bf16.msra.mxu0 %v467
      %477 = vmatmul.bf16.gmra.mxu0 %v464
      %v478 = vpop.f32.mrf.mxu0
      %v479 = vadd.f32 0.0, %v478
      %v480 = vpop.f32.mrf.mxu0
      %481 = vdwg.mxu0
      %v483 = vrot.slane %v479, 2
      %v485 = vadd.f32 %v404, %v479
      %v486 = vadd.f32 %v405, %v483
      %s487 = scalar_lea.vmem %s168, 2
      %v488 = vld [vmem:[%s487] sm:$0x1]
      %v489 = vld [vmem:[%s487 + $0x2] sm:$0x1]
      %s490 = scalar_lea.vmem %s1, 24
      %v491 = vld [vmem:[%s490] sm:$0xf]
      %493 = vst [vmem:[#allocation1] ss:$9 sm:$0xff] %v488
      %s495 = scalar_lea.vmem [#allocation1], 1
      %496 = vst [vmem:[%s495] ss:$9 sm:$0xff] %v489
      %v497 = vld [vmem:[#allocation1] sm:$0xff]
      %v498 = vsel %vm189, %v497, 0
      %v501 = vsel %vm192, %v491, 0
      %503 = vmatpush.bf16.msra.mxu0 0
      %504 = vmatpush.bf16.msra.mxu0 0
      %505 = vmatpush.bf16.msra.mxu0 0
      %506 = vmatpush.bf16.msra.mxu0 0
      %507 = vmatpush.bf16.msra.mxu0 0
      %508 = vmatpush.bf16.msra.mxu0 0
      %509 = vmatpush.bf16.msra.mxu0 0
      %510 = vmatpush.bf16.msra.mxu0 %v501
      %511 = vmatmul.bf16.gmra.mxu0 %v498
      %v512 = vpop.f32.mrf.mxu0
      %v513 = vadd.f32 0.0, %v512
      %v514 = vpop.f32.mrf.mxu0
      %515 = vdwg.mxu0
      %v517 = vrot.slane %v513, 2
      %v519 = vadd.f32 %v485, %v513
      %v520 = vadd.f32 %v486, %v517
      %s521 = scalar_lea.vmem %s168, 8
      %v522 = vld [vmem:[%s521] sm:$0x1]
      %v523 = vld [vmem:[%s521 + $0x2] sm:$0x1]
      %s524 = scalar_lea.vmem %s1, 28
      %v525 = vld [vmem:[%s524] sm:$0xf]
      %527 = vst [vmem:[#allocation1] ss:$9 sm:$0xff] %v522
      %s529 = scalar_lea.vmem [#allocation1], 1
      %530 = vst [vmem:[%s529] ss:$9 sm:$0xff] %v523
      %v531 = vld [vmem:[#allocation1] sm:$0xff]
      %v532 = vsel %vm189, %v531, 0
      %v535 = vsel %vm192, %v525, 0
      %537 = vmatpush.bf16.msra.mxu0 0
      %538 = vmatpush.bf16.msra.mxu0 0
      %539 = vmatpush.bf16.msra.mxu0 0
      %540 = vmatpush.bf16.msra.mxu0 0
      %541 = vmatpush.bf16.msra.mxu0 0
      %542 = vmatpush.bf16.msra.mxu0 0
      %543 = vmatpush.bf16.msra.mxu0 0
      %544 = vmatpush.bf16.msra.mxu0 %v535
      %545 = vmatmul.bf16.gmra.mxu0 %v532
      %v546 = vpop.f32.mrf.mxu0
      %v547 = vadd.f32 0.0, %v546
      %v548 = vpop.f32.mrf.mxu0
      %549 = vdwg.mxu0
      %v551 = vrot.slane %v547, 2
      %v553 = vadd.f32 %v519, %v547
      %v554 = vadd.f32 %v520, %v551
      %v555 = vld [vmem:[%s487] sm:$0x3]
      %v556 = vld [vmem:[%s487 + $0x2] sm:$0x3]
      %s557 = scalar_lea.vmem %s1, 32
      %v558 = vld [vmem:[%s557] sm:$0xf]
      %v561 = vrot.slane %v555, 1
      %v562 = vrot.slane %v555, 2
      %v563 = vrot.slane %v555, 3
      %v564 = vrot.slane %v556, 1
      %v565 = vrot.slane %v556, 2
      %v566 = vrot.slane %v556, 3
      %v569 = vsel %vm248, %v555, %v561
      %v572 = vsel %vm252, %v562, %v563
      %v573 = vsel %vm256, %v569, %v572
      %v574 = vsel %vm258, %v555, %v561
      %v575 = vsel %vm260, %v562, %v563
      %v576 = vsel %vm262, %v574, %v575
      %v578 = vrot.slane %v576, 1
      %v581 = vsel %vm248, %v556, %v564
      %v584 = vsel %vm252, %v565, %v566
      %v585 = vsel %vm256, %v581, %v584
      %v586 = vsel %vm258, %v556, %v564
      %v587 = vsel %vm260, %v565, %v566
      %v588 = vsel %vm262, %v586, %v587
      %v590 = vrot.slane %v588, 1
      %v591 = vshrl.u32 %v573, 16
      %v593 = vrot.slane %v591, 7
      %v594 = vrot.slane %v593, 1
      %v596 = vshll.u32 %v578, 16
      %v598 = vsel %vm292, %v594, %v596
      %v599 = vshrl.u32 %v585, 16
      %v601 = vrot.slane %v599, 7
      %v602 = vrot.slane %v601, 1
      %v604 = vshll.u32 %v590, 16
      %v606 = vsel %vm292, %v602, %v604
      %608 = vst [vmem:[#allocation1] ss:$9 sm:$0xff] %v598
      %s610 = scalar_lea.vmem [#allocation1], 1
      %611 = vst [vmem:[%s610] ss:$9 sm:$0xff] %v606
      %v612 = vld [vmem:[#allocation1] sm:$0xff]
      %v613 = vsel %vm189, %v612, 0
      %v616 = vsel %vm192, %v558, 0
      %618 = vmatpush.bf16.msra.mxu0 0
      %619 = vmatpush.bf16.msra.mxu0 0
      %620 = vmatpush.bf16.msra.mxu0 0
      %621 = vmatpush.bf16.msra.mxu0 0
      %622 = vmatpush.bf16.msra.mxu0 0
      %623 = vmatpush.bf16.msra.mxu0 0
      %624 = vmatpush.bf16.msra.mxu0 0
      %625 = vmatpush.bf16.msra.mxu0 %v616
      %626 = vmatmul.bf16.gmra.mxu0 %v613
      %v627 = vpop.f32.mrf.mxu0
      %v628 = vadd.f32 0.0, %v627
      %v629 = vpop.f32.mrf.mxu0
      %630 = vdwg.mxu0
      %v632 = vrot.slane %v628, 2
      %v634 = vadd.f32 %v553, %v628
      %v635 = vadd.f32 %v554, %v632
      %v636 = vld [vmem:[%s2] sm:$0x1]
      %v638 = vperm.slane %v636, 0
      %v640 = vadd.f32 %v634, %v638
      %v641 = vadd.f32 %v635, %v638
      %v642 = vmax.f32 %v640, 0.0
      %v643 = vmax.f32 %v641, 0.0
      %v644 = vpack.c.bf16 %v642, %v642
      %v645 = vpack.c.bf16 %v643, %v643
      %vm646 = vcmask 122880
      %647 = vst.msk [vmem:[%s173] sm:$0x1] %vm646, %v644
      %648 = vst.msk [vmem:[%s173 + $0x1] sm:$0x1] %vm646, %v645
      %p649 = scmp.lt.s32.totalorder %s14, 1
      %s650 = scalar_select %p649, %s14, 1
      %s651 = smul.addr %s650, 2
      %s652 = scalar_lea.vmem %s3, %s651
      // Predicated region
      $region33: #{encoder_forward.15} parent=31 // pred_check
        %p653 = pneg %p100
      $region34: #{encoder_forward.15} parent=31 // pred_check_branch
        %655 = sbr.rel (%p653) target = $region36
      $region35: #{encoder_forward.15} parent=31 // pred_region
        _
      $region36: #{encoder_forward.15} parent=31 // pred_fallthru
        _
    $region32: #{encoder_forward.15} parent=5 // pred_fallthru
      _
    %p656 = scmp.le.s32.totalorder 2, %s9
    // Predicated region
    $region37: #{encoder_forward.15} parent=5 // pred_check
      %p657 = pneg %p656
    $region38: #{encoder_forward.15} parent=5 // pred_check_branch
      %659 = sbr.rel (%p657) target = $region40
    $region39: #{encoder_forward.15} parent=5 // pred_region
      %s660 = ssub.s32 %s9, 2
      // Predicated region
      $region41: #{encoder_forward.15} parent=39 // pred_check
        %p661 = pneg %p106
      $region42: #{encoder_forward.15} parent=39 // pred_check_branch
        %663 = sbr.rel (%p661) target = $region44
      $region43: #{encoder_forward.15} parent=39 // pred_region
        %p664 = scmp.lt.s32.totalorder %s15, 1
        %s665 = scalar_select %p664, %s15, 1
        %s666 = smul.addr %s665, 2
        %s667 = scalar_lea.vmem %s3, %s666
      $region44: #{encoder_forward.15} parent=39 // pred_fallthru
        _
    $region40: #{encoder_forward.15} parent=5 // pred_fallthru
      _
  $region6: #{encoder_forward.15} parent=0 // loop_footer
    %s13 = sadd.s32 1, %s9
  $region7: #{encoder_forward.15} parent=0 // loop_footer_branch
    %8 = sbr.rel target = $region3
  $region8: #{encoder_forward.15} parent=0 // loop_exit
    _

// kernel: encoder_forward.16
$region0: #{encoder_forward.16}
  #allocation0 [shape = 'u32[]', space=smem, size = 0x4, offset = 0x4, fixed_abs, tag = 'smem constant byte address 0x4 - core index']
  #allocation1 [shape = 'u32[72,128]{1,0:T(1,128)}', space=vmem, size = 0x9000, scoped, tag = 'internal scratch']
  %s0 = inlined_call_operand.vmem [shape: bf16[8,2,2,16], index: 0, kind: input, shape index: {}]
  %s1 = inlined_call_operand.vmem [shape: bf16[9,16,32], index: 1, kind: input, shape index: {}]
  %s2 = inlined_call_operand.vmem [shape: f32[1,32], index: 2, kind: input, shape index: {}]
  %s3 = inlined_call_operand.vmem [shape: bf16[2,1,1,32], index: 3, kind: output, shape index: {}]
  %s4 = sld [smem:[#allocation0]]
  $region45: #{encoder_forward.16} parent=0
    _
  %s6 = ssub.s32 1, %s4
  %s7 = scalar_select 0, %s6, %s4
  loop: start=0, step=1, limit=4
  $region2: #{encoder_forward.16} parent=0 // loop_pre_header
    _
  $region3: #{encoder_forward.16} parent=0 // loop_header
    %s9 = sphi 0, %s13
    %p10 = scmp.ge.s32.totalorder %s9, 4
    %s19 = sphi 0, %s21
    %s22 = sphi 0, %s19
    %s23 = sphi 0, %s22
    %s39 = sphi 0, %s23
    %s43 = sphi 0, %s43
    %s45 = sphi 0, %s43
    %s46 = sphi 0, %s45
    %s60 = sphi 0, %s46
    %s64 = sphi 0, %s64
    %s66 = sphi 0, %s64
    %s67 = sphi 0, %s66
    %s81 = sphi 0, %s67
    %s87 = sphi 0, %s89
    %s90 = sphi 0, %s87
    %s91 = sphi 0, %s90
    %s107 = sphi 0, %s91
  $region4: #{encoder_forward.16} parent=0 // loop_header_branch
    %12 = sbr.rel (%p10) target = $region8
  $region5: #{encoder_forward.16} parent=0 // loop_body
    %s14 = ssub.s32 %s9, 1
    %s15 = ssub.s32 %s9, 2
    %s16 = sadd.s32 %s9, 1
    %s17 = ssub.s32 %s9, %s16
    %p18 = scmp.eq.s32.totalorder %s17, 0
    %s20 = sadd.s32 %s19, 1
    %s21 = scalar_select %p18, %s19, %s20
    %p24 = pneg %p18
    %p25 = scmp.eq.s32.totalorder %s9, 1
    %p26 = por %p24, %p25
    %p27 = scmp.ne.s32.totalorder %s19, %s22
    %p28 = scmp.eq.s32.totalorder %s9, 0
    %p29 = por %p27, %p28
    %p30 = scmp.ne.s32.totalorder %s19, %s22
    %p31 = scmp.eq.s32.totalorder %s14, 1
    %p32 = por %p30, %p31
    %p33 = scmp.ne.s32.totalorder %s22, %s23
    %p34 = scmp.eq.s32.totalorder %s14, 0
    %p35 = por %p33, %p34
    %p36 = scmp.ne.s32.totalorder %s22, %s23
    %p37 = scmp.eq.s32.totalorder %s15, 1
    %p38 = por %p36, %p37
    %p40 = scmp.ne.s32.totalorder %s23, %s39
    %p41 = scmp.eq.s32.totalorder %s15, 0
    %p42 = por %p40, %p41
    %s44 = sadd.s32 %s43, 1
    %p47 = scmp.eq.s32.totalorder %s9, 1
    %p48 = scmp.ne.s32.totalorder %s43, %s45
    %p49 = scmp.eq.s32.totalorder %s9, 0
    %p50 = por %p48, %p49
    %p51 = scmp.ne.s32.totalorder %s43, %s45
    %p52 = scmp.eq.s32.totalorder %s14, 1
    %p53 = por %p51, %p52
    %p54 = scmp.ne.s32.totalorder %s45, %s46
    %p55 = scmp.eq.s32.totalorder %s14, 0
    %p56 = por %p54, %p55
    %p57 = scmp.ne.s32.totalorder %s45, %s46
    %p58 = scmp.eq.s32.totalorder %s15, 1
    %p59 = por %p57, %p58
    %p61 = scmp.ne.s32.totalorder %s46, %s60
    %p62 = scmp.eq.s32.totalorder %s15, 0
    %p63 = por %p61, %p62
    %s65 = sadd.s32 %s64, 1
    %p68 = scmp.eq.s32.totalorder %s9, 1
    %p69 = scmp.ne.s32.totalorder %s64, %s66
    %p70 = scmp.eq.s32.totalorder %s9, 0
    %p71 = por %p69, %p70
    %p72 = scmp.ne.s32.totalorder %s64, %s66
    %p73 = scmp.eq.s32.totalorder %s14, 1
    %p74 = por %p72, %p73
    %p75 = scmp.ne.s32.totalorder %s66, %s67
    %p76 = scmp.eq.s32.totalorder %s14, 0
    %p77 = por %p75, %p76
    %p78 = scmp.ne.s32.totalorder %s66, %s67
    %p79 = scmp.eq.s32.totalorder %s15, 1
    %p80 = por %p78, %p79
    %p82 = scmp.ne.s32.totalorder %s67, %s81
    %p83 = scmp.eq.s32.totalorder %s15, 0
    %p84 = por %p82, %p83
    %s85 = ssub.s32 %s9, %s16
    %p86 = scmp.eq.s32.totalorder %s85, 0
    %s88 = sadd.s32 %s87, 1
    %s89 = scalar_select %p86, %s87, %s88
    %p92 = pneg %p86
    %p93 = scmp.eq.s32.totalorder %s9, 1
    %p94 = por %p92, %p93
    %p95 = scmp.ne.s32.totalorder %s87, %s90
    %p96 = scmp.eq.s32.totalorder %s9, 0
    %p97 = por %p95, %p96
    %p98 = scmp.ne.s32.totalorder %s87, %s90
    %p99 = scmp.eq.s32.totalorder %s14, 1
    %p100 = por %p98, %p99
    %p101 = scmp.ne.s32.totalorder %s90, %s91
    %p102 = scmp.eq.s32.totalorder %s14, 0
    %p103 = por %p101, %p102
    %p104 = scmp.ne.s32.totalorder %s90, %s91
    %p105 = scmp.eq.s32.totalorder %s15, 1
    %p106 = por %p104, %p105
    %p108 = scmp.ne.s32.totalorder %s91, %s107
    %p109 = scmp.eq.s32.totalorder %s15, 0
    %p110 = por %p108, %p109
    %p111 = scmp.le.s32.totalorder 1, %s9
    %p112 = scmp.lt.s32.totalorder %s9, 3
    %p113 = pnand %p111, %p112
    %p114 = pneg %p113
    // Predicated region
    $region9: #{encoder_forward.16} parent=5 // pred_check
      _
    $region10: #{encoder_forward.16} parent=5 // pred_check_branch
      %116 = sbr.rel (%p113) target = $region12
    $region11: #{encoder_forward.16} parent=5 // pred_region
      %s117 = ssub.s32 %s9, 1
      // Predicated region
      $region13: #{encoder_forward.16} parent=11 // pred_check
        %p118 = pneg %p56
      $region14: #{encoder_forward.16} parent=11 // pred_check_branch
        %120 = sbr.rel (%p118) target = $region16
      $region15: #{encoder_forward.16} parent=11 // pred_region
        _
      $region16: #{encoder_forward.16} parent=11 // pred_fallthru
        _
      // Predicated region
      $region17: #{encoder_forward.16} parent=11 // pred_check
        %p121 = pneg %p77
      $region18: #{encoder_forward.16} parent=11 // pred_check_branch
        %123 = sbr.rel (%p121) target = $region20
      $region19: #{encoder_forward.16} parent=11 // pred_region
        _
      $region20: #{encoder_forward.16} parent=11 // pred_fallthru
        _
    $region12: #{encoder_forward.16} parent=5 // pred_fallthru
      _
    %p124 = scmp.lt.s32.totalorder %s9, 2
    // Predicated region
    $region21: #{encoder_forward.16} parent=5 // pred_check
      %p125 = pneg %p124
    $region22: #{encoder_forward.16} parent=5 // pred_check_branch
      %127 = sbr.rel (%p125) target = $region24
    $region23: #{encoder_forward.16} parent=5 // pred_region
      // Predicated region
      $region25: #{encoder_forward.16} parent=23 // pred_check
        %p128 = pneg %p29
      $region26: #{encoder_forward.16} parent=23 // pred_check_branch
        %130 = sbr.rel (%p128) target = $region28
      $region27: #{encoder_forward.16} parent=23 // pred_region
        %s131 = smul.u32 4, %s9
        %p132 = scmp.lt.s32.totalorder %s131, 7
        %s133 = scalar_select %p132, %s131, 7
        %s134 = smul.addr %s133, 2
        %s135 = scalar_lea.vmem %s0, %s134
        %s136 = smul.u32 4, %s9
      $region28: #{encoder_forward.16} parent=23 // pred_fallthru
        _
    $region24: #{encoder_forward.16} parent=5 // pred_fallthru
      _
    %p137 = scmp.le.s32.totalorder 1, %s9
    %p138 = scmp.lt.s32.totalorder %s9, 3
    %p139 = pnand %p137, %p138
    %p140 = pneg %p139
    // Predicated region
    $region29: #{encoder_forward.16} parent=5 // pred_check
      _
    $region30: #{encoder_forward.16} parent=5 // pred_check_branch
      %142 = sbr.rel (%p139) target = $region32
    $region31: #{encoder_forward.16} parent=5 // pred_region
      %s143 = ssub.s32 %s9, 1
      %s144 = smul.u32 4, %s14
      %p145 = scmp.lt.s32.totalorder %s144, 7
      %s146 = scalar_select %p145, %s144, 7
      %s147 = smul.addr %s146, 2
      %s148 = scalar_lea.vmem %s0, %s147
      %p149 = pneg %p35
      %p150 = pneg %p32
      %p151 = pneg %p56
      %p152 = pneg %p53
      %p153 = pneg %p77
      %p154 = pneg %p74
      %p155 = pneg %p103
      %p156 = pneg %p100
      %p157 = scmp.lt.s32.totalorder %s14, 1
      %s158 = scalar_select %p157, %s14, 1
      %s159 = scalar_lea.vmem %s3, %s158
      %s160 = smul.u32 4, %s14
      %p161 = scmp.lt.s32.totalorder %s160, 7
      %s162 = scalar_select %p161, %s160, 7
      %s163 = smul.addr %s162, 2
      %s164 = scalar_lea.vmem %s0, %s163
      %s165 = smul.u32 4, %s14
      %p166 = scmp.lt.s32.totalorder %s14, 1
      %s167 = scalar_select %p166, %s14, 1
      %s168 = scalar_lea.vmem %s3, %s167
      %v170 = vld [vmem:[%s164] sm:$0x1]
      %v171 = vld [vmem:[%s1] sm:$0xf]
      %v172 = vld [vmem:[%s1 + $0x4] sm:$0xf]
      %s173 = scalar_lea.vmem %s164, 2
      %v174 = vld [vmem:[%s173] sm:$0x1]
      %s175 = scalar_lea.vmem %s1, 8
      %v176 = vld [vmem:[%s175] sm:$0xf]
      %v177 = vld [vmem:[%s175 + $0x4] sm:$0xf]
      %v180 = vunpack.c.l.b16 %v176
      %v181 = vunpack.c.l.b16 %v177
      %v182 = vpack.c.b16 %v181, %v180
      %vm184 = vcmask 130048
      %v186 = vsel %vm184, %v174, 0
      %188 = vmatpush.bf16.msra.mxu0 0
      %189 = vmatpush.bf16.msra.mxu0 0
      %190 = vmatpush.bf16.msra.mxu0 0
      %191 = vmatpush.bf16.msra.mxu0 0
      %192 = vmatpush.bf16.msra.mxu0 0
      %193 = vmatpush.bf16.msra.mxu0 0
      %194 = vmatpush.bf16.msra.mxu0 0
      %195 = vmatpush.bf16.msra.mxu0 %v182
      %196 = vmatmul.bf16.gmra.mxu0 %v186
      %v197 = vpop.f32.mrf.mxu0
      %v198 = vadd.f32 0.0, %v197
      %v199 = vpop.f32.mrf.mxu0
      %200 = vdwg.mxu0
      %v203 = vunpack.c.l.b16 %v171
      %v204 = vunpack.c.l.b16 %v172
      %v205 = vpack.c.b16 %v204, %v203
      %v208 = vsel %vm184, %v170, 0
      %210 = vmatpush.bf16.msra.mxu0 0
      %211 = vmatpush.bf16.msra.mxu0 0
      %212 = vmatpush.bf16.msra.mxu0 0
      %213 = vmatpush.bf16.msra.mxu0 0
      %214 = vmatpush.bf16.msra.mxu0 0
      %215 = vmatpush.bf16.msra.mxu0 0
      %216 = vmatpush.bf16.msra.mxu0 0
      %217 = vmatpush.bf16.msra.mxu0 %v205
      %218 = vmatmul.bf16.gmra.mxu0 %v208
      %v219 = vpop.f32.mrf.mxu0
      %v220 = vadd.f32 %v198, %v219
      %v221 = vpop.f32.mrf.mxu0
      %222 = vdwg.mxu0
      %s223 = scalar_lea.vmem %s1, 16
      %v224 = vld [vmem:[%s223] sm:$0xf]
      %v225 = vld [vmem:[%s223 + $0x4] sm:$0xf]
      %226 = vst [vmem:[#allocation1] ss:$9 sm:$0xff] %v170
      %v227 = vld [vmem:[#allocation1] sm:$0xff]
      %v228 = vshrl.u32 %v227, 16
      %v232 = vunpack.c.l.b16 %v224
      %v233 = vunpack.c.l.b16 %v225
      %v234 = vpack.c.b16 %v233, %v232
      %v237 = vsel %vm184, %v228, 0
      %239 = vmatpush.bf16.msra.mxu0 0
      %240 = vmatpush.bf16.msra.mxu0 0
      %241 = vmatpush.bf16.msra.mxu0 0
      %242 = vmatpush.bf16.msra.mxu0 0
      %243 = vmatpush.bf16.msra.mxu0 0
      %244 = vmatpush.bf16.msra.mxu0 0
      %245 = vmatpush.bf16.msra.mxu0 0
      %246 = vmatpush.bf16.msra.mxu0 %v234
      %247 = vmatmul.bf16.gmra.mxu0 %v237
      %v248 = vpop.f32.mrf.mxu0
      %v249 = vadd.f32 0.0, %v248
      %v250 = vpop.f32.mrf.mxu0
      %251 = vdwg.mxu0
      %v252 = vadd.f32 %v220, %v249
      %s253 = scalar_lea.vmem %s164, 4
      %v254 = vld [vmem:[%s253] sm:$0x1]
      %s255 = scalar_lea.vmem %s1, 24
      %v256 = vld [vmem:[%s255] sm:$0xf]
      %v257 = vld [vmem:[%s255 + $0x4] sm:$0xf]
      %v260 = vunpack.c.l.b16 %v256
      %v261 = vunpack.c.l.b16 %v257
      %v262 = vpack.c.b16 %v261, %v260
      %v265 = vsel %vm184, %v254, 0
      %267 = vmatpush.bf16.msra.mxu0 0
      %268 = vmatpush.bf16.msra.mxu0 0
      %269 = vmatpush.bf16.msra.mxu0 0
      %270 = vmatpush.bf16.msra.mxu0 0
      %271 = vmatpush.bf16.msra.mxu0 0
      %272 = vmatpush.bf16.msra.mxu0 0
      %273 = vmatpush.bf16.msra.mxu0 0
      %274 = vmatpush.bf16.msra.mxu0 %v262
      %275 = vmatmul.bf16.gmra.mxu0 %v265
      %v276 = vpop.f32.mrf.mxu0
      %v277 = vadd.f32 0.0, %v276
      %v278 = vpop.f32.mrf.mxu0
      %279 = vdwg.mxu0
      %v280 = vadd.f32 %v252, %v277
      %s281 = scalar_lea.vmem %s164, 6
      %v282 = vld [vmem:[%s281] sm:$0x1]
      %s283 = scalar_lea.vmem %s1, 32
      %v284 = vld [vmem:[%s283] sm:$0xf]
      %v285 = vld [vmem:[%s283 + $0x4] sm:$0xf]
      %v288 = vunpack.c.l.b16 %v284
      %v289 = vunpack.c.l.b16 %v285
      %v290 = vpack.c.b16 %v289, %v288
      %v293 = vsel %vm184, %v282, 0
      %295 = vmatpush.bf16.msra.mxu0 0
      %296 = vmatpush.bf16.msra.mxu0 0
      %297 = vmatpush.bf16.msra.mxu0 0
      %298 = vmatpush.bf16.msra.mxu0 0
      %299 = vmatpush.bf16.msra.mxu0 0
      %300 = vmatpush.bf16.msra.mxu0 0
      %301 = vmatpush.bf16.msra.mxu0 0
      %302 = vmatpush.bf16.msra.mxu0 %v290
      %303 = vmatmul.bf16.gmra.mxu0 %v293
      %v304 = vpop.f32.mrf.mxu0
      %v305 = vadd.f32 0.0, %v304
      %v306 = vpop.f32.mrf.mxu0
      %307 = vdwg.mxu0
      %v308 = vadd.f32 %v280, %v305
      %s309 = scalar_lea.vmem %s1, 40
      %v310 = vld [vmem:[%s309] sm:$0xf]
      %v311 = vld [vmem:[%s309 + $0x4] sm:$0xf]
      %312 = vst [vmem:[#allocation1] ss:$9 sm:$0xff] %v254
      %v313 = vld [vmem:[#allocation1] sm:$0xff]
      %v314 = vshrl.u32 %v313, 16
      %v318 = vunpack.c.l.b16 %v310
      %v319 = vunpack.c.l.b16 %v311
      %v320 = vpack.c.b16 %v319, %v318
      %v323 = vsel %vm184, %v314, 0
      %325 = vmatpush.bf16.msra.mxu0 0
      %326 = vmatpush.bf16.msra.mxu0 0
      %327 = vmatpush.bf16.msra.mxu0 0
      %328 = vmatpush.bf16.msra.mxu0 0
      %329 = vmatpush.bf16.msra.mxu0 0
      %330 = vmatpush.bf16.msra.mxu0 0
      %331 = vmatpush.bf16.msra.mxu0 0
      %332 = vmatpush.bf16.msra.mxu0 %v320
      %333 = vmatmul.bf16.gmra.mxu0 %v323
      %v334 = vpop.f32.mrf.mxu0
      %v335 = vadd.f32 0.0, %v334
      %v336 = vpop.f32.mrf.mxu0
      %337 = vdwg.mxu0
      %v338 = vadd.f32 %v308, %v335
      %s339 = scalar_lea.vmem %s164, 1
      %v340 = vld [vmem:[%s339] sm:$0x1]
      %s341 = scalar_lea.vmem %s1, 48
      %v342 = vld [vmem:[%s341] sm:$0xf]
      %v343 = vld [vmem:[%s341 + $0x4] sm:$0xf]
      %v346 = vunpack.c.l.b16 %v342
      %v347 = vunpack.c.l.b16 %v343
      %v348 = vpack.c.b16 %v347, %v346
      %v351 = vsel %vm184, %v340, 0
      %353 = vmatpush.bf16.msra.mxu0 0
      %354 = vmatpush.bf16.msra.mxu0 0
      %355 = vmatpush.bf16.msra.mxu0 0
      %356 = vmatpush.bf16.msra.mxu0 0
      %357 = vmatpush.bf16.msra.mxu0 0
      %358 = vmatpush.bf16.msra.mxu0 0
      %359 = vmatpush.bf16.msra.mxu0 0
      %360 = vmatpush.bf16.msra.mxu0 %v348
      %361 = vmatmul.bf16.gmra.mxu0 %v351
      %v362 = vpop.f32.mrf.mxu0
      %v363 = vadd.f32 0.0, %v362
      %v364 = vpop.f32.mrf.mxu0
      %365 = vdwg.mxu0
      %v366 = vadd.f32 %v338, %v363
      %s367 = scalar_lea.vmem %s164, 3
      %v368 = vld [vmem:[%s367] sm:$0x1]
      %s369 = scalar_lea.vmem %s1, 56
      %v370 = vld [vmem:[%s369] sm:$0xf]
      %v371 = vld [vmem:[%s369 + $0x4] sm:$0xf]
      %v374 = vunpack.c.l.b16 %v370
      %v375 = vunpack.c.l.b16 %v371
      %v376 = vpack.c.b16 %v375, %v374
      %v379 = vsel %vm184, %v368, 0
      %381 = vmatpush.bf16.msra.mxu0 0
      %382 = vmatpush.bf16.msra.mxu0 0
      %383 = vmatpush.bf16.msra.mxu0 0
      %384 = vmatpush.bf16.msra.mxu0 0
      %385 = vmatpush.bf16.msra.mxu0 0
      %386 = vmatpush.bf16.msra.mxu0 0
      %387 = vmatpush.bf16.msra.mxu0 0
      %388 = vmatpush.bf16.msra.mxu0 %v376
      %389 = vmatmul.bf16.gmra.mxu0 %v379
      %v390 = vpop.f32.mrf.mxu0
      %v391 = vadd.f32 0.0, %v390
      %v392 = vpop.f32.mrf.mxu0
      %393 = vdwg.mxu0
      %v394 = vadd.f32 %v366, %v391
      %s395 = scalar_lea.vmem %s1, 64
      %v396 = vld [vmem:[%s395] sm:$0xf]
      %v397 = vld [vmem:[%s395 + $0x4] sm:$0xf]
      %398 = vst [vmem:[#allocation1] ss:$9 sm:$0xff] %v340
      %v399 = vld [vmem:[#allocation1] sm:$0xff]
      %v400 = vshrl.u32 %v399, 16
      %v404 = vunpack.c.l.b16 %v396
      %v405 = vunpack.c.l.b16 %v397
      %v406 = vpack.c.b16 %v405, %v404
      %v409 = vsel %vm184, %v400, 0
      %411 = vmatpush.bf16.msra.mxu0 0
      %412 = vmatpush.bf16.msra.mxu0 0
      %413 = vmatpush.bf16.msra.mxu0 0
      %414 = vmatpush.bf16.msra.mxu0 0
      %415 = vmatpush.bf16.msra.mxu0 0
      %416 = vmatpush.bf16.msra.mxu0 0
      %417 = vmatpush.bf16.msra.mxu0 0
      %418 = vmatpush.bf16.msra.mxu0 %v406
      %419 = vmatmul.bf16.gmra.mxu0 %v409
      %v420 = vpop.f32.mrf.mxu0
      %v421 = vadd.f32 0.0, %v420
      %v422 = vpop.f32.mrf.mxu0
      %423 = vdwg.mxu0
      %v424 = vadd.f32 %v394, %v421
      %v425 = vld [vmem:[%s2] sm:$0x1]
      %v426 = vadd.f32 %v424, %v425
      %v427 = vmax.f32 %v426, 0.0
      %v428 = vpack.c.bf16 %v427, %v427
      %vm429 = vcmask 253952
      %vm430 = vsmask.f32 256
      %vm431 = vmand %vm429, %vm430
      %v432 = vld [vmem:[%s168] sm:$0x1]
      %v433 = vsel %vm431, %v428, %v432
      %434 = vst [vmem:[%s168] sm:$0x1] %v433
      %p435 = scmp.lt.s32.totalorder %s14, 1
      %s436 = scalar_select %p435, %s14, 1
      %s437 = scalar_lea.vmem %s3, %s436
      // Predicated region
      $region33: #{encoder_forward.16} parent=31 // pred_check
        %p438 = pneg %p100
      $region34: #{encoder_forward.16} parent=31 // pred_check_branch
        %440 = sbr.rel (%p438) target = $region36
      $region35: #{encoder_forward.16} parent=31 // pred_region
        _
      $region36: #{encoder_forward.16} parent=31 // pred_fallthru
        _
    $region32: #{encoder_forward.16} parent=5 // pred_fallthru
      _
    %p441 = scmp.le.s32.totalorder 2, %s9
    // Predicated region
    $region37: #{encoder_forward.16} parent=5 // pred_check
      %p442 = pneg %p441
    $region38: #{encoder_forward.16} parent=5 // pred_check_branch
      %444 = sbr.rel (%p442) target = $region40
    $region39: #{encoder_forward.16} parent=5 // pred_region
      %s445 = ssub.s32 %s9, 2
      // Predicated region
      $region41: #{encoder_forward.16} parent=39 // pred_check
        %p446 = pneg %p106
      $region42: #{encoder_forward.16} parent=39 // pred_check_branch
        %448 = sbr.rel (%p446) target = $region44
      $region43: #{encoder_forward.16} parent=39 // pred_region
        %p449 = scmp.lt.s32.totalorder %s15, 1
        %s450 = scalar_select %p449, %s15, 1
        %s451 = scalar_lea.vmem %s3, %s450
      $region44: #{encoder_forward.16} parent=39 // pred_fallthru
        _
    $region40: #{encoder_forward.16} parent=5 // pred_fallthru
      _
  $region6: #{encoder_forward.16} parent=0 // loop_footer
    %s13 = sadd.s32 1, %s9
  $region7: #{encoder_forward.16} parent=0 // loop_footer_branch
    %8 = sbr.rel target = $region3
  $region8: #{encoder_forward.16} parent=0 // loop_exit
    _

// kernel: encoder_forward.14
$region0: #{encoder_forward.14}
  #allocation0 [shape = 'u32[]', space=smem, size = 0x4, offset = 0x4, fixed_abs, tag = 'smem constant byte address 0x4 - core index']
  #allocation1 [shape = 'u32[72,128]{1,0:T(1,128)}', space=vmem, size = 0x9000, scoped, tag = 'internal scratch']
  %s0 = inlined_call_operand.vmem [shape: bf16[8,5,5,3], index: 0, kind: input, shape index: {}]
  %s1 = inlined_call_operand.vmem [shape: bf16[9,3,8], index: 1, kind: input, shape index: {}]
  %s2 = inlined_call_operand.vmem [shape: f32[1,8], index: 2, kind: input, shape index: {}]
  %s3 = inlined_call_operand.vmem [shape: bf16[2,4,4,8], index: 3, kind: output, shape index: {}]
  %s4 = sld [smem:[#allocation0]]
  $region45: #{encoder_forward.14} parent=0
    _
  %s6 = ssub.s32 1, %s4
  %s7 = scalar_select 0, %s6, %s4
  loop: start=0, step=1, limit=4
  $region2: #{encoder_forward.14} parent=0 // loop_pre_header
    _
  $region3: #{encoder_forward.14} parent=0 // loop_header
    %s9 = sphi 0, %s13
    %p10 = scmp.ge.s32.totalorder %s9, 4
    %s19 = sphi 0, %s21
    %s22 = sphi 0, %s19
    %s23 = sphi 0, %s22
    %s39 = sphi 0, %s23
    %s43 = sphi 0, %s43
    %s45 = sphi 0, %s43
    %s46 = sphi 0, %s45
    %s60 = sphi 0, %s46
    %s64 = sphi 0, %s64
    %s66 = sphi 0, %s64
    %s67 = sphi 0, %s66
    %s81 = sphi 0, %s67
    %s87 = sphi 0, %s89
    %s90 = sphi 0, %s87
    %s91 = sphi 0, %s90
    %s107 = sphi 0, %s91
  $region4: #{encoder_forward.14} parent=0 // loop_header_branch
    %12 = sbr.rel (%p10) target = $region8
  $region5: #{encoder_forward.14} parent=0 // loop_body
    %s14 = ssub.s32 %s9, 1
    %s15 = ssub.s32 %s9, 2
    %s16 = sadd.s32 %s9, 1
    %s17 = ssub.s32 %s9, %s16
    %p18 = scmp.eq.s32.totalorder %s17, 0
    %s20 = sadd.s32 %s19, 1
    %s21 = scalar_select %p18, %s19, %s20
    %p24 = pneg %p18
    %p25 = scmp.eq.s32.totalorder %s9, 1
    %p26 = por %p24, %p25
    %p27 = scmp.ne.s32.totalorder %s19, %s22
    %p28 = scmp.eq.s32.totalorder %s9, 0
    %p29 = por %p27, %p28
    %p30 = scmp.ne.s32.totalorder %s19, %s22
    %p31 = scmp.eq.s32.totalorder %s14, 1
    %p32 = por %p30, %p31
    %p33 = scmp.ne.s32.totalorder %s22, %s23
    %p34 = scmp.eq.s32.totalorder %s14, 0
    %p35 = por %p33, %p34
    %p36 = scmp.ne.s32.totalorder %s22, %s23
    %p37 = scmp.eq.s32.totalorder %s15, 1
    %p38 = por %p36, %p37
    %p40 = scmp.ne.s32.totalorder %s23, %s39
    %p41 = scmp.eq.s32.totalorder %s15, 0
    %p42 = por %p40, %p41
    %s44 = sadd.s32 %s43, 1
    %p47 = scmp.eq.s32.totalorder %s9, 1
    %p48 = scmp.ne.s32.totalorder %s43, %s45
    %p49 = scmp.eq.s32.totalorder %s9, 0
    %p50 = por %p48, %p49
    %p51 = scmp.ne.s32.totalorder %s43, %s45
    %p52 = scmp.eq.s32.totalorder %s14, 1
    %p53 = por %p51, %p52
    %p54 = scmp.ne.s32.totalorder %s45, %s46
    %p55 = scmp.eq.s32.totalorder %s14, 0
    %p56 = por %p54, %p55
    %p57 = scmp.ne.s32.totalorder %s45, %s46
    %p58 = scmp.eq.s32.totalorder %s15, 1
    %p59 = por %p57, %p58
    %p61 = scmp.ne.s32.totalorder %s46, %s60
    %p62 = scmp.eq.s32.totalorder %s15, 0
    %p63 = por %p61, %p62
    %s65 = sadd.s32 %s64, 1
    %p68 = scmp.eq.s32.totalorder %s9, 1
    %p69 = scmp.ne.s32.totalorder %s64, %s66
    %p70 = scmp.eq.s32.totalorder %s9, 0
    %p71 = por %p69, %p70
    %p72 = scmp.ne.s32.totalorder %s64, %s66
    %p73 = scmp.eq.s32.totalorder %s14, 1
    %p74 = por %p72, %p73
    %p75 = scmp.ne.s32.totalorder %s66, %s67
    %p76 = scmp.eq.s32.totalorder %s14, 0
    %p77 = por %p75, %p76
    %p78 = scmp.ne.s32.totalorder %s66, %s67
    %p79 = scmp.eq.s32.totalorder %s15, 1
    %p80 = por %p78, %p79
    %p82 = scmp.ne.s32.totalorder %s67, %s81
    %p83 = scmp.eq.s32.totalorder %s15, 0
    %p84 = por %p82, %p83
    %s85 = ssub.s32 %s9, %s16
    %p86 = scmp.eq.s32.totalorder %s85, 0
    %s88 = sadd.s32 %s87, 1
    %s89 = scalar_select %p86, %s87, %s88
    %p92 = pneg %p86
    %p93 = scmp.eq.s32.totalorder %s9, 1
    %p94 = por %p92, %p93
    %p95 = scmp.ne.s32.totalorder %s87, %s90
    %p96 = scmp.eq.s32.totalorder %s9, 0
    %p97 = por %p95, %p96
    %p98 = scmp.ne.s32.totalorder %s87, %s90
    %p99 = scmp.eq.s32.totalorder %s14, 1
    %p100 = por %p98, %p99
    %p101 = scmp.ne.s32.totalorder %s90, %s91
    %p102 = scmp.eq.s32.totalorder %s14, 0
    %p103 = por %p101, %p102
    %p104 = scmp.ne.s32.totalorder %s90, %s91
    %p105 = scmp.eq.s32.totalorder %s15, 1
    %p106 = por %p104, %p105
    %p108 = scmp.ne.s32.totalorder %s91, %s107
    %p109 = scmp.eq.s32.totalorder %s15, 0
    %p110 = por %p108, %p109
    %p111 = scmp.le.s32.totalorder 1, %s9
    %p112 = scmp.lt.s32.totalorder %s9, 3
    %p113 = pnand %p111, %p112
    %p114 = pneg %p113
    // Predicated region
    $region9: #{encoder_forward.14} parent=5 // pred_check
      _
    $region10: #{encoder_forward.14} parent=5 // pred_check_branch
      %116 = sbr.rel (%p113) target = $region12
    $region11: #{encoder_forward.14} parent=5 // pred_region
      %s117 = ssub.s32 %s9, 1
      // Predicated region
      $region13: #{encoder_forward.14} parent=11 // pred_check
        %p118 = pneg %p56
      $region14: #{encoder_forward.14} parent=11 // pred_check_branch
        %120 = sbr.rel (%p118) target = $region16
      $region15: #{encoder_forward.14} parent=11 // pred_region
        _
      $region16: #{encoder_forward.14} parent=11 // pred_fallthru
        _
      // Predicated region
      $region17: #{encoder_forward.14} parent=11 // pred_check
        %p121 = pneg %p77
      $region18: #{encoder_forward.14} parent=11 // pred_check_branch
        %123 = sbr.rel (%p121) target = $region20
      $region19: #{encoder_forward.14} parent=11 // pred_region
        _
      $region20: #{encoder_forward.14} parent=11 // pred_fallthru
        _
    $region12: #{encoder_forward.14} parent=5 // pred_fallthru
      _
    %p124 = scmp.lt.s32.totalorder %s9, 2
    // Predicated region
    $region21: #{encoder_forward.14} parent=5 // pred_check
      %p125 = pneg %p124
    $region22: #{encoder_forward.14} parent=5 // pred_check_branch
      %127 = sbr.rel (%p125) target = $region24
    $region23: #{encoder_forward.14} parent=5 // pred_region
      // Predicated region
      $region25: #{encoder_forward.14} parent=23 // pred_check
        %p128 = pneg %p29
      $region26: #{encoder_forward.14} parent=23 // pred_check_branch
        %130 = sbr.rel (%p128) target = $region28
      $region27: #{encoder_forward.14} parent=23 // pred_region
        %s131 = smul.u32 4, %s9
        %p132 = scmp.lt.s32.totalorder %s131, 7
        %s133 = scalar_select %p132, %s131, 7
        %s134 = smul.addr %s133, 5
        %s135 = smul.addr %s134, 4
        %s136 = scalar_lea.vmem %s0, %s135
        %s137 = smul.u32 4, %s9
      $region28: #{encoder_forward.14} parent=23 // pred_fallthru
        _
    $region24: #{encoder_forward.14} parent=5 // pred_fallthru
      _
    %p138 = scmp.le.s32.totalorder 1, %s9
    %p139 = scmp.lt.s32.totalorder %s9, 3
    %p140 = pnand %p138, %p139
    %p141 = pneg %p140
    // Predicated region
    $region29: #{encoder_forward.14} parent=5 // pred_check
      _
    $region30: #{encoder_forward.14} parent=5 // pred_check_branch
      %143 = sbr.rel (%p140) target = $region32
    $region31: #{encoder_forward.14} parent=5 // pred_region
      %s144 = ssub.s32 %s9, 1
      %s145 = smul.u32 4, %s14
      %p146 = scmp.lt.s32.totalorder %s145, 7
      %s147 = scalar_select %p146, %s145, 7
      %s148 = smul.addr %s147, 5
      %s149 = smul.addr %s148, 4
      %s150 = scalar_lea.vmem %s0, %s149
      %p151 = pneg %p35
      %p152 = pneg %p32
      %p153 = pneg %p56
      %p154 = pneg %p53
      %p155 = pneg %p77
      %p156 = pneg %p74
      %p157 = pneg %p103
      %p158 = pneg %p100
      %p159 = scmp.lt.s32.totalorder %s14, 1
      %s160 = scalar_select %p159, %s14, 1
      %s161 = smul.addr %s160, 4
      %s162 = smul.addr %s161, 2
      %s163 = scalar_lea.vmem %s3, %s162
      %s164 = smul.u32 4, %s14
      %p165 = scmp.lt.s32.totalorder %s164, 7
      %s166 = scalar_select %p165, %s164, 7
      %s167 = smul.addr %s166, 5
      %s168 = smul.addr %s167, 4
      %s169 = scalar_lea.vmem %s0, %s168
      %s170 = smul.u32 4, %s14
      %p171 = scmp.lt.s32.totalorder %s14, 1
      %s172 = scalar_select %p171, %s14, 1
      %s173 = smul.addr %s172, 4
      %s174 = smul.addr %s173, 2
      %s175 = scalar_lea.vmem %s3, %s174
      %v177 = vld [vmem:[%s169] sm:$0x3]
      %v178 = vld [vmem:[%s169 + $0x4] sm:$0x3]
      %v179 = vld [vmem:[%s169 + $0x8] sm:$0x3]
      %v180 = vld [vmem:[%s169 + $0xc] sm:$0x3]
      %v181 = vld [vmem:[%s1] sm:$0x3]
      %s182 = scalar_lea.vmem %s169, 20
      %v183 = vld [vmem:[%s182] sm:$0x3]
      %v184 = vld [vmem:[%s182 + $0x4] sm:$0x3]
      %v185 = vld [vmem:[%s182 + $0x8] sm:$0x3]
      %v186 = vld [vmem:[%s182 + $0xc] sm:$0x3]
      %s187 = scalar_lea.vmem %s1, 2
      %v188 = vld [vmem:[%s187] sm:$0x3]
      %190 = vst [vmem:[#allocation1] ss:$4 sm:$0xff] %v183
      %s192 = scalar_lea.vmem [#allocation1], 1
      %193 = vst [vmem:[%s192] ss:$4 sm:$0xff] %v184
      %s195 = scalar_lea.vmem [#allocation1], 2
      %196 = vst [vmem:[%s195] ss:$4 sm:$0xff] %v185
      %s198 = scalar_lea.vmem [#allocation1], 3
      %199 = vst [vmem:[%s198] ss:$4 sm:$0xff] %v186
      %v200 = vld.sshfl [vmem:[#allocation1] sm:$0xff pattern:$0x73625140]
      %vm201 = vcmask 23552
      %v202 = vsel %vm201, %v200, 0
      %vm204 = vcmask 1040384
      %vm205 = vcmask 1041408
      %v206 = vsel %vm204, 4294967295, 65535
      %v207 = vsel %vm205, %v206, 0
      %v209 = vand.u32 %v188, %v207
      %211 = vmatpush.bf16.msra.mxu0 0
      %212 = vmatpush.bf16.msra.mxu0 0
      %213 = vmatpush.bf16.msra.mxu0 0
      %214 = vmatpush.bf16.msra.mxu0 0
      %215 = vmatpush.bf16.msra.mxu0 0
      %216 = vmatpush.bf16.msra.mxu0 0
      %217 = vmatpush.bf16.msra.mxu0 0
      %218 = vmatpush.bf16.msra.mxu0 %v209
      %219 = vmatmul.bf16.gmra.mxu0 %v202
      %v220 = vpop.f32.mrf.mxu0
      %v221 = vadd.f32 0.0, %v220
      %v222 = vpop.f32.mrf.mxu0
      %v223 = vadd.f32 0.0, %v222
      %224 = vdwg.mxu0
      %226 = vst [vmem:[#allocation1] ss:$4 sm:$0xff] %v177
      %s228 = scalar_lea.vmem [#allocation1], 1
      %229 = vst [vmem:[%s228] ss:$4 sm:$0xff] %v178
      %s231 = scalar_lea.vmem [#allocation1], 2
      %232 = vst [vmem:[%s231] ss:$4 sm:$0xff] %v179
      %s234 = scalar_lea.vmem [#allocation1], 3
      %235 = vst [vmem:[%s234] ss:$4 sm:$0xff] %v180
      %v236 = vld.sshfl [vmem:[#allocation1] sm:$0xff pattern:$0x73625140]
      %v237 = vsel %vm201, %v236, 0
      %v240 = vand.u32 %v181, %v207
      %242 = vmatpush.bf16.msra.mxu0 0
      %243 = vmatpush.bf16.msra.mxu0 0
      %244 = vmatpush.bf16.msra.mxu0 0
      %245 = vmatpush.bf16.msra.mxu0 0
      %246 = vmatpush.bf16.msra.mxu0 0
      %247 = vmatpush.bf16.msra.mxu0 0
      %248 = vmatpush.bf16.msra.mxu0 0
      %249 = vmatpush.bf16.msra.mxu0 %v240
      %250 = vmatmul.bf16.gmra.mxu0 %v237
      %v251 = vpop.f32.mrf.mxu0
      %v252 = vadd.f32 %v221, %v251
      %v253 = vpop.f32.mrf.mxu0
      %v254 = vadd.f32 %v223, %v253
      %255 = vdwg.mxu0
      %v258 = vrot.slane %v252, 4
      %v259 = vrot.slane %v254, 4
      %v262 = vld [vmem:[%s169] sm:$0x7]
      %v263 = vld [vmem:[%s169 + $0x4] sm:$0x7]
      %v264 = vld [vmem:[%s169 + $0x8] sm:$0x7]
      %v265 = vld [vmem:[%s169 + $0xc] sm:$0x7]
      %s266 = scalar_lea.vmem %s1, 4
      %v267 = vld [vmem:[%s266] sm:$0x3]
      %v272 = vrot.slane %v262, 2
      %v273 = vrot.slane %v263, 2
      %v274 = vrot.slane %v264, 2
      %v275 = vrot.slane %v265, 2
      %v278 = vsel %vm205, %v262, %v272
      %vm279 = vcmask 1043458
      %v280 = vsel %vm279, %v262, %v272
      %v282 = vrot.slane %v280, 2
      %v285 = vsel %vm205, %v263, %v273
      %v286 = vsel %vm279, %v263, %v273
      %v288 = vrot.slane %v286, 2
      %v291 = vsel %vm205, %v264, %v274
      %v292 = vsel %vm279, %v264, %v274
      %v294 = vrot.slane %v292, 2
      %v297 = vsel %vm205, %v265, %v275
      %v298 = vsel %vm279, %v265, %v275
      %v300 = vrot.slane %v298, 2
      %vm301 = vsmask.f32 1280
      %vm302 = vsmask.f32 3336
      %vm303 = vmor %vm301, %vm302
      %vm304 = vsmask.f32 5392
      %vm305 = vmor %vm303, %vm304
      %vm306 = vsmask.f32 7448
      %vm307 = vmor %vm305, %vm306
      %v308 = vshrl.u32 %v278, 16
      %v310 = vrot.slane %v308, 6
      %v311 = vshll.u32 %v278, 16
      %v313 = vrot.slane %v311, 7
      %v314 = vor.u32 %v310, %v313
      %v315 = vrot.slane %v314, 2
      %v317 = vshll.u32 %v282, 16
      %v319 = vrot.slane %v317, 7
      %v320 = vsel %vm307, %v315, %v319
      %v321 = vshrl.u32 %v285, 16
      %v323 = vrot.slane %v321, 6
      %v324 = vshll.u32 %v285, 16
      %v326 = vrot.slane %v324, 7
      %v327 = vor.u32 %v323, %v326
      %v328 = vrot.slane %v327, 2
      %v330 = vshll.u32 %v288, 16
      %v332 = vrot.slane %v330, 7
      %v333 = vsel %vm307, %v328, %v332
      %v334 = vshrl.u32 %v291, 16
      %v336 = vrot.slane %v334, 6
      %v337 = vshll.u32 %v291, 16
      %v339 = vrot.slane %v337, 7
      %v340 = vor.u32 %v336, %v339
      %v341 = vrot.slane %v340, 2
      %v343 = vshll.u32 %v294, 16
      %v345 = vrot.slane %v343, 7
      %v346 = vsel %vm307, %v341, %v345
      %v347 = vshrl.u32 %v297, 16
      %v349 = vrot.slane %v347, 6
      %v350 = vshll.u32 %v297, 16
      %v352 = vrot.slane %v350, 7
      %v353 = vor.u32 %v349, %v352
      %v354 = vrot.slane %v353, 2
      %v356 = vshll.u32 %v300, 16
      %v358 = vrot.slane %v356, 7
      %v359 = vsel %vm307, %v354, %v358
      %361 = vst [vmem:[#allocation1] ss:$4 sm:$0xff] %v320
      %s363 = scalar_lea.vmem [#allocation1], 1
      %364 = vst [vmem:[%s363] ss:$4 sm:$0xff] %v333
      %s366 = scalar_lea.vmem [#allocation1], 2
      %367 = vst [vmem:[%s366] ss:$4 sm:$0xff] %v346
      %s369 = scalar_lea.vmem [#allocation1], 3
      %370 = vst [vmem:[%s369] ss:$4 sm:$0xff] %v359
      %v371 = vld.sshfl [vmem:[#allocation1] sm:$0xff pattern:$0x73625140]
      %v372 = vsel %vm201, %v371, 0
      %v375 = vand.u32 %v267, %v207
      %377 = vmatpush.bf16.msra.mxu0 0
      %378 = vmatpush.bf16.msra.mxu0 0
      %379 = vmatpush.bf16.msra.mxu0 0
      %380 = vmatpush.bf16.msra.mxu0 0
      %381 = vmatpush.bf16.msra.mxu0 0
      %382 = vmatpush.bf16.msra.mxu0 0
      %383 = vmatpush.bf16.msra.mxu0 0
      %384 = vmatpush.bf16.msra.mxu0 %v375
      %385 = vmatmul.bf16.gmra.mxu0 %v372
      %v386 = vpop.f32.mrf.mxu0
      %v387 = vadd.f32 0.0, %v386
      %v388 = vpop.f32.mrf.mxu0
      %v389 = vadd.f32 0.0, %v388
      %390 = vdwg.mxu0
      %v393 = vrot.slane %v387, 4
      %v394 = vrot.slane %v389, 4
      %v397 = vadd.f32 %v252, %v387
      %v398 = vadd.f32 %v258, %v393
      %v399 = vadd.f32 %v254, %v389
      %v400 = vadd.f32 %v259, %v394
      %s401 = scalar_lea.vmem %s169, 40
      %v402 = vld [vmem:[%s401] sm:$0x3]
      %v403 = vld [vmem:[%s401 + $0x4] sm:$0x3]
      %v404 = vld [vmem:[%s401 + $0x8] sm:$0x3]
      %v405 = vld [vmem:[%s401 + $0xc] sm:$0x3]
      %s406 = scalar_lea.vmem %s1, 6
      %v407 = vld [vmem:[%s406] sm:$0x3]
      %409 = vst [vmem:[#allocation1] ss:$4 sm:$0xff] %v402
      %s411 = scalar_lea.vmem [#allocation1], 1
      %412 = vst [vmem:[%s411] ss:$4 sm:$0xff] %v403
      %s414 = scalar_lea.vmem [#allocation1], 2
      %415 = vst [vmem:[%s414] ss:$4 sm:$0xff] %v404
      %s417 = scalar_lea.vmem [#allocation1], 3
      %418 = vst [vmem:[%s417] ss:$4 sm:$0xff] %v405
      %v419 = vld.sshfl [vmem:[#allocation1] sm:$0xff pattern:$0x73625140]
      %v420 = vsel %vm201, %v419, 0
      %v423 = vand.u32 %v407, %v207
      %425 = vmatpush.bf16.msra.mxu0 0
      %426 = vmatpush.bf16.msra.mxu0 0
      %427 = vmatpush.bf16.msra.mxu0 0
      %428 = vmatpush.bf16.msra.mxu0 0
      %429 = vmatpush.bf16.msra.mxu0 0
      %430 = vmatpush.bf16.msra.mxu0 0
      %431 = vmatpush.bf16.msra.mxu0 0
      %432 = vmatpush.bf16.msra.mxu0 %v423
      %433 = vmatmul.bf16.gmra.mxu0 %v420
      %v434 = vpop.f32.mrf.mxu0
      %v435 = vadd.f32 0.0, %v434
      %v436 = vpop.f32.mrf.mxu0
      %v437 = vadd.f32 0.0, %v436
      %438 = vdwg.mxu0
      %v441 = vrot.slane %v435, 4
      %v442 = vrot.slane %v437, 4
      %v445 = vadd.f32 %v397, %v435
      %v446 = vadd.f32 %v398, %v441
      %v447 = vadd.f32 %v399, %v437
      %v448 = vadd.f32 %v400, %v442
      %s449 = scalar_lea.vmem %s169, 60
      %v450 = vld [vmem:[%s449] sm:$0x3]
      %v451 = vld [vmem:[%s449 + $0x4] sm:$0x3]
      %v452 = vld [vmem:[%s449 + $0x8] sm:$0x3]
      %v453 = vld [vmem:[%s449 + $0xc] sm:$0x3]
      %s454 = scalar_lea.vmem %s1, 8
      %v455 = vld [vmem:[%s454] sm:$0x3]
      %457 = vst [vmem:[#allocation1] ss:$4 sm:$0xff] %v450
      %s459 = scalar_lea.vmem [#allocation1], 1
      %460 = vst [vmem:[%s459] ss:$4 sm:$0xff] %v451
      %s462 = scalar_lea.vmem [#allocation1], 2
      %463 = vst [vmem:[%s462] ss:$4 sm:$0xff] %v452
      %s465 = scalar_lea.vmem [#allocation1], 3
      %466 = vst [vmem:[%s465] ss:$4 sm:$0xff] %v453
      %v467 = vld.sshfl [vmem:[#allocation1] sm:$0xff pattern:$0x73625140]
      %v468 = vsel %vm201, %v467, 0
      %v471 = vand.u32 %v455, %v207
      %473 = vmatpush.bf16.msra.mxu0 0
      %474 = vmatpush.bf16.msra.mxu0 0
      %475 = vmatpush.bf16.msra.mxu0 0
      %476 = vmatpush.bf16.msra.mxu0 0
      %477 = vmatpush.bf16.msra.mxu0 0
      %478 = vmatpush.bf16.msra.mxu0 0
      %479 = vmatpush.bf16.msra.mxu0 0
      %480 = vmatpush.bf16.msra.mxu0 %v471
      %481 = vmatmul.bf16.gmra.mxu0 %v468
      %v482 = vpop.f32.mrf.mxu0
      %v483 = vadd.f32 0.0, %v482
      %v484 = vpop.f32.mrf.mxu0
      %v485 = vadd.f32 0.0, %v484
      %486 = vdwg.mxu0
      %v489 = vrot.slane %v483, 4
      %v490 = vrot.slane %v485, 4
      %v493 = vadd.f32 %v445, %v483
      %v494 = vadd.f32 %v446, %v489
      %v495 = vadd.f32 %v447, %v485
      %v496 = vadd.f32 %v448, %v490
      %v497 = vld [vmem:[%s401] sm:$0x7]
      %v498 = vld [vmem:[%s401 + $0x4] sm:$0x7]
      %v499 = vld [vmem:[%s401 + $0x8] sm:$0x7]
      %v500 = vld [vmem:[%s401 + $0xc] sm:$0x7]
      %s501 = scalar_lea.vmem %s1, 10
      %v502 = vld [vmem:[%s501] sm:$0x3]
      %v507 = vrot.slane %v497, 2
      %v508 = vrot.slane %v498, 2
      %v509 = vrot.slane %v499, 2
      %v510 = vrot.slane %v500, 2
      %v513 = vsel %vm205, %v497, %v507
      %v514 = vsel %vm279, %v497, %v507
      %v516 = vrot.slane %v514, 2
      %v519 = vsel %vm205, %v498, %v508
      %v520 = vsel %vm279, %v498, %v508
      %v522 = vrot.slane %v520, 2
      %v525 = vsel %vm205, %v499, %v509
      %v526 = vsel %vm279, %v499, %v509
      %v528 = vrot.slane %v526, 2
      %v531 = vsel %vm205, %v500, %v510
      %v532 = vsel %vm279, %v500, %v510
      %v534 = vrot.slane %v532, 2
      %v535 = vshrl.u32 %v513, 16
      %v537 = vrot.slane %v535, 6
      %v538 = vshll.u32 %v513, 16
      %v540 = vrot.slane %v538, 7
      %v541 = vor.u32 %v537, %v540
      %v542 = vrot.slane %v541, 2
      %v544 = vshll.u32 %v516, 16
      %v546 = vrot.slane %v544, 7
      %v547 = vsel %vm307, %v542, %v546
      %v548 = vshrl.u32 %v519, 16
      %v550 = vrot.slane %v548, 6
      %v551 = vshll.u32 %v519, 16
      %v553 = vrot.slane %v551, 7
      %v554 = vor.u32 %v550, %v553
      %v555 = vrot.slane %v554, 2
      %v557 = vshll.u32 %v522, 16
      %v559 = vrot.slane %v557, 7
      %v560 = vsel %vm307, %v555, %v559
      %v561 = vshrl.u32 %v525, 16
      %v563 = vrot.slane %v561, 6
      %v564 = vshll.u32 %v525, 16
      %v566 = vrot.slane %v564, 7
      %v567 = vor.u32 %v563, %v566
      %v568 = vrot.slane %v567, 2
      %v570 = vshll.u32 %v528, 16
      %v572 = vrot.slane %v570, 7
      %v573 = vsel %vm307, %v568, %v572
      %v574 = vshrl.u32 %v531, 16
      %v576 = vrot.slane %v574, 6
      %v577 = vshll.u32 %v531, 16
      %v579 = vrot.slane %v577, 7
      %v580 = vor.u32 %v576, %v579
      %v581 = vrot.slane %v580, 2
      %v583 = vshll.u32 %v534, 16
      %v585 = vrot.slane %v583, 7
      %v586 = vsel %vm307, %v581, %v585
      %588 = vst [vmem:[#allocation1] ss:$4 sm:$0xff] %v547
      %s590 = scalar_lea.vmem [#allocation1], 1
      %591 = vst [vmem:[%s590] ss:$4 sm:$0xff] %v560
      %s593 = scalar_lea.vmem [#allocation1], 2
      %594 = vst [vmem:[%s593] ss:$4 sm:$0xff] %v573
      %s596 = scalar_lea.vmem [#allocation1], 3
      %597 = vst [vmem:[%s596] ss:$4 sm:$0xff] %v586
      %v598 = vld.sshfl [vmem:[#allocation1] sm:$0xff pattern:$0x73625140]
      %v599 = vsel %vm201, %v598, 0
      %v602 = vand.u32 %v502, %v207
      %604 = vmatpush.bf16.msra.mxu0 0
      %605 = vmatpush.bf16.msra.mxu0 0
      %606 = vmatpush.bf16.msra.mxu0 0
      %607 = vmatpush.bf16.msra.mxu0 0
      %608 = vmatpush.bf16.msra.mxu0 0
      %609 = vmatpush.bf16.msra.mxu0 0
      %610 = vmatpush.bf16.msra.mxu0 0
      %611 = vmatpush.bf16.msra.mxu0 %v602
      %612 = vmatmul.bf16.gmra.mxu0 %v599
      %v613 = vpop.f32.mrf.mxu0
      %v614 = vadd.f32 0.0, %v613
      %v615 = vpop.f32.mrf.mxu0
      %v616 = vadd.f32 0.0, %v615
      %617 = vdwg.mxu0
      %v620 = vrot.slane %v614, 4
      %v621 = vrot.slane %v616, 4
      %v624 = vadd.f32 %v493, %v614
      %v625 = vadd.f32 %v494, %v620
      %v626 = vadd.f32 %v495, %v616
      %v627 = vadd.f32 %v496, %v621
      %s628 = scalar_lea.vmem %s169, 4
      %v629 = vld [vmem:[%s628] sm:$0x3]
      %v630 = vld [vmem:[%s628 + $0x4] sm:$0x3]
      %v631 = vld [vmem:[%s628 + $0x8] sm:$0x3]
      %v632 = vld [vmem:[%s628 + $0xc] sm:$0x3]
      %s633 = scalar_lea.vmem %s1, 12
      %v634 = vld [vmem:[%s633] sm:$0x3]
      %636 = vst [vmem:[#allocation1] ss:$4 sm:$0xff] %v629
      %s638 = scalar_lea.vmem [#allocation1], 1
      %639 = vst [vmem:[%s638] ss:$4 sm:$0xff] %v630
      %s641 = scalar_lea.vmem [#allocation1], 2
      %642 = vst [vmem:[%s641] ss:$4 sm:$0xff] %v631
      %s644 = scalar_lea.vmem [#allocation1], 3
      %645 = vst [vmem:[%s644] ss:$4 sm:$0xff] %v632
      %v646 = vld.sshfl [vmem:[#allocation1] sm:$0xff pattern:$0x73625140]
      %v647 = vsel %vm201, %v646, 0
      %v650 = vand.u32 %v634, %v207
      %652 = vmatpush.bf16.msra.mxu0 0
      %653 = vmatpush.bf16.msra.mxu0 0
      %654 = vmatpush.bf16.msra.mxu0 0
      %655 = vmatpush.bf16.msra.mxu0 0
      %656 = vmatpush.bf16.msra.mxu0 0
      %657 = vmatpush.bf16.msra.mxu0 0
      %658 = vmatpush.bf16.msra.mxu0 0
      %659 = vmatpush.bf16.msra.mxu0 %v650
      %660 = vmatmul.bf16.gmra.mxu0 %v647
      %v661 = vpop.f32.mrf.mxu0
      %v662 = vadd.f32 0.0, %v661
      %v663 = vpop.f32.mrf.mxu0
      %v664 = vadd.f32 0.0, %v663
      %665 = vdwg.mxu0
      %v668 = vrot.slane %v662, 4
      %v669 = vrot.slane %v664, 4
      %v672 = vadd.f32 %v624, %v662
      %v673 = vadd.f32 %v625, %v668
      %v674 = vadd.f32 %v626, %v664
      %v675 = vadd.f32 %v627, %v669
      %s676 = scalar_lea.vmem %s169, 24
      %v677 = vld [vmem:[%s676] sm:$0x3]
      %v678 = vld [vmem:[%s676 + $0x4] sm:$0x3]
      %v679 = vld [vmem:[%s676 + $0x8] sm:$0x3]
      %v680 = vld [vmem:[%s676 + $0xc] sm:$0x3]
      %s681 = scalar_lea.vmem %s1, 14
      %v682 = vld [vmem:[%s681] sm:$0x3]
      %684 = vst [vmem:[#allocation1] ss:$4 sm:$0xff] %v677
      %s686 = scalar_lea.vmem [#allocation1], 1
      %687 = vst [vmem:[%s686] ss:$4 sm:$0xff] %v678
      %s689 = scalar_lea.vmem [#allocation1], 2
      %690 = vst [vmem:[%s689] ss:$4 sm:$0xff] %v679
      %s692 = scalar_lea.vmem [#allocation1], 3
      %693 = vst [vmem:[%s692] ss:$4 sm:$0xff] %v680
      %v694 = vld.sshfl [vmem:[#allocation1] sm:$0xff pattern:$0x73625140]
      %v695 = vsel %vm201, %v694, 0
      %v698 = vand.u32 %v682, %v207
      %700 = vmatpush.bf16.msra.mxu0 0
      %701 = vmatpush.bf16.msra.mxu0 0
      %702 = vmatpush.bf16.msra.mxu0 0
      %703 = vmatpush.bf16.msra.mxu0 0
      %704 = vmatpush.bf16.msra.mxu0 0
      %705 = vmatpush.bf16.msra.mxu0 0
      %706 = vmatpush.bf16.msra.mxu0 0
      %707 = vmatpush.bf16.msra.mxu0 %v698
      %708 = vmatmul.bf16.gmra.mxu0 %v695
      %v709 = vpop.f32.mrf.mxu0
      %v710 = vadd.f32 0.0, %v709
      %v711 = vpop.f32.mrf.mxu0
      %v712 = vadd.f32 0.0, %v711
      %713 = vdwg.mxu0
      %v716 = vrot.slane %v710, 4
      %v717 = vrot.slane %v712, 4
      %v720 = vadd.f32 %v672, %v710
      %v721 = vadd.f32 %v673, %v716
      %v722 = vadd.f32 %v674, %v712
      %v723 = vadd.f32 %v675, %v717
      %v724 = vld [vmem:[%s628] sm:$0x7]
      %v725 = vld [vmem:[%s628 + $0x4] sm:$0x7]
      %v726 = vld [vmem:[%s628 + $0x8] sm:$0x7]
      %v727 = vld [vmem:[%s628 + $0xc] sm:$0x7]
      %s728 = scalar_lea.vmem %s1, 16
      %v729 = vld [vmem:[%s728] sm:$0x3]
      %v734 = vrot.slane %v724, 2
      %v735 = vrot.slane %v725, 2
      %v736 = vrot.slane %v726, 2
      %v737 = vrot.slane %v727, 2
      %v740 = vsel %vm205, %v724, %v734
      %v741 = vsel %vm279, %v724, %v734
      %v743 = vrot.slane %v741, 2
      %v746 = vsel %vm205, %v725, %v735
      %v747 = vsel %vm279, %v725, %v735
      %v749 = vrot.slane %v747, 2
      %v752 = vsel %vm205, %v726, %v736
      %v753 = vsel %vm279, %v726, %v736
      %v755 = vrot.slane %v753, 2
      %v758 = vsel %vm205, %v727, %v737
      %v759 = vsel %vm279, %v727, %v737
      %v761 = vrot.slane %v759, 2
      %v762 = vshrl.u32 %v740, 16
      %v764 = vrot.slane %v762, 6
      %v765 = vshll.u32 %v740, 16
      %v767 = vrot.slane %v765, 7
      %v768 = vor.u32 %v764, %v767
      %v769 = vrot.slane %v768, 2
      %v771 = vshll.u32 %v743, 16
      %v773 = vrot.slane %v771, 7
      %v774 = vsel %vm307, %v769, %v773
      %v775 = vshrl.u32 %v746, 16
      %v777 = vrot.slane %v775, 6
      %v778 = vshll.u32 %v746, 16
      %v780 = vrot.slane %v778, 7
      %v781 = vor.u32 %v777, %v780
      %v782 = vrot.slane %v781, 2
      %v784 = vshll.u32 %v749, 16
      %v786 = vrot.slane %v784, 7
      %v787 = vsel %vm307, %v782, %v786
      %v788 = vshrl.u32 %v752, 16
      %v790 = vrot.slane %v788, 6
      %v791 = vshll.u32 %v752, 16
      %v793 = vrot.slane %v791, 7
      %v794 = vor.u32 %v790, %v793
      %v795 = vrot.slane %v794, 2
      %v797 = vshll.u32 %v755, 16
      %v799 = vrot.slane %v797, 7
      %v800 = vsel %vm307, %v795, %v799
      %v801 = vshrl.u32 %v758, 16
      %v803 = vrot.slane %v801, 6
      %v804 = vshll.u32 %v758, 16
      %v806 = vrot.slane %v804, 7
      %v807 = vor.u32 %v803, %v806
      %v808 = vrot.slane %v807, 2
      %v810 = vshll.u32 %v761, 16
      %v812 = vrot.slane %v810, 7
      %v813 = vsel %vm307, %v808, %v812
      %815 = vst [vmem:[#allocation1] ss:$4 sm:$0xff] %v774
      %s817 = scalar_lea.vmem [#allocation1], 1
      %818 = vst [vmem:[%s817] ss:$4 sm:$0xff] %v787
      %s820 = scalar_lea.vmem [#allocation1], 2
      %821 = vst [vmem:[%s820] ss:$4 sm:$0xff] %v800
      %s823 = scalar_lea.vmem [#allocation1], 3
      %824 = vst [vmem:[%s823] ss:$4 sm:$0xff] %v813
      %v825 = vld.sshfl [vmem:[#allocation1] sm:$0xff pattern:$0x73625140]
      %v826 = vsel %vm201, %v825, 0
      %v829 = vand.u32 %v729, %v207
      %831 = vmatpush.bf16.msra.mxu0 0
      %832 = vmatpush.bf16.msra.mxu0 0
      %833 = vmatpush.bf16.msra.mxu0 0
      %834 = vmatpush.bf16.msra.mxu0 0
      %835 = vmatpush.bf16.msra.mxu0 0
      %836 = vmatpush.bf16.msra.mxu0 0
      %837 = vmatpush.bf16.msra.mxu0 0
      %838 = vmatpush.bf16.msra.mxu0 %v829
      %839 = vmatmul.bf16.gmra.mxu0 %v826
      %v840 = vpop.f32.mrf.mxu0
      %v841 = vadd.f32 0.0, %v840
      %v842 = vpop.f32.mrf.mxu0
      %v843 = vadd.f32 0.0, %v842
      %844 = vdwg.mxu0
      %v847 = vrot.slane %v841, 4
      %v848 = vrot.slane %v843, 4
      %v851 = vadd.f32 %v720, %v841
      %v852 = vadd.f32 %v721, %v847
      %v853 = vadd.f32 %v722, %v843
      %v854 = vadd.f32 %v723, %v848
      %v855 = vld [vmem:[%s2] sm:$0x1]
      %v857 = vperm.slane %v855, 0
      %v859 = vadd.f32 %v851, %v857
      %v860 = vadd.f32 %v852, %v857
      %v861 = vadd.f32 %v853, %v857
      %v862 = vadd.f32 %v854, %v857
      %v863 = vmax.f32 %v859, 0.0
      %v864 = vmax.f32 %v860, 0.0
      %v865 = vmax.f32 %v861, 0.0
      %v866 = vmax.f32 %v862, 0.0
      %v867 = vpack.c.bf16 %v863, %v863
      %v868 = vpack.c.bf16 %v864, %v864
      %v869 = vpack.c.bf16 %v865, %v865
      %v870 = vpack.c.bf16 %v866, %v866
      %vm871 = vcmask 58368
      %872 = vst.msk [vmem:[%s175] sm:$0x3] %vm871, %v867
      %873 = vst.msk [vmem:[%s175 + $0x2] sm:$0x3] %vm871, %v868
      %874 = vst.msk [vmem:[%s175 + $0x4] sm:$0x3] %vm871, %v869
      %875 = vst.msk [vmem:[%s175 + $0x6] sm:$0x3] %vm871, %v870
      %p876 = scmp.lt.s32.totalorder %s14, 1
      %s877 = scalar_select %p876, %s14, 1
      %s878 = smul.addr %s877, 4
      %s879 = smul.addr %s878, 2
      %s880 = scalar_lea.vmem %s3, %s879
      // Predicated region
      $region33: #{encoder_forward.14} parent=31 // pred_check
        %p881 = pneg %p100
      $region34: #{encoder_forward.14} parent=31 // pred_check_branch
        %883 = sbr.rel (%p881) target = $region36
      $region35: #{encoder_forward.14} parent=31 // pred_region
        _
      $region36: #{encoder_forward.14} parent=31 // pred_fallthru
        _
    $region32: #{encoder_forward.14} parent=5 // pred_fallthru
      _
    %p884 = scmp.le.s32.totalorder 2, %s9
    // Predicated region
    $region37: #{encoder_forward.14} parent=5 // pred_check
      %p885 = pneg %p884
    $region38: #{encoder_forward.14} parent=5 // pred_check_branch
      %887 = sbr.rel (%p885) target = $region40
    $region39: #{encoder_forward.14} parent=5 // pred_region
      %s888 = ssub.s32 %s9, 2
      // Predicated region
      $region41: #{encoder_forward.14} parent=39 // pred_check
        %p889 = pneg %p106
      $region42: #{encoder_forward.14} parent=39 // pred_check_branch
        %891 = sbr.rel (%p889) target = $region44
      $region43: #{encoder_forward.14} parent=39 // pred_region
        %p892 = scmp.lt.s32.totalorder %s15, 1
        %s893 = scalar_select %p892, %s15, 1
        %s894 = smul.addr %s893, 4
        %s895 = smul.addr %s894, 2
        %s896 = scalar_lea.vmem %s3, %s895
      $region44: #{encoder_forward.14} parent=39 // pred_fallthru
        _
    $region40: #{encoder_forward.14} parent=5 // pred_fallthru
      _
  $region6: #{encoder_forward.14} parent=0 // loop_footer
    %s13 = sadd.s32 1, %s9
  $region7: #{encoder_forward.14} parent=0 // loop_footer_branch
    %8 = sbr.rel target = $region3
  $region8: #{encoder_forward.14} parent=0 // loop_exit
    _

</llo_original>
